<compile_context>
chip_gen: v7x
topology: tpu7x:2x2x1
jax: 0.10.0
libtpu: 0.0.40
codegen_flags: <defaults>
</compile_context>

<pallas_src>
import functools

import jax
import jax.numpy as jnp
from jax.experimental import pallas as pl
from jax.experimental.pallas import tpu as pltpu

EPS = 1e-5
LANES = 128


# ------------------------------ fused kernel -------------------------------------


def _basic_block_kernel(x_ref, w1_ref, w2_ref, bn_ref, o_ref,
                        out1p_ref, stats_ref, *, H, W, Cp, m_total):
    """Fused BasicBlock.  Grid = (3 phases, N images), phase outermost.

    x_ref     : (1, H+2, W+2, Cp) f32   spatially + channel padded image
    w1_ref    : (9, Cp, Cp)       bf16  conv1 taps, t = ky*3 + kx
    w2_ref    : (9, Cp, Cp)       bf16  conv2 taps
    bn_ref    : (4, Cp)           f32   rows: gamma1, beta1, gamma2, beta2
    o_ref     : (1, H, W, Cp)     f32   output block (lane-dense)
    out1p_ref : (H+2, W+2, Cp)    f32   VMEM scratch: zero-haloed conv1 act.
    stats_ref : (4, Cp)           f32   rows: sum1, sumsq1, sum2, sumsq2
    """
    p = pl.program_id(0)
    n = pl.program_id(1)
    HW = H * W

    @pl.when(jnp.logical_and(p == 0, n == 0))
    def _init():
        stats_ref[...] = jnp.zeros_like(stats_ref)
        out1p_ref[...] = jnp.zeros_like(out1p_ref)   # zero halo, written once

    x_img = x_ref[0]                                 # (H+2, W+2, Cp) f32
    x_bf = x_img.astype(jnp.bfloat16)                # MXU feed

    def conv3x3(src_bf, w_ref):
        """3x3 'SAME' conv as 9 accumulated matmuls of shifted views."""
        acc = jnp.zeros((HW, Cp), jnp.float32)
        for t in range(9):
            ky, kx = t // 3, t % 3
            tap = src_bf[ky:ky + H, kx:kx + W, :].reshape(HW, Cp)
            acc = acc + jnp.dot(tap, w_ref[t],
                                preferred_element_type=jnp.float32)
        return acc                                   # (HW, Cp) f32

    def col_sums(y):
        """Per-channel sum & sum-of-squares via ones-matmul (MXU, not XLU)."""
        ones = jnp.ones((8, HW), jnp.float32)
        s = jnp.dot(ones, y, preferred_element_type=jnp.float32)[0:1, :]
        sq = jnp.dot(ones, y * y, preferred_element_type=jnp.float32)[0:1, :]
        return s, sq

    def scale_bias(s_row, sq_row, gamma, beta):
        """Folded BN affine: y_bn = y * scale + bias (batch stats, biased var)."""
        mean = s_row * (1.0 / m_total)
        var = jnp.maximum(sq_row * (1.0 / m_total) - mean * mean, 0.0)
        scale = gamma * jax.lax.rsqrt(var + EPS)
        return scale, beta - mean * scale

    y1 = conv3x3(x_bf, w1_ref)                       # needed in every phase

    def y2_from_out1():
        scale1, bias1 = scale_bias(stats_ref[0:1, :], stats_ref[1:2, :],
                                   bn_ref[0:1, :], bn_ref[1:2, :])
        out1 = jnp.maximum(y1 * scale1 + bias1, 0.0)            # (HW, Cp) f32
        out1p_ref[pl.ds(1, H), pl.ds(1, W), :] = out1.reshape(H, W, Cp)
        return conv3x3(out1p_ref[...].astype(jnp.bfloat16), w2_ref)

    @pl.when(p == 0)                                 # conv1 statistics pass
    def _phase0():
        s, sq = col_sums(y1)
        stats_ref[0:1, :] += s
        stats_ref[1:2, :] += sq

    @pl.when(p == 1)                                 # conv2 statistics pass
    def _phase1():
        s, sq = col_sums(y2_from_out1())
        stats_ref[2:3, :] += s
        stats_ref[3:4, :] += sq

    @pl.when(p == 2)                                 # apply + store pass
    def _phase2():
        y2 = y2_from_out1()
        scale2, bias2 = scale_bias(stats_ref[2:3, :], stats_ref[3:4, :],
                                   bn_ref[2:3, :], bn_ref[3:4, :])
        residual = x_img[1:H + 1, 1:W + 1, :].reshape(HW, Cp)   # resident x, f32
        out = jnp.maximum(y2 * scale2 + bias2 + residual, 0.0)
        o_ref[...] = out.reshape(1, H, W, Cp)


# ------------------------------ wrapper -------------------------------------------


def basic_block_pallas(x_nhwc, w1, g1, b1, w2, g2, b2):
    """x_nhwc: [N,H,W,C] f32.  w1, w2: [3,3,Cin,Cout] (HWIO).  gamma/beta: [C]."""
    N, H, W, C = x_nhwc.shape
    Cp = ((C + LANES - 1) // LANES) * LANES          # lane-dense channel padding
    pc = Cp - C

    # Spatial pad (for 'SAME' 3x3) + channel pad.  Kept f32 -> exact residual.
    x_pad = jnp.pad(x_nhwc, ((0, 0), (1, 1), (1, 1), (0, pc)))

    def prep_w(w):
        wp = jnp.pad(w, ((0, 0), (0, 0), (0, pc), (0, pc)))
        return wp.reshape(9, Cp, Cp).astype(jnp.bfloat16)

    w1p, w2p = prep_w(w1), prep_w(w2)
    bn = jnp.stack([jnp.pad(g1, (0, pc)), jnp.pad(b1, (0, pc)),
                    jnp.pad(g2, (0, pc)), jnp.pad(b2, (0, pc))], axis=0)  # [4,Cp]

    kernel = functools.partial(_basic_block_kernel, H=H, W=W, Cp=Cp,
                               m_total=float(N * H * W))

    out_padded = pl.pallas_call(
        kernel,
        out_shape=jax.ShapeDtypeStruct((N, H, W, Cp), jnp.float32),
        grid=(3, N),                                  # (phase, image), phase outer
        in_specs=[
            pl.BlockSpec((1, H + 2, W + 2, Cp), lambda p, n: (n, 0, 0, 0)),
            pl.BlockSpec((9, Cp, Cp), lambda p, n: (0, 0, 0)),
            pl.BlockSpec((9, Cp, Cp), lambda p, n: (0, 0, 0)),
            pl.BlockSpec((4, Cp), lambda p, n: (0, 0)),
        ],
        out_specs=pl.BlockSpec((1, H, W, Cp), lambda p, n: (n, 0, 0, 0)),
        scratch_shapes=[
            pltpu.VMEM((H + 2, W + 2, Cp), jnp.float32),  # zero-haloed out1
            pltpu.VMEM((4, Cp), jnp.float32),             # BN sum / sum-of-squares
        ],
        compiler_params=pltpu.CompilerParams(
            # Both axes carry sequential deps (stat accumulation across images,
            # phases in order) -> "arbitrary".  See megacore TODO at top.
            dimension_semantics=("arbitrary", "arbitrary"),
            vmem_limit_bytes=32 * 1024 * 1024,
        ),
    )(x_pad, w1p, w2p, bn)
    return out_padded[..., :C]                        # drop lane padding


# ------------------------------ pure-JAX reference --------------------------------


def basic_block_ref(x_nhwc, w1, g1, b1, w2, g2, b2):
    def conv(x, w):
        return jax.lax.conv_general_dilated(
            x, w, (1, 1), "SAME", dimension_numbers=("NHWC", "HWIO", "NHWC"))

    def bn(y, g, b):
        mean = y.mean(axis=(0, 1, 2), keepdims=True)
        var = jnp.square(y - mean).mean(axis=(0, 1, 2), keepdims=True)
        return (y - mean) * jax.lax.rsqrt(var + EPS) * g + b

    out = jnp.maximum(bn(conv(x_nhwc, w1), g1, b1), 0.0)
    out = bn(conv(out, w2), g2, b2)
    return jnp.maximum(out + x_nhwc, 0.0)


# ------------------------------ main ----------------------------------------------

if __name__ == "__main__":
    N, C, H, W = 2, 8, 16, 16  # in_planes == planes == 8, stride=1, downsample=None

    key = jax.random.PRNGKey(0)
    kx, kw1, kw2, kg1, kb1, kg2, kb2 = jax.random.split(key, 7)

    x_nchw = jax.random.normal(kx, (N, C, H, W), jnp.float32)        # PyTorch layout
    x_nhwc = jnp.transpose(x_nchw, (0, 2, 3, 1))                     # kernel layout

    w1 = jax.random.normal(kw1, (3, 3, C, C), jnp.float32) * 0.1     # HWIO
    w2 = jax.random.normal(kw2, (3, 3, C, C), jnp.float32) * 0.1
    g1 = 1.0 + 0.1 * jax.random.normal(kg1, (C,), jnp.float32)
    b1 = 0.1 * jax.random.normal(kb1, (C,), jnp.float32)
    g2 = 1.0 + 0.1 * jax.random.normal(kg2, (C,), jnp.float32)
    b2 = 0.1 * jax.random.normal(kb2, (C,), jnp.float32)

    out_nhwc = basic_block_pallas(x_nhwc, w1, g1, b1, w2, g2, b2)
    out_nchw = jnp.transpose(out_nhwc, (0, 3, 1, 2))                 # back to NCHW
    jax.block_until_ready(out_nchw)

    ref_nhwc = basic_block_ref(x_nhwc, w1, g1, b1, w2, g2, b2)
    ref_nchw = jnp.transpose(ref_nhwc, (0, 3, 1, 2))

    assert out_nchw.shape == (N, C, H, W)
    # bf16 MXU inputs (f32 accumulation) -> tolerance loosened vs pure-f32 ref.
    assert jnp.allclose(out_nchw, ref_nchw, atol=5e-2, rtol=5e-2), "mismatch vs reference"

    print("KERNEL_OK")
</pallas_src>

<mosaic_0001>
module attributes {stable_mosaic.version = 11 : i64} {
  func.func @_basic_block_kernel(%arg0: i32, %arg1: i32, %arg2: memref<1x18x18x128xf32, #tpu.memory_space<vmem>>, %arg3: memref<9x128x128xbf16, #tpu.memory_space<vmem>>, %arg4: memref<9x128x128xbf16, #tpu.memory_space<vmem>>, %arg5: memref<4x128xf32, #tpu.memory_space<vmem>>, %arg6: memref<1x16x16x128xf32, #tpu.memory_space<vmem>>, %arg7: memref<18x18x128xf32, #tpu.memory_space<vmem>>, %arg8: memref<4x128xf32, #tpu.memory_space<vmem>>) attributes {dimension_semantics = [#tpu.dimension_semantics<arbitrary>, #tpu.dimension_semantics<arbitrary>], iteration_bounds = array<i64: 3, 2>, scalar_prefetch = 0 : i64, scratch_operands = 2 : i64, tpu.core_type = #tpu.core_type<tc>, window_params = [{transform_indices = @transform_0, window_bounds = array<i64: 1, 18, 18, 128>}, {pipeline_mode = #tpu.pipeline_mode<synchronous>, transform_indices = @transform_1, window_bounds = array<i64: 9, 128, 128>}, {pipeline_mode = #tpu.pipeline_mode<synchronous>, transform_indices = @transform_2, window_bounds = array<i64: 9, 128, 128>}, {pipeline_mode = #tpu.pipeline_mode<synchronous>, transform_indices = @transform_3, window_bounds = array<i64: 4, 128>}, {transform_indices = @transform_4, window_bounds = array<i64: 1, 16, 16, 128>}]} {
    %c0_i32 = arith.constant 0 : i32
    %0 = arith.cmpi eq, %arg0, %c0_i32 : i32
    %c0_i32_0 = arith.constant 0 : i32
    %1 = arith.cmpi eq, %arg1, %c0_i32_0 : i32
    %2 = arith.andi %0, %1 : i1
    %3 = arith.extui %2 : i1 to i32
    %c0_i32_1 = arith.constant 0 : i32
    %4 = arith.cmpi ne, %3, %c0_i32_1 : i32
    scf.if %4 {
      %cst_37 = arith.constant 0.000000e+00 : f32
      %72 = vector.broadcast %cst_37 : f32 to vector<4x128xf32>
      %c0_38 = arith.constant 0 : index
      %c0_39 = arith.constant 0 : index
      %73 = vector.load %arg8[%c0_38, %c0_39] : memref<4x128xf32, #tpu.memory_space<vmem>>, vector<4x128xf32>
      tpu.vector_store %arg8[%c0_38, %c0_39], %72 {strides = array<i32>} : memref<4x128xf32, #tpu.memory_space<vmem>>, vector<4x128xf32>,
      %cst_40 = arith.constant 0.000000e+00 : f32
      %74 = vector.broadcast %cst_40 : f32 to vector<18x18x128xf32>
      %c0_41 = arith.constant 0 : index
      %c0_42 = arith.constant 0 : index
      %c0_43 = arith.constant 0 : index
      %75 = vector.load %arg7[%c0_41, %c0_42, %c0_43] : memref<18x18x128xf32, #tpu.memory_space<vmem>>, vector<18x18x128xf32>
      tpu.vector_store %arg7[%c0_41, %c0_42, %c0_43], %74 {strides = array<i32>} : memref<18x18x128xf32, #tpu.memory_space<vmem>>, vector<18x18x128xf32>,
    } else {
    }
    %c0 = arith.constant 0 : index
    %c0_2 = arith.constant 0 : index
    %c0_3 = arith.constant 0 : index
    %c0_4 = arith.constant 0 : index
    %5 = vector.load %arg2[%c0, %c0_2, %c0_3, %c0_4] : memref<1x18x18x128xf32, #tpu.memory_space<vmem>>, vector<1x18x18x128xf32>
    %6 = vector.shape_cast %5 : vector<1x18x18x128xf32> to vector<18x18x128xf32>
    %7 = arith.truncf %6 : vector<18x18x128xf32> to vector<18x18x128xbf16>
    %cst = arith.constant 0.000000e+00 : f32
    %8 = vector.broadcast %cst : f32 to vector<256x128xf32>
    %9 = vector.extract_strided_slice %7 {offsets = [0, 0, 0], sizes = [16, 16, 128], strides = [1, 1, 1]} : vector<18x18x128xbf16> to vector<16x16x128xbf16>
    %10 = vector.shape_cast %9 : vector<16x16x128xbf16> to vector<256x128xbf16>
    %c0_5 = arith.constant 0 : index
    %c0_6 = arith.constant 0 : index
    %c0_7 = arith.constant 0 : index
    %11 = vector.load %arg3[%c0_5, %c0_6, %c0_7] : memref<9x128x128xbf16, #tpu.memory_space<vmem>>, vector<1x128x128xbf16>
    %12 = vector.shape_cast %11 : vector<1x128x128xbf16> to vector<128x128xbf16>
    %cst_8 = arith.constant dense<0.000000e+00> : vector<256x128xf32>
    %13 = tpu.matmul %10, %12, %cst_8 {dimension_numbers = #tpu.dot_dimension_numbers<[1], [0], [0], [1], [0, 0, 1, 1], [], []>} : vector<256x128xbf16>, vector<128x128xbf16>, vector<256x128xf32> -> vector<256x128xf32>
    %14 = arith.addf %8, %13 : vector<256x128xf32>
    %15 = vector.extract_strided_slice %7 {offsets = [0, 1, 0], sizes = [16, 16, 128], strides = [1, 1, 1]} : vector<18x18x128xbf16> to vector<16x16x128xbf16>
    %16 = vector.shape_cast %15 : vector<16x16x128xbf16> to vector<256x128xbf16>
    %c1 = arith.constant 1 : index
    %c0_9 = arith.constant 0 : index
    %c0_10 = arith.constant 0 : index
    %17 = vector.load %arg3[%c1, %c0_9, %c0_10] : memref<9x128x128xbf16, #tpu.memory_space<vmem>>, vector<1x128x128xbf16>
    %18 = vector.shape_cast %17 : vector<1x128x128xbf16> to vector<128x128xbf16>
    %cst_11 = arith.constant dense<0.000000e+00> : vector<256x128xf32>
    %19 = tpu.matmul %16, %18, %cst_11 {dimension_numbers = #tpu.dot_dimension_numbers<[1], [0], [0], [1], [0, 0, 1, 1], [], []>} : vector<256x128xbf16>, vector<128x128xbf16>, vector<256x128xf32> -> vector<256x128xf32>
    %20 = arith.addf %14, %19 : vector<256x128xf32>
    %21 = vector.extract_strided_slice %7 {offsets = [0, 2, 0], sizes = [16, 16, 128], strides = [1, 1, 1]} : vector<18x18x128xbf16> to vector<16x16x128xbf16>
    %22 = vector.shape_cast %21 : vector<16x16x128xbf16> to vector<256x128xbf16>
    %c2 = arith.constant 2 : index
    %c0_12 = arith.constant 0 : index
    %c0_13 = arith.constant 0 : index
    %23 = vector.load %arg3[%c2, %c0_12, %c0_13] : memref<9x128x128xbf16, #tpu.memory_space<vmem>>, vector<1x128x128xbf16>
    %24 = vector.shape_cast %23 : vector<1x128x128xbf16> to vector<128x128xbf16>
    %cst_14 = arith.constant dense<0.000000e+00> : vector<256x128xf32>
    %25 = tpu.matmul %22, %24, %cst_14 {dimension_numbers = #tpu.dot_dimension_numbers<[1], [0], [0], [1], [0, 0, 1, 1], [], []>} : vector<256x128xbf16>, vector<128x128xbf16>, vector<256x128xf32> -> vector<256x128xf32>
    %26 = arith.addf %20, %25 : vector<256x128xf32>
    %27 = vector.extract_strided_slice %7 {offsets = [1, 0, 0], sizes = [16, 16, 128], strides = [1, 1, 1]} : vector<18x18x128xbf16> to vector<16x16x128xbf16>
    %28 = vector.shape_cast %27 : vector<16x16x128xbf16> to vector<256x128xbf16>
    %c3 = arith.constant 3 : index
    %c0_15 = arith.constant 0 : index
    %c0_16 = arith.constant 0 : index
    %29 = vector.load %arg3[%c3, %c0_15, %c0_16] : memref<9x128x128xbf16, #tpu.memory_space<vmem>>, vector<1x128x128xbf16>
    %30 = vector.shape_cast %29 : vector<1x128x128xbf16> to vector<128x128xbf16>
    %cst_17 = arith.constant dense<0.000000e+00> : vector<256x128xf32>
    %31 = tpu.matmul %28, %30, %cst_17 {dimension_numbers = #tpu.dot_dimension_numbers<[1], [0], [0], [1], [0, 0, 1, 1], [], []>} : vector<256x128xbf16>, vector<128x128xbf16>, vector<256x128xf32> -> vector<256x128xf32>
    %32 = arith.addf %26, %31 : vector<256x128xf32>
    %33 = vector.extract_strided_slice %7 {offsets = [1, 1, 0], sizes = [16, 16, 128], strides = [1, 1, 1]} : vector<18x18x128xbf16> to vector<16x16x128xbf16>
    %34 = vector.shape_cast %33 : vector<16x16x128xbf16> to vector<256x128xbf16>
    %c4 = arith.constant 4 : index
    %c0_18 = arith.constant 0 : index
    %c0_19 = arith.constant 0 : index
    %35 = vector.load %arg3[%c4, %c0_18, %c0_19] : memref<9x128x128xbf16, #tpu.memory_space<vmem>>, vector<1x128x128xbf16>
    %36 = vector.shape_cast %35 : vector<1x128x128xbf16> to vector<128x128xbf16>
    %cst_20 = arith.constant dense<0.000000e+00> : vector<256x128xf32>
    %37 = tpu.matmul %34, %36, %cst_20 {dimension_numbers = #tpu.dot_dimension_numbers<[1], [0], [0], [1], [0, 0, 1, 1], [], []>} : vector<256x128xbf16>, vector<128x128xbf16>, vector<256x128xf32> -> vector<256x128xf32>
    %38 = arith.addf %32, %37 : vector<256x128xf32>
    %39 = vector.extract_strided_slice %7 {offsets = [1, 2, 0], sizes = [16, 16, 128], strides = [1, 1, 1]} : vector<18x18x128xbf16> to vector<16x16x128xbf16>
    %40 = vector.shape_cast %39 : vector<16x16x128xbf16> to vector<256x128xbf16>
    %c5 = arith.constant 5 : index
    %c0_21 = arith.constant 0 : index
    %c0_22 = arith.constant 0 : index
    %41 = vector.load %arg3[%c5, %c0_21, %c0_22] : memref<9x128x128xbf16, #tpu.memory_space<vmem>>, vector<1x128x128xbf16>
    %42 = vector.shape_cast %41 : vector<1x128x128xbf16> to vector<128x128xbf16>
    %cst_23 = arith.constant dense<0.000000e+00> : vector<256x128xf32>
    %43 = tpu.matmul %40, %42, %cst_23 {dimension_numbers = #tpu.dot_dimension_numbers<[1], [0], [0], [1], [0, 0, 1, 1], [], []>} : vector<256x128xbf16>, vector<128x128xbf16>, vector<256x128xf32> -> vector<256x128xf32>
    %44 = arith.addf %38, %43 : vector<256x128xf32>
    %45 = vector.extract_strided_slice %7 {offsets = [2, 0, 0], sizes = [16, 16, 128], strides = [1, 1, 1]} : vector<18x18x128xbf16> to vector<16x16x128xbf16>
    %46 = vector.shape_cast %45 : vector<16x16x128xbf16> to vector<256x128xbf16>
    %c6 = arith.constant 6 : index
    %c0_24 = arith.constant 0 : index
    %c0_25 = arith.constant 0 : index
    %47 = vector.load %arg3[%c6, %c0_24, %c0_25] : memref<9x128x128xbf16, #tpu.memory_space<vmem>>, vector<1x128x128xbf16>
    %48 = vector.shape_cast %47 : vector<1x128x128xbf16> to vector<128x128xbf16>
    %cst_26 = arith.constant dense<0.000000e+00> : vector<256x128xf32>
    %49 = tpu.matmul %46, %48, %cst_26 {dimension_numbers = #tpu.dot_dimension_numbers<[1], [0], [0], [1], [0, 0, 1, 1], [], []>} : vector<256x128xbf16>, vector<128x128xbf16>, vector<256x128xf32> -> vector<256x128xf32>
    %50 = arith.addf %44, %49 : vector<256x128xf32>
    %51 = vector.extract_strided_slice %7 {offsets = [2, 1, 0], sizes = [16, 16, 128], strides = [1, 1, 1]} : vector<18x18x128xbf16> to vector<16x16x128xbf16>
    %52 = vector.shape_cast %51 : vector<16x16x128xbf16> to vector<256x128xbf16>
    %c7 = arith.constant 7 : index
    %c0_27 = arith.constant 0 : index
    %c0_28 = arith.constant 0 : index
    %53 = vector.load %arg3[%c7, %c0_27, %c0_28] : memref<9x128x128xbf16, #tpu.memory_space<vmem>>, vector<1x128x128xbf16>
    %54 = vector.shape_cast %53 : vector<1x128x128xbf16> to vector<128x128xbf16>
    %cst_29 = arith.constant dense<0.000000e+00> : vector<256x128xf32>
    %55 = tpu.matmul %52, %54, %cst_29 {dimension_numbers = #tpu.dot_dimension_numbers<[1], [0], [0], [1], [0, 0, 1, 1], [], []>} : vector<256x128xbf16>, vector<128x128xbf16>, vector<256x128xf32> -> vector<256x128xf32>
    %56 = arith.addf %50, %55 : vector<256x128xf32>
    %57 = vector.extract_strided_slice %7 {offsets = [2, 2, 0], sizes = [16, 16, 128], strides = [1, 1, 1]} : vector<18x18x128xbf16> to vector<16x16x128xbf16>
    %58 = vector.shape_cast %57 : vector<16x16x128xbf16> to vector<256x128xbf16>
    %c8 = arith.constant 8 : index
    %c0_30 = arith.constant 0 : index
    %c0_31 = arith.constant 0 : index
    %59 = vector.load %arg3[%c8, %c0_30, %c0_31] : memref<9x128x128xbf16, #tpu.memory_space<vmem>>, vector<1x128x128xbf16>
    %60 = vector.shape_cast %59 : vector<1x128x128xbf16> to vector<128x128xbf16>
    %cst_32 = arith.constant dense<0.000000e+00> : vector<256x128xf32>
    %61 = tpu.matmul %58, %60, %cst_32 {dimension_numbers = #tpu.dot_dimension_numbers<[1], [0], [0], [1], [0, 0, 1, 1], [], []>} : vector<256x128xbf16>, vector<128x128xbf16>, vector<256x128xf32> -> vector<256x128xf32>
    %62 = arith.addf %56, %61 : vector<256x128xf32>
    %c0_i32_33 = arith.constant 0 : i32
    %63 = arith.cmpi eq, %arg0, %c0_i32_33 : i32
    %64 = arith.extui %63 : i1 to i32
    %c0_i32_34 = arith.constant 0 : i32
    %65 = arith.cmpi ne, %64, %c0_i32_34 : i32
    scf.if %65 {
      %cst_37 = arith.constant 1.000000e+00 : f32
      %72 = vector.broadcast %cst_37 : f32 to vector<8x256xf32>
      %cst_38 = arith.constant dense<0.000000e+00> : vector<8x128xf32>
      %73 = tpu.matmul %72, %62, %cst_38 {dimension_numbers = #tpu.dot_dimension_numbers<[1], [0], [0], [1], [0, 0, 1, 1], [], []>} : vector<8x256xf32>, vector<256x128xf32>, vector<8x128xf32> -> vector<8x128xf32>
      %74 = vector.extract_strided_slice %73 {offsets = [0, 0], sizes = [1, 128], strides = [1, 1]} : vector<8x128xf32> to vector<1x128xf32>
      %75 = arith.mulf %62, %62 : vector<256x128xf32>
      %cst_39 = arith.constant dense<0.000000e+00> : vector<8x128xf32>
      %76 = tpu.matmul %72, %75, %cst_39 {dimension_numbers = #tpu.dot_dimension_numbers<[1], [0], [0], [1], [0, 0, 1, 1], [], []>} : vector<8x256xf32>, vector<256x128xf32>, vector<8x128xf32> -> vector<8x128xf32>
      %77 = vector.extract_strided_slice %76 {offsets = [0, 0], sizes = [1, 128], strides = [1, 1]} : vector<8x128xf32> to vector<1x128xf32>
      %c0_40 = arith.constant 0 : index
      %c0_41 = arith.constant 0 : index
      %78 = vector.load %arg8[%c0_40, %c0_41] : memref<4x128xf32, #tpu.memory_space<vmem>>, vector<1x128xf32>
      %79 = arith.addf %78, %74 : vector<1x128xf32>
      %c0_42 = arith.constant 0 : index
      %c0_43 = arith.constant 0 : index
      %80 = vector.load %arg8[%c0_42, %c0_43] : memref<4x128xf32, #tpu.memory_space<vmem>>, vector<1x128xf32>
      tpu.vector_store %arg8[%c0_42, %c0_43], %79 {strides = array<i32>} : memref<4x128xf32, #tpu.memory_space<vmem>>, vector<1x128xf32>,
      %c1_44 = arith.constant 1 : index
      %c0_45 = arith.constant 0 : index
      %81 = vector.load %arg8[%c1_44, %c0_45] : memref<4x128xf32, #tpu.memory_space<vmem>>, vector<1x128xf32>
      %82 = arith.addf %81, %77 : vector<1x128xf32>
      %c1_46 = arith.constant 1 : index
      %c0_47 = arith.constant 0 : index
      %83 = vector.load %arg8[%c1_46, %c0_47] : memref<4x128xf32, #tpu.memory_space<vmem>>, vector<1x128xf32>
      tpu.vector_store %arg8[%c1_46, %c0_47], %82 {strides = array<i32>} : memref<4x128xf32, #tpu.memory_space<vmem>>, vector<1x128xf32>,
    } else {
    }
    %c1_i32 = arith.constant 1 : i32
    %66 = arith.cmpi eq, %arg0, %c1_i32 : i32
    %67 = arith.extui %66 : i1 to i32
    %c0_i32_35 = arith.constant 0 : i32
    %68 = arith.cmpi ne, %67, %c0_i32_35 : i32
    scf.if %68 {
      %c0_37 = arith.constant 0 : index
      %c0_38 = arith.constant 0 : index
      %72 = vector.load %arg8[%c0_37, %c0_38] : memref<4x128xf32, #tpu.memory_space<vmem>>, vector<1x128xf32>
      %c1_39 = arith.constant 1 : index
      %c0_40 = arith.constant 0 : index
      %73 = vector.load %arg8[%c1_39, %c0_40] : memref<4x128xf32, #tpu.memory_space<vmem>>, vector<1x128xf32>
      %c0_41 = arith.constant 0 : index
      %c0_42 = arith.constant 0 : index
      %74 = vector.load %arg5[%c0_41, %c0_42] : memref<4x128xf32, #tpu.memory_space<vmem>>, vector<1x128xf32>
      %c1_43 = arith.constant 1 : index
      %c0_44 = arith.constant 0 : index
      %75 = vector.load %arg5[%c1_43, %c0_44] : memref<4x128xf32, #tpu.memory_space<vmem>>, vector<1x128xf32>
      %cst_45 = arith.constant 0.001953125 : f32
      %76 = vector.broadcast %cst_45 : f32 to vector<1x128xf32>
      %77 = arith.mulf %72, %76 : vector<1x128xf32>
      %cst_46 = arith.constant 0.001953125 : f32
      %78 = vector.broadcast %cst_46 : f32 to vector<1x128xf32>
      %79 = arith.mulf %73, %78 : vector<1x128xf32>
      %80 = arith.mulf %77, %77 : vector<1x128xf32>
      %81 = arith.subf %79, %80 : vector<1x128xf32>
      %cst_47 = arith.constant 0.000000e+00 : f32
      %82 = vector.broadcast %cst_47 : f32 to vector<1x128xf32>
      %83 = arith.maximumf %81, %82 : vector<1x128xf32>
      %cst_48 = arith.constant 9.99999974E-6 : f32
      %84 = vector.broadcast %cst_48 : f32 to vector<1x128xf32>
      %85 = arith.addf %83, %84 : vector<1x128xf32>
      %86 = math.rsqrt %85 : vector<1x128xf32>
      %87 = arith.mulf %74, %86 : vector<1x128xf32>
      %88 = arith.mulf %77, %87 : vector<1x128xf32>
      %89 = arith.subf %75, %88 : vector<1x128xf32>
      %90 = vector.broadcast %87 : vector<1x128xf32> to vector<256x128xf32>
      %91 = arith.mulf %62, %90 : vector<256x128xf32>
      %92 = vector.broadcast %89 : vector<1x128xf32> to vector<256x128xf32>
      %93 = arith.addf %91, %92 : vector<256x128xf32>
      %cst_49 = arith.constant 0.000000e+00 : f32
      %94 = vector.broadcast %cst_49 : f32 to vector<256x128xf32>
      %95 = arith.maximumf %93, %94 : vector<256x128xf32>
      %96 = vector.shape_cast %95 : vector<256x128xf32> to vector<16x16x128xf32>
      %c1_50 = arith.constant 1 : index
      %c1_51 = arith.constant 1 : index
      %c0_52 = arith.constant 0 : index
      %97 = vector.load %arg7[%c1_50, %c1_51, %c0_52] : memref<18x18x128xf32, #tpu.memory_space<vmem>>, vector<16x16x128xf32>
      tpu.vector_store %arg7[%c1_50, %c1_51, %c0_52], %96 {strides = array<i32>} : memref<18x18x128xf32, #tpu.memory_space<vmem>>, vector<16x16x128xf32>,
      %c0_53 = arith.constant 0 : index
      %c0_54 = arith.constant 0 : index
      %c0_55 = arith.constant 0 : index
      %98 = vector.load %arg7[%c0_53, %c0_54, %c0_55] : memref<18x18x128xf32, #tpu.memory_space<vmem>>, vector<18x18x128xf32>
      %99 = arith.truncf %98 : vector<18x18x128xf32> to vector<18x18x128xbf16>
      %cst_56 = arith.constant 0.000000e+00 : f32
      %100 = vector.broadcast %cst_56 : f32 to vector<256x128xf32>
      %101 = vector.extract_strided_slice %99 {offsets = [0, 0, 0], sizes = [16, 16, 128], strides = [1, 1, 1]} : vector<18x18x128xbf16> to vector<16x16x128xbf16>
      %102 = vector.shape_cast %101 : vector<16x16x128xbf16> to vector<256x128xbf16>
      %c0_57 = arith.constant 0 : index
      %c0_58 = arith.constant 0 : index
      %c0_59 = arith.constant 0 : index
      %103 = vector.load %arg4[%c0_57, %c0_58, %c0_59] : memref<9x128x128xbf16, #tpu.memory_space<vmem>>, vector<1x128x128xbf16>
      %104 = vector.shape_cast %103 : vector<1x128x128xbf16> to vector<128x128xbf16>
      %cst_60 = arith.constant dense<0.000000e+00> : vector<256x128xf32>
      %105 = tpu.matmul %102, %104, %cst_60 {dimension_numbers = #tpu.dot_dimension_numbers<[1], [0], [0], [1], [0, 0, 1, 1], [], []>} : vector<256x128xbf16>, vector<128x128xbf16>, vector<256x128xf32> -> vector<256x128xf32>
      %106 = arith.addf %100, %105 : vector<256x128xf32>
      %107 = vector.extract_strided_slice %99 {offsets = [0, 1, 0], sizes = [16, 16, 128], strides = [1, 1, 1]} : vector<18x18x128xbf16> to vector<16x16x128xbf16>
      %108 = vector.shape_cast %107 : vector<16x16x128xbf16> to vector<256x128xbf16>
      %c1_61 = arith.constant 1 : index
      %c0_62 = arith.constant 0 : index
      %c0_63 = arith.constant 0 : index
      %109 = vector.load %arg4[%c1_61, %c0_62, %c0_63] : memref<9x128x128xbf16, #tpu.memory_space<vmem>>, vector<1x128x128xbf16>
      %110 = vector.shape_cast %109 : vector<1x128x128xbf16> to vector<128x128xbf16>
      %cst_64 = arith.constant dense<0.000000e+00> : vector<256x128xf32>
      %111 = tpu.matmul %108, %110, %cst_64 {dimension_numbers = #tpu.dot_dimension_numbers<[1], [0], [0], [1], [0, 0, 1, 1], [], []>} : vector<256x128xbf16>, vector<128x128xbf16>, vector<256x128xf32> -> vector<256x128xf32>
      %112 = arith.addf %106, %111 : vector<256x128xf32>
      %113 = vector.extract_strided_slice %99 {offsets = [0, 2, 0], sizes = [16, 16, 128], strides = [1, 1, 1]} : vector<18x18x128xbf16> to vector<16x16x128xbf16>
      %114 = vector.shape_cast %113 : vector<16x16x128xbf16> to vector<256x128xbf16>
      %c2_65 = arith.constant 2 : index
      %c0_66 = arith.constant 0 : index
      %c0_67 = arith.constant 0 : index
      %115 = vector.load %arg4[%c2_65, %c0_66, %c0_67] : memref<9x128x128xbf16, #tpu.memory_space<vmem>>, vector<1x128x128xbf16>
      %116 = vector.shape_cast %115 : vector<1x128x128xbf16> to vector<128x128xbf16>
      %cst_68 = arith.constant dense<0.000000e+00> : vector<256x128xf32>
      %117 = tpu.matmul %114, %116, %cst_68 {dimension_numbers = #tpu.dot_dimension_numbers<[1], [0], [0], [1], [0, 0, 1, 1], [], []>} : vector<256x128xbf16>, vector<128x128xbf16>, vector<256x128xf32> -> vector<256x128xf32>
      %118 = arith.addf %112, %117 : vector<256x128xf32>
      %119 = vector.extract_strided_slice %99 {offsets = [1, 0, 0], sizes = [16, 16, 128], strides = [1, 1, 1]} : vector<18x18x128xbf16> to vector<16x16x128xbf16>
      %120 = vector.shape_cast %119 : vector<16x16x128xbf16> to vector<256x128xbf16>
      %c3_69 = arith.constant 3 : index
      %c0_70 = arith.constant 0 : index
      %c0_71 = arith.constant 0 : index
      %121 = vector.load %arg4[%c3_69, %c0_70, %c0_71] : memref<9x128x128xbf16, #tpu.memory_space<vmem>>, vector<1x128x128xbf16>
      %122 = vector.shape_cast %121 : vector<1x128x128xbf16> to vector<128x128xbf16>
      %cst_72 = arith.constant dense<0.000000e+00> : vector<256x128xf32>
      %123 = tpu.matmul %120, %122, %cst_72 {dimension_numbers = #tpu.dot_dimension_numbers<[1], [0], [0], [1], [0, 0, 1, 1], [], []>} : vector<256x128xbf16>, vector<128x128xbf16>, vector<256x128xf32> -> vector<256x128xf32>
      %124 = arith.addf %118, %123 : vector<256x128xf32>
      %125 = vector.extract_strided_slice %99 {offsets = [1, 1, 0], sizes = [16, 16, 128], strides = [1, 1, 1]} : vector<18x18x128xbf16> to vector<16x16x128xbf16>
      %126 = vector.shape_cast %125 : vector<16x16x128xbf16> to vector<256x128xbf16>
      %c4_73 = arith.constant 4 : index
      %c0_74 = arith.constant 0 : index
      %c0_75 = arith.constant 0 : index
      %127 = vector.load %arg4[%c4_73, %c0_74, %c0_75] : memref<9x128x128xbf16, #tpu.memory_space<vmem>>, vector<1x128x128xbf16>
      %128 = vector.shape_cast %127 : vector<1x128x128xbf16> to vector<128x128xbf16>
      %cst_76 = arith.constant dense<0.000000e+00> : vector<256x128xf32>
      %129 = tpu.matmul %126, %128, %cst_76 {dimension_numbers = #tpu.dot_dimension_numbers<[1], [0], [0], [1], [0, 0, 1, 1], [], []>} : vector<256x128xbf16>, vector<128x128xbf16>, vector<256x128xf32> -> vector<256x128xf32>
      %130 = arith.addf %124, %129 : vector<256x128xf32>
      %131 = vector.extract_strided_slice %99 {offsets = [1, 2, 0], sizes = [16, 16, 128], strides = [1, 1, 1]} : vector<18x18x128xbf16> to vector<16x16x128xbf16>
      %132 = vector.shape_cast %131 : vector<16x16x128xbf16> to vector<256x128xbf16>
      %c5_77 = arith.constant 5 : index
      %c0_78 = arith.constant 0 : index
      %c0_79 = arith.constant 0 : index
      %133 = vector.load %arg4[%c5_77, %c0_78, %c0_79] : memref<9x128x128xbf16, #tpu.memory_space<vmem>>, vector<1x128x128xbf16>
      %134 = vector.shape_cast %133 : vector<1x128x128xbf16> to vector<128x128xbf16>
      %cst_80 = arith.constant dense<0.000000e+00> : vector<256x128xf32>
      %135 = tpu.matmul %132, %134, %cst_80 {dimension_numbers = #tpu.dot_dimension_numbers<[1], [0], [0], [1], [0, 0, 1, 1], [], []>} : vector<256x128xbf16>, vector<128x128xbf16>, vector<256x128xf32> -> vector<256x128xf32>
      %136 = arith.addf %130, %135 : vector<256x128xf32>
      %137 = vector.extract_strided_slice %99 {offsets = [2, 0, 0], sizes = [16, 16, 128], strides = [1, 1, 1]} : vector<18x18x128xbf16> to vector<16x16x128xbf16>
      %138 = vector.shape_cast %137 : vector<16x16x128xbf16> to vector<256x128xbf16>
      %c6_81 = arith.constant 6 : index
      %c0_82 = arith.constant 0 : index
      %c0_83 = arith.constant 0 : index
      %139 = vector.load %arg4[%c6_81, %c0_82, %c0_83] : memref<9x128x128xbf16, #tpu.memory_space<vmem>>, vector<1x128x128xbf16>
      %140 = vector.shape_cast %139 : vector<1x128x128xbf16> to vector<128x128xbf16>
      %cst_84 = arith.constant dense<0.000000e+00> : vector<256x128xf32>
      %141 = tpu.matmul %138, %140, %cst_84 {dimension_numbers = #tpu.dot_dimension_numbers<[1], [0], [0], [1], [0, 0, 1, 1], [], []>} : vector<256x128xbf16>, vector<128x128xbf16>, vector<256x128xf32> -> vector<256x128xf32>
      %142 = arith.addf %136, %141 : vector<256x128xf32>
      %143 = vector.extract_strided_slice %99 {offsets = [2, 1, 0], sizes = [16, 16, 128], strides = [1, 1, 1]} : vector<18x18x128xbf16> to vector<16x16x128xbf16>
      %144 = vector.shape_cast %143 : vector<16x16x128xbf16> to vector<256x128xbf16>
      %c7_85 = arith.constant 7 : index
      %c0_86 = arith.constant 0 : index
      %c0_87 = arith.constant 0 : index
      %145 = vector.load %arg4[%c7_85, %c0_86, %c0_87] : memref<9x128x128xbf16, #tpu.memory_space<vmem>>, vector<1x128x128xbf16>
      %146 = vector.shape_cast %145 : vector<1x128x128xbf16> to vector<128x128xbf16>
      %cst_88 = arith.constant dense<0.000000e+00> : vector<256x128xf32>
      %147 = tpu.matmul %144, %146, %cst_88 {dimension_numbers = #tpu.dot_dimension_numbers<[1], [0], [0], [1], [0, 0, 1, 1], [], []>} : vector<256x128xbf16>, vector<128x128xbf16>, vector<256x128xf32> -> vector<256x128xf32>
      %148 = arith.addf %142, %147 : vector<256x128xf32>
      %149 = vector.extract_strided_slice %99 {offsets = [2, 2, 0], sizes = [16, 16, 128], strides = [1, 1, 1]} : vector<18x18x128xbf16> to vector<16x16x128xbf16>
      %150 = vector.shape_cast %149 : vector<16x16x128xbf16> to vector<256x128xbf16>
      %c8_89 = arith.constant 8 : index
      %c0_90 = arith.constant 0 : index
      %c0_91 = arith.constant 0 : index
      %151 = vector.load %arg4[%c8_89, %c0_90, %c0_91] : memref<9x128x128xbf16, #tpu.memory_space<vmem>>, vector<1x128x128xbf16>
      %152 = vector.shape_cast %151 : vector<1x128x128xbf16> to vector<128x128xbf16>
      %cst_92 = arith.constant dense<0.000000e+00> : vector<256x128xf32>
      %153 = tpu.matmul %150, %152, %cst_92 {dimension_numbers = #tpu.dot_dimension_numbers<[1], [0], [0], [1], [0, 0, 1, 1], [], []>} : vector<256x128xbf16>, vector<128x128xbf16>, vector<256x128xf32> -> vector<256x128xf32>
      %154 = arith.addf %148, %153 : vector<256x128xf32>
      %cst_93 = arith.constant 1.000000e+00 : f32
      %155 = vector.broadcast %cst_93 : f32 to vector<8x256xf32>
      %cst_94 = arith.constant dense<0.000000e+00> : vector<8x128xf32>
      %156 = tpu.matmul %155, %154, %cst_94 {dimension_numbers = #tpu.dot_dimension_numbers<[1], [0], [0], [1], [0, 0, 1, 1], [], []>} : vector<8x256xf32>, vector<256x128xf32>, vector<8x128xf32> -> vector<8x128xf32>
      %157 = vector.extract_strided_slice %156 {offsets = [0, 0], sizes = [1, 128], strides = [1, 1]} : vector<8x128xf32> to vector<1x128xf32>
      %158 = arith.mulf %154, %154 : vector<256x128xf32>
      %cst_95 = arith.constant dense<0.000000e+00> : vector<8x128xf32>
      %159 = tpu.matmul %155, %158, %cst_95 {dimension_numbers = #tpu.dot_dimension_numbers<[1], [0], [0], [1], [0, 0, 1, 1], [], []>} : vector<8x256xf32>, vector<256x128xf32>, vector<8x128xf32> -> vector<8x128xf32>
      %160 = vector.extract_strided_slice %159 {offsets = [0, 0], sizes = [1, 128], strides = [1, 1]} : vector<8x128xf32> to vector<1x128xf32>
      %c2_96 = arith.constant 2 : index
      %c0_97 = arith.constant 0 : index
      %161 = vector.load %arg8[%c2_96, %c0_97] : memref<4x128xf32, #tpu.memory_space<vmem>>, vector<1x128xf32>
      %162 = arith.addf %161, %157 : vector<1x128xf32>
      %c2_98 = arith.constant 2 : index
      %c0_99 = arith.constant 0 : index
      %163 = vector.load %arg8[%c2_98, %c0_99] : memref<4x128xf32, #tpu.memory_space<vmem>>, vector<1x128xf32>
      tpu.vector_store %arg8[%c2_98, %c0_99], %162 {strides = array<i32>} : memref<4x128xf32, #tpu.memory_space<vmem>>, vector<1x128xf32>,
      %c3_100 = arith.constant 3 : index
      %c0_101 = arith.constant 0 : index
      %164 = vector.load %arg8[%c3_100, %c0_101] : memref<4x128xf32, #tpu.memory_space<vmem>>, vector<1x128xf32>
      %165 = arith.addf %164, %160 : vector<1x128xf32>
      %c3_102 = arith.constant 3 : index
      %c0_103 = arith.constant 0 : index
      %166 = vector.load %arg8[%c3_102, %c0_103] : memref<4x128xf32, #tpu.memory_space<vmem>>, vector<1x128xf32>
      tpu.vector_store %arg8[%c3_102, %c0_103], %165 {strides = array<i32>} : memref<4x128xf32, #tpu.memory_space<vmem>>, vector<1x128xf32>,
    } else {
    }
    %c2_i32 = arith.constant 2 : i32
    %69 = arith.cmpi eq, %arg0, %c2_i32 : i32
    %70 = arith.extui %69 : i1 to i32
    %c0_i32_36 = arith.constant 0 : i32
    %71 = arith.cmpi ne, %70, %c0_i32_36 : i32
    scf.if %71 {
      %c0_37 = arith.constant 0 : index
      %c0_38 = arith.constant 0 : index
      %72 = vector.load %arg8[%c0_37, %c0_38] : memref<4x128xf32, #tpu.memory_space<vmem>>, vector<1x128xf32>
      %c1_39 = arith.constant 1 : index
      %c0_40 = arith.constant 0 : index
      %73 = vector.load %arg8[%c1_39, %c0_40] : memref<4x128xf32, #tpu.memory_space<vmem>>, vector<1x128xf32>
      %c0_41 = arith.constant 0 : index
      %c0_42 = arith.constant 0 : index
      %74 = vector.load %arg5[%c0_41, %c0_42] : memref<4x128xf32, #tpu.memory_space<vmem>>, vector<1x128xf32>
      %c1_43 = arith.constant 1 : index
      %c0_44 = arith.constant 0 : index
      %75 = vector.load %arg5[%c1_43, %c0_44] : memref<4x128xf32, #tpu.memory_space<vmem>>, vector<1x128xf32>
      %cst_45 = arith.constant 0.001953125 : f32
      %76 = vector.broadcast %cst_45 : f32 to vector<1x128xf32>
      %77 = arith.mulf %72, %76 : vector<1x128xf32>
      %cst_46 = arith.constant 0.001953125 : f32
      %78 = vector.broadcast %cst_46 : f32 to vector<1x128xf32>
      %79 = arith.mulf %73, %78 : vector<1x128xf32>
      %80 = arith.mulf %77, %77 : vector<1x128xf32>
      %81 = arith.subf %79, %80 : vector<1x128xf32>
      %cst_47 = arith.constant 0.000000e+00 : f32
      %82 = vector.broadcast %cst_47 : f32 to vector<1x128xf32>
      %83 = arith.maximumf %81, %82 : vector<1x128xf32>
      %cst_48 = arith.constant 9.99999974E-6 : f32
      %84 = vector.broadcast %cst_48 : f32 to vector<1x128xf32>
      %85 = arith.addf %83, %84 : vector<1x128xf32>
      %86 = math.rsqrt %85 : vector<1x128xf32>
      %87 = arith.mulf %74, %86 : vector<1x128xf32>
      %88 = arith.mulf %77, %87 : vector<1x128xf32>
      %89 = arith.subf %75, %88 : vector<1x128xf32>
      %90 = vector.broadcast %87 : vector<1x128xf32> to vector<256x128xf32>
      %91 = arith.mulf %62, %90 : vector<256x128xf32>
      %92 = vector.broadcast %89 : vector<1x128xf32> to vector<256x128xf32>
      %93 = arith.addf %91, %92 : vector<256x128xf32>
      %cst_49 = arith.constant 0.000000e+00 : f32
      %94 = vector.broadcast %cst_49 : f32 to vector<256x128xf32>
      %95 = arith.maximumf %93, %94 : vector<256x128xf32>
      %96 = vector.shape_cast %95 : vector<256x128xf32> to vector<16x16x128xf32>
      %c1_50 = arith.constant 1 : index
      %c1_51 = arith.constant 1 : index
      %c0_52 = arith.constant 0 : index
      %97 = vector.load %arg7[%c1_50, %c1_51, %c0_52] : memref<18x18x128xf32, #tpu.memory_space<vmem>>, vector<16x16x128xf32>
      tpu.vector_store %arg7[%c1_50, %c1_51, %c0_52], %96 {strides = array<i32>} : memref<18x18x128xf32, #tpu.memory_space<vmem>>, vector<16x16x128xf32>,
      %c0_53 = arith.constant 0 : index
      %c0_54 = arith.constant 0 : index
      %c0_55 = arith.constant 0 : index
      %98 = vector.load %arg7[%c0_53, %c0_54, %c0_55] : memref<18x18x128xf32, #tpu.memory_space<vmem>>, vector<18x18x128xf32>
      %99 = arith.truncf %98 : vector<18x18x128xf32> to vector<18x18x128xbf16>
      %cst_56 = arith.constant 0.000000e+00 : f32
      %100 = vector.broadcast %cst_56 : f32 to vector<256x128xf32>
      %101 = vector.extract_strided_slice %99 {offsets = [0, 0, 0], sizes = [16, 16, 128], strides = [1, 1, 1]} : vector<18x18x128xbf16> to vector<16x16x128xbf16>
      %102 = vector.shape_cast %101 : vector<16x16x128xbf16> to vector<256x128xbf16>
      %c0_57 = arith.constant 0 : index
      %c0_58 = arith.constant 0 : index
      %c0_59 = arith.constant 0 : index
      %103 = vector.load %arg4[%c0_57, %c0_58, %c0_59] : memref<9x128x128xbf16, #tpu.memory_space<vmem>>, vector<1x128x128xbf16>
      %104 = vector.shape_cast %103 : vector<1x128x128xbf16> to vector<128x128xbf16>
      %cst_60 = arith.constant dense<0.000000e+00> : vector<256x128xf32>
      %105 = tpu.matmul %102, %104, %cst_60 {dimension_numbers = #tpu.dot_dimension_numbers<[1], [0], [0], [1], [0, 0, 1, 1], [], []>} : vector<256x128xbf16>, vector<128x128xbf16>, vector<256x128xf32> -> vector<256x128xf32>
      %106 = arith.addf %100, %105 : vector<256x128xf32>
      %107 = vector.extract_strided_slice %99 {offsets = [0, 1, 0], sizes = [16, 16, 128], strides = [1, 1, 1]} : vector<18x18x128xbf16> to vector<16x16x128xbf16>
      %108 = vector.shape_cast %107 : vector<16x16x128xbf16> to vector<256x128xbf16>
      %c1_61 = arith.constant 1 : index
      %c0_62 = arith.constant 0 : index
      %c0_63 = arith.constant 0 : index
      %109 = vector.load %arg4[%c1_61, %c0_62, %c0_63] : memref<9x128x128xbf16, #tpu.memory_space<vmem>>, vector<1x128x128xbf16>
      %110 = vector.shape_cast %109 : vector<1x128x128xbf16> to vector<128x128xbf16>
      %cst_64 = arith.constant dense<0.000000e+00> : vector<256x128xf32>
      %111 = tpu.matmul %108, %110, %cst_64 {dimension_numbers = #tpu.dot_dimension_numbers<[1], [0], [0], [1], [0, 0, 1, 1], [], []>} : vector<256x128xbf16>, vector<128x128xbf16>, vector<256x128xf32> -> vector<256x128xf32>
      %112 = arith.addf %106, %111 : vector<256x128xf32>
      %113 = vector.extract_strided_slice %99 {offsets = [0, 2, 0], sizes = [16, 16, 128], strides = [1, 1, 1]} : vector<18x18x128xbf16> to vector<16x16x128xbf16>
      %114 = vector.shape_cast %113 : vector<16x16x128xbf16> to vector<256x128xbf16>
      %c2_65 = arith.constant 2 : index
      %c0_66 = arith.constant 0 : index
      %c0_67 = arith.constant 0 : index
      %115 = vector.load %arg4[%c2_65, %c0_66, %c0_67] : memref<9x128x128xbf16, #tpu.memory_space<vmem>>, vector<1x128x128xbf16>
      %116 = vector.shape_cast %115 : vector<1x128x128xbf16> to vector<128x128xbf16>
      %cst_68 = arith.constant dense<0.000000e+00> : vector<256x128xf32>
      %117 = tpu.matmul %114, %116, %cst_68 {dimension_numbers = #tpu.dot_dimension_numbers<[1], [0], [0], [1], [0, 0, 1, 1], [], []>} : vector<256x128xbf16>, vector<128x128xbf16>, vector<256x128xf32> -> vector<256x128xf32>
      %118 = arith.addf %112, %117 : vector<256x128xf32>
      %119 = vector.extract_strided_slice %99 {offsets = [1, 0, 0], sizes = [16, 16, 128], strides = [1, 1, 1]} : vector<18x18x128xbf16> to vector<16x16x128xbf16>
      %120 = vector.shape_cast %119 : vector<16x16x128xbf16> to vector<256x128xbf16>
      %c3_69 = arith.constant 3 : index
      %c0_70 = arith.constant 0 : index
      %c0_71 = arith.constant 0 : index
      %121 = vector.load %arg4[%c3_69, %c0_70, %c0_71] : memref<9x128x128xbf16, #tpu.memory_space<vmem>>, vector<1x128x128xbf16>
      %122 = vector.shape_cast %121 : vector<1x128x128xbf16> to vector<128x128xbf16>
      %cst_72 = arith.constant dense<0.000000e+00> : vector<256x128xf32>
      %123 = tpu.matmul %120, %122, %cst_72 {dimension_numbers = #tpu.dot_dimension_numbers<[1], [0], [0], [1], [0, 0, 1, 1], [], []>} : vector<256x128xbf16>, vector<128x128xbf16>, vector<256x128xf32> -> vector<256x128xf32>
      %124 = arith.addf %118, %123 : vector<256x128xf32>
      %125 = vector.extract_strided_slice %99 {offsets = [1, 1, 0], sizes = [16, 16, 128], strides = [1, 1, 1]} : vector<18x18x128xbf16> to vector<16x16x128xbf16>
      %126 = vector.shape_cast %125 : vector<16x16x128xbf16> to vector<256x128xbf16>
      %c4_73 = arith.constant 4 : index
      %c0_74 = arith.constant 0 : index
      %c0_75 = arith.constant 0 : index
      %127 = vector.load %arg4[%c4_73, %c0_74, %c0_75] : memref<9x128x128xbf16, #tpu.memory_space<vmem>>, vector<1x128x128xbf16>
      %128 = vector.shape_cast %127 : vector<1x128x128xbf16> to vector<128x128xbf16>
      %cst_76 = arith.constant dense<0.000000e+00> : vector<256x128xf32>
      %129 = tpu.matmul %126, %128, %cst_76 {dimension_numbers = #tpu.dot_dimension_numbers<[1], [0], [0], [1], [0, 0, 1, 1], [], []>} : vector<256x128xbf16>, vector<128x128xbf16>, vector<256x128xf32> -> vector<256x128xf32>
      %130 = arith.addf %124, %129 : vector<256x128xf32>
      %131 = vector.extract_strided_slice %99 {offsets = [1, 2, 0], sizes = [16, 16, 128], strides = [1, 1, 1]} : vector<18x18x128xbf16> to vector<16x16x128xbf16>
      %132 = vector.shape_cast %131 : vector<16x16x128xbf16> to vector<256x128xbf16>
      %c5_77 = arith.constant 5 : index
      %c0_78 = arith.constant 0 : index
      %c0_79 = arith.constant 0 : index
      %133 = vector.load %arg4[%c5_77, %c0_78, %c0_79] : memref<9x128x128xbf16, #tpu.memory_space<vmem>>, vector<1x128x128xbf16>
      %134 = vector.shape_cast %133 : vector<1x128x128xbf16> to vector<128x128xbf16>
      %cst_80 = arith.constant dense<0.000000e+00> : vector<256x128xf32>
      %135 = tpu.matmul %132, %134, %cst_80 {dimension_numbers = #tpu.dot_dimension_numbers<[1], [0], [0], [1], [0, 0, 1, 1], [], []>} : vector<256x128xbf16>, vector<128x128xbf16>, vector<256x128xf32> -> vector<256x128xf32>
      %136 = arith.addf %130, %135 : vector<256x128xf32>
      %137 = vector.extract_strided_slice %99 {offsets = [2, 0, 0], sizes = [16, 16, 128], strides = [1, 1, 1]} : vector<18x18x128xbf16> to vector<16x16x128xbf16>
      %138 = vector.shape_cast %137 : vector<16x16x128xbf16> to vector<256x128xbf16>
      %c6_81 = arith.constant 6 : index
      %c0_82 = arith.constant 0 : index
      %c0_83 = arith.constant 0 : index
      %139 = vector.load %arg4[%c6_81, %c0_82, %c0_83] : memref<9x128x128xbf16, #tpu.memory_space<vmem>>, vector<1x128x128xbf16>
      %140 = vector.shape_cast %139 : vector<1x128x128xbf16> to vector<128x128xbf16>
      %cst_84 = arith.constant dense<0.000000e+00> : vector<256x128xf32>
      %141 = tpu.matmul %138, %140, %cst_84 {dimension_numbers = #tpu.dot_dimension_numbers<[1], [0], [0], [1], [0, 0, 1, 1], [], []>} : vector<256x128xbf16>, vector<128x128xbf16>, vector<256x128xf32> -> vector<256x128xf32>
      %142 = arith.addf %136, %141 : vector<256x128xf32>
      %143 = vector.extract_strided_slice %99 {offsets = [2, 1, 0], sizes = [16, 16, 128], strides = [1, 1, 1]} : vector<18x18x128xbf16> to vector<16x16x128xbf16>
      %144 = vector.shape_cast %143 : vector<16x16x128xbf16> to vector<256x128xbf16>
      %c7_85 = arith.constant 7 : index
      %c0_86 = arith.constant 0 : index
      %c0_87 = arith.constant 0 : index
      %145 = vector.load %arg4[%c7_85, %c0_86, %c0_87] : memref<9x128x128xbf16, #tpu.memory_space<vmem>>, vector<1x128x128xbf16>
      %146 = vector.shape_cast %145 : vector<1x128x128xbf16> to vector<128x128xbf16>
      %cst_88 = arith.constant dense<0.000000e+00> : vector<256x128xf32>
      %147 = tpu.matmul %144, %146, %cst_88 {dimension_numbers = #tpu.dot_dimension_numbers<[1], [0], [0], [1], [0, 0, 1, 1], [], []>} : vector<256x128xbf16>, vector<128x128xbf16>, vector<256x128xf32> -> vector<256x128xf32>
      %148 = arith.addf %142, %147 : vector<256x128xf32>
      %149 = vector.extract_strided_slice %99 {offsets = [2, 2, 0], sizes = [16, 16, 128], strides = [1, 1, 1]} : vector<18x18x128xbf16> to vector<16x16x128xbf16>
      %150 = vector.shape_cast %149 : vector<16x16x128xbf16> to vector<256x128xbf16>
      %c8_89 = arith.constant 8 : index
      %c0_90 = arith.constant 0 : index
      %c0_91 = arith.constant 0 : index
      %151 = vector.load %arg4[%c8_89, %c0_90, %c0_91] : memref<9x128x128xbf16, #tpu.memory_space<vmem>>, vector<1x128x128xbf16>
      %152 = vector.shape_cast %151 : vector<1x128x128xbf16> to vector<128x128xbf16>
      %cst_92 = arith.constant dense<0.000000e+00> : vector<256x128xf32>
      %153 = tpu.matmul %150, %152, %cst_92 {dimension_numbers = #tpu.dot_dimension_numbers<[1], [0], [0], [1], [0, 0, 1, 1], [], []>} : vector<256x128xbf16>, vector<128x128xbf16>, vector<256x128xf32> -> vector<256x128xf32>
      %154 = arith.addf %148, %153 : vector<256x128xf32>
      %c2_93 = arith.constant 2 : index
      %c0_94 = arith.constant 0 : index
      %155 = vector.load %arg8[%c2_93, %c0_94] : memref<4x128xf32, #tpu.memory_space<vmem>>, vector<1x128xf32>
      %c3_95 = arith.constant 3 : index
      %c0_96 = arith.constant 0 : index
      %156 = vector.load %arg8[%c3_95, %c0_96] : memref<4x128xf32, #tpu.memory_space<vmem>>, vector<1x128xf32>
      %c2_97 = arith.constant 2 : index
      %c0_98 = arith.constant 0 : index
      %157 = vector.load %arg5[%c2_97, %c0_98] : memref<4x128xf32, #tpu.memory_space<vmem>>, vector<1x128xf32>
      %c3_99 = arith.constant 3 : index
      %c0_100 = arith.constant 0 : index
      %158 = vector.load %arg5[%c3_99, %c0_100] : memref<4x128xf32, #tpu.memory_space<vmem>>, vector<1x128xf32>
      %cst_101 = arith.constant 0.001953125 : f32
      %159 = vector.broadcast %cst_101 : f32 to vector<1x128xf32>
      %160 = arith.mulf %155, %159 : vector<1x128xf32>
      %cst_102 = arith.constant 0.001953125 : f32
      %161 = vector.broadcast %cst_102 : f32 to vector<1x128xf32>
      %162 = arith.mulf %156, %161 : vector<1x128xf32>
      %163 = arith.mulf %160, %160 : vector<1x128xf32>
      %164 = arith.subf %162, %163 : vector<1x128xf32>
      %cst_103 = arith.constant 0.000000e+00 : f32
      %165 = vector.broadcast %cst_103 : f32 to vector<1x128xf32>
      %166 = arith.maximumf %164, %165 : vector<1x128xf32>
      %cst_104 = arith.constant 9.99999974E-6 : f32
      %167 = vector.broadcast %cst_104 : f32 to vector<1x128xf32>
      %168 = arith.addf %166, %167 : vector<1x128xf32>
      %169 = math.rsqrt %168 : vector<1x128xf32>
      %170 = arith.mulf %157, %169 : vector<1x128xf32>
      %171 = arith.mulf %160, %170 : vector<1x128xf32>
      %172 = arith.subf %158, %171 : vector<1x128xf32>
      %173 = vector.extract_strided_slice %6 {offsets = [1, 1, 0], sizes = [16, 16, 128], strides = [1, 1, 1]} : vector<18x18x128xf32> to vector<16x16x128xf32>
      %174 = vector.shape_cast %173 : vector<16x16x128xf32> to vector<256x128xf32>
      %175 = vector.broadcast %170 : vector<1x128xf32> to vector<256x128xf32>
      %176 = arith.mulf %154, %175 : vector<256x128xf32>
      %177 = vector.broadcast %172 : vector<1x128xf32> to vector<256x128xf32>
      %178 = arith.addf %176, %177 : vector<256x128xf32>
      %179 = arith.addf %178, %174 : vector<256x128xf32>
      %cst_105 = arith.constant 0.000000e+00 : f32
      %180 = vector.broadcast %cst_105 : f32 to vector<256x128xf32>
      %181 = arith.maximumf %179, %180 : vector<256x128xf32>
      %182 = vector.shape_cast %181 : vector<256x128xf32> to vector<1x16x16x128xf32>
      %c0_106 = arith.constant 0 : index
      %c0_107 = arith.constant 0 : index
      %c0_108 = arith.constant 0 : index
      %c0_109 = arith.constant 0 : index
      %183 = vector.load %arg6[%c0_106, %c0_107, %c0_108, %c0_109] : memref<1x16x16x128xf32, #tpu.memory_space<vmem>>, vector<1x16x16x128xf32>
      tpu.vector_store %arg6[%c0_106, %c0_107, %c0_108, %c0_109], %182 {strides = array<i32>} : memref<1x16x16x128xf32, #tpu.memory_space<vmem>>, vector<1x16x16x128xf32>,
    } else {
    }
    return
  }
  func.func @transform_0(%arg0: i32, %arg1: i32) -> (i32, i32, i32, i32) {
    %c0_i32 = arith.constant 0 : i32
    %c0_i32_0 = arith.constant 0 : i32
    %c0_i32_1 = arith.constant 0 : i32
    %c0_i32_2 = arith.constant 0 : i32
    return %arg1, %c0_i32, %c0_i32_0, %c0_i32_1 : i32, i32, i32, i32
  }
  func.func @transform_1(%arg0: i32, %arg1: i32) -> (i32, i32, i32) {
    %c0_i32 = arith.constant 0 : i32
    %c0_i32_0 = arith.constant 0 : i32
    %c0_i32_1 = arith.constant 0 : i32
    %c0_i32_2 = arith.constant 0 : i32
    return %c0_i32, %c0_i32_0, %c0_i32_1 : i32, i32, i32
  }
  func.func @transform_2(%arg0: i32, %arg1: i32) -> (i32, i32, i32) {
    %c0_i32 = arith.constant 0 : i32
    %c0_i32_0 = arith.constant 0 : i32
    %c0_i32_1 = arith.constant 0 : i32
    %c0_i32_2 = arith.constant 0 : i32
    return %c0_i32, %c0_i32_0, %c0_i32_1 : i32, i32, i32
  }
  func.func @transform_3(%arg0: i32, %arg1: i32) -> (i32, i32) {
    %c0_i32 = arith.constant 0 : i32
    %c0_i32_0 = arith.constant 0 : i32
    %c0_i32_1 = arith.constant 0 : i32
    return %c0_i32, %c0_i32_0 : i32, i32
  }
  func.func @transform_4(%arg0: i32, %arg1: i32) -> (i32, i32, i32, i32) {
    %c0_i32 = arith.constant 0 : i32
    %c0_i32_0 = arith.constant 0 : i32
    %c0_i32_1 = arith.constant 0 : i32
    %c0_i32_2 = arith.constant 0 : i32
    return %arg1, %c0_i32, %c0_i32_0, %c0_i32_1 : i32, i32, i32, i32
  }
}

</mosaic_0001>

<llo_original>
// kernel: tpu_custom_call.1
$region0: #{tpu_custom_call.1}
  #allocation0 [shape = 'u32[]', space=smem, size = 0x4, offset = 0x4, fixed_abs, tag = 'smem constant byte address 0x4 - core index']
  #allocation1 [shape = 'u32[144,128]{1,0:T(1,128)}', space=vmem, size = 0x12000, scoped, tag = 'internal scratch']
  #allocation2 [shape = 'f32[18,18,128]{2,1,0:T(8,128)}', space=vmem, size = 0x36000, scoped, tag = 'scratch operand']
  #allocation3 [shape = 'f32[4,128]{1,0:T(4,128)}', space=vmem, size = 0x800, scoped, tag = 'scratch operand']
  %s0 = inlined_call_operand.vmem [shape: f32[2,18,18,128], index: 0, kind: input, shape index: {}]
  %s1 = inlined_call_operand.vmem [shape: bf16[9,128,128], index: 1, kind: input, shape index: {}]
  %s2 = inlined_call_operand.vmem [shape: bf16[9,128,128], index: 2, kind: input, shape index: {}]
  %s3 = inlined_call_operand.vmem [shape: f32[4,128], index: 3, kind: input, shape index: {}]
  %s4 = inlined_call_operand.hbm [shape: f32[2,16,16,128], index: 4, kind: output, shape index: {}]
  %s5 = sld [smem:[#allocation0]]
  $region65: #{tpu_custom_call.1} parent=0
    _
  %s7 = ssub.s32 1, %s5
  %s8 = scalar_select 0, %s7, %s5
  $region1: #{tpu_custom_call.1} parent=0
    #allocation4 [shape = 'u8[262144]{0}', space=vmem, size = 0x40000, scoped, tag = 'output window, operand 0']
    #allocation5 [shape = 's32[2]{0}', space=sflag, size = 0x8, scoped, tag = 'scoped memory for tpu_custom_call.1']
    %9 = vsyncpa [#allocation5], 0
    %s10 = scalar_lea.sflag [#allocation5], 1
    %11 = vsyncpa %s10, 0
    loop: start=0, step=1, limit=8
    $region2: #{tpu_custom_call.1} parent=1 // loop_pre_header
      _
    $region3: #{tpu_custom_call.1} parent=1 // loop_header
      %s13 = sphi 0, %s17
      %p14 = scmp.ge.s32.totalorder %s13, 8
      %s20 = sphi 0, %s32
      %s21 = sphi 0, %s28
      %s22 = sphi 0, %s20
      %s23 = sphi 0, %s21
      %s24 = sphi 0, %s22
      %s25 = sphi 0, %s23
      %s35 = sphi 0, %s37
      %s38 = sphi 0, %s35
      %s39 = sphi 0, %s38
      %s55 = sphi 0, %s39
      %s59 = sphi 0, %s59
      %s61 = sphi 0, %s59
      %s62 = sphi 0, %s61
      %s76 = sphi 0, %s62
      %s80 = sphi 0, %s80
      %s82 = sphi 0, %s80
      %s83 = sphi 0, %s82
      %s97 = sphi 0, %s83
      %s101 = sphi 0, %s101
      %s103 = sphi 0, %s101
      %s104 = sphi 0, %s103
      %s118 = sphi 0, %s104
      %s124 = sphi 0, %s126
      %s127 = sphi 0, %s124
      %s128 = sphi 0, %s127
      %s144 = sphi 0, %s128
    $region4: #{tpu_custom_call.1} parent=1 // loop_header_branch
      %16 = sbr.rel (%p14) target = $region8
    $region5: #{tpu_custom_call.1} parent=1 // loop_body
      %s18 = ssub.s32 %s13, 1
      %s19 = ssub.s32 %s13, 2
      %s26 = sadd.s32 1, %s21
      %p27 = scmp.ge.s32.totalorder %s26, 2
      %s28 = scalar_select %p27, 0, %s26
      %s29 = sadd.s32 1, %s20
      %s30 = scalar_select %p27, %s29, %s20
      %p31 = scmp.ge.s32.totalorder %s30, 3
      %s32 = scalar_select %p31, 0, %s30
      %s33 = ssub.s32 %s21, %s28
      %p34 = scmp.eq.s32.totalorder %s33, 0
      %s36 = sadd.s32 %s35, 1
      %s37 = scalar_select %p34, %s35, %s36
      %p40 = pneg %p34
      %p41 = scmp.eq.s32.totalorder %s13, 5
      %p42 = por %p40, %p41
      %p43 = scmp.ne.s32.totalorder %s35, %s38
      %p44 = scmp.eq.s32.totalorder %s13, 0
      %p45 = por %p43, %p44
      %p46 = scmp.ne.s32.totalorder %s35, %s38
      %p47 = scmp.eq.s32.totalorder %s18, 5
      %p48 = por %p46, %p47
      %p49 = scmp.ne.s32.totalorder %s38, %s39
      %p50 = scmp.eq.s32.totalorder %s18, 0
      %p51 = por %p49, %p50
      %p52 = scmp.ne.s32.totalorder %s38, %s39
      %p53 = scmp.eq.s32.totalorder %s19, 5
      %p54 = por %p52, %p53
      %p56 = scmp.ne.s32.totalorder %s39, %s55
      %p57 = scmp.eq.s32.totalorder %s19, 0
      %p58 = por %p56, %p57
      %s60 = sadd.s32 %s59, 1
      %p63 = scmp.eq.s32.totalorder %s13, 5
      %p64 = scmp.ne.s32.totalorder %s59, %s61
      %p65 = scmp.eq.s32.totalorder %s13, 0
      %p66 = por %p64, %p65
      %p67 = scmp.ne.s32.totalorder %s59, %s61
      %p68 = scmp.eq.s32.totalorder %s18, 5
      %p69 = por %p67, %p68
      %p70 = scmp.ne.s32.totalorder %s61, %s62
      %p71 = scmp.eq.s32.totalorder %s18, 0
      %p72 = por %p70, %p71
      %p73 = scmp.ne.s32.totalorder %s61, %s62
      %p74 = scmp.eq.s32.totalorder %s19, 5
      %p75 = por %p73, %p74
      %p77 = scmp.ne.s32.totalorder %s62, %s76
      %p78 = scmp.eq.s32.totalorder %s19, 0
      %p79 = por %p77, %p78
      %s81 = sadd.s32 %s80, 1
      %p84 = scmp.eq.s32.totalorder %s13, 5
      %p85 = scmp.ne.s32.totalorder %s80, %s82
      %p86 = scmp.eq.s32.totalorder %s13, 0
      %p87 = por %p85, %p86
      %p88 = scmp.ne.s32.totalorder %s80, %s82
      %p89 = scmp.eq.s32.totalorder %s18, 5
      %p90 = por %p88, %p89
      %p91 = scmp.ne.s32.totalorder %s82, %s83
      %p92 = scmp.eq.s32.totalorder %s18, 0
      %p93 = por %p91, %p92
      %p94 = scmp.ne.s32.totalorder %s82, %s83
      %p95 = scmp.eq.s32.totalorder %s19, 5
      %p96 = por %p94, %p95
      %p98 = scmp.ne.s32.totalorder %s83, %s97
      %p99 = scmp.eq.s32.totalorder %s19, 0
      %p100 = por %p98, %p99
      %s102 = sadd.s32 %s101, 1
      %p105 = scmp.eq.s32.totalorder %s13, 5
      %p106 = scmp.ne.s32.totalorder %s101, %s103
      %p107 = scmp.eq.s32.totalorder %s13, 0
      %p108 = por %p106, %p107
      %p109 = scmp.ne.s32.totalorder %s101, %s103
      %p110 = scmp.eq.s32.totalorder %s18, 5
      %p111 = por %p109, %p110
      %p112 = scmp.ne.s32.totalorder %s103, %s104
      %p113 = scmp.eq.s32.totalorder %s18, 0
      %p114 = por %p112, %p113
      %p115 = scmp.ne.s32.totalorder %s103, %s104
      %p116 = scmp.eq.s32.totalorder %s19, 5
      %p117 = por %p115, %p116
      %p119 = scmp.ne.s32.totalorder %s104, %s118
      %p120 = scmp.eq.s32.totalorder %s19, 0
      %p121 = por %p119, %p120
      %s122 = ssub.s32 %s21, %s28
      %p123 = scmp.eq.s32.totalorder %s122, 0
      %s125 = sadd.s32 %s124, 1
      %s126 = scalar_select %p123, %s124, %s125
      %p129 = pneg %p123
      %p130 = scmp.eq.s32.totalorder %s13, 5
      %p131 = por %p129, %p130
      %p132 = scmp.ne.s32.totalorder %s124, %s127
      %p133 = scmp.eq.s32.totalorder %s13, 0
      %p134 = por %p132, %p133
      %p135 = scmp.ne.s32.totalorder %s124, %s127
      %p136 = scmp.eq.s32.totalorder %s18, 5
      %p137 = por %p135, %p136
      %p138 = scmp.ne.s32.totalorder %s127, %s128
      %p139 = scmp.eq.s32.totalorder %s18, 0
      %p140 = por %p138, %p139
      %p141 = scmp.ne.s32.totalorder %s127, %s128
      %p142 = scmp.eq.s32.totalorder %s19, 5
      %p143 = por %p141, %p142
      %p145 = scmp.ne.s32.totalorder %s128, %s144
      %p146 = scmp.eq.s32.totalorder %s19, 0
      %p147 = por %p145, %p146
      %p148 = scmp.le.s32.totalorder 1, %s13
      %p149 = scmp.lt.s32.totalorder %s13, 7
      %p150 = pnand %p148, %p149
      %p151 = pneg %p150
      // Predicated region
      $region9: #{tpu_custom_call.1} parent=5 // pred_check
        _
      $region10: #{tpu_custom_call.1} parent=5 // pred_check_branch
        %153 = sbr.rel (%p150) target = $region12
      $region11: #{tpu_custom_call.1} parent=5 // pred_region
        %s154 = ssub.s32 %s13, 1
        // Predicated region
        $region13: #{tpu_custom_call.1} parent=11 // pred_check
          %p155 = pneg %p72
        $region14: #{tpu_custom_call.1} parent=11 // pred_check_branch
          %157 = sbr.rel (%p155) target = $region16
        $region15: #{tpu_custom_call.1} parent=11 // pred_region
          _
        $region16: #{tpu_custom_call.1} parent=11 // pred_fallthru
          _
        // Predicated region
        $region17: #{tpu_custom_call.1} parent=11 // pred_check
          %p158 = pneg %p93
        $region18: #{tpu_custom_call.1} parent=11 // pred_check_branch
          %160 = sbr.rel (%p158) target = $region20
        $region19: #{tpu_custom_call.1} parent=11 // pred_region
          _
        $region20: #{tpu_custom_call.1} parent=11 // pred_fallthru
          _
        // Predicated region
        $region21: #{tpu_custom_call.1} parent=11 // pred_check
          %p161 = pneg %p114
        $region22: #{tpu_custom_call.1} parent=11 // pred_check_branch
          %163 = sbr.rel (%p161) target = $region24
        $region23: #{tpu_custom_call.1} parent=11 // pred_region
          _
        $region24: #{tpu_custom_call.1} parent=11 // pred_fallthru
          _
      $region12: #{tpu_custom_call.1} parent=5 // pred_fallthru
        _
      %p164 = scmp.lt.s32.totalorder %s13, 6
      // Predicated region
      $region25: #{tpu_custom_call.1} parent=5 // pred_check
        %p165 = pneg %p164
      $region26: #{tpu_custom_call.1} parent=5 // pred_check_branch
        %167 = sbr.rel (%p165) target = $region28
      $region27: #{tpu_custom_call.1} parent=5 // pred_region
        // Predicated region
        $region29: #{tpu_custom_call.1} parent=27 // pred_check
          %p168 = pneg %p45
        $region30: #{tpu_custom_call.1} parent=27 // pred_check_branch
          %170 = sbr.rel (%p168) target = $region32
        $region31: #{tpu_custom_call.1} parent=27 // pred_region
          %p171 = scmp.lt.s32.totalorder %s21, 1
          %s172 = scalar_select %p171, %s21, 1
          %s173 = smul.addr %s172, 54
          %s174 = smul.addr %s173, 8
          %s175 = scalar_lea.vmem %s0, %s174
        $region32: #{tpu_custom_call.1} parent=27 // pred_fallthru
          _
      $region28: #{tpu_custom_call.1} parent=5 // pred_fallthru
        _
      %p176 = scmp.le.s32.totalorder 1, %s13
      %p177 = scmp.lt.s32.totalorder %s13, 7
      %p178 = pnand %p176, %p177
      %p179 = pneg %p178
      // Predicated region
      $region33: #{tpu_custom_call.1} parent=5 // pred_check
        _
      $region34: #{tpu_custom_call.1} parent=5 // pred_check_branch
        %181 = sbr.rel (%p178) target = $region36
      $region35: #{tpu_custom_call.1} parent=5 // pred_region
        %s182 = ssub.s32 %s13, 1
        %p183 = scmp.lt.s32.totalorder %s23, 1
        %s184 = scalar_select %p183, %s23, 1
        %s185 = smul.addr %s184, 54
        %s186 = smul.addr %s185, 8
        %s187 = scalar_lea.vmem %s0, %s186
        %p188 = pneg %p51
        %p189 = pneg %p48
        %p190 = pneg %p72
        %p191 = pneg %p69
        %p192 = pneg %p93
        %p193 = pneg %p90
        %p194 = pneg %p114
        %p195 = pneg %p111
        %p196 = pneg %p140
        %p197 = pneg %p137
        %s198 = sand.u32 %s127, 1
        %s199 = scalar_lea.sflag [#allocation5], %s198
        %s200 = sand.u32 %s127, 1
        %s201 = smul.addr %s200, 256
        %s202 = scalar_lea.vmem [#allocation4], %s201
        %p203 = scmp.lt.s32.totalorder %s23, 1
        %s204 = scalar_select %p203, %s23, 1
        %s205 = smul.addr %s204, 54
        %s206 = smul.addr %s205, 8
        %s207 = scalar_lea.vmem %s0, %s206
        %p209 = scmp.eq.s32.totalorder %s22, 0
        %p210 = scmp.eq.s32.totalorder %s23, 0
        %p211 = pnand %p209, %p210
        %p212 = pneg %p211
        // Predicated region
        $region37: #{tpu_custom_call.1} parent=35 // pred_check
          _
        $region38: #{tpu_custom_call.1} parent=35 // pred_check_branch
          %214 = sbr.rel (%p211) target = $region40
        $region39: #{tpu_custom_call.1} parent=35 // pred_region
          %215 = vst [vmem:[#allocation3] sm:$0xf] 0.0
          %216 = vst [vmem:[#allocation2] sm:$0xff] 0.0
          %217 = vst [vmem:[#allocation2 + $0x8] sm:$0xff] 0.0
          %218 = vst [vmem:[#allocation2 + $0x10] sm:$0x3] 0.0
          %219 = vst [vmem:[#allocation2 + $0x18] sm:$0xff] 0.0
          %220 = vst [vmem:[#allocation2 + $0x20] sm:$0xff] 0.0
          %221 = vst [vmem:[#allocation2 + $0x28] sm:$0x3] 0.0
          %222 = vst [vmem:[#allocation2 + $0x30] sm:$0xff] 0.0
          %223 = vst [vmem:[#allocation2 + $0x38] sm:$0xff] 0.0
          %224 = vst [vmem:[#allocation2 + $0x40] sm:$0x3] 0.0
          %225 = vst [vmem:[#allocation2 + $0x48] sm:$0xff] 0.0
          %226 = vst [vmem:[#allocation2 + $0x50] sm:$0xff] 0.0
          %227 = vst [vmem:[#allocation2 + $0x58] sm:$0x3] 0.0
          %228 = vst [vmem:[#allocation2 + $0x60] sm:$0xff] 0.0
          %229 = vst [vmem:[#allocation2 + $0x68] sm:$0xff] 0.0
          %230 = vst [vmem:[#allocation2 + $0x70] sm:$0x3] 0.0
          %231 = vst [vmem:[#allocation2 + $0x78] sm:$0xff] 0.0
          %232 = vst [vmem:[#allocation2 + $0x80] sm:$0xff] 0.0
          %233 = vst [vmem:[#allocation2 + $0x88] sm:$0x3] 0.0
          %234 = vst [vmem:[#allocation2 + $0x90] sm:$0xff] 0.0
          %235 = vst [vmem:[#allocation2 + $0x98] sm:$0xff] 0.0
          %236 = vst [vmem:[#allocation2 + $0xa0] sm:$0x3] 0.0
          %237 = vst [vmem:[#allocation2 + $0xa8] sm:$0xff] 0.0
          %238 = vst [vmem:[#allocation2 + $0xb0] sm:$0xff] 0.0
          %239 = vst [vmem:[#allocation2 + $0xb8] sm:$0x3] 0.0
          %240 = vst [vmem:[#allocation2 + $0xc0] sm:$0xff] 0.0
          %241 = vst [vmem:[#allocation2 + $0xc8] sm:$0xff] 0.0
          %242 = vst [vmem:[#allocation2 + $0xd0] sm:$0x3] 0.0
          %243 = vst [vmem:[#allocation2 + $0xd8] sm:$0xff] 0.0
          %244 = vst [vmem:[#allocation2 + $0xe0] sm:$0xff] 0.0
          %245 = vst [vmem:[#allocation2 + $0xe8] sm:$0x3] 0.0
          %246 = vst [vmem:[#allocation2 + $0xf0] sm:$0xff] 0.0
          %247 = vst [vmem:[#allocation2 + $0xf8] sm:$0xff] 0.0
          %248 = vst [vmem:[#allocation2 + $0x100] sm:$0x3] 0.0
          %249 = vst [vmem:[#allocation2 + $0x108] sm:$0xff] 0.0
          %250 = vst [vmem:[#allocation2 + $0x110] sm:$0xff] 0.0
          %251 = vst [vmem:[#allocation2 + $0x118] sm:$0x3] 0.0
          %252 = vst [vmem:[#allocation2 + $0x120] sm:$0xff] 0.0
          %253 = vst [vmem:[#allocation2 + $0x128] sm:$0xff] 0.0
          %254 = vst [vmem:[#allocation2 + $0x130] sm:$0x3] 0.0
          %255 = vst [vmem:[#allocation2 + $0x138] sm:$0xff] 0.0
          %256 = vst [vmem:[#allocation2 + $0x140] sm:$0xff] 0.0
          %257 = vst [vmem:[#allocation2 + $0x148] sm:$0x3] 0.0
          %258 = vst [vmem:[#allocation2 + $0x150] sm:$0xff] 0.0
          %259 = vst [vmem:[#allocation2 + $0x158] sm:$0xff] 0.0
          %260 = vst [vmem:[#allocation2 + $0x160] sm:$0x3] 0.0
          %261 = vst [vmem:[#allocation2 + $0x168] sm:$0xff] 0.0
          %262 = vst [vmem:[#allocation2 + $0x170] sm:$0xff] 0.0
          %263 = vst [vmem:[#allocation2 + $0x178] sm:$0x3] 0.0
          %264 = vst [vmem:[#allocation2 + $0x180] sm:$0xff] 0.0
          %265 = vst [vmem:[#allocation2 + $0x188] sm:$0xff] 0.0
          %266 = vst [vmem:[#allocation2 + $0x190] sm:$0x3] 0.0
          %267 = vst [vmem:[#allocation2 + $0x198] sm:$0xff] 0.0
          %268 = vst [vmem:[#allocation2 + $0x1a0] sm:$0xff] 0.0
          %269 = vst [vmem:[#allocation2 + $0x1a8] sm:$0x3] 0.0
        $region40: #{tpu_custom_call.1} parent=35 // pred_fallthru
          _
        %v270 = vld [vmem:[%s207] sm:$0xff]
        %v271 = vld [vmem:[%s207 + $0x8] sm:$0xff]
        %v272 = vld [vmem:[%s207 + $0x10] sm:$0x3]
        %v273 = vld [vmem:[%s207 + $0x18] sm:$0xff]
        %v274 = vld [vmem:[%s207 + $0x20] sm:$0xff]
        %v275 = vld [vmem:[%s207 + $0x28] sm:$0x3]
        %v276 = vld [vmem:[%s207 + $0x30] sm:$0xff]
        %v277 = vld [vmem:[%s207 + $0x38] sm:$0xff]
        %v278 = vld [vmem:[%s207 + $0x40] sm:$0x3]
        %v279 = vld [vmem:[%s207 + $0x48] sm:$0xff]
        %v280 = vld [vmem:[%s207 + $0x50] sm:$0xff]
        %v281 = vld [vmem:[%s207 + $0x58] sm:$0x3]
        %v282 = vld [vmem:[%s207 + $0x60] sm:$0xff]
        %v283 = vld [vmem:[%s207 + $0x68] sm:$0xff]
        %v284 = vld [vmem:[%s207 + $0x70] sm:$0x3]
        %v285 = vld [vmem:[%s207 + $0x78] sm:$0xff]
        %v286 = vld [vmem:[%s207 + $0x80] sm:$0xff]
        %v287 = vld [vmem:[%s207 + $0x88] sm:$0x3]
        %v288 = vld [vmem:[%s207 + $0x90] sm:$0xff]
        %v289 = vld [vmem:[%s207 + $0x98] sm:$0xff]
        %v290 = vld [vmem:[%s207 + $0xa0] sm:$0x3]
        %v291 = vld [vmem:[%s207 + $0xa8] sm:$0xff]
        %v292 = vld [vmem:[%s207 + $0xb0] sm:$0xff]
        %v293 = vld [vmem:[%s207 + $0xb8] sm:$0x3]
        %v294 = vld [vmem:[%s207 + $0xc0] sm:$0xff]
        %v295 = vld [vmem:[%s207 + $0xc8] sm:$0xff]
        %v296 = vld [vmem:[%s207 + $0xd0] sm:$0x3]
        %v297 = vld [vmem:[%s207 + $0xd8] sm:$0xff]
        %v298 = vld [vmem:[%s207 + $0xe0] sm:$0xff]
        %v299 = vld [vmem:[%s207 + $0xe8] sm:$0x3]
        %v300 = vld [vmem:[%s207 + $0xf0] sm:$0xff]
        %v301 = vld [vmem:[%s207 + $0xf8] sm:$0xff]
        %v302 = vld [vmem:[%s207 + $0x100] sm:$0x3]
        %v303 = vld [vmem:[%s207 + $0x108] sm:$0xff]
        %v304 = vld [vmem:[%s207 + $0x110] sm:$0xff]
        %v305 = vld [vmem:[%s207 + $0x118] sm:$0x3]
        %v306 = vld [vmem:[%s207 + $0x120] sm:$0xff]
        %v307 = vld [vmem:[%s207 + $0x128] sm:$0xff]
        %v308 = vld [vmem:[%s207 + $0x130] sm:$0x3]
        %v309 = vld [vmem:[%s207 + $0x138] sm:$0xff]
        %v310 = vld [vmem:[%s207 + $0x140] sm:$0xff]
        %v311 = vld [vmem:[%s207 + $0x148] sm:$0x3]
        %v312 = vld [vmem:[%s207 + $0x150] sm:$0xff]
        %v313 = vld [vmem:[%s207 + $0x158] sm:$0xff]
        %v314 = vld [vmem:[%s207 + $0x160] sm:$0x3]
        %v315 = vld [vmem:[%s207 + $0x168] sm:$0xff]
        %v316 = vld [vmem:[%s207 + $0x170] sm:$0xff]
        %v317 = vld [vmem:[%s207 + $0x178] sm:$0x3]
        %v318 = vld [vmem:[%s207 + $0x180] sm:$0xff]
        %v319 = vld [vmem:[%s207 + $0x188] sm:$0xff]
        %v320 = vld [vmem:[%s207 + $0x190] sm:$0x3]
        %v321 = vld [vmem:[%s207 + $0x198] sm:$0xff]
        %v322 = vld [vmem:[%s207 + $0x1a0] sm:$0xff]
        %v323 = vld [vmem:[%s207 + $0x1a8] sm:$0x3]
        %v324 = vpack.c.bf16 %v271, %v270
        %v325 = vpack.c.bf16 %v272, %v272
        %v326 = vpack.c.bf16 %v274, %v273
        %v327 = vpack.c.bf16 %v275, %v275
        %v328 = vpack.c.bf16 %v277, %v276
        %v329 = vpack.c.bf16 %v278, %v278
        %v330 = vpack.c.bf16 %v280, %v279
        %v331 = vpack.c.bf16 %v281, %v281
        %v332 = vpack.c.bf16 %v283, %v282
        %v333 = vpack.c.bf16 %v284, %v284
        %v334 = vpack.c.bf16 %v286, %v285
        %v335 = vpack.c.bf16 %v287, %v287
        %v336 = vpack.c.bf16 %v289, %v288
        %v337 = vpack.c.bf16 %v290, %v290
        %v338 = vpack.c.bf16 %v292, %v291
        %v339 = vpack.c.bf16 %v293, %v293
        %v340 = vpack.c.bf16 %v295, %v294
        %v341 = vpack.c.bf16 %v296, %v296
        %v342 = vpack.c.bf16 %v298, %v297
        %v343 = vpack.c.bf16 %v299, %v299
        %v344 = vpack.c.bf16 %v301, %v300
        %v345 = vpack.c.bf16 %v302, %v302
        %v346 = vpack.c.bf16 %v304, %v303
        %v347 = vpack.c.bf16 %v305, %v305
        %v348 = vpack.c.bf16 %v307, %v306
        %v349 = vpack.c.bf16 %v308, %v308
        %v350 = vpack.c.bf16 %v310, %v309
        %v351 = vpack.c.bf16 %v311, %v311
        %v352 = vpack.c.bf16 %v313, %v312
        %v353 = vpack.c.bf16 %v314, %v314
        %v354 = vpack.c.bf16 %v316, %v315
        %v355 = vpack.c.bf16 %v317, %v317
        %v356 = vpack.c.bf16 %v319, %v318
        %v357 = vpack.c.bf16 %v320, %v320
        %v358 = vpack.c.bf16 %v322, %v321
        %v359 = vpack.c.bf16 %v323, %v323
        %v360 = vld [vmem:[%s1] sm:$0xf]
        %v361 = vld [vmem:[%s1 + $0x4] sm:$0xf]
        %v362 = vld [vmem:[%s1 + $0x8] sm:$0xf]
        %v363 = vld [vmem:[%s1 + $0xc] sm:$0xf]
        %v364 = vld [vmem:[%s1 + $0x10] sm:$0xf]
        %v365 = vld [vmem:[%s1 + $0x14] sm:$0xf]
        %v366 = vld [vmem:[%s1 + $0x18] sm:$0xf]
        %v367 = vld [vmem:[%s1 + $0x1c] sm:$0xf]
        %v368 = vld [vmem:[%s1 + $0x20] sm:$0xf]
        %v369 = vld [vmem:[%s1 + $0x24] sm:$0xf]
        %v370 = vld [vmem:[%s1 + $0x28] sm:$0xf]
        %v371 = vld [vmem:[%s1 + $0x2c] sm:$0xf]
        %v372 = vld [vmem:[%s1 + $0x30] sm:$0xf]
        %v373 = vld [vmem:[%s1 + $0x34] sm:$0xf]
        %v374 = vld [vmem:[%s1 + $0x38] sm:$0xf]
        %v375 = vld [vmem:[%s1 + $0x3c] sm:$0xf]
        %vm376 = vsmask.f32 7424
        %v378 = vshrl.u32 %v324, 16
        %v380 = vshll.u32 %v324, 16
        %v382 = vrot.slane %v380, 1
        %v383 = vor.u32 %v378, %v382
        %v385 = vshll.u32 %v325, 16
        %v387 = vrot.slane %v385, 1
        %v388 = vsel %vm376, %v383, %v387
        %v390 = vshrl.u32 %v326, 16
        %v392 = vshll.u32 %v326, 16
        %v394 = vrot.slane %v392, 1
        %v395 = vor.u32 %v390, %v394
        %v397 = vshll.u32 %v327, 16
        %v399 = vrot.slane %v397, 1
        %v400 = vsel %vm376, %v395, %v399
        %v402 = vshrl.u32 %v328, 16
        %v404 = vshll.u32 %v328, 16
        %v406 = vrot.slane %v404, 1
        %v407 = vor.u32 %v402, %v406
        %v409 = vshll.u32 %v329, 16
        %v411 = vrot.slane %v409, 1
        %v412 = vsel %vm376, %v407, %v411
        %v414 = vshrl.u32 %v330, 16
        %v416 = vshll.u32 %v330, 16
        %v418 = vrot.slane %v416, 1
        %v419 = vor.u32 %v414, %v418
        %v421 = vshll.u32 %v331, 16
        %v423 = vrot.slane %v421, 1
        %v424 = vsel %vm376, %v419, %v423
        %v426 = vshrl.u32 %v332, 16
        %v428 = vshll.u32 %v332, 16
        %v430 = vrot.slane %v428, 1
        %v431 = vor.u32 %v426, %v430
        %v433 = vshll.u32 %v333, 16
        %v435 = vrot.slane %v433, 1
        %v436 = vsel %vm376, %v431, %v435
        %v438 = vshrl.u32 %v334, 16
        %v440 = vshll.u32 %v334, 16
        %v442 = vrot.slane %v440, 1
        %v443 = vor.u32 %v438, %v442
        %v445 = vshll.u32 %v335, 16
        %v447 = vrot.slane %v445, 1
        %v448 = vsel %vm376, %v443, %v447
        %v450 = vshrl.u32 %v336, 16
        %v452 = vshll.u32 %v336, 16
        %v454 = vrot.slane %v452, 1
        %v455 = vor.u32 %v450, %v454
        %v457 = vshll.u32 %v337, 16
        %v459 = vrot.slane %v457, 1
        %v460 = vsel %vm376, %v455, %v459
        %v462 = vshrl.u32 %v338, 16
        %v464 = vshll.u32 %v338, 16
        %v466 = vrot.slane %v464, 1
        %v467 = vor.u32 %v462, %v466
        %v469 = vshll.u32 %v339, 16
        %v471 = vrot.slane %v469, 1
        %v472 = vsel %vm376, %v467, %v471
        %v474 = vshrl.u32 %v340, 16
        %v476 = vshll.u32 %v340, 16
        %v478 = vrot.slane %v476, 1
        %v479 = vor.u32 %v474, %v478
        %v481 = vshll.u32 %v341, 16
        %v483 = vrot.slane %v481, 1
        %v484 = vsel %vm376, %v479, %v483
        %v486 = vshrl.u32 %v342, 16
        %v488 = vshll.u32 %v342, 16
        %v490 = vrot.slane %v488, 1
        %v491 = vor.u32 %v486, %v490
        %v493 = vshll.u32 %v343, 16
        %v495 = vrot.slane %v493, 1
        %v496 = vsel %vm376, %v491, %v495
        %v498 = vshrl.u32 %v344, 16
        %v500 = vshll.u32 %v344, 16
        %v502 = vrot.slane %v500, 1
        %v503 = vor.u32 %v498, %v502
        %v505 = vshll.u32 %v345, 16
        %v507 = vrot.slane %v505, 1
        %v508 = vsel %vm376, %v503, %v507
        %v510 = vshrl.u32 %v346, 16
        %v512 = vshll.u32 %v346, 16
        %v514 = vrot.slane %v512, 1
        %v515 = vor.u32 %v510, %v514
        %v517 = vshll.u32 %v347, 16
        %v519 = vrot.slane %v517, 1
        %v520 = vsel %vm376, %v515, %v519
        %v522 = vshrl.u32 %v348, 16
        %v524 = vshll.u32 %v348, 16
        %v526 = vrot.slane %v524, 1
        %v527 = vor.u32 %v522, %v526
        %v529 = vshll.u32 %v349, 16
        %v531 = vrot.slane %v529, 1
        %v532 = vsel %vm376, %v527, %v531
        %v534 = vshrl.u32 %v350, 16
        %v536 = vshll.u32 %v350, 16
        %v538 = vrot.slane %v536, 1
        %v539 = vor.u32 %v534, %v538
        %v541 = vshll.u32 %v351, 16
        %v543 = vrot.slane %v541, 1
        %v544 = vsel %vm376, %v539, %v543
        %v546 = vshrl.u32 %v352, 16
        %v548 = vshll.u32 %v352, 16
        %v550 = vrot.slane %v548, 1
        %v551 = vor.u32 %v546, %v550
        %v553 = vshll.u32 %v353, 16
        %v555 = vrot.slane %v553, 1
        %v556 = vsel %vm376, %v551, %v555
        %v558 = vshrl.u32 %v354, 16
        %v560 = vshll.u32 %v354, 16
        %v562 = vrot.slane %v560, 1
        %v563 = vor.u32 %v558, %v562
        %v565 = vshll.u32 %v355, 16
        %v567 = vrot.slane %v565, 1
        %v568 = vsel %vm376, %v563, %v567
        %s585 = scalar_lea.vmem %s1, 64
        %v586 = vld [vmem:[%s585] sm:$0xf]
        %v587 = vld [vmem:[%s585 + $0x4] sm:$0xf]
        %v588 = vld [vmem:[%s585 + $0x8] sm:$0xf]
        %v589 = vld [vmem:[%s585 + $0xc] sm:$0xf]
        %v590 = vld [vmem:[%s585 + $0x10] sm:$0xf]
        %v591 = vld [vmem:[%s585 + $0x14] sm:$0xf]
        %v592 = vld [vmem:[%s585 + $0x18] sm:$0xf]
        %v593 = vld [vmem:[%s585 + $0x1c] sm:$0xf]
        %v594 = vld [vmem:[%s585 + $0x20] sm:$0xf]
        %v595 = vld [vmem:[%s585 + $0x24] sm:$0xf]
        %v596 = vld [vmem:[%s585 + $0x28] sm:$0xf]
        %v597 = vld [vmem:[%s585 + $0x2c] sm:$0xf]
        %v598 = vld [vmem:[%s585 + $0x30] sm:$0xf]
        %v599 = vld [vmem:[%s585 + $0x34] sm:$0xf]
        %v600 = vld [vmem:[%s585 + $0x38] sm:$0xf]
        %v601 = vld [vmem:[%s585 + $0x3c] sm:$0xf]
        %v618 = vunpack.c.l.b16 %v586
        %v619 = vunpack.c.l.b16 %v587
        %v620 = vunpack.c.l.b16 %v588
        %v621 = vunpack.c.l.b16 %v589
        %v622 = vunpack.c.l.b16 %v590
        %v623 = vunpack.c.l.b16 %v591
        %v624 = vunpack.c.l.b16 %v592
        %v625 = vunpack.c.l.b16 %v593
        %v626 = vunpack.c.l.b16 %v594
        %v627 = vunpack.c.l.b16 %v595
        %v628 = vunpack.c.l.b16 %v596
        %v629 = vunpack.c.l.b16 %v597
        %v630 = vunpack.c.l.b16 %v598
        %v631 = vunpack.c.l.b16 %v599
        %v632 = vunpack.c.l.b16 %v600
        %v633 = vunpack.c.l.b16 %v601
        %v634 = vpack.c.b16 %v619, %v618
        %v635 = vpack.c.b16 %v621, %v620
        %v636 = vpack.c.b16 %v623, %v622
        %v637 = vpack.c.b16 %v625, %v624
        %v638 = vpack.c.b16 %v627, %v626
        %v639 = vpack.c.b16 %v629, %v628
        %v640 = vpack.c.b16 %v631, %v630
        %v641 = vpack.c.b16 %v633, %v632
        %650 = vmatprep.subr.bf16.mxu0 0
        %651 = vmatpush1.bf16.msra.mxu0 %v634
        %652 = vmatprep.subr.bf16.mxu0 0
        %653 = vmatpush1.bf16.msra.mxu0 %v635
        %654 = vmatprep.subr.bf16.mxu0 0
        %655 = vmatpush1.bf16.msra.mxu0 %v636
        %656 = vmatprep.subr.bf16.mxu0 0
        %657 = vmatpush1.bf16.msra.mxu0 %v637
        %658 = vmatprep.subr.bf16.mxu0 0
        %659 = vmatpush1.bf16.msra.mxu0 %v638
        %660 = vmatprep.subr.bf16.mxu0 0
        %661 = vmatpush1.bf16.msra.mxu0 %v639
        %662 = vmatprep.subr.bf16.mxu0 0
        %663 = vmatpush1.bf16.msra.mxu0 %v640
        %664 = vmatprep.subr.bf16.mxu0 0
        %665 = vmatpush1.bf16.msra.mxu0 %v641
        %666 = vmatprep.subr.bf16.mxu0 0
        %667 = vmatpush1.bf16.msra.mxu0 0
        %668 = vmatprep.subr.bf16.mxu0 0
        %669 = vmatpush1.bf16.msra.mxu0 0
        %670 = vmatprep.subr.bf16.mxu0 0
        %671 = vmatpush1.bf16.msra.mxu0 0
        %672 = vmatprep.subr.bf16.mxu0 0
        %673 = vmatpush1.bf16.msra.mxu0 0
        %674 = vmatprep.subr.bf16.mxu0 0
        %675 = vmatpush1.bf16.msra.mxu0 0
        %676 = vmatprep.subr.bf16.mxu0 0
        %677 = vmatpush1.bf16.msra.mxu0 0
        %678 = vmatprep.subr.bf16.mxu0 0
        %679 = vmatpush1.bf16.msra.mxu0 0
        %680 = vmatprep.subr.bf16.mxu0 0
        %681 = vmatpush1.bf16.msra.mxu0 0
        %682 = vmatprep.mubr.bf16.mxu0 0
        %683 = vmatmul.mubr.bf16.gmra.mrb[0].mxu0 %v388
        %v684 = vpop.f32.mrb[0].mxu0
        %v685 = vadd.f32 0.0, %v684
        %v686 = vpop.f32.mrb[0].mxu0
        %v687 = vpop.f32.mrb[0].mxu0
        %v688 = vadd.f32 0.0, %v687
        %v689 = vpop.f32.mrb[0].mxu0
        %690 = vmatprep.mubr.bf16.mxu0 0
        %691 = vmatmul.mubr.bf16.gmra.mrb[0].mxu0 %v400
        %v692 = vpop.f32.mrb[0].mxu0
        %v693 = vadd.f32 0.0, %v692
        %v694 = vpop.f32.mrb[0].mxu0
        %v695 = vpop.f32.mrb[0].mxu0
        %v696 = vadd.f32 0.0, %v695
        %v697 = vpop.f32.mrb[0].mxu0
        %698 = vmatprep.mubr.bf16.mxu0 0
        %699 = vmatmul.mubr.bf16.gmra.mrb[0].mxu0 %v412
        %v700 = vpop.f32.mrb[0].mxu0
        %v701 = vadd.f32 0.0, %v700
        %v702 = vpop.f32.mrb[0].mxu0
        %v703 = vpop.f32.mrb[0].mxu0
        %v704 = vadd.f32 0.0, %v703
        %v705 = vpop.f32.mrb[0].mxu0
        %706 = vmatprep.mubr.bf16.mxu0 0
        %707 = vmatmul.mubr.bf16.gmra.mrb[0].mxu0 %v424
        %v708 = vpop.f32.mrb[0].mxu0
        %v709 = vadd.f32 0.0, %v708
        %v710 = vpop.f32.mrb[0].mxu0
        %v711 = vpop.f32.mrb[0].mxu0
        %v712 = vadd.f32 0.0, %v711
        %v713 = vpop.f32.mrb[0].mxu0
        %714 = vmatprep.mubr.bf16.mxu0 0
        %715 = vmatmul.mubr.bf16.gmra.mrb[0].mxu0 %v436
        %v716 = vpop.f32.mrb[0].mxu0
        %v717 = vadd.f32 0.0, %v716
        %v718 = vpop.f32.mrb[0].mxu0
        %v719 = vpop.f32.mrb[0].mxu0
        %v720 = vadd.f32 0.0, %v719
        %v721 = vpop.f32.mrb[0].mxu0
        %722 = vmatprep.mubr.bf16.mxu0 0
        %723 = vmatmul.mubr.bf16.gmra.mrb[0].mxu0 %v448
        %v724 = vpop.f32.mrb[0].mxu0
        %v725 = vadd.f32 0.0, %v724
        %v726 = vpop.f32.mrb[0].mxu0
        %v727 = vpop.f32.mrb[0].mxu0
        %v728 = vadd.f32 0.0, %v727
        %v729 = vpop.f32.mrb[0].mxu0
        %730 = vmatprep.mubr.bf16.mxu0 0
        %731 = vmatmul.mubr.bf16.gmra.mrb[0].mxu0 %v460
        %v732 = vpop.f32.mrb[0].mxu0
        %v733 = vadd.f32 0.0, %v732
        %v734 = vpop.f32.mrb[0].mxu0
        %v735 = vpop.f32.mrb[0].mxu0
        %v736 = vadd.f32 0.0, %v735
        %v737 = vpop.f32.mrb[0].mxu0
        %738 = vmatprep.mubr.bf16.mxu0 0
        %739 = vmatmul.mubr.bf16.gmra.mrb[0].mxu0 %v472
        %v740 = vpop.f32.mrb[0].mxu0
        %v741 = vadd.f32 0.0, %v740
        %v742 = vpop.f32.mrb[0].mxu0
        %v743 = vpop.f32.mrb[0].mxu0
        %v744 = vadd.f32 0.0, %v743
        %v745 = vpop.f32.mrb[0].mxu0
        %746 = vmatprep.mubr.bf16.mxu0 0
        %747 = vmatmul.mubr.bf16.gmra.mrb[0].mxu0 %v484
        %v748 = vpop.f32.mrb[0].mxu0
        %v749 = vadd.f32 0.0, %v748
        %v750 = vpop.f32.mrb[0].mxu0
        %v751 = vpop.f32.mrb[0].mxu0
        %v752 = vadd.f32 0.0, %v751
        %v753 = vpop.f32.mrb[0].mxu0
        %754 = vmatprep.mubr.bf16.mxu0 0
        %755 = vmatmul.mubr.bf16.gmra.mrb[0].mxu0 %v496
        %v756 = vpop.f32.mrb[0].mxu0
        %v757 = vadd.f32 0.0, %v756
        %v758 = vpop.f32.mrb[0].mxu0
        %v759 = vpop.f32.mrb[0].mxu0
        %v760 = vadd.f32 0.0, %v759
        %v761 = vpop.f32.mrb[0].mxu0
        %762 = vmatprep.mubr.bf16.mxu0 0
        %763 = vmatmul.mubr.bf16.gmra.mrb[0].mxu0 %v508
        %v764 = vpop.f32.mrb[0].mxu0
        %v765 = vadd.f32 0.0, %v764
        %v766 = vpop.f32.mrb[0].mxu0
        %v767 = vpop.f32.mrb[0].mxu0
        %v768 = vadd.f32 0.0, %v767
        %v769 = vpop.f32.mrb[0].mxu0
        %770 = vmatprep.mubr.bf16.mxu0 0
        %771 = vmatmul.mubr.bf16.gmra.mrb[0].mxu0 %v520
        %v772 = vpop.f32.mrb[0].mxu0
        %v773 = vadd.f32 0.0, %v772
        %v774 = vpop.f32.mrb[0].mxu0
        %v775 = vpop.f32.mrb[0].mxu0
        %v776 = vadd.f32 0.0, %v775
        %v777 = vpop.f32.mrb[0].mxu0
        %778 = vmatprep.mubr.bf16.mxu0 0
        %779 = vmatmul.mubr.bf16.gmra.mrb[0].mxu0 %v532
        %v780 = vpop.f32.mrb[0].mxu0
        %v781 = vadd.f32 0.0, %v780
        %v782 = vpop.f32.mrb[0].mxu0
        %v783 = vpop.f32.mrb[0].mxu0
        %v784 = vadd.f32 0.0, %v783
        %v785 = vpop.f32.mrb[0].mxu0
        %786 = vmatprep.mubr.bf16.mxu0 0
        %787 = vmatmul.mubr.bf16.gmra.mrb[0].mxu0 %v544
        %v788 = vpop.f32.mrb[0].mxu0
        %v789 = vadd.f32 0.0, %v788
        %v790 = vpop.f32.mrb[0].mxu0
        %v791 = vpop.f32.mrb[0].mxu0
        %v792 = vadd.f32 0.0, %v791
        %v793 = vpop.f32.mrb[0].mxu0
        %794 = vmatprep.mubr.bf16.mxu0 0
        %795 = vmatmul.mubr.bf16.gmra.mrb[0].mxu0 %v556
        %v796 = vpop.f32.mrb[0].mxu0
        %v797 = vadd.f32 0.0, %v796
        %v798 = vpop.f32.mrb[0].mxu0
        %v799 = vpop.f32.mrb[0].mxu0
        %v800 = vadd.f32 0.0, %v799
        %v801 = vpop.f32.mrb[0].mxu0
        %802 = vmatprep.mubr.bf16.mxu0 0
        %803 = vmatmul.mubr.bf16.gmra.mrb[0].mxu0 %v568
        %v804 = vpop.f32.mrb[0].mxu0
        %v805 = vadd.f32 0.0, %v804
        %v806 = vpop.f32.mrb[0].mxu0
        %v807 = vpop.f32.mrb[0].mxu0
        %v808 = vadd.f32 0.0, %v807
        %v809 = vpop.f32.mrb[0].mxu0
        %810 = vdwg.mxu0
        %v827 = vunpack.c.l.b16 %v360
        %v828 = vunpack.c.l.b16 %v361
        %v829 = vunpack.c.l.b16 %v362
        %v830 = vunpack.c.l.b16 %v363
        %v831 = vunpack.c.l.b16 %v364
        %v832 = vunpack.c.l.b16 %v365
        %v833 = vunpack.c.l.b16 %v366
        %v834 = vunpack.c.l.b16 %v367
        %v835 = vunpack.c.l.b16 %v368
        %v836 = vunpack.c.l.b16 %v369
        %v837 = vunpack.c.l.b16 %v370
        %v838 = vunpack.c.l.b16 %v371
        %v839 = vunpack.c.l.b16 %v372
        %v840 = vunpack.c.l.b16 %v373
        %v841 = vunpack.c.l.b16 %v374
        %v842 = vunpack.c.l.b16 %v375
        %v843 = vpack.c.b16 %v828, %v827
        %v844 = vpack.c.b16 %v830, %v829
        %v845 = vpack.c.b16 %v832, %v831
        %v846 = vpack.c.b16 %v834, %v833
        %v847 = vpack.c.b16 %v836, %v835
        %v848 = vpack.c.b16 %v838, %v837
        %v849 = vpack.c.b16 %v840, %v839
        %v850 = vpack.c.b16 %v842, %v841
        %859 = vmatprep.subr.bf16.mxu0 0
        %860 = vmatpush1.bf16.msra.mxu0 %v843
        %861 = vmatprep.subr.bf16.mxu0 0
        %862 = vmatpush1.bf16.msra.mxu0 %v844
        %863 = vmatprep.subr.bf16.mxu0 0
        %864 = vmatpush1.bf16.msra.mxu0 %v845
        %865 = vmatprep.subr.bf16.mxu0 0
        %866 = vmatpush1.bf16.msra.mxu0 %v846
        %867 = vmatprep.subr.bf16.mxu0 0
        %868 = vmatpush1.bf16.msra.mxu0 %v847
        %869 = vmatprep.subr.bf16.mxu0 0
        %870 = vmatpush1.bf16.msra.mxu0 %v848
        %871 = vmatprep.subr.bf16.mxu0 0
        %872 = vmatpush1.bf16.msra.mxu0 %v849
        %873 = vmatprep.subr.bf16.mxu0 0
        %874 = vmatpush1.bf16.msra.mxu0 %v850
        %875 = vmatprep.subr.bf16.mxu0 0
        %876 = vmatpush1.bf16.msra.mxu0 0
        %877 = vmatprep.subr.bf16.mxu0 0
        %878 = vmatpush1.bf16.msra.mxu0 0
        %879 = vmatprep.subr.bf16.mxu0 0
        %880 = vmatpush1.bf16.msra.mxu0 0
        %881 = vmatprep.subr.bf16.mxu0 0
        %882 = vmatpush1.bf16.msra.mxu0 0
        %883 = vmatprep.subr.bf16.mxu0 0
        %884 = vmatpush1.bf16.msra.mxu0 0
        %885 = vmatprep.subr.bf16.mxu0 0
        %886 = vmatpush1.bf16.msra.mxu0 0
        %887 = vmatprep.subr.bf16.mxu0 0
        %888 = vmatpush1.bf16.msra.mxu0 0
        %889 = vmatprep.subr.bf16.mxu0 0
        %890 = vmatpush1.bf16.msra.mxu0 0
        %891 = vmatprep.mubr.bf16.mxu0 0
        %892 = vmatmul.mubr.bf16.gmra.mrb[0].mxu0 %v324
        %v893 = vpop.f32.mrb[0].mxu0
        %v894 = vadd.f32 %v685, %v893
        %v895 = vpop.f32.mrb[0].mxu0
        %v896 = vpop.f32.mrb[0].mxu0
        %v897 = vadd.f32 %v688, %v896
        %v898 = vpop.f32.mrb[0].mxu0
        %899 = vmatprep.mubr.bf16.mxu0 0
        %900 = vmatmul.mubr.bf16.gmra.mrb[0].mxu0 %v326
        %v901 = vpop.f32.mrb[0].mxu0
        %v902 = vadd.f32 %v693, %v901
        %v903 = vpop.f32.mrb[0].mxu0
        %v904 = vpop.f32.mrb[0].mxu0
        %v905 = vadd.f32 %v696, %v904
        %v906 = vpop.f32.mrb[0].mxu0
        %907 = vmatprep.mubr.bf16.mxu0 0
        %908 = vmatmul.mubr.bf16.gmra.mrb[0].mxu0 %v328
        %v909 = vpop.f32.mrb[0].mxu0
        %v910 = vadd.f32 %v701, %v909
        %v911 = vpop.f32.mrb[0].mxu0
        %v912 = vpop.f32.mrb[0].mxu0
        %v913 = vadd.f32 %v704, %v912
        %v914 = vpop.f32.mrb[0].mxu0
        %915 = vmatprep.mubr.bf16.mxu0 0
        %916 = vmatmul.mubr.bf16.gmra.mrb[0].mxu0 %v330
        %v917 = vpop.f32.mrb[0].mxu0
        %v918 = vadd.f32 %v709, %v917
        %v919 = vpop.f32.mrb[0].mxu0
        %v920 = vpop.f32.mrb[0].mxu0
        %v921 = vadd.f32 %v712, %v920
        %v922 = vpop.f32.mrb[0].mxu0
        %923 = vmatprep.mubr.bf16.mxu0 0
        %924 = vmatmul.mubr.bf16.gmra.mrb[0].mxu0 %v332
        %v925 = vpop.f32.mrb[0].mxu0
        %v926 = vadd.f32 %v717, %v925
        %v927 = vpop.f32.mrb[0].mxu0
        %v928 = vpop.f32.mrb[0].mxu0
        %v929 = vadd.f32 %v720, %v928
        %v930 = vpop.f32.mrb[0].mxu0
        %931 = vmatprep.mubr.bf16.mxu0 0
        %932 = vmatmul.mubr.bf16.gmra.mrb[0].mxu0 %v334
        %v933 = vpop.f32.mrb[0].mxu0
        %v934 = vadd.f32 %v725, %v933
        %v935 = vpop.f32.mrb[0].mxu0
        %v936 = vpop.f32.mrb[0].mxu0
        %v937 = vadd.f32 %v728, %v936
        %v938 = vpop.f32.mrb[0].mxu0
        %939 = vmatprep.mubr.bf16.mxu0 0
        %940 = vmatmul.mubr.bf16.gmra.mrb[0].mxu0 %v336
        %v941 = vpop.f32.mrb[0].mxu0
        %v942 = vadd.f32 %v733, %v941
        %v943 = vpop.f32.mrb[0].mxu0
        %v944 = vpop.f32.mrb[0].mxu0
        %v945 = vadd.f32 %v736, %v944
        %v946 = vpop.f32.mrb[0].mxu0
        %947 = vmatprep.mubr.bf16.mxu0 0
        %948 = vmatmul.mubr.bf16.gmra.mrb[0].mxu0 %v338
        %v949 = vpop.f32.mrb[0].mxu0
        %v950 = vadd.f32 %v741, %v949
        %v951 = vpop.f32.mrb[0].mxu0
        %v952 = vpop.f32.mrb[0].mxu0
        %v953 = vadd.f32 %v744, %v952
        %v954 = vpop.f32.mrb[0].mxu0
        %955 = vmatprep.mubr.bf16.mxu0 0
        %956 = vmatmul.mubr.bf16.gmra.mrb[0].mxu0 %v340
        %v957 = vpop.f32.mrb[0].mxu0
        %v958 = vadd.f32 %v749, %v957
        %v959 = vpop.f32.mrb[0].mxu0
        %v960 = vpop.f32.mrb[0].mxu0
        %v961 = vadd.f32 %v752, %v960
        %v962 = vpop.f32.mrb[0].mxu0
        %963 = vmatprep.mubr.bf16.mxu0 0
        %964 = vmatmul.mubr.bf16.gmra.mrb[0].mxu0 %v342
        %v965 = vpop.f32.mrb[0].mxu0
        %v966 = vadd.f32 %v757, %v965
        %v967 = vpop.f32.mrb[0].mxu0
        %v968 = vpop.f32.mrb[0].mxu0
        %v969 = vadd.f32 %v760, %v968
        %v970 = vpop.f32.mrb[0].mxu0
        %971 = vmatprep.mubr.bf16.mxu0 0
        %972 = vmatmul.mubr.bf16.gmra.mrb[0].mxu0 %v344
        %v973 = vpop.f32.mrb[0].mxu0
        %v974 = vadd.f32 %v765, %v973
        %v975 = vpop.f32.mrb[0].mxu0
        %v976 = vpop.f32.mrb[0].mxu0
        %v977 = vadd.f32 %v768, %v976
        %v978 = vpop.f32.mrb[0].mxu0
        %979 = vmatprep.mubr.bf16.mxu0 0
        %980 = vmatmul.mubr.bf16.gmra.mrb[0].mxu0 %v346
        %v981 = vpop.f32.mrb[0].mxu0
        %v982 = vadd.f32 %v773, %v981
        %v983 = vpop.f32.mrb[0].mxu0
        %v984 = vpop.f32.mrb[0].mxu0
        %v985 = vadd.f32 %v776, %v984
        %v986 = vpop.f32.mrb[0].mxu0
        %987 = vmatprep.mubr.bf16.mxu0 0
        %988 = vmatmul.mubr.bf16.gmra.mrb[0].mxu0 %v348
        %v989 = vpop.f32.mrb[0].mxu0
        %v990 = vadd.f32 %v781, %v989
        %v991 = vpop.f32.mrb[0].mxu0
        %v992 = vpop.f32.mrb[0].mxu0
        %v993 = vadd.f32 %v784, %v992
        %v994 = vpop.f32.mrb[0].mxu0
        %995 = vmatprep.mubr.bf16.mxu0 0
        %996 = vmatmul.mubr.bf16.gmra.mrb[0].mxu0 %v350
        %v997 = vpop.f32.mrb[0].mxu0
        %v998 = vadd.f32 %v789, %v997
        %v999 = vpop.f32.mrb[0].mxu0
        %v1000 = vpop.f32.mrb[0].mxu0
        %v1001 = vadd.f32 %v792, %v1000
        %v1002 = vpop.f32.mrb[0].mxu0
        %1003 = vmatprep.mubr.bf16.mxu0 0
        %1004 = vmatmul.mubr.bf16.gmra.mrb[0].mxu0 %v352
        %v1005 = vpop.f32.mrb[0].mxu0
        %v1006 = vadd.f32 %v797, %v1005
        %v1007 = vpop.f32.mrb[0].mxu0
        %v1008 = vpop.f32.mrb[0].mxu0
        %v1009 = vadd.f32 %v800, %v1008
        %v1010 = vpop.f32.mrb[0].mxu0
        %1011 = vmatprep.mubr.bf16.mxu0 0
        %1012 = vmatmul.mubr.bf16.gmra.mrb[0].mxu0 %v354
        %v1013 = vpop.f32.mrb[0].mxu0
        %v1014 = vadd.f32 %v805, %v1013
        %v1015 = vpop.f32.mrb[0].mxu0
        %v1016 = vpop.f32.mrb[0].mxu0
        %v1017 = vadd.f32 %v808, %v1016
        %v1018 = vpop.f32.mrb[0].mxu0
        %1019 = vdwg.mxu0
        %vm1052 = vcmask 1046528
        %v1053 = vrot.slane %v324, 1
        %v1054 = vrot.slane %v325, 1
        %v1055 = vsel %vm1052, %v1053, %v1054
        %v1056 = vrot.slane %v326, 1
        %v1057 = vrot.slane %v327, 1
        %v1058 = vsel %vm1052, %v1056, %v1057
        %v1059 = vrot.slane %v328, 1
        %v1060 = vrot.slane %v329, 1
        %v1061 = vsel %vm1052, %v1059, %v1060
        %v1062 = vrot.slane %v330, 1
        %v1063 = vrot.slane %v331, 1
        %v1064 = vsel %vm1052, %v1062, %v1063
        %v1065 = vrot.slane %v332, 1
        %v1066 = vrot.slane %v333, 1
        %v1067 = vsel %vm1052, %v1065, %v1066
        %v1068 = vrot.slane %v334, 1
        %v1069 = vrot.slane %v335, 1
        %v1070 = vsel %vm1052, %v1068, %v1069
        %v1071 = vrot.slane %v336, 1
        %v1072 = vrot.slane %v337, 1
        %v1073 = vsel %vm1052, %v1071, %v1072
        %v1074 = vrot.slane %v338, 1
        %v1075 = vrot.slane %v339, 1
        %v1076 = vsel %vm1052, %v1074, %v1075
        %v1077 = vrot.slane %v340, 1
        %v1078 = vrot.slane %v341, 1
        %v1079 = vsel %vm1052, %v1077, %v1078
        %v1080 = vrot.slane %v342, 1
        %v1081 = vrot.slane %v343, 1
        %v1082 = vsel %vm1052, %v1080, %v1081
        %v1083 = vrot.slane %v344, 1
        %v1084 = vrot.slane %v345, 1
        %v1085 = vsel %vm1052, %v1083, %v1084
        %v1086 = vrot.slane %v346, 1
        %v1087 = vrot.slane %v347, 1
        %v1088 = vsel %vm1052, %v1086, %v1087
        %v1089 = vrot.slane %v348, 1
        %v1090 = vrot.slane %v349, 1
        %v1091 = vsel %vm1052, %v1089, %v1090
        %v1092 = vrot.slane %v350, 1
        %v1093 = vrot.slane %v351, 1
        %v1094 = vsel %vm1052, %v1092, %v1093
        %v1095 = vrot.slane %v352, 1
        %v1096 = vrot.slane %v353, 1
        %v1097 = vsel %vm1052, %v1095, %v1096
        %v1098 = vrot.slane %v354, 1
        %v1099 = vrot.slane %v355, 1
        %v1100 = vsel %vm1052, %v1098, %v1099
        %s1117 = scalar_lea.vmem %s1, 128
        %v1118 = vld [vmem:[%s1117] sm:$0xf]
        %v1119 = vld [vmem:[%s1117 + $0x4] sm:$0xf]
        %v1120 = vld [vmem:[%s1117 + $0x8] sm:$0xf]
        %v1121 = vld [vmem:[%s1117 + $0xc] sm:$0xf]
        %v1122 = vld [vmem:[%s1117 + $0x10] sm:$0xf]
        %v1123 = vld [vmem:[%s1117 + $0x14] sm:$0xf]
        %v1124 = vld [vmem:[%s1117 + $0x18] sm:$0xf]
        %v1125 = vld [vmem:[%s1117 + $0x1c] sm:$0xf]
        %v1126 = vld [vmem:[%s1117 + $0x20] sm:$0xf]
        %v1127 = vld [vmem:[%s1117 + $0x24] sm:$0xf]
        %v1128 = vld [vmem:[%s1117 + $0x28] sm:$0xf]
        %v1129 = vld [vmem:[%s1117 + $0x2c] sm:$0xf]
        %v1130 = vld [vmem:[%s1117 + $0x30] sm:$0xf]
        %v1131 = vld [vmem:[%s1117 + $0x34] sm:$0xf]
        %v1132 = vld [vmem:[%s1117 + $0x38] sm:$0xf]
        %v1133 = vld [vmem:[%s1117 + $0x3c] sm:$0xf]
        %v1150 = vunpack.c.l.b16 %v1118
        %v1151 = vunpack.c.l.b16 %v1119
        %v1152 = vunpack.c.l.b16 %v1120
        %v1153 = vunpack.c.l.b16 %v1121
        %v1154 = vunpack.c.l.b16 %v1122
        %v1155 = vunpack.c.l.b16 %v1123
        %v1156 = vunpack.c.l.b16 %v1124
        %v1157 = vunpack.c.l.b16 %v1125
        %v1158 = vunpack.c.l.b16 %v1126
        %v1159 = vunpack.c.l.b16 %v1127
        %v1160 = vunpack.c.l.b16 %v1128
        %v1161 = vunpack.c.l.b16 %v1129
        %v1162 = vunpack.c.l.b16 %v1130
        %v1163 = vunpack.c.l.b16 %v1131
        %v1164 = vunpack.c.l.b16 %v1132
        %v1165 = vunpack.c.l.b16 %v1133
        %v1166 = vpack.c.b16 %v1151, %v1150
        %v1167 = vpack.c.b16 %v1153, %v1152
        %v1168 = vpack.c.b16 %v1155, %v1154
        %v1169 = vpack.c.b16 %v1157, %v1156
        %v1170 = vpack.c.b16 %v1159, %v1158
        %v1171 = vpack.c.b16 %v1161, %v1160
        %v1172 = vpack.c.b16 %v1163, %v1162
        %v1173 = vpack.c.b16 %v1165, %v1164
        %1182 = vmatprep.subr.bf16.mxu0 0
        %1183 = vmatpush1.bf16.msra.mxu0 %v1166
        %1184 = vmatprep.subr.bf16.mxu0 0
        %1185 = vmatpush1.bf16.msra.mxu0 %v1167
        %1186 = vmatprep.subr.bf16.mxu0 0
        %1187 = vmatpush1.bf16.msra.mxu0 %v1168
        %1188 = vmatprep.subr.bf16.mxu0 0
        %1189 = vmatpush1.bf16.msra.mxu0 %v1169
        %1190 = vmatprep.subr.bf16.mxu0 0
        %1191 = vmatpush1.bf16.msra.mxu0 %v1170
        %1192 = vmatprep.subr.bf16.mxu0 0
        %1193 = vmatpush1.bf16.msra.mxu0 %v1171
        %1194 = vmatprep.subr.bf16.mxu0 0
        %1195 = vmatpush1.bf16.msra.mxu0 %v1172
        %1196 = vmatprep.subr.bf16.mxu0 0
        %1197 = vmatpush1.bf16.msra.mxu0 %v1173
        %1198 = vmatprep.subr.bf16.mxu0 0
        %1199 = vmatpush1.bf16.msra.mxu0 0
        %1200 = vmatprep.subr.bf16.mxu0 0
        %1201 = vmatpush1.bf16.msra.mxu0 0
        %1202 = vmatprep.subr.bf16.mxu0 0
        %1203 = vmatpush1.bf16.msra.mxu0 0
        %1204 = vmatprep.subr.bf16.mxu0 0
        %1205 = vmatpush1.bf16.msra.mxu0 0
        %1206 = vmatprep.subr.bf16.mxu0 0
        %1207 = vmatpush1.bf16.msra.mxu0 0
        %1208 = vmatprep.subr.bf16.mxu0 0
        %1209 = vmatpush1.bf16.msra.mxu0 0
        %1210 = vmatprep.subr.bf16.mxu0 0
        %1211 = vmatpush1.bf16.msra.mxu0 0
        %1212 = vmatprep.subr.bf16.mxu0 0
        %1213 = vmatpush1.bf16.msra.mxu0 0
        %1214 = vmatprep.mubr.bf16.mxu0 0
        %1215 = vmatmul.mubr.bf16.gmra.mrb[0].mxu0 %v1055
        %v1216 = vpop.f32.mrb[0].mxu0
        %v1217 = vadd.f32 0.0, %v1216
        %v1218 = vpop.f32.mrb[0].mxu0
        %v1219 = vpop.f32.mrb[0].mxu0
        %v1220 = vadd.f32 0.0, %v1219
        %v1221 = vpop.f32.mrb[0].mxu0
        %1222 = vmatprep.mubr.bf16.mxu0 0
        %1223 = vmatmul.mubr.bf16.gmra.mrb[0].mxu0 %v1058
        %v1224 = vpop.f32.mrb[0].mxu0
        %v1225 = vadd.f32 0.0, %v1224
        %v1226 = vpop.f32.mrb[0].mxu0
        %v1227 = vpop.f32.mrb[0].mxu0
        %v1228 = vadd.f32 0.0, %v1227
        %v1229 = vpop.f32.mrb[0].mxu0
        %1230 = vmatprep.mubr.bf16.mxu0 0
        %1231 = vmatmul.mubr.bf16.gmra.mrb[0].mxu0 %v1061
        %v1232 = vpop.f32.mrb[0].mxu0
        %v1233 = vadd.f32 0.0, %v1232
        %v1234 = vpop.f32.mrb[0].mxu0
        %v1235 = vpop.f32.mrb[0].mxu0
        %v1236 = vadd.f32 0.0, %v1235
        %v1237 = vpop.f32.mrb[0].mxu0
        %1238 = vmatprep.mubr.bf16.mxu0 0
        %1239 = vmatmul.mubr.bf16.gmra.mrb[0].mxu0 %v1064
        %v1240 = vpop.f32.mrb[0].mxu0
        %v1241 = vadd.f32 0.0, %v1240
        %v1242 = vpop.f32.mrb[0].mxu0
        %v1243 = vpop.f32.mrb[0].mxu0
        %v1244 = vadd.f32 0.0, %v1243
        %v1245 = vpop.f32.mrb[0].mxu0
        %1246 = vmatprep.mubr.bf16.mxu0 0
        %1247 = vmatmul.mubr.bf16.gmra.mrb[0].mxu0 %v1067
        %v1248 = vpop.f32.mrb[0].mxu0
        %v1249 = vadd.f32 0.0, %v1248
        %v1250 = vpop.f32.mrb[0].mxu0
        %v1251 = vpop.f32.mrb[0].mxu0
        %v1252 = vadd.f32 0.0, %v1251
        %v1253 = vpop.f32.mrb[0].mxu0
        %1254 = vmatprep.mubr.bf16.mxu0 0
        %1255 = vmatmul.mubr.bf16.gmra.mrb[0].mxu0 %v1070
        %v1256 = vpop.f32.mrb[0].mxu0
        %v1257 = vadd.f32 0.0, %v1256
        %v1258 = vpop.f32.mrb[0].mxu0
        %v1259 = vpop.f32.mrb[0].mxu0
        %v1260 = vadd.f32 0.0, %v1259
        %v1261 = vpop.f32.mrb[0].mxu0
        %1262 = vmatprep.mubr.bf16.mxu0 0
        %1263 = vmatmul.mubr.bf16.gmra.mrb[0].mxu0 %v1073
        %v1264 = vpop.f32.mrb[0].mxu0
        %v1265 = vadd.f32 0.0, %v1264
        %v1266 = vpop.f32.mrb[0].mxu0
        %v1267 = vpop.f32.mrb[0].mxu0
        %v1268 = vadd.f32 0.0, %v1267
        %v1269 = vpop.f32.mrb[0].mxu0
        %1270 = vmatprep.mubr.bf16.mxu0 0
        %1271 = vmatmul.mubr.bf16.gmra.mrb[0].mxu0 %v1076
        %v1272 = vpop.f32.mrb[0].mxu0
        %v1273 = vadd.f32 0.0, %v1272
        %v1274 = vpop.f32.mrb[0].mxu0
        %v1275 = vpop.f32.mrb[0].mxu0
        %v1276 = vadd.f32 0.0, %v1275
        %v1277 = vpop.f32.mrb[0].mxu0
        %1278 = vmatprep.mubr.bf16.mxu0 0
        %1279 = vmatmul.mubr.bf16.gmra.mrb[0].mxu0 %v1079
        %v1280 = vpop.f32.mrb[0].mxu0
        %v1281 = vadd.f32 0.0, %v1280
        %v1282 = vpop.f32.mrb[0].mxu0
        %v1283 = vpop.f32.mrb[0].mxu0
        %v1284 = vadd.f32 0.0, %v1283
        %v1285 = vpop.f32.mrb[0].mxu0
        %1286 = vmatprep.mubr.bf16.mxu0 0
        %1287 = vmatmul.mubr.bf16.gmra.mrb[0].mxu0 %v1082
        %v1288 = vpop.f32.mrb[0].mxu0
        %v1289 = vadd.f32 0.0, %v1288
        %v1290 = vpop.f32.mrb[0].mxu0
        %v1291 = vpop.f32.mrb[0].mxu0
        %v1292 = vadd.f32 0.0, %v1291
        %v1293 = vpop.f32.mrb[0].mxu0
        %1294 = vmatprep.mubr.bf16.mxu0 0
        %1295 = vmatmul.mubr.bf16.gmra.mrb[0].mxu0 %v1085
        %v1296 = vpop.f32.mrb[0].mxu0
        %v1297 = vadd.f32 0.0, %v1296
        %v1298 = vpop.f32.mrb[0].mxu0
        %v1299 = vpop.f32.mrb[0].mxu0
        %v1300 = vadd.f32 0.0, %v1299
        %v1301 = vpop.f32.mrb[0].mxu0
        %1302 = vmatprep.mubr.bf16.mxu0 0
        %1303 = vmatmul.mubr.bf16.gmra.mrb[0].mxu0 %v1088
        %v1304 = vpop.f32.mrb[0].mxu0
        %v1305 = vadd.f32 0.0, %v1304
        %v1306 = vpop.f32.mrb[0].mxu0
        %v1307 = vpop.f32.mrb[0].mxu0
        %v1308 = vadd.f32 0.0, %v1307
        %v1309 = vpop.f32.mrb[0].mxu0
        %1310 = vmatprep.mubr.bf16.mxu0 0
        %1311 = vmatmul.mubr.bf16.gmra.mrb[0].mxu0 %v1091
        %v1312 = vpop.f32.mrb[0].mxu0
        %v1313 = vadd.f32 0.0, %v1312
        %v1314 = vpop.f32.mrb[0].mxu0
        %v1315 = vpop.f32.mrb[0].mxu0
        %v1316 = vadd.f32 0.0, %v1315
        %v1317 = vpop.f32.mrb[0].mxu0
        %1318 = vmatprep.mubr.bf16.mxu0 0
        %1319 = vmatmul.mubr.bf16.gmra.mrb[0].mxu0 %v1094
        %v1320 = vpop.f32.mrb[0].mxu0
        %v1321 = vadd.f32 0.0, %v1320
        %v1322 = vpop.f32.mrb[0].mxu0
        %v1323 = vpop.f32.mrb[0].mxu0
        %v1324 = vadd.f32 0.0, %v1323
        %v1325 = vpop.f32.mrb[0].mxu0
        %1326 = vmatprep.mubr.bf16.mxu0 0
        %1327 = vmatmul.mubr.bf16.gmra.mrb[0].mxu0 %v1097
        %v1328 = vpop.f32.mrb[0].mxu0
        %v1329 = vadd.f32 0.0, %v1328
        %v1330 = vpop.f32.mrb[0].mxu0
        %v1331 = vpop.f32.mrb[0].mxu0
        %v1332 = vadd.f32 0.0, %v1331
        %v1333 = vpop.f32.mrb[0].mxu0
        %1334 = vmatprep.mubr.bf16.mxu0 0
        %1335 = vmatmul.mubr.bf16.gmra.mrb[0].mxu0 %v1100
        %v1336 = vpop.f32.mrb[0].mxu0
        %v1337 = vadd.f32 0.0, %v1336
        %v1338 = vpop.f32.mrb[0].mxu0
        %v1339 = vpop.f32.mrb[0].mxu0
        %v1340 = vadd.f32 0.0, %v1339
        %v1341 = vpop.f32.mrb[0].mxu0
        %1342 = vdwg.mxu0
        %v1343 = vadd.f32 %v894, %v1217
        %v1344 = vadd.f32 %v897, %v1220
        %v1345 = vadd.f32 %v902, %v1225
        %v1346 = vadd.f32 %v905, %v1228
        %v1347 = vadd.f32 %v910, %v1233
        %v1348 = vadd.f32 %v913, %v1236
        %v1349 = vadd.f32 %v918, %v1241
        %v1350 = vadd.f32 %v921, %v1244
        %v1351 = vadd.f32 %v926, %v1249
        %v1352 = vadd.f32 %v929, %v1252
        %v1353 = vadd.f32 %v934, %v1257
        %v1354 = vadd.f32 %v937, %v1260
        %v1355 = vadd.f32 %v942, %v1265
        %v1356 = vadd.f32 %v945, %v1268
        %v1357 = vadd.f32 %v950, %v1273
        %v1358 = vadd.f32 %v953, %v1276
        %v1359 = vadd.f32 %v958, %v1281
        %v1360 = vadd.f32 %v961, %v1284
        %v1361 = vadd.f32 %v966, %v1289
        %v1362 = vadd.f32 %v969, %v1292
        %v1363 = vadd.f32 %v974, %v1297
        %v1364 = vadd.f32 %v977, %v1300
        %v1365 = vadd.f32 %v982, %v1305
        %v1366 = vadd.f32 %v985, %v1308
        %v1367 = vadd.f32 %v990, %v1313
        %v1368 = vadd.f32 %v993, %v1316
        %v1369 = vadd.f32 %v998, %v1321
        %v1370 = vadd.f32 %v1001, %v1324
        %v1371 = vadd.f32 %v1006, %v1329
        %v1372 = vadd.f32 %v1009, %v1332
        %v1373 = vadd.f32 %v1014, %v1337
        %v1374 = vadd.f32 %v1017, %v1340
        %s1375 = scalar_lea.vmem %s1, 192
        %v1376 = vld [vmem:[%s1375] sm:$0xf]
        %v1377 = vld [vmem:[%s1375 + $0x4] sm:$0xf]
        %v1378 = vld [vmem:[%s1375 + $0x8] sm:$0xf]
        %v1379 = vld [vmem:[%s1375 + $0xc] sm:$0xf]
        %v1380 = vld [vmem:[%s1375 + $0x10] sm:$0xf]
        %v1381 = vld [vmem:[%s1375 + $0x14] sm:$0xf]
        %v1382 = vld [vmem:[%s1375 + $0x18] sm:$0xf]
        %v1383 = vld [vmem:[%s1375 + $0x1c] sm:$0xf]
        %v1384 = vld [vmem:[%s1375 + $0x20] sm:$0xf]
        %v1385 = vld [vmem:[%s1375 + $0x24] sm:$0xf]
        %v1386 = vld [vmem:[%s1375 + $0x28] sm:$0xf]
        %v1387 = vld [vmem:[%s1375 + $0x2c] sm:$0xf]
        %v1388 = vld [vmem:[%s1375 + $0x30] sm:$0xf]
        %v1389 = vld [vmem:[%s1375 + $0x34] sm:$0xf]
        %v1390 = vld [vmem:[%s1375 + $0x38] sm:$0xf]
        %v1391 = vld [vmem:[%s1375 + $0x3c] sm:$0xf]
        %v1408 = vunpack.c.l.b16 %v1376
        %v1409 = vunpack.c.l.b16 %v1377
        %v1410 = vunpack.c.l.b16 %v1378
        %v1411 = vunpack.c.l.b16 %v1379
        %v1412 = vunpack.c.l.b16 %v1380
        %v1413 = vunpack.c.l.b16 %v1381
        %v1414 = vunpack.c.l.b16 %v1382
        %v1415 = vunpack.c.l.b16 %v1383
        %v1416 = vunpack.c.l.b16 %v1384
        %v1417 = vunpack.c.l.b16 %v1385
        %v1418 = vunpack.c.l.b16 %v1386
        %v1419 = vunpack.c.l.b16 %v1387
        %v1420 = vunpack.c.l.b16 %v1388
        %v1421 = vunpack.c.l.b16 %v1389
        %v1422 = vunpack.c.l.b16 %v1390
        %v1423 = vunpack.c.l.b16 %v1391
        %v1424 = vpack.c.b16 %v1409, %v1408
        %v1425 = vpack.c.b16 %v1411, %v1410
        %v1426 = vpack.c.b16 %v1413, %v1412
        %v1427 = vpack.c.b16 %v1415, %v1414
        %v1428 = vpack.c.b16 %v1417, %v1416
        %v1429 = vpack.c.b16 %v1419, %v1418
        %v1430 = vpack.c.b16 %v1421, %v1420
        %v1431 = vpack.c.b16 %v1423, %v1422
        %1440 = vmatprep.subr.bf16.mxu0 0
        %1441 = vmatpush1.bf16.msra.mxu0 %v1424
        %1442 = vmatprep.subr.bf16.mxu0 0
        %1443 = vmatpush1.bf16.msra.mxu0 %v1425
        %1444 = vmatprep.subr.bf16.mxu0 0
        %1445 = vmatpush1.bf16.msra.mxu0 %v1426
        %1446 = vmatprep.subr.bf16.mxu0 0
        %1447 = vmatpush1.bf16.msra.mxu0 %v1427
        %1448 = vmatprep.subr.bf16.mxu0 0
        %1449 = vmatpush1.bf16.msra.mxu0 %v1428
        %1450 = vmatprep.subr.bf16.mxu0 0
        %1451 = vmatpush1.bf16.msra.mxu0 %v1429
        %1452 = vmatprep.subr.bf16.mxu0 0
        %1453 = vmatpush1.bf16.msra.mxu0 %v1430
        %1454 = vmatprep.subr.bf16.mxu0 0
        %1455 = vmatpush1.bf16.msra.mxu0 %v1431
        %1456 = vmatprep.subr.bf16.mxu0 0
        %1457 = vmatpush1.bf16.msra.mxu0 0
        %1458 = vmatprep.subr.bf16.mxu0 0
        %1459 = vmatpush1.bf16.msra.mxu0 0
        %1460 = vmatprep.subr.bf16.mxu0 0
        %1461 = vmatpush1.bf16.msra.mxu0 0
        %1462 = vmatprep.subr.bf16.mxu0 0
        %1463 = vmatpush1.bf16.msra.mxu0 0
        %1464 = vmatprep.subr.bf16.mxu0 0
        %1465 = vmatpush1.bf16.msra.mxu0 0
        %1466 = vmatprep.subr.bf16.mxu0 0
        %1467 = vmatpush1.bf16.msra.mxu0 0
        %1468 = vmatprep.subr.bf16.mxu0 0
        %1469 = vmatpush1.bf16.msra.mxu0 0
        %1470 = vmatprep.subr.bf16.mxu0 0
        %1471 = vmatpush1.bf16.msra.mxu0 0
        %1472 = vmatprep.mubr.bf16.mxu0 0
        %1473 = vmatmul.mubr.bf16.gmra.mrb[0].mxu0 %v326
        %v1474 = vpop.f32.mrb[0].mxu0
        %v1475 = vadd.f32 0.0, %v1474
        %v1476 = vpop.f32.mrb[0].mxu0
        %v1477 = vpop.f32.mrb[0].mxu0
        %v1478 = vadd.f32 0.0, %v1477
        %v1479 = vpop.f32.mrb[0].mxu0
        %1480 = vmatprep.mubr.bf16.mxu0 0
        %1481 = vmatmul.mubr.bf16.gmra.mrb[0].mxu0 %v328
        %v1482 = vpop.f32.mrb[0].mxu0
        %v1483 = vadd.f32 0.0, %v1482
        %v1484 = vpop.f32.mrb[0].mxu0
        %v1485 = vpop.f32.mrb[0].mxu0
        %v1486 = vadd.f32 0.0, %v1485
        %v1487 = vpop.f32.mrb[0].mxu0
        %1488 = vmatprep.mubr.bf16.mxu0 0
        %1489 = vmatmul.mubr.bf16.gmra.mrb[0].mxu0 %v330
        %v1490 = vpop.f32.mrb[0].mxu0
        %v1491 = vadd.f32 0.0, %v1490
        %v1492 = vpop.f32.mrb[0].mxu0
        %v1493 = vpop.f32.mrb[0].mxu0
        %v1494 = vadd.f32 0.0, %v1493
        %v1495 = vpop.f32.mrb[0].mxu0
        %1496 = vmatprep.mubr.bf16.mxu0 0
        %1497 = vmatmul.mubr.bf16.gmra.mrb[0].mxu0 %v332
        %v1498 = vpop.f32.mrb[0].mxu0
        %v1499 = vadd.f32 0.0, %v1498
        %v1500 = vpop.f32.mrb[0].mxu0
        %v1501 = vpop.f32.mrb[0].mxu0
        %v1502 = vadd.f32 0.0, %v1501
        %v1503 = vpop.f32.mrb[0].mxu0
        %1504 = vmatprep.mubr.bf16.mxu0 0
        %1505 = vmatmul.mubr.bf16.gmra.mrb[0].mxu0 %v334
        %v1506 = vpop.f32.mrb[0].mxu0
        %v1507 = vadd.f32 0.0, %v1506
        %v1508 = vpop.f32.mrb[0].mxu0
        %v1509 = vpop.f32.mrb[0].mxu0
        %v1510 = vadd.f32 0.0, %v1509
        %v1511 = vpop.f32.mrb[0].mxu0
        %1512 = vmatprep.mubr.bf16.mxu0 0
        %1513 = vmatmul.mubr.bf16.gmra.mrb[0].mxu0 %v336
        %v1514 = vpop.f32.mrb[0].mxu0
        %v1515 = vadd.f32 0.0, %v1514
        %v1516 = vpop.f32.mrb[0].mxu0
        %v1517 = vpop.f32.mrb[0].mxu0
        %v1518 = vadd.f32 0.0, %v1517
        %v1519 = vpop.f32.mrb[0].mxu0
        %1520 = vmatprep.mubr.bf16.mxu0 0
        %1521 = vmatmul.mubr.bf16.gmra.mrb[0].mxu0 %v338
        %v1522 = vpop.f32.mrb[0].mxu0
        %v1523 = vadd.f32 0.0, %v1522
        %v1524 = vpop.f32.mrb[0].mxu0
        %v1525 = vpop.f32.mrb[0].mxu0
        %v1526 = vadd.f32 0.0, %v1525
        %v1527 = vpop.f32.mrb[0].mxu0
        %1528 = vmatprep.mubr.bf16.mxu0 0
        %1529 = vmatmul.mubr.bf16.gmra.mrb[0].mxu0 %v340
        %v1530 = vpop.f32.mrb[0].mxu0
        %v1531 = vadd.f32 0.0, %v1530
        %v1532 = vpop.f32.mrb[0].mxu0
        %v1533 = vpop.f32.mrb[0].mxu0
        %v1534 = vadd.f32 0.0, %v1533
        %v1535 = vpop.f32.mrb[0].mxu0
        %1536 = vmatprep.mubr.bf16.mxu0 0
        %1537 = vmatmul.mubr.bf16.gmra.mrb[0].mxu0 %v342
        %v1538 = vpop.f32.mrb[0].mxu0
        %v1539 = vadd.f32 0.0, %v1538
        %v1540 = vpop.f32.mrb[0].mxu0
        %v1541 = vpop.f32.mrb[0].mxu0
        %v1542 = vadd.f32 0.0, %v1541
        %v1543 = vpop.f32.mrb[0].mxu0
        %1544 = vmatprep.mubr.bf16.mxu0 0
        %1545 = vmatmul.mubr.bf16.gmra.mrb[0].mxu0 %v344
        %v1546 = vpop.f32.mrb[0].mxu0
        %v1547 = vadd.f32 0.0, %v1546
        %v1548 = vpop.f32.mrb[0].mxu0
        %v1549 = vpop.f32.mrb[0].mxu0
        %v1550 = vadd.f32 0.0, %v1549
        %v1551 = vpop.f32.mrb[0].mxu0
        %1552 = vmatprep.mubr.bf16.mxu0 0
        %1553 = vmatmul.mubr.bf16.gmra.mrb[0].mxu0 %v346
        %v1554 = vpop.f32.mrb[0].mxu0
        %v1555 = vadd.f32 0.0, %v1554
        %v1556 = vpop.f32.mrb[0].mxu0
        %v1557 = vpop.f32.mrb[0].mxu0
        %v1558 = vadd.f32 0.0, %v1557
        %v1559 = vpop.f32.mrb[0].mxu0
        %1560 = vmatprep.mubr.bf16.mxu0 0
        %1561 = vmatmul.mubr.bf16.gmra.mrb[0].mxu0 %v348
        %v1562 = vpop.f32.mrb[0].mxu0
        %v1563 = vadd.f32 0.0, %v1562
        %v1564 = vpop.f32.mrb[0].mxu0
        %v1565 = vpop.f32.mrb[0].mxu0
        %v1566 = vadd.f32 0.0, %v1565
        %v1567 = vpop.f32.mrb[0].mxu0
        %1568 = vmatprep.mubr.bf16.mxu0 0
        %1569 = vmatmul.mubr.bf16.gmra.mrb[0].mxu0 %v350
        %v1570 = vpop.f32.mrb[0].mxu0
        %v1571 = vadd.f32 0.0, %v1570
        %v1572 = vpop.f32.mrb[0].mxu0
        %v1573 = vpop.f32.mrb[0].mxu0
        %v1574 = vadd.f32 0.0, %v1573
        %v1575 = vpop.f32.mrb[0].mxu0
        %1576 = vmatprep.mubr.bf16.mxu0 0
        %1577 = vmatmul.mubr.bf16.gmra.mrb[0].mxu0 %v352
        %v1578 = vpop.f32.mrb[0].mxu0
        %v1579 = vadd.f32 0.0, %v1578
        %v1580 = vpop.f32.mrb[0].mxu0
        %v1581 = vpop.f32.mrb[0].mxu0
        %v1582 = vadd.f32 0.0, %v1581
        %v1583 = vpop.f32.mrb[0].mxu0
        %1584 = vmatprep.mubr.bf16.mxu0 0
        %1585 = vmatmul.mubr.bf16.gmra.mrb[0].mxu0 %v354
        %v1586 = vpop.f32.mrb[0].mxu0
        %v1587 = vadd.f32 0.0, %v1586
        %v1588 = vpop.f32.mrb[0].mxu0
        %v1589 = vpop.f32.mrb[0].mxu0
        %v1590 = vadd.f32 0.0, %v1589
        %v1591 = vpop.f32.mrb[0].mxu0
        %1592 = vmatprep.mubr.bf16.mxu0 0
        %1593 = vmatmul.mubr.bf16.gmra.mrb[0].mxu0 %v356
        %v1594 = vpop.f32.mrb[0].mxu0
        %v1595 = vadd.f32 0.0, %v1594
        %v1596 = vpop.f32.mrb[0].mxu0
        %v1597 = vpop.f32.mrb[0].mxu0
        %v1598 = vadd.f32 0.0, %v1597
        %v1599 = vpop.f32.mrb[0].mxu0
        %1600 = vdwg.mxu0
        %v1601 = vadd.f32 %v1343, %v1475
        %v1602 = vadd.f32 %v1344, %v1478
        %v1603 = vadd.f32 %v1345, %v1483
        %v1604 = vadd.f32 %v1346, %v1486
        %v1605 = vadd.f32 %v1347, %v1491
        %v1606 = vadd.f32 %v1348, %v1494
        %v1607 = vadd.f32 %v1349, %v1499
        %v1608 = vadd.f32 %v1350, %v1502
        %v1609 = vadd.f32 %v1351, %v1507
        %v1610 = vadd.f32 %v1352, %v1510
        %v1611 = vadd.f32 %v1353, %v1515
        %v1612 = vadd.f32 %v1354, %v1518
        %v1613 = vadd.f32 %v1355, %v1523
        %v1614 = vadd.f32 %v1356, %v1526
        %v1615 = vadd.f32 %v1357, %v1531
        %v1616 = vadd.f32 %v1358, %v1534
        %v1617 = vadd.f32 %v1359, %v1539
        %v1618 = vadd.f32 %v1360, %v1542
        %v1619 = vadd.f32 %v1361, %v1547
        %v1620 = vadd.f32 %v1362, %v1550
        %v1621 = vadd.f32 %v1363, %v1555
        %v1622 = vadd.f32 %v1364, %v1558
        %v1623 = vadd.f32 %v1365, %v1563
        %v1624 = vadd.f32 %v1366, %v1566
        %v1625 = vadd.f32 %v1367, %v1571
        %v1626 = vadd.f32 %v1368, %v1574
        %v1627 = vadd.f32 %v1369, %v1579
        %v1628 = vadd.f32 %v1370, %v1582
        %v1629 = vadd.f32 %v1371, %v1587
        %v1630 = vadd.f32 %v1372, %v1590
        %v1631 = vadd.f32 %v1373, %v1595
        %v1632 = vadd.f32 %v1374, %v1598
        %v1634 = vshrl.u32 %v356, 16
        %v1636 = vshll.u32 %v356, 16
        %v1638 = vrot.slane %v1636, 1
        %v1639 = vor.u32 %v1634, %v1638
        %v1641 = vshll.u32 %v357, 16
        %v1643 = vrot.slane %v1641, 1
        %v1644 = vsel %vm376, %v1639, %v1643
        %s1646 = scalar_lea.vmem %s1, 256
        %v1647 = vld [vmem:[%s1646] sm:$0xf]
        %v1648 = vld [vmem:[%s1646 + $0x4] sm:$0xf]
        %v1649 = vld [vmem:[%s1646 + $0x8] sm:$0xf]
        %v1650 = vld [vmem:[%s1646 + $0xc] sm:$0xf]
        %v1651 = vld [vmem:[%s1646 + $0x10] sm:$0xf]
        %v1652 = vld [vmem:[%s1646 + $0x14] sm:$0xf]
        %v1653 = vld [vmem:[%s1646 + $0x18] sm:$0xf]
        %v1654 = vld [vmem:[%s1646 + $0x1c] sm:$0xf]
        %v1655 = vld [vmem:[%s1646 + $0x20] sm:$0xf]
        %v1656 = vld [vmem:[%s1646 + $0x24] sm:$0xf]
        %v1657 = vld [vmem:[%s1646 + $0x28] sm:$0xf]
        %v1658 = vld [vmem:[%s1646 + $0x2c] sm:$0xf]
        %v1659 = vld [vmem:[%s1646 + $0x30] sm:$0xf]
        %v1660 = vld [vmem:[%s1646 + $0x34] sm:$0xf]
        %v1661 = vld [vmem:[%s1646 + $0x38] sm:$0xf]
        %v1662 = vld [vmem:[%s1646 + $0x3c] sm:$0xf]
        %v1679 = vunpack.c.l.b16 %v1647
        %v1680 = vunpack.c.l.b16 %v1648
        %v1681 = vunpack.c.l.b16 %v1649
        %v1682 = vunpack.c.l.b16 %v1650
        %v1683 = vunpack.c.l.b16 %v1651
        %v1684 = vunpack.c.l.b16 %v1652
        %v1685 = vunpack.c.l.b16 %v1653
        %v1686 = vunpack.c.l.b16 %v1654
        %v1687 = vunpack.c.l.b16 %v1655
        %v1688 = vunpack.c.l.b16 %v1656
        %v1689 = vunpack.c.l.b16 %v1657
        %v1690 = vunpack.c.l.b16 %v1658
        %v1691 = vunpack.c.l.b16 %v1659
        %v1692 = vunpack.c.l.b16 %v1660
        %v1693 = vunpack.c.l.b16 %v1661
        %v1694 = vunpack.c.l.b16 %v1662
        %v1695 = vpack.c.b16 %v1680, %v1679
        %v1696 = vpack.c.b16 %v1682, %v1681
        %v1697 = vpack.c.b16 %v1684, %v1683
        %v1698 = vpack.c.b16 %v1686, %v1685
        %v1699 = vpack.c.b16 %v1688, %v1687
        %v1700 = vpack.c.b16 %v1690, %v1689
        %v1701 = vpack.c.b16 %v1692, %v1691
        %v1702 = vpack.c.b16 %v1694, %v1693
        %1711 = vmatprep.subr.bf16.mxu0 0
        %1712 = vmatpush1.bf16.msra.mxu0 %v1695
        %1713 = vmatprep.subr.bf16.mxu0 0
        %1714 = vmatpush1.bf16.msra.mxu0 %v1696
        %1715 = vmatprep.subr.bf16.mxu0 0
        %1716 = vmatpush1.bf16.msra.mxu0 %v1697
        %1717 = vmatprep.subr.bf16.mxu0 0
        %1718 = vmatpush1.bf16.msra.mxu0 %v1698
        %1719 = vmatprep.subr.bf16.mxu0 0
        %1720 = vmatpush1.bf16.msra.mxu0 %v1699
        %1721 = vmatprep.subr.bf16.mxu0 0
        %1722 = vmatpush1.bf16.msra.mxu0 %v1700
        %1723 = vmatprep.subr.bf16.mxu0 0
        %1724 = vmatpush1.bf16.msra.mxu0 %v1701
        %1725 = vmatprep.subr.bf16.mxu0 0
        %1726 = vmatpush1.bf16.msra.mxu0 %v1702
        %1727 = vmatprep.subr.bf16.mxu0 0
        %1728 = vmatpush1.bf16.msra.mxu0 0
        %1729 = vmatprep.subr.bf16.mxu0 0
        %1730 = vmatpush1.bf16.msra.mxu0 0
        %1731 = vmatprep.subr.bf16.mxu0 0
        %1732 = vmatpush1.bf16.msra.mxu0 0
        %1733 = vmatprep.subr.bf16.mxu0 0
        %1734 = vmatpush1.bf16.msra.mxu0 0
        %1735 = vmatprep.subr.bf16.mxu0 0
        %1736 = vmatpush1.bf16.msra.mxu0 0
        %1737 = vmatprep.subr.bf16.mxu0 0
        %1738 = vmatpush1.bf16.msra.mxu0 0
        %1739 = vmatprep.subr.bf16.mxu0 0
        %1740 = vmatpush1.bf16.msra.mxu0 0
        %1741 = vmatprep.subr.bf16.mxu0 0
        %1742 = vmatpush1.bf16.msra.mxu0 0
        %1743 = vmatprep.mubr.bf16.mxu0 0
        %1744 = vmatmul.mubr.bf16.gmra.mrb[0].mxu0 %v400
        %v1745 = vpop.f32.mrb[0].mxu0
        %v1746 = vadd.f32 0.0, %v1745
        %v1747 = vpop.f32.mrb[0].mxu0
        %v1748 = vpop.f32.mrb[0].mxu0
        %v1749 = vadd.f32 0.0, %v1748
        %v1750 = vpop.f32.mrb[0].mxu0
        %1751 = vmatprep.mubr.bf16.mxu0 0
        %1752 = vmatmul.mubr.bf16.gmra.mrb[0].mxu0 %v412
        %v1753 = vpop.f32.mrb[0].mxu0
        %v1754 = vadd.f32 0.0, %v1753
        %v1755 = vpop.f32.mrb[0].mxu0
        %v1756 = vpop.f32.mrb[0].mxu0
        %v1757 = vadd.f32 0.0, %v1756
        %v1758 = vpop.f32.mrb[0].mxu0
        %1759 = vmatprep.mubr.bf16.mxu0 0
        %1760 = vmatmul.mubr.bf16.gmra.mrb[0].mxu0 %v424
        %v1761 = vpop.f32.mrb[0].mxu0
        %v1762 = vadd.f32 0.0, %v1761
        %v1763 = vpop.f32.mrb[0].mxu0
        %v1764 = vpop.f32.mrb[0].mxu0
        %v1765 = vadd.f32 0.0, %v1764
        %v1766 = vpop.f32.mrb[0].mxu0
        %1767 = vmatprep.mubr.bf16.mxu0 0
        %1768 = vmatmul.mubr.bf16.gmra.mrb[0].mxu0 %v436
        %v1769 = vpop.f32.mrb[0].mxu0
        %v1770 = vadd.f32 0.0, %v1769
        %v1771 = vpop.f32.mrb[0].mxu0
        %v1772 = vpop.f32.mrb[0].mxu0
        %v1773 = vadd.f32 0.0, %v1772
        %v1774 = vpop.f32.mrb[0].mxu0
        %1775 = vmatprep.mubr.bf16.mxu0 0
        %1776 = vmatmul.mubr.bf16.gmra.mrb[0].mxu0 %v448
        %v1777 = vpop.f32.mrb[0].mxu0
        %v1778 = vadd.f32 0.0, %v1777
        %v1779 = vpop.f32.mrb[0].mxu0
        %v1780 = vpop.f32.mrb[0].mxu0
        %v1781 = vadd.f32 0.0, %v1780
        %v1782 = vpop.f32.mrb[0].mxu0
        %1783 = vmatprep.mubr.bf16.mxu0 0
        %1784 = vmatmul.mubr.bf16.gmra.mrb[0].mxu0 %v460
        %v1785 = vpop.f32.mrb[0].mxu0
        %v1786 = vadd.f32 0.0, %v1785
        %v1787 = vpop.f32.mrb[0].mxu0
        %v1788 = vpop.f32.mrb[0].mxu0
        %v1789 = vadd.f32 0.0, %v1788
        %v1790 = vpop.f32.mrb[0].mxu0
        %1791 = vmatprep.mubr.bf16.mxu0 0
        %1792 = vmatmul.mubr.bf16.gmra.mrb[0].mxu0 %v472
        %v1793 = vpop.f32.mrb[0].mxu0
        %v1794 = vadd.f32 0.0, %v1793
        %v1795 = vpop.f32.mrb[0].mxu0
        %v1796 = vpop.f32.mrb[0].mxu0
        %v1797 = vadd.f32 0.0, %v1796
        %v1798 = vpop.f32.mrb[0].mxu0
        %1799 = vmatprep.mubr.bf16.mxu0 0
        %1800 = vmatmul.mubr.bf16.gmra.mrb[0].mxu0 %v484
        %v1801 = vpop.f32.mrb[0].mxu0
        %v1802 = vadd.f32 0.0, %v1801
        %v1803 = vpop.f32.mrb[0].mxu0
        %v1804 = vpop.f32.mrb[0].mxu0
        %v1805 = vadd.f32 0.0, %v1804
        %v1806 = vpop.f32.mrb[0].mxu0
        %1807 = vmatprep.mubr.bf16.mxu0 0
        %1808 = vmatmul.mubr.bf16.gmra.mrb[0].mxu0 %v496
        %v1809 = vpop.f32.mrb[0].mxu0
        %v1810 = vadd.f32 0.0, %v1809
        %v1811 = vpop.f32.mrb[0].mxu0
        %v1812 = vpop.f32.mrb[0].mxu0
        %v1813 = vadd.f32 0.0, %v1812
        %v1814 = vpop.f32.mrb[0].mxu0
        %1815 = vmatprep.mubr.bf16.mxu0 0
        %1816 = vmatmul.mubr.bf16.gmra.mrb[0].mxu0 %v508
        %v1817 = vpop.f32.mrb[0].mxu0
        %v1818 = vadd.f32 0.0, %v1817
        %v1819 = vpop.f32.mrb[0].mxu0
        %v1820 = vpop.f32.mrb[0].mxu0
        %v1821 = vadd.f32 0.0, %v1820
        %v1822 = vpop.f32.mrb[0].mxu0
        %1823 = vmatprep.mubr.bf16.mxu0 0
        %1824 = vmatmul.mubr.bf16.gmra.mrb[0].mxu0 %v520
        %v1825 = vpop.f32.mrb[0].mxu0
        %v1826 = vadd.f32 0.0, %v1825
        %v1827 = vpop.f32.mrb[0].mxu0
        %v1828 = vpop.f32.mrb[0].mxu0
        %v1829 = vadd.f32 0.0, %v1828
        %v1830 = vpop.f32.mrb[0].mxu0
        %1831 = vmatprep.mubr.bf16.mxu0 0
        %1832 = vmatmul.mubr.bf16.gmra.mrb[0].mxu0 %v532
        %v1833 = vpop.f32.mrb[0].mxu0
        %v1834 = vadd.f32 0.0, %v1833
        %v1835 = vpop.f32.mrb[0].mxu0
        %v1836 = vpop.f32.mrb[0].mxu0
        %v1837 = vadd.f32 0.0, %v1836
        %v1838 = vpop.f32.mrb[0].mxu0
        %1839 = vmatprep.mubr.bf16.mxu0 0
        %1840 = vmatmul.mubr.bf16.gmra.mrb[0].mxu0 %v544
        %v1841 = vpop.f32.mrb[0].mxu0
        %v1842 = vadd.f32 0.0, %v1841
        %v1843 = vpop.f32.mrb[0].mxu0
        %v1844 = vpop.f32.mrb[0].mxu0
        %v1845 = vadd.f32 0.0, %v1844
        %v1846 = vpop.f32.mrb[0].mxu0
        %1847 = vmatprep.mubr.bf16.mxu0 0
        %1848 = vmatmul.mubr.bf16.gmra.mrb[0].mxu0 %v556
        %v1849 = vpop.f32.mrb[0].mxu0
        %v1850 = vadd.f32 0.0, %v1849
        %v1851 = vpop.f32.mrb[0].mxu0
        %v1852 = vpop.f32.mrb[0].mxu0
        %v1853 = vadd.f32 0.0, %v1852
        %v1854 = vpop.f32.mrb[0].mxu0
        %1855 = vmatprep.mubr.bf16.mxu0 0
        %1856 = vmatmul.mubr.bf16.gmra.mrb[0].mxu0 %v568
        %v1857 = vpop.f32.mrb[0].mxu0
        %v1858 = vadd.f32 0.0, %v1857
        %v1859 = vpop.f32.mrb[0].mxu0
        %v1860 = vpop.f32.mrb[0].mxu0
        %v1861 = vadd.f32 0.0, %v1860
        %v1862 = vpop.f32.mrb[0].mxu0
        %1863 = vmatprep.mubr.bf16.mxu0 0
        %1864 = vmatmul.mubr.bf16.gmra.mrb[0].mxu0 %v1644
        %v1865 = vpop.f32.mrb[0].mxu0
        %v1866 = vadd.f32 0.0, %v1865
        %v1867 = vpop.f32.mrb[0].mxu0
        %v1868 = vpop.f32.mrb[0].mxu0
        %v1869 = vadd.f32 0.0, %v1868
        %v1870 = vpop.f32.mrb[0].mxu0
        %1871 = vdwg.mxu0
        %v1872 = vadd.f32 %v1601, %v1746
        %v1873 = vadd.f32 %v1602, %v1749
        %v1874 = vadd.f32 %v1603, %v1754
        %v1875 = vadd.f32 %v1604, %v1757
        %v1876 = vadd.f32 %v1605, %v1762
        %v1877 = vadd.f32 %v1606, %v1765
        %v1878 = vadd.f32 %v1607, %v1770
        %v1879 = vadd.f32 %v1608, %v1773
        %v1880 = vadd.f32 %v1609, %v1778
        %v1881 = vadd.f32 %v1610, %v1781
        %v1882 = vadd.f32 %v1611, %v1786
        %v1883 = vadd.f32 %v1612, %v1789
        %v1884 = vadd.f32 %v1613, %v1794
        %v1885 = vadd.f32 %v1614, %v1797
        %v1886 = vadd.f32 %v1615, %v1802
        %v1887 = vadd.f32 %v1616, %v1805
        %v1888 = vadd.f32 %v1617, %v1810
        %v1889 = vadd.f32 %v1618, %v1813
        %v1890 = vadd.f32 %v1619, %v1818
        %v1891 = vadd.f32 %v1620, %v1821
        %v1892 = vadd.f32 %v1621, %v1826
        %v1893 = vadd.f32 %v1622, %v1829
        %v1894 = vadd.f32 %v1623, %v1834
        %v1895 = vadd.f32 %v1624, %v1837
        %v1896 = vadd.f32 %v1625, %v1842
        %v1897 = vadd.f32 %v1626, %v1845
        %v1898 = vadd.f32 %v1627, %v1850
        %v1899 = vadd.f32 %v1628, %v1853
        %v1900 = vadd.f32 %v1629, %v1858
        %v1901 = vadd.f32 %v1630, %v1861
        %v1902 = vadd.f32 %v1631, %v1866
        %v1903 = vadd.f32 %v1632, %v1869
        %v1906 = vrot.slane %v356, 1
        %v1907 = vrot.slane %v357, 1
        %v1908 = vsel %vm1052, %v1906, %v1907
        %s1910 = scalar_lea.vmem %s1, 320
        %v1911 = vld [vmem:[%s1910] sm:$0xf]
        %v1912 = vld [vmem:[%s1910 + $0x4] sm:$0xf]
        %v1913 = vld [vmem:[%s1910 + $0x8] sm:$0xf]
        %v1914 = vld [vmem:[%s1910 + $0xc] sm:$0xf]
        %v1915 = vld [vmem:[%s1910 + $0x10] sm:$0xf]
        %v1916 = vld [vmem:[%s1910 + $0x14] sm:$0xf]
        %v1917 = vld [vmem:[%s1910 + $0x18] sm:$0xf]
        %v1918 = vld [vmem:[%s1910 + $0x1c] sm:$0xf]
        %v1919 = vld [vmem:[%s1910 + $0x20] sm:$0xf]
        %v1920 = vld [vmem:[%s1910 + $0x24] sm:$0xf]
        %v1921 = vld [vmem:[%s1910 + $0x28] sm:$0xf]
        %v1922 = vld [vmem:[%s1910 + $0x2c] sm:$0xf]
        %v1923 = vld [vmem:[%s1910 + $0x30] sm:$0xf]
        %v1924 = vld [vmem:[%s1910 + $0x34] sm:$0xf]
        %v1925 = vld [vmem:[%s1910 + $0x38] sm:$0xf]
        %v1926 = vld [vmem:[%s1910 + $0x3c] sm:$0xf]
        %v1943 = vunpack.c.l.b16 %v1911
        %v1944 = vunpack.c.l.b16 %v1912
        %v1945 = vunpack.c.l.b16 %v1913
        %v1946 = vunpack.c.l.b16 %v1914
        %v1947 = vunpack.c.l.b16 %v1915
        %v1948 = vunpack.c.l.b16 %v1916
        %v1949 = vunpack.c.l.b16 %v1917
        %v1950 = vunpack.c.l.b16 %v1918
        %v1951 = vunpack.c.l.b16 %v1919
        %v1952 = vunpack.c.l.b16 %v1920
        %v1953 = vunpack.c.l.b16 %v1921
        %v1954 = vunpack.c.l.b16 %v1922
        %v1955 = vunpack.c.l.b16 %v1923
        %v1956 = vunpack.c.l.b16 %v1924
        %v1957 = vunpack.c.l.b16 %v1925
        %v1958 = vunpack.c.l.b16 %v1926
        %v1959 = vpack.c.b16 %v1944, %v1943
        %v1960 = vpack.c.b16 %v1946, %v1945
        %v1961 = vpack.c.b16 %v1948, %v1947
        %v1962 = vpack.c.b16 %v1950, %v1949
        %v1963 = vpack.c.b16 %v1952, %v1951
        %v1964 = vpack.c.b16 %v1954, %v1953
        %v1965 = vpack.c.b16 %v1956, %v1955
        %v1966 = vpack.c.b16 %v1958, %v1957
        %1975 = vmatprep.subr.bf16.mxu0 0
        %1976 = vmatpush1.bf16.msra.mxu0 %v1959
        %1977 = vmatprep.subr.bf16.mxu0 0
        %1978 = vmatpush1.bf16.msra.mxu0 %v1960
        %1979 = vmatprep.subr.bf16.mxu0 0
        %1980 = vmatpush1.bf16.msra.mxu0 %v1961
        %1981 = vmatprep.subr.bf16.mxu0 0
        %1982 = vmatpush1.bf16.msra.mxu0 %v1962
        %1983 = vmatprep.subr.bf16.mxu0 0
        %1984 = vmatpush1.bf16.msra.mxu0 %v1963
        %1985 = vmatprep.subr.bf16.mxu0 0
        %1986 = vmatpush1.bf16.msra.mxu0 %v1964
        %1987 = vmatprep.subr.bf16.mxu0 0
        %1988 = vmatpush1.bf16.msra.mxu0 %v1965
        %1989 = vmatprep.subr.bf16.mxu0 0
        %1990 = vmatpush1.bf16.msra.mxu0 %v1966
        %1991 = vmatprep.subr.bf16.mxu0 0
        %1992 = vmatpush1.bf16.msra.mxu0 0
        %1993 = vmatprep.subr.bf16.mxu0 0
        %1994 = vmatpush1.bf16.msra.mxu0 0
        %1995 = vmatprep.subr.bf16.mxu0 0
        %1996 = vmatpush1.bf16.msra.mxu0 0
        %1997 = vmatprep.subr.bf16.mxu0 0
        %1998 = vmatpush1.bf16.msra.mxu0 0
        %1999 = vmatprep.subr.bf16.mxu0 0
        %2000 = vmatpush1.bf16.msra.mxu0 0
        %2001 = vmatprep.subr.bf16.mxu0 0
        %2002 = vmatpush1.bf16.msra.mxu0 0
        %2003 = vmatprep.subr.bf16.mxu0 0
        %2004 = vmatpush1.bf16.msra.mxu0 0
        %2005 = vmatprep.subr.bf16.mxu0 0
        %2006 = vmatpush1.bf16.msra.mxu0 0
        %2007 = vmatprep.mubr.bf16.mxu0 0
        %2008 = vmatmul.mubr.bf16.gmra.mrb[0].mxu0 %v1058
        %v2009 = vpop.f32.mrb[0].mxu0
        %v2010 = vadd.f32 0.0, %v2009
        %v2011 = vpop.f32.mrb[0].mxu0
        %v2012 = vpop.f32.mrb[0].mxu0
        %v2013 = vadd.f32 0.0, %v2012
        %v2014 = vpop.f32.mrb[0].mxu0
        %2015 = vmatprep.mubr.bf16.mxu0 0
        %2016 = vmatmul.mubr.bf16.gmra.mrb[0].mxu0 %v1061
        %v2017 = vpop.f32.mrb[0].mxu0
        %v2018 = vadd.f32 0.0, %v2017
        %v2019 = vpop.f32.mrb[0].mxu0
        %v2020 = vpop.f32.mrb[0].mxu0
        %v2021 = vadd.f32 0.0, %v2020
        %v2022 = vpop.f32.mrb[0].mxu0
        %2023 = vmatprep.mubr.bf16.mxu0 0
        %2024 = vmatmul.mubr.bf16.gmra.mrb[0].mxu0 %v1064
        %v2025 = vpop.f32.mrb[0].mxu0
        %v2026 = vadd.f32 0.0, %v2025
        %v2027 = vpop.f32.mrb[0].mxu0
        %v2028 = vpop.f32.mrb[0].mxu0
        %v2029 = vadd.f32 0.0, %v2028
        %v2030 = vpop.f32.mrb[0].mxu0
        %2031 = vmatprep.mubr.bf16.mxu0 0
        %2032 = vmatmul.mubr.bf16.gmra.mrb[0].mxu0 %v1067
        %v2033 = vpop.f32.mrb[0].mxu0
        %v2034 = vadd.f32 0.0, %v2033
        %v2035 = vpop.f32.mrb[0].mxu0
        %v2036 = vpop.f32.mrb[0].mxu0
        %v2037 = vadd.f32 0.0, %v2036
        %v2038 = vpop.f32.mrb[0].mxu0
        %2039 = vmatprep.mubr.bf16.mxu0 0
        %2040 = vmatmul.mubr.bf16.gmra.mrb[0].mxu0 %v1070
        %v2041 = vpop.f32.mrb[0].mxu0
        %v2042 = vadd.f32 0.0, %v2041
        %v2043 = vpop.f32.mrb[0].mxu0
        %v2044 = vpop.f32.mrb[0].mxu0
        %v2045 = vadd.f32 0.0, %v2044
        %v2046 = vpop.f32.mrb[0].mxu0
        %2047 = vmatprep.mubr.bf16.mxu0 0
        %2048 = vmatmul.mubr.bf16.gmra.mrb[0].mxu0 %v1073
        %v2049 = vpop.f32.mrb[0].mxu0
        %v2050 = vadd.f32 0.0, %v2049
        %v2051 = vpop.f32.mrb[0].mxu0
        %v2052 = vpop.f32.mrb[0].mxu0
        %v2053 = vadd.f32 0.0, %v2052
        %v2054 = vpop.f32.mrb[0].mxu0
        %2055 = vmatprep.mubr.bf16.mxu0 0
        %2056 = vmatmul.mubr.bf16.gmra.mrb[0].mxu0 %v1076
        %v2057 = vpop.f32.mrb[0].mxu0
        %v2058 = vadd.f32 0.0, %v2057
        %v2059 = vpop.f32.mrb[0].mxu0
        %v2060 = vpop.f32.mrb[0].mxu0
        %v2061 = vadd.f32 0.0, %v2060
        %v2062 = vpop.f32.mrb[0].mxu0
        %2063 = vmatprep.mubr.bf16.mxu0 0
        %2064 = vmatmul.mubr.bf16.gmra.mrb[0].mxu0 %v1079
        %v2065 = vpop.f32.mrb[0].mxu0
        %v2066 = vadd.f32 0.0, %v2065
        %v2067 = vpop.f32.mrb[0].mxu0
        %v2068 = vpop.f32.mrb[0].mxu0
        %v2069 = vadd.f32 0.0, %v2068
        %v2070 = vpop.f32.mrb[0].mxu0
        %2071 = vmatprep.mubr.bf16.mxu0 0
        %2072 = vmatmul.mubr.bf16.gmra.mrb[0].mxu0 %v1082
        %v2073 = vpop.f32.mrb[0].mxu0
        %v2074 = vadd.f32 0.0, %v2073
        %v2075 = vpop.f32.mrb[0].mxu0
        %v2076 = vpop.f32.mrb[0].mxu0
        %v2077 = vadd.f32 0.0, %v2076
        %v2078 = vpop.f32.mrb[0].mxu0
        %2079 = vmatprep.mubr.bf16.mxu0 0
        %2080 = vmatmul.mubr.bf16.gmra.mrb[0].mxu0 %v1085
        %v2081 = vpop.f32.mrb[0].mxu0
        %v2082 = vadd.f32 0.0, %v2081
        %v2083 = vpop.f32.mrb[0].mxu0
        %v2084 = vpop.f32.mrb[0].mxu0
        %v2085 = vadd.f32 0.0, %v2084
        %v2086 = vpop.f32.mrb[0].mxu0
        %2087 = vmatprep.mubr.bf16.mxu0 0
        %2088 = vmatmul.mubr.bf16.gmra.mrb[0].mxu0 %v1088
        %v2089 = vpop.f32.mrb[0].mxu0
        %v2090 = vadd.f32 0.0, %v2089
        %v2091 = vpop.f32.mrb[0].mxu0
        %v2092 = vpop.f32.mrb[0].mxu0
        %v2093 = vadd.f32 0.0, %v2092
        %v2094 = vpop.f32.mrb[0].mxu0
        %2095 = vmatprep.mubr.bf16.mxu0 0
        %2096 = vmatmul.mubr.bf16.gmra.mrb[0].mxu0 %v1091
        %v2097 = vpop.f32.mrb[0].mxu0
        %v2098 = vadd.f32 0.0, %v2097
        %v2099 = vpop.f32.mrb[0].mxu0
        %v2100 = vpop.f32.mrb[0].mxu0
        %v2101 = vadd.f32 0.0, %v2100
        %v2102 = vpop.f32.mrb[0].mxu0
        %2103 = vmatprep.mubr.bf16.mxu0 0
        %2104 = vmatmul.mubr.bf16.gmra.mrb[0].mxu0 %v1094
        %v2105 = vpop.f32.mrb[0].mxu0
        %v2106 = vadd.f32 0.0, %v2105
        %v2107 = vpop.f32.mrb[0].mxu0
        %v2108 = vpop.f32.mrb[0].mxu0
        %v2109 = vadd.f32 0.0, %v2108
        %v2110 = vpop.f32.mrb[0].mxu0
        %2111 = vmatprep.mubr.bf16.mxu0 0
        %2112 = vmatmul.mubr.bf16.gmra.mrb[0].mxu0 %v1097
        %v2113 = vpop.f32.mrb[0].mxu0
        %v2114 = vadd.f32 0.0, %v2113
        %v2115 = vpop.f32.mrb[0].mxu0
        %v2116 = vpop.f32.mrb[0].mxu0
        %v2117 = vadd.f32 0.0, %v2116
        %v2118 = vpop.f32.mrb[0].mxu0
        %2119 = vmatprep.mubr.bf16.mxu0 0
        %2120 = vmatmul.mubr.bf16.gmra.mrb[0].mxu0 %v1100
        %v2121 = vpop.f32.mrb[0].mxu0
        %v2122 = vadd.f32 0.0, %v2121
        %v2123 = vpop.f32.mrb[0].mxu0
        %v2124 = vpop.f32.mrb[0].mxu0
        %v2125 = vadd.f32 0.0, %v2124
        %v2126 = vpop.f32.mrb[0].mxu0
        %2127 = vmatprep.mubr.bf16.mxu0 0
        %2128 = vmatmul.mubr.bf16.gmra.mrb[0].mxu0 %v1908
        %v2129 = vpop.f32.mrb[0].mxu0
        %v2130 = vadd.f32 0.0, %v2129
        %v2131 = vpop.f32.mrb[0].mxu0
        %v2132 = vpop.f32.mrb[0].mxu0
        %v2133 = vadd.f32 0.0, %v2132
        %v2134 = vpop.f32.mrb[0].mxu0
        %2135 = vdwg.mxu0
        %v2136 = vadd.f32 %v1872, %v2010
        %v2137 = vadd.f32 %v1873, %v2013
        %v2138 = vadd.f32 %v1874, %v2018
        %v2139 = vadd.f32 %v1875, %v2021
        %v2140 = vadd.f32 %v1876, %v2026
        %v2141 = vadd.f32 %v1877, %v2029
        %v2142 = vadd.f32 %v1878, %v2034
        %v2143 = vadd.f32 %v1879, %v2037
        %v2144 = vadd.f32 %v1880, %v2042
        %v2145 = vadd.f32 %v1881, %v2045
        %v2146 = vadd.f32 %v1882, %v2050
        %v2147 = vadd.f32 %v1883, %v2053
        %v2148 = vadd.f32 %v1884, %v2058
        %v2149 = vadd.f32 %v1885, %v2061
        %v2150 = vadd.f32 %v1886, %v2066
        %v2151 = vadd.f32 %v1887, %v2069
        %v2152 = vadd.f32 %v1888, %v2074
        %v2153 = vadd.f32 %v1889, %v2077
        %v2154 = vadd.f32 %v1890, %v2082
        %v2155 = vadd.f32 %v1891, %v2085
        %v2156 = vadd.f32 %v1892, %v2090
        %v2157 = vadd.f32 %v1893, %v2093
        %v2158 = vadd.f32 %v1894, %v2098
        %v2159 = vadd.f32 %v1895, %v2101
        %v2160 = vadd.f32 %v1896, %v2106
        %v2161 = vadd.f32 %v1897, %v2109
        %v2162 = vadd.f32 %v1898, %v2114
        %v2163 = vadd.f32 %v1899, %v2117
        %v2164 = vadd.f32 %v1900, %v2122
        %v2165 = vadd.f32 %v1901, %v2125
        %v2166 = vadd.f32 %v1902, %v2130
        %v2167 = vadd.f32 %v1903, %v2133
        %s2168 = scalar_lea.vmem %s1, 384
        %v2169 = vld [vmem:[%s2168] sm:$0xf]
        %v2170 = vld [vmem:[%s2168 + $0x4] sm:$0xf]
        %v2171 = vld [vmem:[%s2168 + $0x8] sm:$0xf]
        %v2172 = vld [vmem:[%s2168 + $0xc] sm:$0xf]
        %v2173 = vld [vmem:[%s2168 + $0x10] sm:$0xf]
        %v2174 = vld [vmem:[%s2168 + $0x14] sm:$0xf]
        %v2175 = vld [vmem:[%s2168 + $0x18] sm:$0xf]
        %v2176 = vld [vmem:[%s2168 + $0x1c] sm:$0xf]
        %v2177 = vld [vmem:[%s2168 + $0x20] sm:$0xf]
        %v2178 = vld [vmem:[%s2168 + $0x24] sm:$0xf]
        %v2179 = vld [vmem:[%s2168 + $0x28] sm:$0xf]
        %v2180 = vld [vmem:[%s2168 + $0x2c] sm:$0xf]
        %v2181 = vld [vmem:[%s2168 + $0x30] sm:$0xf]
        %v2182 = vld [vmem:[%s2168 + $0x34] sm:$0xf]
        %v2183 = vld [vmem:[%s2168 + $0x38] sm:$0xf]
        %v2184 = vld [vmem:[%s2168 + $0x3c] sm:$0xf]
        %v2201 = vunpack.c.l.b16 %v2169
        %v2202 = vunpack.c.l.b16 %v2170
        %v2203 = vunpack.c.l.b16 %v2171
        %v2204 = vunpack.c.l.b16 %v2172
        %v2205 = vunpack.c.l.b16 %v2173
        %v2206 = vunpack.c.l.b16 %v2174
        %v2207 = vunpack.c.l.b16 %v2175
        %v2208 = vunpack.c.l.b16 %v2176
        %v2209 = vunpack.c.l.b16 %v2177
        %v2210 = vunpack.c.l.b16 %v2178
        %v2211 = vunpack.c.l.b16 %v2179
        %v2212 = vunpack.c.l.b16 %v2180
        %v2213 = vunpack.c.l.b16 %v2181
        %v2214 = vunpack.c.l.b16 %v2182
        %v2215 = vunpack.c.l.b16 %v2183
        %v2216 = vunpack.c.l.b16 %v2184
        %v2217 = vpack.c.b16 %v2202, %v2201
        %v2218 = vpack.c.b16 %v2204, %v2203
        %v2219 = vpack.c.b16 %v2206, %v2205
        %v2220 = vpack.c.b16 %v2208, %v2207
        %v2221 = vpack.c.b16 %v2210, %v2209
        %v2222 = vpack.c.b16 %v2212, %v2211
        %v2223 = vpack.c.b16 %v2214, %v2213
        %v2224 = vpack.c.b16 %v2216, %v2215
        %2233 = vmatprep.subr.bf16.mxu0 0
        %2234 = vmatpush1.bf16.msra.mxu0 %v2217
        %2235 = vmatprep.subr.bf16.mxu0 0
        %2236 = vmatpush1.bf16.msra.mxu0 %v2218
        %2237 = vmatprep.subr.bf16.mxu0 0
        %2238 = vmatpush1.bf16.msra.mxu0 %v2219
        %2239 = vmatprep.subr.bf16.mxu0 0
        %2240 = vmatpush1.bf16.msra.mxu0 %v2220
        %2241 = vmatprep.subr.bf16.mxu0 0
        %2242 = vmatpush1.bf16.msra.mxu0 %v2221
        %2243 = vmatprep.subr.bf16.mxu0 0
        %2244 = vmatpush1.bf16.msra.mxu0 %v2222
        %2245 = vmatprep.subr.bf16.mxu0 0
        %2246 = vmatpush1.bf16.msra.mxu0 %v2223
        %2247 = vmatprep.subr.bf16.mxu0 0
        %2248 = vmatpush1.bf16.msra.mxu0 %v2224
        %2249 = vmatprep.subr.bf16.mxu0 0
        %2250 = vmatpush1.bf16.msra.mxu0 0
        %2251 = vmatprep.subr.bf16.mxu0 0
        %2252 = vmatpush1.bf16.msra.mxu0 0
        %2253 = vmatprep.subr.bf16.mxu0 0
        %2254 = vmatpush1.bf16.msra.mxu0 0
        %2255 = vmatprep.subr.bf16.mxu0 0
        %2256 = vmatpush1.bf16.msra.mxu0 0
        %2257 = vmatprep.subr.bf16.mxu0 0
        %2258 = vmatpush1.bf16.msra.mxu0 0
        %2259 = vmatprep.subr.bf16.mxu0 0
        %2260 = vmatpush1.bf16.msra.mxu0 0
        %2261 = vmatprep.subr.bf16.mxu0 0
        %2262 = vmatpush1.bf16.msra.mxu0 0
        %2263 = vmatprep.subr.bf16.mxu0 0
        %2264 = vmatpush1.bf16.msra.mxu0 0
        %2265 = vmatprep.mubr.bf16.mxu0 0
        %2266 = vmatmul.mubr.bf16.gmra.mrb[0].mxu0 %v328
        %v2267 = vpop.f32.mrb[0].mxu0
        %v2268 = vadd.f32 0.0, %v2267
        %v2269 = vpop.f32.mrb[0].mxu0
        %v2270 = vpop.f32.mrb[0].mxu0
        %v2271 = vadd.f32 0.0, %v2270
        %v2272 = vpop.f32.mrb[0].mxu0
        %2273 = vmatprep.mubr.bf16.mxu0 0
        %2274 = vmatmul.mubr.bf16.gmra.mrb[0].mxu0 %v330
        %v2275 = vpop.f32.mrb[0].mxu0
        %v2276 = vadd.f32 0.0, %v2275
        %v2277 = vpop.f32.mrb[0].mxu0
        %v2278 = vpop.f32.mrb[0].mxu0
        %v2279 = vadd.f32 0.0, %v2278
        %v2280 = vpop.f32.mrb[0].mxu0
        %2281 = vmatprep.mubr.bf16.mxu0 0
        %2282 = vmatmul.mubr.bf16.gmra.mrb[0].mxu0 %v332
        %v2283 = vpop.f32.mrb[0].mxu0
        %v2284 = vadd.f32 0.0, %v2283
        %v2285 = vpop.f32.mrb[0].mxu0
        %v2286 = vpop.f32.mrb[0].mxu0
        %v2287 = vadd.f32 0.0, %v2286
        %v2288 = vpop.f32.mrb[0].mxu0
        %2289 = vmatprep.mubr.bf16.mxu0 0
        %2290 = vmatmul.mubr.bf16.gmra.mrb[0].mxu0 %v334
        %v2291 = vpop.f32.mrb[0].mxu0
        %v2292 = vadd.f32 0.0, %v2291
        %v2293 = vpop.f32.mrb[0].mxu0
        %v2294 = vpop.f32.mrb[0].mxu0
        %v2295 = vadd.f32 0.0, %v2294
        %v2296 = vpop.f32.mrb[0].mxu0
        %2297 = vmatprep.mubr.bf16.mxu0 0
        %2298 = vmatmul.mubr.bf16.gmra.mrb[0].mxu0 %v336
        %v2299 = vpop.f32.mrb[0].mxu0
        %v2300 = vadd.f32 0.0, %v2299
        %v2301 = vpop.f32.mrb[0].mxu0
        %v2302 = vpop.f32.mrb[0].mxu0
        %v2303 = vadd.f32 0.0, %v2302
        %v2304 = vpop.f32.mrb[0].mxu0
        %2305 = vmatprep.mubr.bf16.mxu0 0
        %2306 = vmatmul.mubr.bf16.gmra.mrb[0].mxu0 %v338
        %v2307 = vpop.f32.mrb[0].mxu0
        %v2308 = vadd.f32 0.0, %v2307
        %v2309 = vpop.f32.mrb[0].mxu0
        %v2310 = vpop.f32.mrb[0].mxu0
        %v2311 = vadd.f32 0.0, %v2310
        %v2312 = vpop.f32.mrb[0].mxu0
        %2313 = vmatprep.mubr.bf16.mxu0 0
        %2314 = vmatmul.mubr.bf16.gmra.mrb[0].mxu0 %v340
        %v2315 = vpop.f32.mrb[0].mxu0
        %v2316 = vadd.f32 0.0, %v2315
        %v2317 = vpop.f32.mrb[0].mxu0
        %v2318 = vpop.f32.mrb[0].mxu0
        %v2319 = vadd.f32 0.0, %v2318
        %v2320 = vpop.f32.mrb[0].mxu0
        %2321 = vmatprep.mubr.bf16.mxu0 0
        %2322 = vmatmul.mubr.bf16.gmra.mrb[0].mxu0 %v342
        %v2323 = vpop.f32.mrb[0].mxu0
        %v2324 = vadd.f32 0.0, %v2323
        %v2325 = vpop.f32.mrb[0].mxu0
        %v2326 = vpop.f32.mrb[0].mxu0
        %v2327 = vadd.f32 0.0, %v2326
        %v2328 = vpop.f32.mrb[0].mxu0
        %2329 = vmatprep.mubr.bf16.mxu0 0
        %2330 = vmatmul.mubr.bf16.gmra.mrb[0].mxu0 %v344
        %v2331 = vpop.f32.mrb[0].mxu0
        %v2332 = vadd.f32 0.0, %v2331
        %v2333 = vpop.f32.mrb[0].mxu0
        %v2334 = vpop.f32.mrb[0].mxu0
        %v2335 = vadd.f32 0.0, %v2334
        %v2336 = vpop.f32.mrb[0].mxu0
        %2337 = vmatprep.mubr.bf16.mxu0 0
        %2338 = vmatmul.mubr.bf16.gmra.mrb[0].mxu0 %v346
        %v2339 = vpop.f32.mrb[0].mxu0
        %v2340 = vadd.f32 0.0, %v2339
        %v2341 = vpop.f32.mrb[0].mxu0
        %v2342 = vpop.f32.mrb[0].mxu0
        %v2343 = vadd.f32 0.0, %v2342
        %v2344 = vpop.f32.mrb[0].mxu0
        %2345 = vmatprep.mubr.bf16.mxu0 0
        %2346 = vmatmul.mubr.bf16.gmra.mrb[0].mxu0 %v348
        %v2347 = vpop.f32.mrb[0].mxu0
        %v2348 = vadd.f32 0.0, %v2347
        %v2349 = vpop.f32.mrb[0].mxu0
        %v2350 = vpop.f32.mrb[0].mxu0
        %v2351 = vadd.f32 0.0, %v2350
        %v2352 = vpop.f32.mrb[0].mxu0
        %2353 = vmatprep.mubr.bf16.mxu0 0
        %2354 = vmatmul.mubr.bf16.gmra.mrb[0].mxu0 %v350
        %v2355 = vpop.f32.mrb[0].mxu0
        %v2356 = vadd.f32 0.0, %v2355
        %v2357 = vpop.f32.mrb[0].mxu0
        %v2358 = vpop.f32.mrb[0].mxu0
        %v2359 = vadd.f32 0.0, %v2358
        %v2360 = vpop.f32.mrb[0].mxu0
        %2361 = vmatprep.mubr.bf16.mxu0 0
        %2362 = vmatmul.mubr.bf16.gmra.mrb[0].mxu0 %v352
        %v2363 = vpop.f32.mrb[0].mxu0
        %v2364 = vadd.f32 0.0, %v2363
        %v2365 = vpop.f32.mrb[0].mxu0
        %v2366 = vpop.f32.mrb[0].mxu0
        %v2367 = vadd.f32 0.0, %v2366
        %v2368 = vpop.f32.mrb[0].mxu0
        %2369 = vmatprep.mubr.bf16.mxu0 0
        %2370 = vmatmul.mubr.bf16.gmra.mrb[0].mxu0 %v354
        %v2371 = vpop.f32.mrb[0].mxu0
        %v2372 = vadd.f32 0.0, %v2371
        %v2373 = vpop.f32.mrb[0].mxu0
        %v2374 = vpop.f32.mrb[0].mxu0
        %v2375 = vadd.f32 0.0, %v2374
        %v2376 = vpop.f32.mrb[0].mxu0
        %2377 = vmatprep.mubr.bf16.mxu0 0
        %2378 = vmatmul.mubr.bf16.gmra.mrb[0].mxu0 %v356
        %v2379 = vpop.f32.mrb[0].mxu0
        %v2380 = vadd.f32 0.0, %v2379
        %v2381 = vpop.f32.mrb[0].mxu0
        %v2382 = vpop.f32.mrb[0].mxu0
        %v2383 = vadd.f32 0.0, %v2382
        %v2384 = vpop.f32.mrb[0].mxu0
        %2385 = vmatprep.mubr.bf16.mxu0 0
        %2386 = vmatmul.mubr.bf16.gmra.mrb[0].mxu0 %v358
        %v2387 = vpop.f32.mrb[0].mxu0
        %v2388 = vadd.f32 0.0, %v2387
        %v2389 = vpop.f32.mrb[0].mxu0
        %v2390 = vpop.f32.mrb[0].mxu0
        %v2391 = vadd.f32 0.0, %v2390
        %v2392 = vpop.f32.mrb[0].mxu0
        %2393 = vdwg.mxu0
        %v2394 = vadd.f32 %v2136, %v2268
        %v2395 = vadd.f32 %v2137, %v2271
        %v2396 = vadd.f32 %v2138, %v2276
        %v2397 = vadd.f32 %v2139, %v2279
        %v2398 = vadd.f32 %v2140, %v2284
        %v2399 = vadd.f32 %v2141, %v2287
        %v2400 = vadd.f32 %v2142, %v2292
        %v2401 = vadd.f32 %v2143, %v2295
        %v2402 = vadd.f32 %v2144, %v2300
        %v2403 = vadd.f32 %v2145, %v2303
        %v2404 = vadd.f32 %v2146, %v2308
        %v2405 = vadd.f32 %v2147, %v2311
        %v2406 = vadd.f32 %v2148, %v2316
        %v2407 = vadd.f32 %v2149, %v2319
        %v2408 = vadd.f32 %v2150, %v2324
        %v2409 = vadd.f32 %v2151, %v2327
        %v2410 = vadd.f32 %v2152, %v2332
        %v2411 = vadd.f32 %v2153, %v2335
        %v2412 = vadd.f32 %v2154, %v2340
        %v2413 = vadd.f32 %v2155, %v2343
        %v2414 = vadd.f32 %v2156, %v2348
        %v2415 = vadd.f32 %v2157, %v2351
        %v2416 = vadd.f32 %v2158, %v2356
        %v2417 = vadd.f32 %v2159, %v2359
        %v2418 = vadd.f32 %v2160, %v2364
        %v2419 = vadd.f32 %v2161, %v2367
        %v2420 = vadd.f32 %v2162, %v2372
        %v2421 = vadd.f32 %v2163, %v2375
        %v2422 = vadd.f32 %v2164, %v2380
        %v2423 = vadd.f32 %v2165, %v2383
        %v2424 = vadd.f32 %v2166, %v2388
        %v2425 = vadd.f32 %v2167, %v2391
        %v2427 = vshrl.u32 %v358, 16
        %v2429 = vshll.u32 %v358, 16
        %v2431 = vrot.slane %v2429, 1
        %v2432 = vor.u32 %v2427, %v2431
        %v2434 = vshll.u32 %v359, 16
        %v2436 = vrot.slane %v2434, 1
        %v2437 = vsel %vm376, %v2432, %v2436
        %s2439 = scalar_lea.vmem %s1, 448
        %v2440 = vld [vmem:[%s2439] sm:$0xf]
        %v2441 = vld [vmem:[%s2439 + $0x4] sm:$0xf]
        %v2442 = vld [vmem:[%s2439 + $0x8] sm:$0xf]
        %v2443 = vld [vmem:[%s2439 + $0xc] sm:$0xf]
        %v2444 = vld [vmem:[%s2439 + $0x10] sm:$0xf]
        %v2445 = vld [vmem:[%s2439 + $0x14] sm:$0xf]
        %v2446 = vld [vmem:[%s2439 + $0x18] sm:$0xf]
        %v2447 = vld [vmem:[%s2439 + $0x1c] sm:$0xf]
        %v2448 = vld [vmem:[%s2439 + $0x20] sm:$0xf]
        %v2449 = vld [vmem:[%s2439 + $0x24] sm:$0xf]
        %v2450 = vld [vmem:[%s2439 + $0x28] sm:$0xf]
        %v2451 = vld [vmem:[%s2439 + $0x2c] sm:$0xf]
        %v2452 = vld [vmem:[%s2439 + $0x30] sm:$0xf]
        %v2453 = vld [vmem:[%s2439 + $0x34] sm:$0xf]
        %v2454 = vld [vmem:[%s2439 + $0x38] sm:$0xf]
        %v2455 = vld [vmem:[%s2439 + $0x3c] sm:$0xf]
        %v2472 = vunpack.c.l.b16 %v2440
        %v2473 = vunpack.c.l.b16 %v2441
        %v2474 = vunpack.c.l.b16 %v2442
        %v2475 = vunpack.c.l.b16 %v2443
        %v2476 = vunpack.c.l.b16 %v2444
        %v2477 = vunpack.c.l.b16 %v2445
        %v2478 = vunpack.c.l.b16 %v2446
        %v2479 = vunpack.c.l.b16 %v2447
        %v2480 = vunpack.c.l.b16 %v2448
        %v2481 = vunpack.c.l.b16 %v2449
        %v2482 = vunpack.c.l.b16 %v2450
        %v2483 = vunpack.c.l.b16 %v2451
        %v2484 = vunpack.c.l.b16 %v2452
        %v2485 = vunpack.c.l.b16 %v2453
        %v2486 = vunpack.c.l.b16 %v2454
        %v2487 = vunpack.c.l.b16 %v2455
        %v2488 = vpack.c.b16 %v2473, %v2472
        %v2489 = vpack.c.b16 %v2475, %v2474
        %v2490 = vpack.c.b16 %v2477, %v2476
        %v2491 = vpack.c.b16 %v2479, %v2478
        %v2492 = vpack.c.b16 %v2481, %v2480
        %v2493 = vpack.c.b16 %v2483, %v2482
        %v2494 = vpack.c.b16 %v2485, %v2484
        %v2495 = vpack.c.b16 %v2487, %v2486
        %2504 = vmatprep.subr.bf16.mxu0 0
        %2505 = vmatpush1.bf16.msra.mxu0 %v2488
        %2506 = vmatprep.subr.bf16.mxu0 0
        %2507 = vmatpush1.bf16.msra.mxu0 %v2489
        %2508 = vmatprep.subr.bf16.mxu0 0
        %2509 = vmatpush1.bf16.msra.mxu0 %v2490
        %2510 = vmatprep.subr.bf16.mxu0 0
        %2511 = vmatpush1.bf16.msra.mxu0 %v2491
        %2512 = vmatprep.subr.bf16.mxu0 0
        %2513 = vmatpush1.bf16.msra.mxu0 %v2492
        %2514 = vmatprep.subr.bf16.mxu0 0
        %2515 = vmatpush1.bf16.msra.mxu0 %v2493
        %2516 = vmatprep.subr.bf16.mxu0 0
        %2517 = vmatpush1.bf16.msra.mxu0 %v2494
        %2518 = vmatprep.subr.bf16.mxu0 0
        %2519 = vmatpush1.bf16.msra.mxu0 %v2495
        %2520 = vmatprep.subr.bf16.mxu0 0
        %2521 = vmatpush1.bf16.msra.mxu0 0
        %2522 = vmatprep.subr.bf16.mxu0 0
        %2523 = vmatpush1.bf16.msra.mxu0 0
        %2524 = vmatprep.subr.bf16.mxu0 0
        %2525 = vmatpush1.bf16.msra.mxu0 0
        %2526 = vmatprep.subr.bf16.mxu0 0
        %2527 = vmatpush1.bf16.msra.mxu0 0
        %2528 = vmatprep.subr.bf16.mxu0 0
        %2529 = vmatpush1.bf16.msra.mxu0 0
        %2530 = vmatprep.subr.bf16.mxu0 0
        %2531 = vmatpush1.bf16.msra.mxu0 0
        %2532 = vmatprep.subr.bf16.mxu0 0
        %2533 = vmatpush1.bf16.msra.mxu0 0
        %2534 = vmatprep.subr.bf16.mxu0 0
        %2535 = vmatpush1.bf16.msra.mxu0 0
        %2536 = vmatprep.mubr.bf16.mxu0 0
        %2537 = vmatmul.mubr.bf16.gmra.mrb[0].mxu0 %v412
        %v2538 = vpop.f32.mrb[0].mxu0
        %v2539 = vadd.f32 0.0, %v2538
        %v2540 = vpop.f32.mrb[0].mxu0
        %v2541 = vpop.f32.mrb[0].mxu0
        %v2542 = vadd.f32 0.0, %v2541
        %v2543 = vpop.f32.mrb[0].mxu0
        %2544 = vmatprep.mubr.bf16.mxu0 0
        %2545 = vmatmul.mubr.bf16.gmra.mrb[0].mxu0 %v424
        %v2546 = vpop.f32.mrb[0].mxu0
        %v2547 = vadd.f32 0.0, %v2546
        %v2548 = vpop.f32.mrb[0].mxu0
        %v2549 = vpop.f32.mrb[0].mxu0
        %v2550 = vadd.f32 0.0, %v2549
        %v2551 = vpop.f32.mrb[0].mxu0
        %2552 = vmatprep.mubr.bf16.mxu0 0
        %2553 = vmatmul.mubr.bf16.gmra.mrb[0].mxu0 %v436
        %v2554 = vpop.f32.mrb[0].mxu0
        %v2555 = vadd.f32 0.0, %v2554
        %v2556 = vpop.f32.mrb[0].mxu0
        %v2557 = vpop.f32.mrb[0].mxu0
        %v2558 = vadd.f32 0.0, %v2557
        %v2559 = vpop.f32.mrb[0].mxu0
        %2560 = vmatprep.mubr.bf16.mxu0 0
        %2561 = vmatmul.mubr.bf16.gmra.mrb[0].mxu0 %v448
        %v2562 = vpop.f32.mrb[0].mxu0
        %v2563 = vadd.f32 0.0, %v2562
        %v2564 = vpop.f32.mrb[0].mxu0
        %v2565 = vpop.f32.mrb[0].mxu0
        %v2566 = vadd.f32 0.0, %v2565
        %v2567 = vpop.f32.mrb[0].mxu0
        %2568 = vmatprep.mubr.bf16.mxu0 0
        %2569 = vmatmul.mubr.bf16.gmra.mrb[0].mxu0 %v460
        %v2570 = vpop.f32.mrb[0].mxu0
        %v2571 = vadd.f32 0.0, %v2570
        %v2572 = vpop.f32.mrb[0].mxu0
        %v2573 = vpop.f32.mrb[0].mxu0
        %v2574 = vadd.f32 0.0, %v2573
        %v2575 = vpop.f32.mrb[0].mxu0
        %2576 = vmatprep.mubr.bf16.mxu0 0
        %2577 = vmatmul.mubr.bf16.gmra.mrb[0].mxu0 %v472
        %v2578 = vpop.f32.mrb[0].mxu0
        %v2579 = vadd.f32 0.0, %v2578
        %v2580 = vpop.f32.mrb[0].mxu0
        %v2581 = vpop.f32.mrb[0].mxu0
        %v2582 = vadd.f32 0.0, %v2581
        %v2583 = vpop.f32.mrb[0].mxu0
        %2584 = vmatprep.mubr.bf16.mxu0 0
        %2585 = vmatmul.mubr.bf16.gmra.mrb[0].mxu0 %v484
        %v2586 = vpop.f32.mrb[0].mxu0
        %v2587 = vadd.f32 0.0, %v2586
        %v2588 = vpop.f32.mrb[0].mxu0
        %v2589 = vpop.f32.mrb[0].mxu0
        %v2590 = vadd.f32 0.0, %v2589
        %v2591 = vpop.f32.mrb[0].mxu0
        %2592 = vmatprep.mubr.bf16.mxu0 0
        %2593 = vmatmul.mubr.bf16.gmra.mrb[0].mxu0 %v496
        %v2594 = vpop.f32.mrb[0].mxu0
        %v2595 = vadd.f32 0.0, %v2594
        %v2596 = vpop.f32.mrb[0].mxu0
        %v2597 = vpop.f32.mrb[0].mxu0
        %v2598 = vadd.f32 0.0, %v2597
        %v2599 = vpop.f32.mrb[0].mxu0
        %2600 = vmatprep.mubr.bf16.mxu0 0
        %2601 = vmatmul.mubr.bf16.gmra.mrb[0].mxu0 %v508
        %v2602 = vpop.f32.mrb[0].mxu0
        %v2603 = vadd.f32 0.0, %v2602
        %v2604 = vpop.f32.mrb[0].mxu0
        %v2605 = vpop.f32.mrb[0].mxu0
        %v2606 = vadd.f32 0.0, %v2605
        %v2607 = vpop.f32.mrb[0].mxu0
        %2608 = vmatprep.mubr.bf16.mxu0 0
        %2609 = vmatmul.mubr.bf16.gmra.mrb[0].mxu0 %v520
        %v2610 = vpop.f32.mrb[0].mxu0
        %v2611 = vadd.f32 0.0, %v2610
        %v2612 = vpop.f32.mrb[0].mxu0
        %v2613 = vpop.f32.mrb[0].mxu0
        %v2614 = vadd.f32 0.0, %v2613
        %v2615 = vpop.f32.mrb[0].mxu0
        %2616 = vmatprep.mubr.bf16.mxu0 0
        %2617 = vmatmul.mubr.bf16.gmra.mrb[0].mxu0 %v532
        %v2618 = vpop.f32.mrb[0].mxu0
        %v2619 = vadd.f32 0.0, %v2618
        %v2620 = vpop.f32.mrb[0].mxu0
        %v2621 = vpop.f32.mrb[0].mxu0
        %v2622 = vadd.f32 0.0, %v2621
        %v2623 = vpop.f32.mrb[0].mxu0
        %2624 = vmatprep.mubr.bf16.mxu0 0
        %2625 = vmatmul.mubr.bf16.gmra.mrb[0].mxu0 %v544
        %v2626 = vpop.f32.mrb[0].mxu0
        %v2627 = vadd.f32 0.0, %v2626
        %v2628 = vpop.f32.mrb[0].mxu0
        %v2629 = vpop.f32.mrb[0].mxu0
        %v2630 = vadd.f32 0.0, %v2629
        %v2631 = vpop.f32.mrb[0].mxu0
        %2632 = vmatprep.mubr.bf16.mxu0 0
        %2633 = vmatmul.mubr.bf16.gmra.mrb[0].mxu0 %v556
        %v2634 = vpop.f32.mrb[0].mxu0
        %v2635 = vadd.f32 0.0, %v2634
        %v2636 = vpop.f32.mrb[0].mxu0
        %v2637 = vpop.f32.mrb[0].mxu0
        %v2638 = vadd.f32 0.0, %v2637
        %v2639 = vpop.f32.mrb[0].mxu0
        %2640 = vmatprep.mubr.bf16.mxu0 0
        %2641 = vmatmul.mubr.bf16.gmra.mrb[0].mxu0 %v568
        %v2642 = vpop.f32.mrb[0].mxu0
        %v2643 = vadd.f32 0.0, %v2642
        %v2644 = vpop.f32.mrb[0].mxu0
        %v2645 = vpop.f32.mrb[0].mxu0
        %v2646 = vadd.f32 0.0, %v2645
        %v2647 = vpop.f32.mrb[0].mxu0
        %2648 = vmatprep.mubr.bf16.mxu0 0
        %2649 = vmatmul.mubr.bf16.gmra.mrb[0].mxu0 %v1644
        %v2650 = vpop.f32.mrb[0].mxu0
        %v2651 = vadd.f32 0.0, %v2650
        %v2652 = vpop.f32.mrb[0].mxu0
        %v2653 = vpop.f32.mrb[0].mxu0
        %v2654 = vadd.f32 0.0, %v2653
        %v2655 = vpop.f32.mrb[0].mxu0
        %2656 = vmatprep.mubr.bf16.mxu0 0
        %2657 = vmatmul.mubr.bf16.gmra.mrb[0].mxu0 %v2437
        %v2658 = vpop.f32.mrb[0].mxu0
        %v2659 = vadd.f32 0.0, %v2658
        %v2660 = vpop.f32.mrb[0].mxu0
        %v2661 = vpop.f32.mrb[0].mxu0
        %v2662 = vadd.f32 0.0, %v2661
        %v2663 = vpop.f32.mrb[0].mxu0
        %2664 = vdwg.mxu0
        %v2665 = vadd.f32 %v2394, %v2539
        %v2666 = vadd.f32 %v2395, %v2542
        %v2667 = vadd.f32 %v2396, %v2547
        %v2668 = vadd.f32 %v2397, %v2550
        %v2669 = vadd.f32 %v2398, %v2555
        %v2670 = vadd.f32 %v2399, %v2558
        %v2671 = vadd.f32 %v2400, %v2563
        %v2672 = vadd.f32 %v2401, %v2566
        %v2673 = vadd.f32 %v2402, %v2571
        %v2674 = vadd.f32 %v2403, %v2574
        %v2675 = vadd.f32 %v2404, %v2579
        %v2676 = vadd.f32 %v2405, %v2582
        %v2677 = vadd.f32 %v2406, %v2587
        %v2678 = vadd.f32 %v2407, %v2590
        %v2679 = vadd.f32 %v2408, %v2595
        %v2680 = vadd.f32 %v2409, %v2598
        %v2681 = vadd.f32 %v2410, %v2603
        %v2682 = vadd.f32 %v2411, %v2606
        %v2683 = vadd.f32 %v2412, %v2611
        %v2684 = vadd.f32 %v2413, %v2614
        %v2685 = vadd.f32 %v2414, %v2619
        %v2686 = vadd.f32 %v2415, %v2622
        %v2687 = vadd.f32 %v2416, %v2627
        %v2688 = vadd.f32 %v2417, %v2630
        %v2689 = vadd.f32 %v2418, %v2635
        %v2690 = vadd.f32 %v2419, %v2638
        %v2691 = vadd.f32 %v2420, %v2643
        %v2692 = vadd.f32 %v2421, %v2646
        %v2693 = vadd.f32 %v2422, %v2651
        %v2694 = vadd.f32 %v2423, %v2654
        %v2695 = vadd.f32 %v2424, %v2659
        %v2696 = vadd.f32 %v2425, %v2662
        %v2699 = vrot.slane %v358, 1
        %v2700 = vrot.slane %v359, 1
        %v2701 = vsel %vm1052, %v2699, %v2700
        %s2703 = scalar_lea.vmem %s1, 512
        %v2704 = vld [vmem:[%s2703] sm:$0xf]
        %v2705 = vld [vmem:[%s2703 + $0x4] sm:$0xf]
        %v2706 = vld [vmem:[%s2703 + $0x8] sm:$0xf]
        %v2707 = vld [vmem:[%s2703 + $0xc] sm:$0xf]
        %v2708 = vld [vmem:[%s2703 + $0x10] sm:$0xf]
        %v2709 = vld [vmem:[%s2703 + $0x14] sm:$0xf]
        %v2710 = vld [vmem:[%s2703 + $0x18] sm:$0xf]
        %v2711 = vld [vmem:[%s2703 + $0x1c] sm:$0xf]
        %v2712 = vld [vmem:[%s2703 + $0x20] sm:$0xf]
        %v2713 = vld [vmem:[%s2703 + $0x24] sm:$0xf]
        %v2714 = vld [vmem:[%s2703 + $0x28] sm:$0xf]
        %v2715 = vld [vmem:[%s2703 + $0x2c] sm:$0xf]
        %v2716 = vld [vmem:[%s2703 + $0x30] sm:$0xf]
        %v2717 = vld [vmem:[%s2703 + $0x34] sm:$0xf]
        %v2718 = vld [vmem:[%s2703 + $0x38] sm:$0xf]
        %v2719 = vld [vmem:[%s2703 + $0x3c] sm:$0xf]
        %v2736 = vunpack.c.l.b16 %v2704
        %v2737 = vunpack.c.l.b16 %v2705
        %v2738 = vunpack.c.l.b16 %v2706
        %v2739 = vunpack.c.l.b16 %v2707
        %v2740 = vunpack.c.l.b16 %v2708
        %v2741 = vunpack.c.l.b16 %v2709
        %v2742 = vunpack.c.l.b16 %v2710
        %v2743 = vunpack.c.l.b16 %v2711
        %v2744 = vunpack.c.l.b16 %v2712
        %v2745 = vunpack.c.l.b16 %v2713
        %v2746 = vunpack.c.l.b16 %v2714
        %v2747 = vunpack.c.l.b16 %v2715
        %v2748 = vunpack.c.l.b16 %v2716
        %v2749 = vunpack.c.l.b16 %v2717
        %v2750 = vunpack.c.l.b16 %v2718
        %v2751 = vunpack.c.l.b16 %v2719
        %v2752 = vpack.c.b16 %v2737, %v2736
        %v2753 = vpack.c.b16 %v2739, %v2738
        %v2754 = vpack.c.b16 %v2741, %v2740
        %v2755 = vpack.c.b16 %v2743, %v2742
        %v2756 = vpack.c.b16 %v2745, %v2744
        %v2757 = vpack.c.b16 %v2747, %v2746
        %v2758 = vpack.c.b16 %v2749, %v2748
        %v2759 = vpack.c.b16 %v2751, %v2750
        %2768 = vmatprep.subr.bf16.mxu0 0
        %2769 = vmatpush1.bf16.msra.mxu0 %v2752
        %2770 = vmatprep.subr.bf16.mxu0 0
        %2771 = vmatpush1.bf16.msra.mxu0 %v2753
        %2772 = vmatprep.subr.bf16.mxu0 0
        %2773 = vmatpush1.bf16.msra.mxu0 %v2754
        %2774 = vmatprep.subr.bf16.mxu0 0
        %2775 = vmatpush1.bf16.msra.mxu0 %v2755
        %2776 = vmatprep.subr.bf16.mxu0 0
        %2777 = vmatpush1.bf16.msra.mxu0 %v2756
        %2778 = vmatprep.subr.bf16.mxu0 0
        %2779 = vmatpush1.bf16.msra.mxu0 %v2757
        %2780 = vmatprep.subr.bf16.mxu0 0
        %2781 = vmatpush1.bf16.msra.mxu0 %v2758
        %2782 = vmatprep.subr.bf16.mxu0 0
        %2783 = vmatpush1.bf16.msra.mxu0 %v2759
        %2784 = vmatprep.subr.bf16.mxu0 0
        %2785 = vmatpush1.bf16.msra.mxu0 0
        %2786 = vmatprep.subr.bf16.mxu0 0
        %2787 = vmatpush1.bf16.msra.mxu0 0
        %2788 = vmatprep.subr.bf16.mxu0 0
        %2789 = vmatpush1.bf16.msra.mxu0 0
        %2790 = vmatprep.subr.bf16.mxu0 0
        %2791 = vmatpush1.bf16.msra.mxu0 0
        %2792 = vmatprep.subr.bf16.mxu0 0
        %2793 = vmatpush1.bf16.msra.mxu0 0
        %2794 = vmatprep.subr.bf16.mxu0 0
        %2795 = vmatpush1.bf16.msra.mxu0 0
        %2796 = vmatprep.subr.bf16.mxu0 0
        %2797 = vmatpush1.bf16.msra.mxu0 0
        %2798 = vmatprep.subr.bf16.mxu0 0
        %2799 = vmatpush1.bf16.msra.mxu0 0
        %2800 = vmatprep.mubr.bf16.mxu0 0
        %2801 = vmatmul.mubr.bf16.gmra.mrb[0].mxu0 %v1061
        %v2802 = vpop.f32.mrb[0].mxu0
        %v2803 = vadd.f32 0.0, %v2802
        %v2804 = vpop.f32.mrb[0].mxu0
        %v2805 = vpop.f32.mrb[0].mxu0
        %v2806 = vadd.f32 0.0, %v2805
        %v2807 = vpop.f32.mrb[0].mxu0
        %2808 = vmatprep.mubr.bf16.mxu0 0
        %2809 = vmatmul.mubr.bf16.gmra.mrb[0].mxu0 %v1064
        %v2810 = vpop.f32.mrb[0].mxu0
        %v2811 = vadd.f32 0.0, %v2810
        %v2812 = vpop.f32.mrb[0].mxu0
        %v2813 = vpop.f32.mrb[0].mxu0
        %v2814 = vadd.f32 0.0, %v2813
        %v2815 = vpop.f32.mrb[0].mxu0
        %2816 = vmatprep.mubr.bf16.mxu0 0
        %2817 = vmatmul.mubr.bf16.gmra.mrb[0].mxu0 %v1067
        %v2818 = vpop.f32.mrb[0].mxu0
        %v2819 = vadd.f32 0.0, %v2818
        %v2820 = vpop.f32.mrb[0].mxu0
        %v2821 = vpop.f32.mrb[0].mxu0
        %v2822 = vadd.f32 0.0, %v2821
        %v2823 = vpop.f32.mrb[0].mxu0
        %2824 = vmatprep.mubr.bf16.mxu0 0
        %2825 = vmatmul.mubr.bf16.gmra.mrb[0].mxu0 %v1070
        %v2826 = vpop.f32.mrb[0].mxu0
        %v2827 = vadd.f32 0.0, %v2826
        %v2828 = vpop.f32.mrb[0].mxu0
        %v2829 = vpop.f32.mrb[0].mxu0
        %v2830 = vadd.f32 0.0, %v2829
        %v2831 = vpop.f32.mrb[0].mxu0
        %2832 = vmatprep.mubr.bf16.mxu0 0
        %2833 = vmatmul.mubr.bf16.gmra.mrb[0].mxu0 %v1073
        %v2834 = vpop.f32.mrb[0].mxu0
        %v2835 = vadd.f32 0.0, %v2834
        %v2836 = vpop.f32.mrb[0].mxu0
        %v2837 = vpop.f32.mrb[0].mxu0
        %v2838 = vadd.f32 0.0, %v2837
        %v2839 = vpop.f32.mrb[0].mxu0
        %2840 = vmatprep.mubr.bf16.mxu0 0
        %2841 = vmatmul.mubr.bf16.gmra.mrb[0].mxu0 %v1076
        %v2842 = vpop.f32.mrb[0].mxu0
        %v2843 = vadd.f32 0.0, %v2842
        %v2844 = vpop.f32.mrb[0].mxu0
        %v2845 = vpop.f32.mrb[0].mxu0
        %v2846 = vadd.f32 0.0, %v2845
        %v2847 = vpop.f32.mrb[0].mxu0
        %2848 = vmatprep.mubr.bf16.mxu0 0
        %2849 = vmatmul.mubr.bf16.gmra.mrb[0].mxu0 %v1079
        %v2850 = vpop.f32.mrb[0].mxu0
        %v2851 = vadd.f32 0.0, %v2850
        %v2852 = vpop.f32.mrb[0].mxu0
        %v2853 = vpop.f32.mrb[0].mxu0
        %v2854 = vadd.f32 0.0, %v2853
        %v2855 = vpop.f32.mrb[0].mxu0
        %2856 = vmatprep.mubr.bf16.mxu0 0
        %2857 = vmatmul.mubr.bf16.gmra.mrb[0].mxu0 %v1082
        %v2858 = vpop.f32.mrb[0].mxu0
        %v2859 = vadd.f32 0.0, %v2858
        %v2860 = vpop.f32.mrb[0].mxu0
        %v2861 = vpop.f32.mrb[0].mxu0
        %v2862 = vadd.f32 0.0, %v2861
        %v2863 = vpop.f32.mrb[0].mxu0
        %2864 = vmatprep.mubr.bf16.mxu0 0
        %2865 = vmatmul.mubr.bf16.gmra.mrb[0].mxu0 %v1085
        %v2866 = vpop.f32.mrb[0].mxu0
        %v2867 = vadd.f32 0.0, %v2866
        %v2868 = vpop.f32.mrb[0].mxu0
        %v2869 = vpop.f32.mrb[0].mxu0
        %v2870 = vadd.f32 0.0, %v2869
        %v2871 = vpop.f32.mrb[0].mxu0
        %2872 = vmatprep.mubr.bf16.mxu0 0
        %2873 = vmatmul.mubr.bf16.gmra.mrb[0].mxu0 %v1088
        %v2874 = vpop.f32.mrb[0].mxu0
        %v2875 = vadd.f32 0.0, %v2874
        %v2876 = vpop.f32.mrb[0].mxu0
        %v2877 = vpop.f32.mrb[0].mxu0
        %v2878 = vadd.f32 0.0, %v2877
        %v2879 = vpop.f32.mrb[0].mxu0
        %2880 = vmatprep.mubr.bf16.mxu0 0
        %2881 = vmatmul.mubr.bf16.gmra.mrb[0].mxu0 %v1091
        %v2882 = vpop.f32.mrb[0].mxu0
        %v2883 = vadd.f32 0.0, %v2882
        %v2884 = vpop.f32.mrb[0].mxu0
        %v2885 = vpop.f32.mrb[0].mxu0
        %v2886 = vadd.f32 0.0, %v2885
        %v2887 = vpop.f32.mrb[0].mxu0
        %2888 = vmatprep.mubr.bf16.mxu0 0
        %2889 = vmatmul.mubr.bf16.gmra.mrb[0].mxu0 %v1094
        %v2890 = vpop.f32.mrb[0].mxu0
        %v2891 = vadd.f32 0.0, %v2890
        %v2892 = vpop.f32.mrb[0].mxu0
        %v2893 = vpop.f32.mrb[0].mxu0
        %v2894 = vadd.f32 0.0, %v2893
        %v2895 = vpop.f32.mrb[0].mxu0
        %2896 = vmatprep.mubr.bf16.mxu0 0
        %2897 = vmatmul.mubr.bf16.gmra.mrb[0].mxu0 %v1097
        %v2898 = vpop.f32.mrb[0].mxu0
        %v2899 = vadd.f32 0.0, %v2898
        %v2900 = vpop.f32.mrb[0].mxu0
        %v2901 = vpop.f32.mrb[0].mxu0
        %v2902 = vadd.f32 0.0, %v2901
        %v2903 = vpop.f32.mrb[0].mxu0
        %2904 = vmatprep.mubr.bf16.mxu0 0
        %2905 = vmatmul.mubr.bf16.gmra.mrb[0].mxu0 %v1100
        %v2906 = vpop.f32.mrb[0].mxu0
        %v2907 = vadd.f32 0.0, %v2906
        %v2908 = vpop.f32.mrb[0].mxu0
        %v2909 = vpop.f32.mrb[0].mxu0
        %v2910 = vadd.f32 0.0, %v2909
        %v2911 = vpop.f32.mrb[0].mxu0
        %2912 = vmatprep.mubr.bf16.mxu0 0
        %2913 = vmatmul.mubr.bf16.gmra.mrb[0].mxu0 %v1908
        %v2914 = vpop.f32.mrb[0].mxu0
        %v2915 = vadd.f32 0.0, %v2914
        %v2916 = vpop.f32.mrb[0].mxu0
        %v2917 = vpop.f32.mrb[0].mxu0
        %v2918 = vadd.f32 0.0, %v2917
        %v2919 = vpop.f32.mrb[0].mxu0
        %2920 = vmatprep.mubr.bf16.mxu0 0
        %2921 = vmatmul.mubr.bf16.gmra.mrb[0].mxu0 %v2701
        %v2922 = vpop.f32.mrb[0].mxu0
        %v2923 = vadd.f32 0.0, %v2922
        %v2924 = vpop.f32.mrb[0].mxu0
        %v2925 = vpop.f32.mrb[0].mxu0
        %v2926 = vadd.f32 0.0, %v2925
        %v2927 = vpop.f32.mrb[0].mxu0
        %2928 = vdwg.mxu0
        %v2929 = vadd.f32 %v2665, %v2803
        %v2930 = vadd.f32 %v2666, %v2806
        %v2931 = vadd.f32 %v2667, %v2811
        %v2932 = vadd.f32 %v2668, %v2814
        %v2933 = vadd.f32 %v2669, %v2819
        %v2934 = vadd.f32 %v2670, %v2822
        %v2935 = vadd.f32 %v2671, %v2827
        %v2936 = vadd.f32 %v2672, %v2830
        %v2937 = vadd.f32 %v2673, %v2835
        %v2938 = vadd.f32 %v2674, %v2838
        %v2939 = vadd.f32 %v2675, %v2843
        %v2940 = vadd.f32 %v2676, %v2846
        %v2941 = vadd.f32 %v2677, %v2851
        %v2942 = vadd.f32 %v2678, %v2854
        %v2943 = vadd.f32 %v2679, %v2859
        %v2944 = vadd.f32 %v2680, %v2862
        %v2945 = vadd.f32 %v2681, %v2867
        %v2946 = vadd.f32 %v2682, %v2870
        %v2947 = vadd.f32 %v2683, %v2875
        %v2948 = vadd.f32 %v2684, %v2878
        %v2949 = vadd.f32 %v2685, %v2883
        %v2950 = vadd.f32 %v2686, %v2886
        %v2951 = vadd.f32 %v2687, %v2891
        %v2952 = vadd.f32 %v2688, %v2894
        %v2953 = vadd.f32 %v2689, %v2899
        %v2954 = vadd.f32 %v2690, %v2902
        %v2955 = vadd.f32 %v2691, %v2907
        %v2956 = vadd.f32 %v2692, %v2910
        %v2957 = vadd.f32 %v2693, %v2915
        %v2958 = vadd.f32 %v2694, %v2918
        %v2959 = vadd.f32 %v2695, %v2923
        %v2960 = vadd.f32 %v2696, %v2926
        // Predicated region
        $region41: #{tpu_custom_call.1} parent=35 // pred_check
          %p2961 = pneg %p209
        $region42: #{tpu_custom_call.1} parent=35 // pred_check_branch
          %2963 = sbr.rel (%p2961) target = $region44
        $region43: #{tpu_custom_call.1} parent=35 // pred_region
          %2964 = vmatprep.subr.mxu0 0.0
          %2965 = vmatpush1.msra.mxu0 %v2929
          %2966 = vmatprep.subr.mxu0 0.0
          %2967 = vmatpush1.msra.mxu0 %v2930
          %2968 = vmatprep.subr.mxu0 0.0
          %2969 = vmatpush1.msra.mxu0 %v2931
          %2970 = vmatprep.subr.mxu0 0.0
          %2971 = vmatpush1.msra.mxu0 %v2932
          %2972 = vmatprep.subr.mxu0 0.0
          %2973 = vmatpush1.msra.mxu0 %v2933
          %2974 = vmatprep.subr.mxu0 0.0
          %2975 = vmatpush1.msra.mxu0 %v2934
          %2976 = vmatprep.subr.mxu0 0.0
          %2977 = vmatpush1.msra.mxu0 %v2935
          %2978 = vmatprep.subr.mxu0 0.0
          %2979 = vmatpush1.msra.mxu0 %v2936
          %2980 = vmatprep.subr.mxu0 0.0
          %2981 = vmatpush1.msra.mxu0 %v2937
          %2982 = vmatprep.subr.mxu0 0.0
          %2983 = vmatpush1.msra.mxu0 %v2938
          %2984 = vmatprep.subr.mxu0 0.0
          %2985 = vmatpush1.msra.mxu0 %v2939
          %2986 = vmatprep.subr.mxu0 0.0
          %2987 = vmatpush1.msra.mxu0 %v2940
          %2988 = vmatprep.subr.mxu0 0.0
          %2989 = vmatpush1.msra.mxu0 %v2941
          %2990 = vmatprep.subr.mxu0 0.0
          %2991 = vmatpush1.msra.mxu0 %v2942
          %2992 = vmatprep.subr.mxu0 0.0
          %2993 = vmatpush1.msra.mxu0 %v2943
          %2994 = vmatprep.subr.mxu0 0.0
          %2995 = vmatpush1.msra.mxu0 %v2944
          %2996 = vmatprep.subr.mxu0 0.0
          %2997 = vmatpush1.msra.mxu0 %v2945
          %2998 = vmatprep.subr.mxu0 0.0
          %2999 = vmatpush1.msra.mxu0 %v2946
          %3000 = vmatprep.subr.mxu0 0.0
          %3001 = vmatpush1.msra.mxu0 %v2947
          %3002 = vmatprep.subr.mxu0 0.0
          %3003 = vmatpush1.msra.mxu0 %v2948
          %3004 = vmatprep.subr.mxu0 0.0
          %3005 = vmatpush1.msra.mxu0 %v2949
          %3006 = vmatprep.subr.mxu0 0.0
          %3007 = vmatpush1.msra.mxu0 %v2950
          %3008 = vmatprep.subr.mxu0 0.0
          %3009 = vmatpush1.msra.mxu0 %v2951
          %3010 = vmatprep.subr.mxu0 0.0
          %3011 = vmatpush1.msra.mxu0 %v2952
          %3012 = vmatprep.subr.mxu0 0.0
          %3013 = vmatpush1.msra.mxu0 %v2953
          %3014 = vmatprep.subr.mxu0 0.0
          %3015 = vmatpush1.msra.mxu0 %v2954
          %3016 = vmatprep.subr.mxu0 0.0
          %3017 = vmatpush1.msra.mxu0 %v2955
          %3018 = vmatprep.subr.mxu0 0.0
          %3019 = vmatpush1.msra.mxu0 %v2956
          %3020 = vmatprep.subr.mxu0 0.0
          %3021 = vmatpush1.msra.mxu0 %v2957
          %3022 = vmatprep.subr.mxu0 0.0
          %3023 = vmatpush1.msra.mxu0 %v2958
          %3024 = vmatprep.subr.mxu0 0.0
          %3025 = vmatpush1.msra.mxu0 %v2959
          %3026 = vmatprep.subr.mxu0 0.0
          %3027 = vmatpush1.msra.mxu0 %v2960
          %3028 = vmatprep.mubr.f32.mxu0 1.0
          %3029 = vmatmul.mubr.f32.gmra.mrb[0].mxu0 1.0
          %v3030 = vpop.f32.mrb[0].mxu0
          %v3031 = vadd.f32 0.0, %v3030
          %v3032 = vpop.f32.mrb[0].mxu0
          %3033 = vdwg.mxu0
          %v3034 = vmul.f32 %v2929, %v2929
          %v3035 = vmul.f32 %v2930, %v2930
          %v3036 = vmul.f32 %v2931, %v2931
          %v3037 = vmul.f32 %v2932, %v2932
          %v3038 = vmul.f32 %v2933, %v2933
          %v3039 = vmul.f32 %v2934, %v2934
          %v3040 = vmul.f32 %v2935, %v2935
          %v3041 = vmul.f32 %v2936, %v2936
          %v3042 = vmul.f32 %v2937, %v2937
          %v3043 = vmul.f32 %v2938, %v2938
          %v3044 = vmul.f32 %v2939, %v2939
          %v3045 = vmul.f32 %v2940, %v2940
          %v3046 = vmul.f32 %v2941, %v2941
          %v3047 = vmul.f32 %v2942, %v2942
          %v3048 = vmul.f32 %v2943, %v2943
          %v3049 = vmul.f32 %v2944, %v2944
          %v3050 = vmul.f32 %v2945, %v2945
          %v3051 = vmul.f32 %v2946, %v2946
          %v3052 = vmul.f32 %v2947, %v2947
          %v3053 = vmul.f32 %v2948, %v2948
          %v3054 = vmul.f32 %v2949, %v2949
          %v3055 = vmul.f32 %v2950, %v2950
          %v3056 = vmul.f32 %v2951, %v2951
          %v3057 = vmul.f32 %v2952, %v2952
          %v3058 = vmul.f32 %v2953, %v2953
          %v3059 = vmul.f32 %v2954, %v2954
          %v3060 = vmul.f32 %v2955, %v2955
          %v3061 = vmul.f32 %v2956, %v2956
          %v3062 = vmul.f32 %v2957, %v2957
          %v3063 = vmul.f32 %v2958, %v2958
          %v3064 = vmul.f32 %v2959, %v2959
          %v3065 = vmul.f32 %v2960, %v2960
          %3066 = vmatprep.subr.mxu0 0.0
          %3067 = vmatpush1.msra.mxu0 %v3034
          %3068 = vmatprep.subr.mxu0 0.0
          %3069 = vmatpush1.msra.mxu0 %v3035
          %3070 = vmatprep.subr.mxu0 0.0
          %3071 = vmatpush1.msra.mxu0 %v3036
          %3072 = vmatprep.subr.mxu0 0.0
          %3073 = vmatpush1.msra.mxu0 %v3037
          %3074 = vmatprep.subr.mxu0 0.0
          %3075 = vmatpush1.msra.mxu0 %v3038
          %3076 = vmatprep.subr.mxu0 0.0
          %3077 = vmatpush1.msra.mxu0 %v3039
          %3078 = vmatprep.subr.mxu0 0.0
          %3079 = vmatpush1.msra.mxu0 %v3040
          %3080 = vmatprep.subr.mxu0 0.0
          %3081 = vmatpush1.msra.mxu0 %v3041
          %3082 = vmatprep.subr.mxu0 0.0
          %3083 = vmatpush1.msra.mxu0 %v3042
          %3084 = vmatprep.subr.mxu0 0.0
          %3085 = vmatpush1.msra.mxu0 %v3043
          %3086 = vmatprep.subr.mxu0 0.0
          %3087 = vmatpush1.msra.mxu0 %v3044
          %3088 = vmatprep.subr.mxu0 0.0
          %3089 = vmatpush1.msra.mxu0 %v3045
          %3090 = vmatprep.subr.mxu0 0.0
          %3091 = vmatpush1.msra.mxu0 %v3046
          %3092 = vmatprep.subr.mxu0 0.0
          %3093 = vmatpush1.msra.mxu0 %v3047
          %3094 = vmatprep.subr.mxu0 0.0
          %3095 = vmatpush1.msra.mxu0 %v3048
          %3096 = vmatprep.subr.mxu0 0.0
          %3097 = vmatpush1.msra.mxu0 %v3049
          %3098 = vmatprep.subr.mxu0 0.0
          %3099 = vmatpush1.msra.mxu0 %v3050
          %3100 = vmatprep.subr.mxu0 0.0
          %3101 = vmatpush1.msra.mxu0 %v3051
          %3102 = vmatprep.subr.mxu0 0.0
          %3103 = vmatpush1.msra.mxu0 %v3052
          %3104 = vmatprep.subr.mxu0 0.0
          %3105 = vmatpush1.msra.mxu0 %v3053
          %3106 = vmatprep.subr.mxu0 0.0
          %3107 = vmatpush1.msra.mxu0 %v3054
          %3108 = vmatprep.subr.mxu0 0.0
          %3109 = vmatpush1.msra.mxu0 %v3055
          %3110 = vmatprep.subr.mxu0 0.0
          %3111 = vmatpush1.msra.mxu0 %v3056
          %3112 = vmatprep.subr.mxu0 0.0
          %3113 = vmatpush1.msra.mxu0 %v3057
          %3114 = vmatprep.subr.mxu0 0.0
          %3115 = vmatpush1.msra.mxu0 %v3058
          %3116 = vmatprep.subr.mxu0 0.0
          %3117 = vmatpush1.msra.mxu0 %v3059
          %3118 = vmatprep.subr.mxu0 0.0
          %3119 = vmatpush1.msra.mxu0 %v3060
          %3120 = vmatprep.subr.mxu0 0.0
          %3121 = vmatpush1.msra.mxu0 %v3061
          %3122 = vmatprep.subr.mxu0 0.0
          %3123 = vmatpush1.msra.mxu0 %v3062
          %3124 = vmatprep.subr.mxu0 0.0
          %3125 = vmatpush1.msra.mxu0 %v3063
          %3126 = vmatprep.subr.mxu0 0.0
          %3127 = vmatpush1.msra.mxu0 %v3064
          %3128 = vmatprep.subr.mxu0 0.0
          %3129 = vmatpush1.msra.mxu0 %v3065
          %3130 = vmatprep.mubr.f32.mxu0 1.0
          %3131 = vmatmul.mubr.f32.gmra.mrb[0].mxu0 1.0
          %v3132 = vpop.f32.mrb[0].mxu0
          %v3133 = vadd.f32 0.0, %v3132
          %v3134 = vpop.f32.mrb[0].mxu0
          %3135 = vdwg.mxu0
          %v3136 = vld [vmem:[#allocation3] sm:$0x1]
          %v3137 = vadd.f32 %v3136, %v3031
          %3138 = vst [vmem:[#allocation3] sm:$0x1] %v3137
          %v3139 = vld [vmem:[#allocation3 + $0x1] sm:$0x1]
          %v3140 = vadd.f32 %v3139, %v3133
          %3141 = vst [vmem:[#allocation3 + $0x1] sm:$0x1] %v3140
        $region44: #{tpu_custom_call.1} parent=35 // pred_fallthru
          _
        %p3142 = scmp.eq.s32.totalorder %s22, 1
        // Predicated region
        $region45: #{tpu_custom_call.1} parent=35 // pred_check
          %p3143 = pneg %p3142
        $region46: #{tpu_custom_call.1} parent=35 // pred_check_branch
          %3145 = sbr.rel (%p3143) target = $region48
        $region47: #{tpu_custom_call.1} parent=35 // pred_region
          %v3146 = vld [vmem:[#allocation3] sm:$0x1]
          %v3147 = vld [vmem:[#allocation3 + $0x1] sm:$0x1]
          %v3148 = vld [vmem:[%s3] sm:$0x1]
          %v3149 = vld [vmem:[%s3 + $0x1] sm:$0x1]
          %v3150 = vmul.f32 %v3146, 0.001953125
          %v3151 = vmul.f32 %v3147, 0.001953125
          %v3152 = vmul.f32 %v3150, %v3150
          %v3153 = vsub.f32 %v3151, %v3152
          %v3154 = vmax.f32 %v3153, 0.0
          %v3155 = vadd.f32 %v3154, 1e-05
          %v3156 = vrsqrt.pop %v3155
          %v3157 = vmul.f32 %v3148, %v3156
          %v3158 = vmul.f32 %v3150, %v3157
          %v3159 = vsub.f32 %v3149, %v3158
          %v3160 = vlaneseq
          %v3161 = vshrl.u32 %v3160, 7
          %v3162 = vsub.s32 0, %v3161
          %v3163 = vrot.slane %v3157, %v3162
          %v3164 = vmul.f32 %v2929, %v3163
          %v3165 = vmul.f32 %v2930, %v3163
          %v3166 = vmul.f32 %v2931, %v3163
          %v3167 = vmul.f32 %v2932, %v3163
          %v3168 = vmul.f32 %v2933, %v3163
          %v3169 = vmul.f32 %v2934, %v3163
          %v3170 = vmul.f32 %v2935, %v3163
          %v3171 = vmul.f32 %v2936, %v3163
          %v3172 = vmul.f32 %v2937, %v3163
          %v3173 = vmul.f32 %v2938, %v3163
          %v3174 = vmul.f32 %v2939, %v3163
          %v3175 = vmul.f32 %v2940, %v3163
          %v3176 = vmul.f32 %v2941, %v3163
          %v3177 = vmul.f32 %v2942, %v3163
          %v3178 = vmul.f32 %v2943, %v3163
          %v3179 = vmul.f32 %v2944, %v3163
          %v3180 = vmul.f32 %v2945, %v3163
          %v3181 = vmul.f32 %v2946, %v3163
          %v3182 = vmul.f32 %v2947, %v3163
          %v3183 = vmul.f32 %v2948, %v3163
          %v3184 = vmul.f32 %v2949, %v3163
          %v3185 = vmul.f32 %v2950, %v3163
          %v3186 = vmul.f32 %v2951, %v3163
          %v3187 = vmul.f32 %v2952, %v3163
          %v3188 = vmul.f32 %v2953, %v3163
          %v3189 = vmul.f32 %v2954, %v3163
          %v3190 = vmul.f32 %v2955, %v3163
          %v3191 = vmul.f32 %v2956, %v3163
          %v3192 = vmul.f32 %v2957, %v3163
          %v3193 = vmul.f32 %v2958, %v3163
          %v3194 = vmul.f32 %v2959, %v3163
          %v3195 = vmul.f32 %v2960, %v3163
          %v3196 = vlaneseq
          %v3197 = vshrl.u32 %v3196, 7
          %v3198 = vsub.s32 0, %v3197
          %v3199 = vrot.slane %v3159, %v3198
          %v3200 = vadd.f32 %v3164, %v3199
          %v3201 = vadd.f32 %v3165, %v3199
          %v3202 = vadd.f32 %v3166, %v3199
          %v3203 = vadd.f32 %v3167, %v3199
          %v3204 = vadd.f32 %v3168, %v3199
          %v3205 = vadd.f32 %v3169, %v3199
          %v3206 = vadd.f32 %v3170, %v3199
          %v3207 = vadd.f32 %v3171, %v3199
          %v3208 = vadd.f32 %v3172, %v3199
          %v3209 = vadd.f32 %v3173, %v3199
          %v3210 = vadd.f32 %v3174, %v3199
          %v3211 = vadd.f32 %v3175, %v3199
          %v3212 = vadd.f32 %v3176, %v3199
          %v3213 = vadd.f32 %v3177, %v3199
          %v3214 = vadd.f32 %v3178, %v3199
          %v3215 = vadd.f32 %v3179, %v3199
          %v3216 = vadd.f32 %v3180, %v3199
          %v3217 = vadd.f32 %v3181, %v3199
          %v3218 = vadd.f32 %v3182, %v3199
          %v3219 = vadd.f32 %v3183, %v3199
          %v3220 = vadd.f32 %v3184, %v3199
          %v3221 = vadd.f32 %v3185, %v3199
          %v3222 = vadd.f32 %v3186, %v3199
          %v3223 = vadd.f32 %v3187, %v3199
          %v3224 = vadd.f32 %v3188, %v3199
          %v3225 = vadd.f32 %v3189, %v3199
          %v3226 = vadd.f32 %v3190, %v3199
          %v3227 = vadd.f32 %v3191, %v3199
          %v3228 = vadd.f32 %v3192, %v3199
          %v3229 = vadd.f32 %v3193, %v3199
          %v3230 = vadd.f32 %v3194, %v3199
          %v3231 = vadd.f32 %v3195, %v3199
          %v3232 = vmax.f32 %v3200, 0.0
          %v3233 = vmax.f32 %v3201, 0.0
          %v3234 = vmax.f32 %v3202, 0.0
          %v3235 = vmax.f32 %v3203, 0.0
          %v3236 = vmax.f32 %v3204, 0.0
          %v3237 = vmax.f32 %v3205, 0.0
          %v3238 = vmax.f32 %v3206, 0.0
          %v3239 = vmax.f32 %v3207, 0.0
          %v3240 = vmax.f32 %v3208, 0.0
          %v3241 = vmax.f32 %v3209, 0.0
          %v3242 = vmax.f32 %v3210, 0.0
          %v3243 = vmax.f32 %v3211, 0.0
          %v3244 = vmax.f32 %v3212, 0.0
          %v3245 = vmax.f32 %v3213, 0.0
          %v3246 = vmax.f32 %v3214, 0.0
          %v3247 = vmax.f32 %v3215, 0.0
          %v3248 = vmax.f32 %v3216, 0.0
          %v3249 = vmax.f32 %v3217, 0.0
          %v3250 = vmax.f32 %v3218, 0.0
          %v3251 = vmax.f32 %v3219, 0.0
          %v3252 = vmax.f32 %v3220, 0.0
          %v3253 = vmax.f32 %v3221, 0.0
          %v3254 = vmax.f32 %v3222, 0.0
          %v3255 = vmax.f32 %v3223, 0.0
          %v3256 = vmax.f32 %v3224, 0.0
          %v3257 = vmax.f32 %v3225, 0.0
          %v3258 = vmax.f32 %v3226, 0.0
          %v3259 = vmax.f32 %v3227, 0.0
          %v3260 = vmax.f32 %v3228, 0.0
          %v3261 = vmax.f32 %v3229, 0.0
          %v3262 = vmax.f32 %v3230, 0.0
          %v3263 = vmax.f32 %v3231, 0.0
          %s3264 = scalar_lea.vmem [#allocation2], 24
          %3265 = vst [vmem:[%s3264 + $0x1] sm:$0xff] %v3232
          %3266 = vst [vmem:[%s3264 + $0x9] sm:$0xff] %v3233
          %3267 = vst [vmem:[%s3264 + $0x19] sm:$0xff] %v3234
          %3268 = vst [vmem:[%s3264 + $0x21] sm:$0xff] %v3235
          %3269 = vst [vmem:[%s3264 + $0x31] sm:$0xff] %v3236
          %3270 = vst [vmem:[%s3264 + $0x39] sm:$0xff] %v3237
          %3271 = vst [vmem:[%s3264 + $0x49] sm:$0xff] %v3238
          %3272 = vst [vmem:[%s3264 + $0x51] sm:$0xff] %v3239
          %3273 = vst [vmem:[%s3264 + $0x61] sm:$0xff] %v3240
          %3274 = vst [vmem:[%s3264 + $0x69] sm:$0xff] %v3241
          %3275 = vst [vmem:[%s3264 + $0x79] sm:$0xff] %v3242
          %3276 = vst [vmem:[%s3264 + $0x81] sm:$0xff] %v3243
          %3277 = vst [vmem:[%s3264 + $0x91] sm:$0xff] %v3244
          %3278 = vst [vmem:[%s3264 + $0x99] sm:$0xff] %v3245
          %3279 = vst [vmem:[%s3264 + $0xa9] sm:$0xff] %v3246
          %3280 = vst [vmem:[%s3264 + $0xb1] sm:$0xff] %v3247
          %3281 = vst [vmem:[%s3264 + $0xc1] sm:$0xff] %v3248
          %3282 = vst [vmem:[%s3264 + $0xc9] sm:$0xff] %v3249
          %3283 = vst [vmem:[%s3264 + $0xd9] sm:$0xff] %v3250
          %3284 = vst [vmem:[%s3264 + $0xe1] sm:$0xff] %v3251
          %3285 = vst [vmem:[%s3264 + $0xf1] sm:$0xff] %v3252
          %3286 = vst [vmem:[%s3264 + $0xf9] sm:$0xff] %v3253
          %3287 = vst [vmem:[%s3264 + $0x109] sm:$0xff] %v3254
          %3288 = vst [vmem:[%s3264 + $0x111] sm:$0xff] %v3255
          %3289 = vst [vmem:[%s3264 + $0x121] sm:$0xff] %v3256
          %3290 = vst [vmem:[%s3264 + $0x129] sm:$0xff] %v3257
          %3291 = vst [vmem:[%s3264 + $0x139] sm:$0xff] %v3258
          %3292 = vst [vmem:[%s3264 + $0x141] sm:$0xff] %v3259
          %3293 = vst [vmem:[%s3264 + $0x151] sm:$0xff] %v3260
          %3294 = vst [vmem:[%s3264 + $0x159] sm:$0xff] %v3261
          %3295 = vst [vmem:[%s3264 + $0x169] sm:$0xff] %v3262
          %3296 = vst [vmem:[%s3264 + $0x171] sm:$0xff] %v3263
          %v3297 = vld [vmem:[#allocation2] sm:$0xff]
          %v3298 = vld [vmem:[#allocation2 + $0x8] sm:$0xff]
          %v3299 = vld [vmem:[#allocation2 + $0x10] sm:$0x3]
          %v3300 = vld [vmem:[#allocation2 + $0x18] sm:$0xff]
          %v3301 = vld [vmem:[#allocation2 + $0x20] sm:$0xff]
          %v3302 = vld [vmem:[#allocation2 + $0x28] sm:$0x3]
          %v3303 = vld [vmem:[#allocation2 + $0x30] sm:$0xff]
          %v3304 = vld [vmem:[#allocation2 + $0x38] sm:$0xff]
          %v3305 = vld [vmem:[#allocation2 + $0x40] sm:$0x3]
          %v3306 = vld [vmem:[#allocation2 + $0x48] sm:$0xff]
          %v3307 = vld [vmem:[#allocation2 + $0x50] sm:$0xff]
          %v3308 = vld [vmem:[#allocation2 + $0x58] sm:$0x3]
          %v3309 = vld [vmem:[#allocation2 + $0x60] sm:$0xff]
          %v3310 = vld [vmem:[#allocation2 + $0x68] sm:$0xff]
          %v3311 = vld [vmem:[#allocation2 + $0x70] sm:$0x3]
          %v3312 = vld [vmem:[#allocation2 + $0x78] sm:$0xff]
          %v3313 = vld [vmem:[#allocation2 + $0x80] sm:$0xff]
          %v3314 = vld [vmem:[#allocation2 + $0x88] sm:$0x3]
          %v3315 = vld [vmem:[#allocation2 + $0x90] sm:$0xff]
          %v3316 = vld [vmem:[#allocation2 + $0x98] sm:$0xff]
          %v3317 = vld [vmem:[#allocation2 + $0xa0] sm:$0x3]
          %v3318 = vld [vmem:[#allocation2 + $0xa8] sm:$0xff]
          %v3319 = vld [vmem:[#allocation2 + $0xb0] sm:$0xff]
          %v3320 = vld [vmem:[#allocation2 + $0xb8] sm:$0x3]
          %v3321 = vld [vmem:[#allocation2 + $0xc0] sm:$0xff]
          %v3322 = vld [vmem:[#allocation2 + $0xc8] sm:$0xff]
          %v3323 = vld [vmem:[#allocation2 + $0xd0] sm:$0x3]
          %v3324 = vld [vmem:[#allocation2 + $0xd8] sm:$0xff]
          %v3325 = vld [vmem:[#allocation2 + $0xe0] sm:$0xff]
          %v3326 = vld [vmem:[#allocation2 + $0xe8] sm:$0x3]
          %v3327 = vld [vmem:[#allocation2 + $0xf0] sm:$0xff]
          %v3328 = vld [vmem:[#allocation2 + $0xf8] sm:$0xff]
          %v3329 = vld [vmem:[#allocation2 + $0x100] sm:$0x3]
          %v3330 = vld [vmem:[#allocation2 + $0x108] sm:$0xff]
          %v3331 = vld [vmem:[#allocation2 + $0x110] sm:$0xff]
          %v3332 = vld [vmem:[#allocation2 + $0x118] sm:$0x3]
          %v3333 = vld [vmem:[#allocation2 + $0x120] sm:$0xff]
          %v3334 = vld [vmem:[#allocation2 + $0x128] sm:$0xff]
          %v3335 = vld [vmem:[#allocation2 + $0x130] sm:$0x3]
          %v3336 = vld [vmem:[#allocation2 + $0x138] sm:$0xff]
          %v3337 = vld [vmem:[#allocation2 + $0x140] sm:$0xff]
          %v3338 = vld [vmem:[#allocation2 + $0x148] sm:$0x3]
          %v3339 = vld [vmem:[#allocation2 + $0x150] sm:$0xff]
          %v3340 = vld [vmem:[#allocation2 + $0x158] sm:$0xff]
          %v3341 = vld [vmem:[#allocation2 + $0x160] sm:$0x3]
          %v3342 = vld [vmem:[#allocation2 + $0x168] sm:$0xff]
          %v3343 = vld [vmem:[#allocation2 + $0x170] sm:$0xff]
          %v3344 = vld [vmem:[#allocation2 + $0x178] sm:$0x3]
          %v3345 = vld [vmem:[#allocation2 + $0x180] sm:$0xff]
          %v3346 = vld [vmem:[#allocation2 + $0x188] sm:$0xff]
          %v3347 = vld [vmem:[#allocation2 + $0x190] sm:$0x3]
          %v3348 = vld [vmem:[#allocation2 + $0x198] sm:$0xff]
          %v3349 = vld [vmem:[#allocation2 + $0x1a0] sm:$0xff]
          %v3350 = vld [vmem:[#allocation2 + $0x1a8] sm:$0x3]
          %v3351 = vpack.c.bf16 %v3298, %v3297
          %v3352 = vpack.c.bf16 %v3299, %v3299
          %v3353 = vpack.c.bf16 %v3301, %v3300
          %v3354 = vpack.c.bf16 %v3302, %v3302
          %v3355 = vpack.c.bf16 %v3304, %v3303
          %v3356 = vpack.c.bf16 %v3305, %v3305
          %v3357 = vpack.c.bf16 %v3307, %v3306
          %v3358 = vpack.c.bf16 %v3308, %v3308
          %v3359 = vpack.c.bf16 %v3310, %v3309
          %v3360 = vpack.c.bf16 %v3311, %v3311
          %v3361 = vpack.c.bf16 %v3313, %v3312
          %v3362 = vpack.c.bf16 %v3314, %v3314
          %v3363 = vpack.c.bf16 %v3316, %v3315
          %v3364 = vpack.c.bf16 %v3317, %v3317
          %v3365 = vpack.c.bf16 %v3319, %v3318
          %v3366 = vpack.c.bf16 %v3320, %v3320
          %v3367 = vpack.c.bf16 %v3322, %v3321
          %v3368 = vpack.c.bf16 %v3323, %v3323
          %v3369 = vpack.c.bf16 %v3325, %v3324
          %v3370 = vpack.c.bf16 %v3326, %v3326
          %v3371 = vpack.c.bf16 %v3328, %v3327
          %v3372 = vpack.c.bf16 %v3329, %v3329
          %v3373 = vpack.c.bf16 %v3331, %v3330
          %v3374 = vpack.c.bf16 %v3332, %v3332
          %v3375 = vpack.c.bf16 %v3334, %v3333
          %v3376 = vpack.c.bf16 %v3335, %v3335
          %v3377 = vpack.c.bf16 %v3337, %v3336
          %v3378 = vpack.c.bf16 %v3338, %v3338
          %v3379 = vpack.c.bf16 %v3340, %v3339
          %v3380 = vpack.c.bf16 %v3341, %v3341
          %v3381 = vpack.c.bf16 %v3343, %v3342
          %v3382 = vpack.c.bf16 %v3344, %v3344
          %v3383 = vpack.c.bf16 %v3346, %v3345
          %v3384 = vpack.c.bf16 %v3347, %v3347
          %v3385 = vpack.c.bf16 %v3349, %v3348
          %v3386 = vpack.c.bf16 %v3350, %v3350
          %v3387 = vld [vmem:[%s2] sm:$0xf]
          %v3388 = vld [vmem:[%s2 + $0x4] sm:$0xf]
          %v3389 = vld [vmem:[%s2 + $0x8] sm:$0xf]
          %v3390 = vld [vmem:[%s2 + $0xc] sm:$0xf]
          %v3391 = vld [vmem:[%s2 + $0x10] sm:$0xf]
          %v3392 = vld [vmem:[%s2 + $0x14] sm:$0xf]
          %v3393 = vld [vmem:[%s2 + $0x18] sm:$0xf]
          %v3394 = vld [vmem:[%s2 + $0x1c] sm:$0xf]
          %v3395 = vld [vmem:[%s2 + $0x20] sm:$0xf]
          %v3396 = vld [vmem:[%s2 + $0x24] sm:$0xf]
          %v3397 = vld [vmem:[%s2 + $0x28] sm:$0xf]
          %v3398 = vld [vmem:[%s2 + $0x2c] sm:$0xf]
          %v3399 = vld [vmem:[%s2 + $0x30] sm:$0xf]
          %v3400 = vld [vmem:[%s2 + $0x34] sm:$0xf]
          %v3401 = vld [vmem:[%s2 + $0x38] sm:$0xf]
          %v3402 = vld [vmem:[%s2 + $0x3c] sm:$0xf]
          %v3404 = vshrl.u32 %v3351, 16
          %v3406 = vshll.u32 %v3351, 16
          %v3408 = vrot.slane %v3406, 1
          %v3409 = vor.u32 %v3404, %v3408
          %v3411 = vshll.u32 %v3352, 16
          %v3413 = vrot.slane %v3411, 1
          %v3414 = vsel %vm376, %v3409, %v3413
          %v3416 = vshrl.u32 %v3353, 16
          %v3418 = vshll.u32 %v3353, 16
          %v3420 = vrot.slane %v3418, 1
          %v3421 = vor.u32 %v3416, %v3420
          %v3423 = vshll.u32 %v3354, 16
          %v3425 = vrot.slane %v3423, 1
          %v3426 = vsel %vm376, %v3421, %v3425
          %v3428 = vshrl.u32 %v3355, 16
          %v3430 = vshll.u32 %v3355, 16
          %v3432 = vrot.slane %v3430, 1
          %v3433 = vor.u32 %v3428, %v3432
          %v3435 = vshll.u32 %v3356, 16
          %v3437 = vrot.slane %v3435, 1
          %v3438 = vsel %vm376, %v3433, %v3437
          %v3440 = vshrl.u32 %v3357, 16
          %v3442 = vshll.u32 %v3357, 16
          %v3444 = vrot.slane %v3442, 1
          %v3445 = vor.u32 %v3440, %v3444
          %v3447 = vshll.u32 %v3358, 16
          %v3449 = vrot.slane %v3447, 1
          %v3450 = vsel %vm376, %v3445, %v3449
          %v3452 = vshrl.u32 %v3359, 16
          %v3454 = vshll.u32 %v3359, 16
          %v3456 = vrot.slane %v3454, 1
          %v3457 = vor.u32 %v3452, %v3456
          %v3459 = vshll.u32 %v3360, 16
          %v3461 = vrot.slane %v3459, 1
          %v3462 = vsel %vm376, %v3457, %v3461
          %v3464 = vshrl.u32 %v3361, 16
          %v3466 = vshll.u32 %v3361, 16
          %v3468 = vrot.slane %v3466, 1
          %v3469 = vor.u32 %v3464, %v3468
          %v3471 = vshll.u32 %v3362, 16
          %v3473 = vrot.slane %v3471, 1
          %v3474 = vsel %vm376, %v3469, %v3473
          %v3476 = vshrl.u32 %v3363, 16
          %v3478 = vshll.u32 %v3363, 16
          %v3480 = vrot.slane %v3478, 1
          %v3481 = vor.u32 %v3476, %v3480
          %v3483 = vshll.u32 %v3364, 16
          %v3485 = vrot.slane %v3483, 1
          %v3486 = vsel %vm376, %v3481, %v3485
          %v3488 = vshrl.u32 %v3365, 16
          %v3490 = vshll.u32 %v3365, 16
          %v3492 = vrot.slane %v3490, 1
          %v3493 = vor.u32 %v3488, %v3492
          %v3495 = vshll.u32 %v3366, 16
          %v3497 = vrot.slane %v3495, 1
          %v3498 = vsel %vm376, %v3493, %v3497
          %v3500 = vshrl.u32 %v3367, 16
          %v3502 = vshll.u32 %v3367, 16
          %v3504 = vrot.slane %v3502, 1
          %v3505 = vor.u32 %v3500, %v3504
          %v3507 = vshll.u32 %v3368, 16
          %v3509 = vrot.slane %v3507, 1
          %v3510 = vsel %vm376, %v3505, %v3509
          %v3512 = vshrl.u32 %v3369, 16
          %v3514 = vshll.u32 %v3369, 16
          %v3516 = vrot.slane %v3514, 1
          %v3517 = vor.u32 %v3512, %v3516
          %v3519 = vshll.u32 %v3370, 16
          %v3521 = vrot.slane %v3519, 1
          %v3522 = vsel %vm376, %v3517, %v3521
          %v3524 = vshrl.u32 %v3371, 16
          %v3526 = vshll.u32 %v3371, 16
          %v3528 = vrot.slane %v3526, 1
          %v3529 = vor.u32 %v3524, %v3528
          %v3531 = vshll.u32 %v3372, 16
          %v3533 = vrot.slane %v3531, 1
          %v3534 = vsel %vm376, %v3529, %v3533
          %v3536 = vshrl.u32 %v3373, 16
          %v3538 = vshll.u32 %v3373, 16
          %v3540 = vrot.slane %v3538, 1
          %v3541 = vor.u32 %v3536, %v3540
          %v3543 = vshll.u32 %v3374, 16
          %v3545 = vrot.slane %v3543, 1
          %v3546 = vsel %vm376, %v3541, %v3545
          %v3548 = vshrl.u32 %v3375, 16
          %v3550 = vshll.u32 %v3375, 16
          %v3552 = vrot.slane %v3550, 1
          %v3553 = vor.u32 %v3548, %v3552
          %v3555 = vshll.u32 %v3376, 16
          %v3557 = vrot.slane %v3555, 1
          %v3558 = vsel %vm376, %v3553, %v3557
          %v3560 = vshrl.u32 %v3377, 16
          %v3562 = vshll.u32 %v3377, 16
          %v3564 = vrot.slane %v3562, 1
          %v3565 = vor.u32 %v3560, %v3564
          %v3567 = vshll.u32 %v3378, 16
          %v3569 = vrot.slane %v3567, 1
          %v3570 = vsel %vm376, %v3565, %v3569
          %v3572 = vshrl.u32 %v3379, 16
          %v3574 = vshll.u32 %v3379, 16
          %v3576 = vrot.slane %v3574, 1
          %v3577 = vor.u32 %v3572, %v3576
          %v3579 = vshll.u32 %v3380, 16
          %v3581 = vrot.slane %v3579, 1
          %v3582 = vsel %vm376, %v3577, %v3581
          %v3584 = vshrl.u32 %v3381, 16
          %v3586 = vshll.u32 %v3381, 16
          %v3588 = vrot.slane %v3586, 1
          %v3589 = vor.u32 %v3584, %v3588
          %v3591 = vshll.u32 %v3382, 16
          %v3593 = vrot.slane %v3591, 1
          %v3594 = vsel %vm376, %v3589, %v3593
          %s3611 = scalar_lea.vmem %s2, 64
          %v3612 = vld [vmem:[%s3611] sm:$0xf]
          %v3613 = vld [vmem:[%s3611 + $0x4] sm:$0xf]
          %v3614 = vld [vmem:[%s3611 + $0x8] sm:$0xf]
          %v3615 = vld [vmem:[%s3611 + $0xc] sm:$0xf]
          %v3616 = vld [vmem:[%s3611 + $0x10] sm:$0xf]
          %v3617 = vld [vmem:[%s3611 + $0x14] sm:$0xf]
          %v3618 = vld [vmem:[%s3611 + $0x18] sm:$0xf]
          %v3619 = vld [vmem:[%s3611 + $0x1c] sm:$0xf]
          %v3620 = vld [vmem:[%s3611 + $0x20] sm:$0xf]
          %v3621 = vld [vmem:[%s3611 + $0x24] sm:$0xf]
          %v3622 = vld [vmem:[%s3611 + $0x28] sm:$0xf]
          %v3623 = vld [vmem:[%s3611 + $0x2c] sm:$0xf]
          %v3624 = vld [vmem:[%s3611 + $0x30] sm:$0xf]
          %v3625 = vld [vmem:[%s3611 + $0x34] sm:$0xf]
          %v3626 = vld [vmem:[%s3611 + $0x38] sm:$0xf]
          %v3627 = vld [vmem:[%s3611 + $0x3c] sm:$0xf]
          %v3644 = vunpack.c.l.b16 %v3612
          %v3645 = vunpack.c.l.b16 %v3613
          %v3646 = vunpack.c.l.b16 %v3614
          %v3647 = vunpack.c.l.b16 %v3615
          %v3648 = vunpack.c.l.b16 %v3616
          %v3649 = vunpack.c.l.b16 %v3617
          %v3650 = vunpack.c.l.b16 %v3618
          %v3651 = vunpack.c.l.b16 %v3619
          %v3652 = vunpack.c.l.b16 %v3620
          %v3653 = vunpack.c.l.b16 %v3621
          %v3654 = vunpack.c.l.b16 %v3622
          %v3655 = vunpack.c.l.b16 %v3623
          %v3656 = vunpack.c.l.b16 %v3624
          %v3657 = vunpack.c.l.b16 %v3625
          %v3658 = vunpack.c.l.b16 %v3626
          %v3659 = vunpack.c.l.b16 %v3627
          %v3660 = vpack.c.b16 %v3645, %v3644
          %v3661 = vpack.c.b16 %v3647, %v3646
          %v3662 = vpack.c.b16 %v3649, %v3648
          %v3663 = vpack.c.b16 %v3651, %v3650
          %v3664 = vpack.c.b16 %v3653, %v3652
          %v3665 = vpack.c.b16 %v3655, %v3654
          %v3666 = vpack.c.b16 %v3657, %v3656
          %v3667 = vpack.c.b16 %v3659, %v3658
          %3676 = vmatprep.subr.bf16.mxu0 0
          %3677 = vmatpush1.bf16.msra.mxu0 %v3660
          %3678 = vmatprep.subr.bf16.mxu0 0
          %3679 = vmatpush1.bf16.msra.mxu0 %v3661
          %3680 = vmatprep.subr.bf16.mxu0 0
          %3681 = vmatpush1.bf16.msra.mxu0 %v3662
          %3682 = vmatprep.subr.bf16.mxu0 0
          %3683 = vmatpush1.bf16.msra.mxu0 %v3663
          %3684 = vmatprep.subr.bf16.mxu0 0
          %3685 = vmatpush1.bf16.msra.mxu0 %v3664
          %3686 = vmatprep.subr.bf16.mxu0 0
          %3687 = vmatpush1.bf16.msra.mxu0 %v3665
          %3688 = vmatprep.subr.bf16.mxu0 0
          %3689 = vmatpush1.bf16.msra.mxu0 %v3666
          %3690 = vmatprep.subr.bf16.mxu0 0
          %3691 = vmatpush1.bf16.msra.mxu0 %v3667
          %3692 = vmatprep.subr.bf16.mxu0 0
          %3693 = vmatpush1.bf16.msra.mxu0 0
          %3694 = vmatprep.subr.bf16.mxu0 0
          %3695 = vmatpush1.bf16.msra.mxu0 0
          %3696 = vmatprep.subr.bf16.mxu0 0
          %3697 = vmatpush1.bf16.msra.mxu0 0
          %3698 = vmatprep.subr.bf16.mxu0 0
          %3699 = vmatpush1.bf16.msra.mxu0 0
          %3700 = vmatprep.subr.bf16.mxu0 0
          %3701 = vmatpush1.bf16.msra.mxu0 0
          %3702 = vmatprep.subr.bf16.mxu0 0
          %3703 = vmatpush1.bf16.msra.mxu0 0
          %3704 = vmatprep.subr.bf16.mxu0 0
          %3705 = vmatpush1.bf16.msra.mxu0 0
          %3706 = vmatprep.subr.bf16.mxu0 0
          %3707 = vmatpush1.bf16.msra.mxu0 0
          %3708 = vmatprep.mubr.bf16.mxu0 0
          %3709 = vmatmul.mubr.bf16.gmra.mrb[0].mxu0 %v3414
          %v3710 = vpop.f32.mrb[0].mxu0
          %v3711 = vadd.f32 0.0, %v3710
          %v3712 = vpop.f32.mrb[0].mxu0
          %v3713 = vpop.f32.mrb[0].mxu0
          %v3714 = vadd.f32 0.0, %v3713
          %v3715 = vpop.f32.mrb[0].mxu0
          %3716 = vmatprep.mubr.bf16.mxu0 0
          %3717 = vmatmul.mubr.bf16.gmra.mrb[0].mxu0 %v3426
          %v3718 = vpop.f32.mrb[0].mxu0
          %v3719 = vadd.f32 0.0, %v3718
          %v3720 = vpop.f32.mrb[0].mxu0
          %v3721 = vpop.f32.mrb[0].mxu0
          %v3722 = vadd.f32 0.0, %v3721
          %v3723 = vpop.f32.mrb[0].mxu0
          %3724 = vmatprep.mubr.bf16.mxu0 0
          %3725 = vmatmul.mubr.bf16.gmra.mrb[0].mxu0 %v3438
          %v3726 = vpop.f32.mrb[0].mxu0
          %v3727 = vadd.f32 0.0, %v3726
          %v3728 = vpop.f32.mrb[0].mxu0
          %v3729 = vpop.f32.mrb[0].mxu0
          %v3730 = vadd.f32 0.0, %v3729
          %v3731 = vpop.f32.mrb[0].mxu0
          %3732 = vmatprep.mubr.bf16.mxu0 0
          %3733 = vmatmul.mubr.bf16.gmra.mrb[0].mxu0 %v3450
          %v3734 = vpop.f32.mrb[0].mxu0
          %v3735 = vadd.f32 0.0, %v3734
          %v3736 = vpop.f32.mrb[0].mxu0
          %v3737 = vpop.f32.mrb[0].mxu0
          %v3738 = vadd.f32 0.0, %v3737
          %v3739 = vpop.f32.mrb[0].mxu0
          %3740 = vmatprep.mubr.bf16.mxu0 0
          %3741 = vmatmul.mubr.bf16.gmra.mrb[0].mxu0 %v3462
          %v3742 = vpop.f32.mrb[0].mxu0
          %v3743 = vadd.f32 0.0, %v3742
          %v3744 = vpop.f32.mrb[0].mxu0
          %v3745 = vpop.f32.mrb[0].mxu0
          %v3746 = vadd.f32 0.0, %v3745
          %v3747 = vpop.f32.mrb[0].mxu0
          %3748 = vmatprep.mubr.bf16.mxu0 0
          %3749 = vmatmul.mubr.bf16.gmra.mrb[0].mxu0 %v3474
          %v3750 = vpop.f32.mrb[0].mxu0
          %v3751 = vadd.f32 0.0, %v3750
          %v3752 = vpop.f32.mrb[0].mxu0
          %v3753 = vpop.f32.mrb[0].mxu0
          %v3754 = vadd.f32 0.0, %v3753
          %v3755 = vpop.f32.mrb[0].mxu0
          %3756 = vmatprep.mubr.bf16.mxu0 0
          %3757 = vmatmul.mubr.bf16.gmra.mrb[0].mxu0 %v3486
          %v3758 = vpop.f32.mrb[0].mxu0
          %v3759 = vadd.f32 0.0, %v3758
          %v3760 = vpop.f32.mrb[0].mxu0
          %v3761 = vpop.f32.mrb[0].mxu0
          %v3762 = vadd.f32 0.0, %v3761
          %v3763 = vpop.f32.mrb[0].mxu0
          %3764 = vmatprep.mubr.bf16.mxu0 0
          %3765 = vmatmul.mubr.bf16.gmra.mrb[0].mxu0 %v3498
          %v3766 = vpop.f32.mrb[0].mxu0
          %v3767 = vadd.f32 0.0, %v3766
          %v3768 = vpop.f32.mrb[0].mxu0
          %v3769 = vpop.f32.mrb[0].mxu0
          %v3770 = vadd.f32 0.0, %v3769
          %v3771 = vpop.f32.mrb[0].mxu0
          %3772 = vmatprep.mubr.bf16.mxu0 0
          %3773 = vmatmul.mubr.bf16.gmra.mrb[0].mxu0 %v3510
          %v3774 = vpop.f32.mrb[0].mxu0
          %v3775 = vadd.f32 0.0, %v3774
          %v3776 = vpop.f32.mrb[0].mxu0
          %v3777 = vpop.f32.mrb[0].mxu0
          %v3778 = vadd.f32 0.0, %v3777
          %v3779 = vpop.f32.mrb[0].mxu0
          %3780 = vmatprep.mubr.bf16.mxu0 0
          %3781 = vmatmul.mubr.bf16.gmra.mrb[0].mxu0 %v3522
          %v3782 = vpop.f32.mrb[0].mxu0
          %v3783 = vadd.f32 0.0, %v3782
          %v3784 = vpop.f32.mrb[0].mxu0
          %v3785 = vpop.f32.mrb[0].mxu0
          %v3786 = vadd.f32 0.0, %v3785
          %v3787 = vpop.f32.mrb[0].mxu0
          %3788 = vmatprep.mubr.bf16.mxu0 0
          %3789 = vmatmul.mubr.bf16.gmra.mrb[0].mxu0 %v3534
          %v3790 = vpop.f32.mrb[0].mxu0
          %v3791 = vadd.f32 0.0, %v3790
          %v3792 = vpop.f32.mrb[0].mxu0
          %v3793 = vpop.f32.mrb[0].mxu0
          %v3794 = vadd.f32 0.0, %v3793
          %v3795 = vpop.f32.mrb[0].mxu0
          %3796 = vmatprep.mubr.bf16.mxu0 0
          %3797 = vmatmul.mubr.bf16.gmra.mrb[0].mxu0 %v3546
          %v3798 = vpop.f32.mrb[0].mxu0
          %v3799 = vadd.f32 0.0, %v3798
          %v3800 = vpop.f32.mrb[0].mxu0
          %v3801 = vpop.f32.mrb[0].mxu0
          %v3802 = vadd.f32 0.0, %v3801
          %v3803 = vpop.f32.mrb[0].mxu0
          %3804 = vmatprep.mubr.bf16.mxu0 0
          %3805 = vmatmul.mubr.bf16.gmra.mrb[0].mxu0 %v3558
          %v3806 = vpop.f32.mrb[0].mxu0
          %v3807 = vadd.f32 0.0, %v3806
          %v3808 = vpop.f32.mrb[0].mxu0
          %v3809 = vpop.f32.mrb[0].mxu0
          %v3810 = vadd.f32 0.0, %v3809
          %v3811 = vpop.f32.mrb[0].mxu0
          %3812 = vmatprep.mubr.bf16.mxu0 0
          %3813 = vmatmul.mubr.bf16.gmra.mrb[0].mxu0 %v3570
          %v3814 = vpop.f32.mrb[0].mxu0
          %v3815 = vadd.f32 0.0, %v3814
          %v3816 = vpop.f32.mrb[0].mxu0
          %v3817 = vpop.f32.mrb[0].mxu0
          %v3818 = vadd.f32 0.0, %v3817
          %v3819 = vpop.f32.mrb[0].mxu0
          %3820 = vmatprep.mubr.bf16.mxu0 0
          %3821 = vmatmul.mubr.bf16.gmra.mrb[0].mxu0 %v3582
          %v3822 = vpop.f32.mrb[0].mxu0
          %v3823 = vadd.f32 0.0, %v3822
          %v3824 = vpop.f32.mrb[0].mxu0
          %v3825 = vpop.f32.mrb[0].mxu0
          %v3826 = vadd.f32 0.0, %v3825
          %v3827 = vpop.f32.mrb[0].mxu0
          %3828 = vmatprep.mubr.bf16.mxu0 0
          %3829 = vmatmul.mubr.bf16.gmra.mrb[0].mxu0 %v3594
          %v3830 = vpop.f32.mrb[0].mxu0
          %v3831 = vadd.f32 0.0, %v3830
          %v3832 = vpop.f32.mrb[0].mxu0
          %v3833 = vpop.f32.mrb[0].mxu0
          %v3834 = vadd.f32 0.0, %v3833
          %v3835 = vpop.f32.mrb[0].mxu0
          %3836 = vdwg.mxu0
          %v3853 = vunpack.c.l.b16 %v3387
          %v3854 = vunpack.c.l.b16 %v3388
          %v3855 = vunpack.c.l.b16 %v3389
          %v3856 = vunpack.c.l.b16 %v3390
          %v3857 = vunpack.c.l.b16 %v3391
          %v3858 = vunpack.c.l.b16 %v3392
          %v3859 = vunpack.c.l.b16 %v3393
          %v3860 = vunpack.c.l.b16 %v3394
          %v3861 = vunpack.c.l.b16 %v3395
          %v3862 = vunpack.c.l.b16 %v3396
          %v3863 = vunpack.c.l.b16 %v3397
          %v3864 = vunpack.c.l.b16 %v3398
          %v3865 = vunpack.c.l.b16 %v3399
          %v3866 = vunpack.c.l.b16 %v3400
          %v3867 = vunpack.c.l.b16 %v3401
          %v3868 = vunpack.c.l.b16 %v3402
          %v3869 = vpack.c.b16 %v3854, %v3853
          %v3870 = vpack.c.b16 %v3856, %v3855
          %v3871 = vpack.c.b16 %v3858, %v3857
          %v3872 = vpack.c.b16 %v3860, %v3859
          %v3873 = vpack.c.b16 %v3862, %v3861
          %v3874 = vpack.c.b16 %v3864, %v3863
          %v3875 = vpack.c.b16 %v3866, %v3865
          %v3876 = vpack.c.b16 %v3868, %v3867
          %3885 = vmatprep.subr.bf16.mxu0 0
          %3886 = vmatpush1.bf16.msra.mxu0 %v3869
          %3887 = vmatprep.subr.bf16.mxu0 0
          %3888 = vmatpush1.bf16.msra.mxu0 %v3870
          %3889 = vmatprep.subr.bf16.mxu0 0
          %3890 = vmatpush1.bf16.msra.mxu0 %v3871
          %3891 = vmatprep.subr.bf16.mxu0 0
          %3892 = vmatpush1.bf16.msra.mxu0 %v3872
          %3893 = vmatprep.subr.bf16.mxu0 0
          %3894 = vmatpush1.bf16.msra.mxu0 %v3873
          %3895 = vmatprep.subr.bf16.mxu0 0
          %3896 = vmatpush1.bf16.msra.mxu0 %v3874
          %3897 = vmatprep.subr.bf16.mxu0 0
          %3898 = vmatpush1.bf16.msra.mxu0 %v3875
          %3899 = vmatprep.subr.bf16.mxu0 0
          %3900 = vmatpush1.bf16.msra.mxu0 %v3876
          %3901 = vmatprep.subr.bf16.mxu0 0
          %3902 = vmatpush1.bf16.msra.mxu0 0
          %3903 = vmatprep.subr.bf16.mxu0 0
          %3904 = vmatpush1.bf16.msra.mxu0 0
          %3905 = vmatprep.subr.bf16.mxu0 0
          %3906 = vmatpush1.bf16.msra.mxu0 0
          %3907 = vmatprep.subr.bf16.mxu0 0
          %3908 = vmatpush1.bf16.msra.mxu0 0
          %3909 = vmatprep.subr.bf16.mxu0 0
          %3910 = vmatpush1.bf16.msra.mxu0 0
          %3911 = vmatprep.subr.bf16.mxu0 0
          %3912 = vmatpush1.bf16.msra.mxu0 0
          %3913 = vmatprep.subr.bf16.mxu0 0
          %3914 = vmatpush1.bf16.msra.mxu0 0
          %3915 = vmatprep.subr.bf16.mxu0 0
          %3916 = vmatpush1.bf16.msra.mxu0 0
          %3917 = vmatprep.mubr.bf16.mxu0 0
          %3918 = vmatmul.mubr.bf16.gmra.mrb[0].mxu0 %v3351
          %v3919 = vpop.f32.mrb[0].mxu0
          %v3920 = vadd.f32 %v3711, %v3919
          %v3921 = vpop.f32.mrb[0].mxu0
          %v3922 = vpop.f32.mrb[0].mxu0
          %v3923 = vadd.f32 %v3714, %v3922
          %v3924 = vpop.f32.mrb[0].mxu0
          %3925 = vmatprep.mubr.bf16.mxu0 0
          %3926 = vmatmul.mubr.bf16.gmra.mrb[0].mxu0 %v3353
          %v3927 = vpop.f32.mrb[0].mxu0
          %v3928 = vadd.f32 %v3719, %v3927
          %v3929 = vpop.f32.mrb[0].mxu0
          %v3930 = vpop.f32.mrb[0].mxu0
          %v3931 = vadd.f32 %v3722, %v3930
          %v3932 = vpop.f32.mrb[0].mxu0
          %3933 = vmatprep.mubr.bf16.mxu0 0
          %3934 = vmatmul.mubr.bf16.gmra.mrb[0].mxu0 %v3355
          %v3935 = vpop.f32.mrb[0].mxu0
          %v3936 = vadd.f32 %v3727, %v3935
          %v3937 = vpop.f32.mrb[0].mxu0
          %v3938 = vpop.f32.mrb[0].mxu0
          %v3939 = vadd.f32 %v3730, %v3938
          %v3940 = vpop.f32.mrb[0].mxu0
          %3941 = vmatprep.mubr.bf16.mxu0 0
          %3942 = vmatmul.mubr.bf16.gmra.mrb[0].mxu0 %v3357
          %v3943 = vpop.f32.mrb[0].mxu0
          %v3944 = vadd.f32 %v3735, %v3943
          %v3945 = vpop.f32.mrb[0].mxu0
          %v3946 = vpop.f32.mrb[0].mxu0
          %v3947 = vadd.f32 %v3738, %v3946
          %v3948 = vpop.f32.mrb[0].mxu0
          %3949 = vmatprep.mubr.bf16.mxu0 0
          %3950 = vmatmul.mubr.bf16.gmra.mrb[0].mxu0 %v3359
          %v3951 = vpop.f32.mrb[0].mxu0
          %v3952 = vadd.f32 %v3743, %v3951
          %v3953 = vpop.f32.mrb[0].mxu0
          %v3954 = vpop.f32.mrb[0].mxu0
          %v3955 = vadd.f32 %v3746, %v3954
          %v3956 = vpop.f32.mrb[0].mxu0
          %3957 = vmatprep.mubr.bf16.mxu0 0
          %3958 = vmatmul.mubr.bf16.gmra.mrb[0].mxu0 %v3361
          %v3959 = vpop.f32.mrb[0].mxu0
          %v3960 = vadd.f32 %v3751, %v3959
          %v3961 = vpop.f32.mrb[0].mxu0
          %v3962 = vpop.f32.mrb[0].mxu0
          %v3963 = vadd.f32 %v3754, %v3962
          %v3964 = vpop.f32.mrb[0].mxu0
          %3965 = vmatprep.mubr.bf16.mxu0 0
          %3966 = vmatmul.mubr.bf16.gmra.mrb[0].mxu0 %v3363
          %v3967 = vpop.f32.mrb[0].mxu0
          %v3968 = vadd.f32 %v3759, %v3967
          %v3969 = vpop.f32.mrb[0].mxu0
          %v3970 = vpop.f32.mrb[0].mxu0
          %v3971 = vadd.f32 %v3762, %v3970
          %v3972 = vpop.f32.mrb[0].mxu0
          %3973 = vmatprep.mubr.bf16.mxu0 0
          %3974 = vmatmul.mubr.bf16.gmra.mrb[0].mxu0 %v3365
          %v3975 = vpop.f32.mrb[0].mxu0
          %v3976 = vadd.f32 %v3767, %v3975
          %v3977 = vpop.f32.mrb[0].mxu0
          %v3978 = vpop.f32.mrb[0].mxu0
          %v3979 = vadd.f32 %v3770, %v3978
          %v3980 = vpop.f32.mrb[0].mxu0
          %3981 = vmatprep.mubr.bf16.mxu0 0
          %3982 = vmatmul.mubr.bf16.gmra.mrb[0].mxu0 %v3367
          %v3983 = vpop.f32.mrb[0].mxu0
          %v3984 = vadd.f32 %v3775, %v3983
          %v3985 = vpop.f32.mrb[0].mxu0
          %v3986 = vpop.f32.mrb[0].mxu0
          %v3987 = vadd.f32 %v3778, %v3986
          %v3988 = vpop.f32.mrb[0].mxu0
          %3989 = vmatprep.mubr.bf16.mxu0 0
          %3990 = vmatmul.mubr.bf16.gmra.mrb[0].mxu0 %v3369
          %v3991 = vpop.f32.mrb[0].mxu0
          %v3992 = vadd.f32 %v3783, %v3991
          %v3993 = vpop.f32.mrb[0].mxu0
          %v3994 = vpop.f32.mrb[0].mxu0
          %v3995 = vadd.f32 %v3786, %v3994
          %v3996 = vpop.f32.mrb[0].mxu0
          %3997 = vmatprep.mubr.bf16.mxu0 0
          %3998 = vmatmul.mubr.bf16.gmra.mrb[0].mxu0 %v3371
          %v3999 = vpop.f32.mrb[0].mxu0
          %v4000 = vadd.f32 %v3791, %v3999
          %v4001 = vpop.f32.mrb[0].mxu0
          %v4002 = vpop.f32.mrb[0].mxu0
          %v4003 = vadd.f32 %v3794, %v4002
          %v4004 = vpop.f32.mrb[0].mxu0
          %4005 = vmatprep.mubr.bf16.mxu0 0
          %4006 = vmatmul.mubr.bf16.gmra.mrb[0].mxu0 %v3373
          %v4007 = vpop.f32.mrb[0].mxu0
          %v4008 = vadd.f32 %v3799, %v4007
          %v4009 = vpop.f32.mrb[0].mxu0
          %v4010 = vpop.f32.mrb[0].mxu0
          %v4011 = vadd.f32 %v3802, %v4010
          %v4012 = vpop.f32.mrb[0].mxu0
          %4013 = vmatprep.mubr.bf16.mxu0 0
          %4014 = vmatmul.mubr.bf16.gmra.mrb[0].mxu0 %v3375
          %v4015 = vpop.f32.mrb[0].mxu0
          %v4016 = vadd.f32 %v3807, %v4015
          %v4017 = vpop.f32.mrb[0].mxu0
          %v4018 = vpop.f32.mrb[0].mxu0
          %v4019 = vadd.f32 %v3810, %v4018
          %v4020 = vpop.f32.mrb[0].mxu0
          %4021 = vmatprep.mubr.bf16.mxu0 0
          %4022 = vmatmul.mubr.bf16.gmra.mrb[0].mxu0 %v3377
          %v4023 = vpop.f32.mrb[0].mxu0
          %v4024 = vadd.f32 %v3815, %v4023
          %v4025 = vpop.f32.mrb[0].mxu0
          %v4026 = vpop.f32.mrb[0].mxu0
          %v4027 = vadd.f32 %v3818, %v4026
          %v4028 = vpop.f32.mrb[0].mxu0
          %4029 = vmatprep.mubr.bf16.mxu0 0
          %4030 = vmatmul.mubr.bf16.gmra.mrb[0].mxu0 %v3379
          %v4031 = vpop.f32.mrb[0].mxu0
          %v4032 = vadd.f32 %v3823, %v4031
          %v4033 = vpop.f32.mrb[0].mxu0
          %v4034 = vpop.f32.mrb[0].mxu0
          %v4035 = vadd.f32 %v3826, %v4034
          %v4036 = vpop.f32.mrb[0].mxu0
          %4037 = vmatprep.mubr.bf16.mxu0 0
          %4038 = vmatmul.mubr.bf16.gmra.mrb[0].mxu0 %v3381
          %v4039 = vpop.f32.mrb[0].mxu0
          %v4040 = vadd.f32 %v3831, %v4039
          %v4041 = vpop.f32.mrb[0].mxu0
          %v4042 = vpop.f32.mrb[0].mxu0
          %v4043 = vadd.f32 %v3834, %v4042
          %v4044 = vpop.f32.mrb[0].mxu0
          %4045 = vdwg.mxu0
          %v4078 = vrot.slane %v3351, 1
          %v4079 = vrot.slane %v3352, 1
          %v4080 = vsel %vm1052, %v4078, %v4079
          %v4081 = vrot.slane %v3353, 1
          %v4082 = vrot.slane %v3354, 1
          %v4083 = vsel %vm1052, %v4081, %v4082
          %v4084 = vrot.slane %v3355, 1
          %v4085 = vrot.slane %v3356, 1
          %v4086 = vsel %vm1052, %v4084, %v4085
          %v4087 = vrot.slane %v3357, 1
          %v4088 = vrot.slane %v3358, 1
          %v4089 = vsel %vm1052, %v4087, %v4088
          %v4090 = vrot.slane %v3359, 1
          %v4091 = vrot.slane %v3360, 1
          %v4092 = vsel %vm1052, %v4090, %v4091
          %v4093 = vrot.slane %v3361, 1
          %v4094 = vrot.slane %v3362, 1
          %v4095 = vsel %vm1052, %v4093, %v4094
          %v4096 = vrot.slane %v3363, 1
          %v4097 = vrot.slane %v3364, 1
          %v4098 = vsel %vm1052, %v4096, %v4097
          %v4099 = vrot.slane %v3365, 1
          %v4100 = vrot.slane %v3366, 1
          %v4101 = vsel %vm1052, %v4099, %v4100
          %v4102 = vrot.slane %v3367, 1
          %v4103 = vrot.slane %v3368, 1
          %v4104 = vsel %vm1052, %v4102, %v4103
          %v4105 = vrot.slane %v3369, 1
          %v4106 = vrot.slane %v3370, 1
          %v4107 = vsel %vm1052, %v4105, %v4106
          %v4108 = vrot.slane %v3371, 1
          %v4109 = vrot.slane %v3372, 1
          %v4110 = vsel %vm1052, %v4108, %v4109
          %v4111 = vrot.slane %v3373, 1
          %v4112 = vrot.slane %v3374, 1
          %v4113 = vsel %vm1052, %v4111, %v4112
          %v4114 = vrot.slane %v3375, 1
          %v4115 = vrot.slane %v3376, 1
          %v4116 = vsel %vm1052, %v4114, %v4115
          %v4117 = vrot.slane %v3377, 1
          %v4118 = vrot.slane %v3378, 1
          %v4119 = vsel %vm1052, %v4117, %v4118
          %v4120 = vrot.slane %v3379, 1
          %v4121 = vrot.slane %v3380, 1
          %v4122 = vsel %vm1052, %v4120, %v4121
          %v4123 = vrot.slane %v3381, 1
          %v4124 = vrot.slane %v3382, 1
          %v4125 = vsel %vm1052, %v4123, %v4124
          %s4142 = scalar_lea.vmem %s2, 128
          %v4143 = vld [vmem:[%s4142] sm:$0xf]
          %v4144 = vld [vmem:[%s4142 + $0x4] sm:$0xf]
          %v4145 = vld [vmem:[%s4142 + $0x8] sm:$0xf]
          %v4146 = vld [vmem:[%s4142 + $0xc] sm:$0xf]
          %v4147 = vld [vmem:[%s4142 + $0x10] sm:$0xf]
          %v4148 = vld [vmem:[%s4142 + $0x14] sm:$0xf]
          %v4149 = vld [vmem:[%s4142 + $0x18] sm:$0xf]
          %v4150 = vld [vmem:[%s4142 + $0x1c] sm:$0xf]
          %v4151 = vld [vmem:[%s4142 + $0x20] sm:$0xf]
          %v4152 = vld [vmem:[%s4142 + $0x24] sm:$0xf]
          %v4153 = vld [vmem:[%s4142 + $0x28] sm:$0xf]
          %v4154 = vld [vmem:[%s4142 + $0x2c] sm:$0xf]
          %v4155 = vld [vmem:[%s4142 + $0x30] sm:$0xf]
          %v4156 = vld [vmem:[%s4142 + $0x34] sm:$0xf]
          %v4157 = vld [vmem:[%s4142 + $0x38] sm:$0xf]
          %v4158 = vld [vmem:[%s4142 + $0x3c] sm:$0xf]
          %v4175 = vunpack.c.l.b16 %v4143
          %v4176 = vunpack.c.l.b16 %v4144
          %v4177 = vunpack.c.l.b16 %v4145
          %v4178 = vunpack.c.l.b16 %v4146
          %v4179 = vunpack.c.l.b16 %v4147
          %v4180 = vunpack.c.l.b16 %v4148
          %v4181 = vunpack.c.l.b16 %v4149
          %v4182 = vunpack.c.l.b16 %v4150
          %v4183 = vunpack.c.l.b16 %v4151
          %v4184 = vunpack.c.l.b16 %v4152
          %v4185 = vunpack.c.l.b16 %v4153
          %v4186 = vunpack.c.l.b16 %v4154
          %v4187 = vunpack.c.l.b16 %v4155
          %v4188 = vunpack.c.l.b16 %v4156
          %v4189 = vunpack.c.l.b16 %v4157
          %v4190 = vunpack.c.l.b16 %v4158
          %v4191 = vpack.c.b16 %v4176, %v4175
          %v4192 = vpack.c.b16 %v4178, %v4177
          %v4193 = vpack.c.b16 %v4180, %v4179
          %v4194 = vpack.c.b16 %v4182, %v4181
          %v4195 = vpack.c.b16 %v4184, %v4183
          %v4196 = vpack.c.b16 %v4186, %v4185
          %v4197 = vpack.c.b16 %v4188, %v4187
          %v4198 = vpack.c.b16 %v4190, %v4189
          %4207 = vmatprep.subr.bf16.mxu0 0
          %4208 = vmatpush1.bf16.msra.mxu0 %v4191
          %4209 = vmatprep.subr.bf16.mxu0 0
          %4210 = vmatpush1.bf16.msra.mxu0 %v4192
          %4211 = vmatprep.subr.bf16.mxu0 0
          %4212 = vmatpush1.bf16.msra.mxu0 %v4193
          %4213 = vmatprep.subr.bf16.mxu0 0
          %4214 = vmatpush1.bf16.msra.mxu0 %v4194
          %4215 = vmatprep.subr.bf16.mxu0 0
          %4216 = vmatpush1.bf16.msra.mxu0 %v4195
          %4217 = vmatprep.subr.bf16.mxu0 0
          %4218 = vmatpush1.bf16.msra.mxu0 %v4196
          %4219 = vmatprep.subr.bf16.mxu0 0
          %4220 = vmatpush1.bf16.msra.mxu0 %v4197
          %4221 = vmatprep.subr.bf16.mxu0 0
          %4222 = vmatpush1.bf16.msra.mxu0 %v4198
          %4223 = vmatprep.subr.bf16.mxu0 0
          %4224 = vmatpush1.bf16.msra.mxu0 0
          %4225 = vmatprep.subr.bf16.mxu0 0
          %4226 = vmatpush1.bf16.msra.mxu0 0
          %4227 = vmatprep.subr.bf16.mxu0 0
          %4228 = vmatpush1.bf16.msra.mxu0 0
          %4229 = vmatprep.subr.bf16.mxu0 0
          %4230 = vmatpush1.bf16.msra.mxu0 0
          %4231 = vmatprep.subr.bf16.mxu0 0
          %4232 = vmatpush1.bf16.msra.mxu0 0
          %4233 = vmatprep.subr.bf16.mxu0 0
          %4234 = vmatpush1.bf16.msra.mxu0 0
          %4235 = vmatprep.subr.bf16.mxu0 0
          %4236 = vmatpush1.bf16.msra.mxu0 0
          %4237 = vmatprep.subr.bf16.mxu0 0
          %4238 = vmatpush1.bf16.msra.mxu0 0
          %4239 = vmatprep.mubr.bf16.mxu0 0
          %4240 = vmatmul.mubr.bf16.gmra.mrb[0].mxu0 %v4080
          %v4241 = vpop.f32.mrb[0].mxu0
          %v4242 = vadd.f32 0.0, %v4241
          %v4243 = vpop.f32.mrb[0].mxu0
          %v4244 = vpop.f32.mrb[0].mxu0
          %v4245 = vadd.f32 0.0, %v4244
          %v4246 = vpop.f32.mrb[0].mxu0
          %4247 = vmatprep.mubr.bf16.mxu0 0
          %4248 = vmatmul.mubr.bf16.gmra.mrb[0].mxu0 %v4083
          %v4249 = vpop.f32.mrb[0].mxu0
          %v4250 = vadd.f32 0.0, %v4249
          %v4251 = vpop.f32.mrb[0].mxu0
          %v4252 = vpop.f32.mrb[0].mxu0
          %v4253 = vadd.f32 0.0, %v4252
          %v4254 = vpop.f32.mrb[0].mxu0
          %4255 = vmatprep.mubr.bf16.mxu0 0
          %4256 = vmatmul.mubr.bf16.gmra.mrb[0].mxu0 %v4086
          %v4257 = vpop.f32.mrb[0].mxu0
          %v4258 = vadd.f32 0.0, %v4257
          %v4259 = vpop.f32.mrb[0].mxu0
          %v4260 = vpop.f32.mrb[0].mxu0
          %v4261 = vadd.f32 0.0, %v4260
          %v4262 = vpop.f32.mrb[0].mxu0
          %4263 = vmatprep.mubr.bf16.mxu0 0
          %4264 = vmatmul.mubr.bf16.gmra.mrb[0].mxu0 %v4089
          %v4265 = vpop.f32.mrb[0].mxu0
          %v4266 = vadd.f32 0.0, %v4265
          %v4267 = vpop.f32.mrb[0].mxu0
          %v4268 = vpop.f32.mrb[0].mxu0
          %v4269 = vadd.f32 0.0, %v4268
          %v4270 = vpop.f32.mrb[0].mxu0
          %4271 = vmatprep.mubr.bf16.mxu0 0
          %4272 = vmatmul.mubr.bf16.gmra.mrb[0].mxu0 %v4092
          %v4273 = vpop.f32.mrb[0].mxu0
          %v4274 = vadd.f32 0.0, %v4273
          %v4275 = vpop.f32.mrb[0].mxu0
          %v4276 = vpop.f32.mrb[0].mxu0
          %v4277 = vadd.f32 0.0, %v4276
          %v4278 = vpop.f32.mrb[0].mxu0
          %4279 = vmatprep.mubr.bf16.mxu0 0
          %4280 = vmatmul.mubr.bf16.gmra.mrb[0].mxu0 %v4095
          %v4281 = vpop.f32.mrb[0].mxu0
          %v4282 = vadd.f32 0.0, %v4281
          %v4283 = vpop.f32.mrb[0].mxu0
          %v4284 = vpop.f32.mrb[0].mxu0
          %v4285 = vadd.f32 0.0, %v4284
          %v4286 = vpop.f32.mrb[0].mxu0
          %4287 = vmatprep.mubr.bf16.mxu0 0
          %4288 = vmatmul.mubr.bf16.gmra.mrb[0].mxu0 %v4098
          %v4289 = vpop.f32.mrb[0].mxu0
          %v4290 = vadd.f32 0.0, %v4289
          %v4291 = vpop.f32.mrb[0].mxu0
          %v4292 = vpop.f32.mrb[0].mxu0
          %v4293 = vadd.f32 0.0, %v4292
          %v4294 = vpop.f32.mrb[0].mxu0
          %4295 = vmatprep.mubr.bf16.mxu0 0
          %4296 = vmatmul.mubr.bf16.gmra.mrb[0].mxu0 %v4101
          %v4297 = vpop.f32.mrb[0].mxu0
          %v4298 = vadd.f32 0.0, %v4297
          %v4299 = vpop.f32.mrb[0].mxu0
          %v4300 = vpop.f32.mrb[0].mxu0
          %v4301 = vadd.f32 0.0, %v4300
          %v4302 = vpop.f32.mrb[0].mxu0
          %4303 = vmatprep.mubr.bf16.mxu0 0
          %4304 = vmatmul.mubr.bf16.gmra.mrb[0].mxu0 %v4104
          %v4305 = vpop.f32.mrb[0].mxu0
          %v4306 = vadd.f32 0.0, %v4305
          %v4307 = vpop.f32.mrb[0].mxu0
          %v4308 = vpop.f32.mrb[0].mxu0
          %v4309 = vadd.f32 0.0, %v4308
          %v4310 = vpop.f32.mrb[0].mxu0
          %4311 = vmatprep.mubr.bf16.mxu0 0
          %4312 = vmatmul.mubr.bf16.gmra.mrb[0].mxu0 %v4107
          %v4313 = vpop.f32.mrb[0].mxu0
          %v4314 = vadd.f32 0.0, %v4313
          %v4315 = vpop.f32.mrb[0].mxu0
          %v4316 = vpop.f32.mrb[0].mxu0
          %v4317 = vadd.f32 0.0, %v4316
          %v4318 = vpop.f32.mrb[0].mxu0
          %4319 = vmatprep.mubr.bf16.mxu0 0
          %4320 = vmatmul.mubr.bf16.gmra.mrb[0].mxu0 %v4110
          %v4321 = vpop.f32.mrb[0].mxu0
          %v4322 = vadd.f32 0.0, %v4321
          %v4323 = vpop.f32.mrb[0].mxu0
          %v4324 = vpop.f32.mrb[0].mxu0
          %v4325 = vadd.f32 0.0, %v4324
          %v4326 = vpop.f32.mrb[0].mxu0
          %4327 = vmatprep.mubr.bf16.mxu0 0
          %4328 = vmatmul.mubr.bf16.gmra.mrb[0].mxu0 %v4113
          %v4329 = vpop.f32.mrb[0].mxu0
          %v4330 = vadd.f32 0.0, %v4329
          %v4331 = vpop.f32.mrb[0].mxu0
          %v4332 = vpop.f32.mrb[0].mxu0
          %v4333 = vadd.f32 0.0, %v4332
          %v4334 = vpop.f32.mrb[0].mxu0
          %4335 = vmatprep.mubr.bf16.mxu0 0
          %4336 = vmatmul.mubr.bf16.gmra.mrb[0].mxu0 %v4116
          %v4337 = vpop.f32.mrb[0].mxu0
          %v4338 = vadd.f32 0.0, %v4337
          %v4339 = vpop.f32.mrb[0].mxu0
          %v4340 = vpop.f32.mrb[0].mxu0
          %v4341 = vadd.f32 0.0, %v4340
          %v4342 = vpop.f32.mrb[0].mxu0
          %4343 = vmatprep.mubr.bf16.mxu0 0
          %4344 = vmatmul.mubr.bf16.gmra.mrb[0].mxu0 %v4119
          %v4345 = vpop.f32.mrb[0].mxu0
          %v4346 = vadd.f32 0.0, %v4345
          %v4347 = vpop.f32.mrb[0].mxu0
          %v4348 = vpop.f32.mrb[0].mxu0
          %v4349 = vadd.f32 0.0, %v4348
          %v4350 = vpop.f32.mrb[0].mxu0
          %4351 = vmatprep.mubr.bf16.mxu0 0
          %4352 = vmatmul.mubr.bf16.gmra.mrb[0].mxu0 %v4122
          %v4353 = vpop.f32.mrb[0].mxu0
          %v4354 = vadd.f32 0.0, %v4353
          %v4355 = vpop.f32.mrb[0].mxu0
          %v4356 = vpop.f32.mrb[0].mxu0
          %v4357 = vadd.f32 0.0, %v4356
          %v4358 = vpop.f32.mrb[0].mxu0
          %4359 = vmatprep.mubr.bf16.mxu0 0
          %4360 = vmatmul.mubr.bf16.gmra.mrb[0].mxu0 %v4125
          %v4361 = vpop.f32.mrb[0].mxu0
          %v4362 = vadd.f32 0.0, %v4361
          %v4363 = vpop.f32.mrb[0].mxu0
          %v4364 = vpop.f32.mrb[0].mxu0
          %v4365 = vadd.f32 0.0, %v4364
          %v4366 = vpop.f32.mrb[0].mxu0
          %4367 = vdwg.mxu0
          %v4368 = vadd.f32 %v3920, %v4242
          %v4369 = vadd.f32 %v3923, %v4245
          %v4370 = vadd.f32 %v3928, %v4250
          %v4371 = vadd.f32 %v3931, %v4253
          %v4372 = vadd.f32 %v3936, %v4258
          %v4373 = vadd.f32 %v3939, %v4261
          %v4374 = vadd.f32 %v3944, %v4266
          %v4375 = vadd.f32 %v3947, %v4269
          %v4376 = vadd.f32 %v3952, %v4274
          %v4377 = vadd.f32 %v3955, %v4277
          %v4378 = vadd.f32 %v3960, %v4282
          %v4379 = vadd.f32 %v3963, %v4285
          %v4380 = vadd.f32 %v3968, %v4290
          %v4381 = vadd.f32 %v3971, %v4293
          %v4382 = vadd.f32 %v3976, %v4298
          %v4383 = vadd.f32 %v3979, %v4301
          %v4384 = vadd.f32 %v3984, %v4306
          %v4385 = vadd.f32 %v3987, %v4309
          %v4386 = vadd.f32 %v3992, %v4314
          %v4387 = vadd.f32 %v3995, %v4317
          %v4388 = vadd.f32 %v4000, %v4322
          %v4389 = vadd.f32 %v4003, %v4325
          %v4390 = vadd.f32 %v4008, %v4330
          %v4391 = vadd.f32 %v4011, %v4333
          %v4392 = vadd.f32 %v4016, %v4338
          %v4393 = vadd.f32 %v4019, %v4341
          %v4394 = vadd.f32 %v4024, %v4346
          %v4395 = vadd.f32 %v4027, %v4349
          %v4396 = vadd.f32 %v4032, %v4354
          %v4397 = vadd.f32 %v4035, %v4357
          %v4398 = vadd.f32 %v4040, %v4362
          %v4399 = vadd.f32 %v4043, %v4365
          %s4400 = scalar_lea.vmem %s2, 192
          %v4401 = vld [vmem:[%s4400] sm:$0xf]
          %v4402 = vld [vmem:[%s4400 + $0x4] sm:$0xf]
          %v4403 = vld [vmem:[%s4400 + $0x8] sm:$0xf]
          %v4404 = vld [vmem:[%s4400 + $0xc] sm:$0xf]
          %v4405 = vld [vmem:[%s4400 + $0x10] sm:$0xf]
          %v4406 = vld [vmem:[%s4400 + $0x14] sm:$0xf]
          %v4407 = vld [vmem:[%s4400 + $0x18] sm:$0xf]
          %v4408 = vld [vmem:[%s4400 + $0x1c] sm:$0xf]
          %v4409 = vld [vmem:[%s4400 + $0x20] sm:$0xf]
          %v4410 = vld [vmem:[%s4400 + $0x24] sm:$0xf]
          %v4411 = vld [vmem:[%s4400 + $0x28] sm:$0xf]
          %v4412 = vld [vmem:[%s4400 + $0x2c] sm:$0xf]
          %v4413 = vld [vmem:[%s4400 + $0x30] sm:$0xf]
          %v4414 = vld [vmem:[%s4400 + $0x34] sm:$0xf]
          %v4415 = vld [vmem:[%s4400 + $0x38] sm:$0xf]
          %v4416 = vld [vmem:[%s4400 + $0x3c] sm:$0xf]
          %v4433 = vunpack.c.l.b16 %v4401
          %v4434 = vunpack.c.l.b16 %v4402
          %v4435 = vunpack.c.l.b16 %v4403
          %v4436 = vunpack.c.l.b16 %v4404
          %v4437 = vunpack.c.l.b16 %v4405
          %v4438 = vunpack.c.l.b16 %v4406
          %v4439 = vunpack.c.l.b16 %v4407
          %v4440 = vunpack.c.l.b16 %v4408
          %v4441 = vunpack.c.l.b16 %v4409
          %v4442 = vunpack.c.l.b16 %v4410
          %v4443 = vunpack.c.l.b16 %v4411
          %v4444 = vunpack.c.l.b16 %v4412
          %v4445 = vunpack.c.l.b16 %v4413
          %v4446 = vunpack.c.l.b16 %v4414
          %v4447 = vunpack.c.l.b16 %v4415
          %v4448 = vunpack.c.l.b16 %v4416
          %v4449 = vpack.c.b16 %v4434, %v4433
          %v4450 = vpack.c.b16 %v4436, %v4435
          %v4451 = vpack.c.b16 %v4438, %v4437
          %v4452 = vpack.c.b16 %v4440, %v4439
          %v4453 = vpack.c.b16 %v4442, %v4441
          %v4454 = vpack.c.b16 %v4444, %v4443
          %v4455 = vpack.c.b16 %v4446, %v4445
          %v4456 = vpack.c.b16 %v4448, %v4447
          %4465 = vmatprep.subr.bf16.mxu0 0
          %4466 = vmatpush1.bf16.msra.mxu0 %v4449
          %4467 = vmatprep.subr.bf16.mxu0 0
          %4468 = vmatpush1.bf16.msra.mxu0 %v4450
          %4469 = vmatprep.subr.bf16.mxu0 0
          %4470 = vmatpush1.bf16.msra.mxu0 %v4451
          %4471 = vmatprep.subr.bf16.mxu0 0
          %4472 = vmatpush1.bf16.msra.mxu0 %v4452
          %4473 = vmatprep.subr.bf16.mxu0 0
          %4474 = vmatpush1.bf16.msra.mxu0 %v4453
          %4475 = vmatprep.subr.bf16.mxu0 0
          %4476 = vmatpush1.bf16.msra.mxu0 %v4454
          %4477 = vmatprep.subr.bf16.mxu0 0
          %4478 = vmatpush1.bf16.msra.mxu0 %v4455
          %4479 = vmatprep.subr.bf16.mxu0 0
          %4480 = vmatpush1.bf16.msra.mxu0 %v4456
          %4481 = vmatprep.subr.bf16.mxu0 0
          %4482 = vmatpush1.bf16.msra.mxu0 0
          %4483 = vmatprep.subr.bf16.mxu0 0
          %4484 = vmatpush1.bf16.msra.mxu0 0
          %4485 = vmatprep.subr.bf16.mxu0 0
          %4486 = vmatpush1.bf16.msra.mxu0 0
          %4487 = vmatprep.subr.bf16.mxu0 0
          %4488 = vmatpush1.bf16.msra.mxu0 0
          %4489 = vmatprep.subr.bf16.mxu0 0
          %4490 = vmatpush1.bf16.msra.mxu0 0
          %4491 = vmatprep.subr.bf16.mxu0 0
          %4492 = vmatpush1.bf16.msra.mxu0 0
          %4493 = vmatprep.subr.bf16.mxu0 0
          %4494 = vmatpush1.bf16.msra.mxu0 0
          %4495 = vmatprep.subr.bf16.mxu0 0
          %4496 = vmatpush1.bf16.msra.mxu0 0
          %4497 = vmatprep.mubr.bf16.mxu0 0
          %4498 = vmatmul.mubr.bf16.gmra.mrb[0].mxu0 %v3353
          %v4499 = vpop.f32.mrb[0].mxu0
          %v4500 = vadd.f32 0.0, %v4499
          %v4501 = vpop.f32.mrb[0].mxu0
          %v4502 = vpop.f32.mrb[0].mxu0
          %v4503 = vadd.f32 0.0, %v4502
          %v4504 = vpop.f32.mrb[0].mxu0
          %4505 = vmatprep.mubr.bf16.mxu0 0
          %4506 = vmatmul.mubr.bf16.gmra.mrb[0].mxu0 %v3355
          %v4507 = vpop.f32.mrb[0].mxu0
          %v4508 = vadd.f32 0.0, %v4507
          %v4509 = vpop.f32.mrb[0].mxu0
          %v4510 = vpop.f32.mrb[0].mxu0
          %v4511 = vadd.f32 0.0, %v4510
          %v4512 = vpop.f32.mrb[0].mxu0
          %4513 = vmatprep.mubr.bf16.mxu0 0
          %4514 = vmatmul.mubr.bf16.gmra.mrb[0].mxu0 %v3357
          %v4515 = vpop.f32.mrb[0].mxu0
          %v4516 = vadd.f32 0.0, %v4515
          %v4517 = vpop.f32.mrb[0].mxu0
          %v4518 = vpop.f32.mrb[0].mxu0
          %v4519 = vadd.f32 0.0, %v4518
          %v4520 = vpop.f32.mrb[0].mxu0
          %4521 = vmatprep.mubr.bf16.mxu0 0
          %4522 = vmatmul.mubr.bf16.gmra.mrb[0].mxu0 %v3359
          %v4523 = vpop.f32.mrb[0].mxu0
          %v4524 = vadd.f32 0.0, %v4523
          %v4525 = vpop.f32.mrb[0].mxu0
          %v4526 = vpop.f32.mrb[0].mxu0
          %v4527 = vadd.f32 0.0, %v4526
          %v4528 = vpop.f32.mrb[0].mxu0
          %4529 = vmatprep.mubr.bf16.mxu0 0
          %4530 = vmatmul.mubr.bf16.gmra.mrb[0].mxu0 %v3361
          %v4531 = vpop.f32.mrb[0].mxu0
          %v4532 = vadd.f32 0.0, %v4531
          %v4533 = vpop.f32.mrb[0].mxu0
          %v4534 = vpop.f32.mrb[0].mxu0
          %v4535 = vadd.f32 0.0, %v4534
          %v4536 = vpop.f32.mrb[0].mxu0
          %4537 = vmatprep.mubr.bf16.mxu0 0
          %4538 = vmatmul.mubr.bf16.gmra.mrb[0].mxu0 %v3363
          %v4539 = vpop.f32.mrb[0].mxu0
          %v4540 = vadd.f32 0.0, %v4539
          %v4541 = vpop.f32.mrb[0].mxu0
          %v4542 = vpop.f32.mrb[0].mxu0
          %v4543 = vadd.f32 0.0, %v4542
          %v4544 = vpop.f32.mrb[0].mxu0
          %4545 = vmatprep.mubr.bf16.mxu0 0
          %4546 = vmatmul.mubr.bf16.gmra.mrb[0].mxu0 %v3365
          %v4547 = vpop.f32.mrb[0].mxu0
          %v4548 = vadd.f32 0.0, %v4547
          %v4549 = vpop.f32.mrb[0].mxu0
          %v4550 = vpop.f32.mrb[0].mxu0
          %v4551 = vadd.f32 0.0, %v4550
          %v4552 = vpop.f32.mrb[0].mxu0
          %4553 = vmatprep.mubr.bf16.mxu0 0
          %4554 = vmatmul.mubr.bf16.gmra.mrb[0].mxu0 %v3367
          %v4555 = vpop.f32.mrb[0].mxu0
          %v4556 = vadd.f32 0.0, %v4555
          %v4557 = vpop.f32.mrb[0].mxu0
          %v4558 = vpop.f32.mrb[0].mxu0
          %v4559 = vadd.f32 0.0, %v4558
          %v4560 = vpop.f32.mrb[0].mxu0
          %4561 = vmatprep.mubr.bf16.mxu0 0
          %4562 = vmatmul.mubr.bf16.gmra.mrb[0].mxu0 %v3369
          %v4563 = vpop.f32.mrb[0].mxu0
          %v4564 = vadd.f32 0.0, %v4563
          %v4565 = vpop.f32.mrb[0].mxu0
          %v4566 = vpop.f32.mrb[0].mxu0
          %v4567 = vadd.f32 0.0, %v4566
          %v4568 = vpop.f32.mrb[0].mxu0
          %4569 = vmatprep.mubr.bf16.mxu0 0
          %4570 = vmatmul.mubr.bf16.gmra.mrb[0].mxu0 %v3371
          %v4571 = vpop.f32.mrb[0].mxu0
          %v4572 = vadd.f32 0.0, %v4571
          %v4573 = vpop.f32.mrb[0].mxu0
          %v4574 = vpop.f32.mrb[0].mxu0
          %v4575 = vadd.f32 0.0, %v4574
          %v4576 = vpop.f32.mrb[0].mxu0
          %4577 = vmatprep.mubr.bf16.mxu0 0
          %4578 = vmatmul.mubr.bf16.gmra.mrb[0].mxu0 %v3373
          %v4579 = vpop.f32.mrb[0].mxu0
          %v4580 = vadd.f32 0.0, %v4579
          %v4581 = vpop.f32.mrb[0].mxu0
          %v4582 = vpop.f32.mrb[0].mxu0
          %v4583 = vadd.f32 0.0, %v4582
          %v4584 = vpop.f32.mrb[0].mxu0
          %4585 = vmatprep.mubr.bf16.mxu0 0
          %4586 = vmatmul.mubr.bf16.gmra.mrb[0].mxu0 %v3375
          %v4587 = vpop.f32.mrb[0].mxu0
          %v4588 = vadd.f32 0.0, %v4587
          %v4589 = vpop.f32.mrb[0].mxu0
          %v4590 = vpop.f32.mrb[0].mxu0
          %v4591 = vadd.f32 0.0, %v4590
          %v4592 = vpop.f32.mrb[0].mxu0
          %4593 = vmatprep.mubr.bf16.mxu0 0
          %4594 = vmatmul.mubr.bf16.gmra.mrb[0].mxu0 %v3377
          %v4595 = vpop.f32.mrb[0].mxu0
          %v4596 = vadd.f32 0.0, %v4595
          %v4597 = vpop.f32.mrb[0].mxu0
          %v4598 = vpop.f32.mrb[0].mxu0
          %v4599 = vadd.f32 0.0, %v4598
          %v4600 = vpop.f32.mrb[0].mxu0
          %4601 = vmatprep.mubr.bf16.mxu0 0
          %4602 = vmatmul.mubr.bf16.gmra.mrb[0].mxu0 %v3379
          %v4603 = vpop.f32.mrb[0].mxu0
          %v4604 = vadd.f32 0.0, %v4603
          %v4605 = vpop.f32.mrb[0].mxu0
          %v4606 = vpop.f32.mrb[0].mxu0
          %v4607 = vadd.f32 0.0, %v4606
          %v4608 = vpop.f32.mrb[0].mxu0
          %4609 = vmatprep.mubr.bf16.mxu0 0
          %4610 = vmatmul.mubr.bf16.gmra.mrb[0].mxu0 %v3381
          %v4611 = vpop.f32.mrb[0].mxu0
          %v4612 = vadd.f32 0.0, %v4611
          %v4613 = vpop.f32.mrb[0].mxu0
          %v4614 = vpop.f32.mrb[0].mxu0
          %v4615 = vadd.f32 0.0, %v4614
          %v4616 = vpop.f32.mrb[0].mxu0
          %4617 = vmatprep.mubr.bf16.mxu0 0
          %4618 = vmatmul.mubr.bf16.gmra.mrb[0].mxu0 %v3383
          %v4619 = vpop.f32.mrb[0].mxu0
          %v4620 = vadd.f32 0.0, %v4619
          %v4621 = vpop.f32.mrb[0].mxu0
          %v4622 = vpop.f32.mrb[0].mxu0
          %v4623 = vadd.f32 0.0, %v4622
          %v4624 = vpop.f32.mrb[0].mxu0
          %4625 = vdwg.mxu0
          %v4626 = vadd.f32 %v4368, %v4500
          %v4627 = vadd.f32 %v4369, %v4503
          %v4628 = vadd.f32 %v4370, %v4508
          %v4629 = vadd.f32 %v4371, %v4511
          %v4630 = vadd.f32 %v4372, %v4516
          %v4631 = vadd.f32 %v4373, %v4519
          %v4632 = vadd.f32 %v4374, %v4524
          %v4633 = vadd.f32 %v4375, %v4527
          %v4634 = vadd.f32 %v4376, %v4532
          %v4635 = vadd.f32 %v4377, %v4535
          %v4636 = vadd.f32 %v4378, %v4540
          %v4637 = vadd.f32 %v4379, %v4543
          %v4638 = vadd.f32 %v4380, %v4548
          %v4639 = vadd.f32 %v4381, %v4551
          %v4640 = vadd.f32 %v4382, %v4556
          %v4641 = vadd.f32 %v4383, %v4559
          %v4642 = vadd.f32 %v4384, %v4564
          %v4643 = vadd.f32 %v4385, %v4567
          %v4644 = vadd.f32 %v4386, %v4572
          %v4645 = vadd.f32 %v4387, %v4575
          %v4646 = vadd.f32 %v4388, %v4580
          %v4647 = vadd.f32 %v4389, %v4583
          %v4648 = vadd.f32 %v4390, %v4588
          %v4649 = vadd.f32 %v4391, %v4591
          %v4650 = vadd.f32 %v4392, %v4596
          %v4651 = vadd.f32 %v4393, %v4599
          %v4652 = vadd.f32 %v4394, %v4604
          %v4653 = vadd.f32 %v4395, %v4607
          %v4654 = vadd.f32 %v4396, %v4612
          %v4655 = vadd.f32 %v4397, %v4615
          %v4656 = vadd.f32 %v4398, %v4620
          %v4657 = vadd.f32 %v4399, %v4623
          %v4659 = vshrl.u32 %v3383, 16
          %v4661 = vshll.u32 %v3383, 16
          %v4663 = vrot.slane %v4661, 1
          %v4664 = vor.u32 %v4659, %v4663
          %v4666 = vshll.u32 %v3384, 16
          %v4668 = vrot.slane %v4666, 1
          %v4669 = vsel %vm376, %v4664, %v4668
          %s4671 = scalar_lea.vmem %s2, 256
          %v4672 = vld [vmem:[%s4671] sm:$0xf]
          %v4673 = vld [vmem:[%s4671 + $0x4] sm:$0xf]
          %v4674 = vld [vmem:[%s4671 + $0x8] sm:$0xf]
          %v4675 = vld [vmem:[%s4671 + $0xc] sm:$0xf]
          %v4676 = vld [vmem:[%s4671 + $0x10] sm:$0xf]
          %v4677 = vld [vmem:[%s4671 + $0x14] sm:$0xf]
          %v4678 = vld [vmem:[%s4671 + $0x18] sm:$0xf]
          %v4679 = vld [vmem:[%s4671 + $0x1c] sm:$0xf]
          %v4680 = vld [vmem:[%s4671 + $0x20] sm:$0xf]
          %v4681 = vld [vmem:[%s4671 + $0x24] sm:$0xf]
          %v4682 = vld [vmem:[%s4671 + $0x28] sm:$0xf]
          %v4683 = vld [vmem:[%s4671 + $0x2c] sm:$0xf]
          %v4684 = vld [vmem:[%s4671 + $0x30] sm:$0xf]
          %v4685 = vld [vmem:[%s4671 + $0x34] sm:$0xf]
          %v4686 = vld [vmem:[%s4671 + $0x38] sm:$0xf]
          %v4687 = vld [vmem:[%s4671 + $0x3c] sm:$0xf]
          %v4704 = vunpack.c.l.b16 %v4672
          %v4705 = vunpack.c.l.b16 %v4673
          %v4706 = vunpack.c.l.b16 %v4674
          %v4707 = vunpack.c.l.b16 %v4675
          %v4708 = vunpack.c.l.b16 %v4676
          %v4709 = vunpack.c.l.b16 %v4677
          %v4710 = vunpack.c.l.b16 %v4678
          %v4711 = vunpack.c.l.b16 %v4679
          %v4712 = vunpack.c.l.b16 %v4680
          %v4713 = vunpack.c.l.b16 %v4681
          %v4714 = vunpack.c.l.b16 %v4682
          %v4715 = vunpack.c.l.b16 %v4683
          %v4716 = vunpack.c.l.b16 %v4684
          %v4717 = vunpack.c.l.b16 %v4685
          %v4718 = vunpack.c.l.b16 %v4686
          %v4719 = vunpack.c.l.b16 %v4687
          %v4720 = vpack.c.b16 %v4705, %v4704
          %v4721 = vpack.c.b16 %v4707, %v4706
          %v4722 = vpack.c.b16 %v4709, %v4708
          %v4723 = vpack.c.b16 %v4711, %v4710
          %v4724 = vpack.c.b16 %v4713, %v4712
          %v4725 = vpack.c.b16 %v4715, %v4714
          %v4726 = vpack.c.b16 %v4717, %v4716
          %v4727 = vpack.c.b16 %v4719, %v4718
          %4736 = vmatprep.subr.bf16.mxu0 0
          %4737 = vmatpush1.bf16.msra.mxu0 %v4720
          %4738 = vmatprep.subr.bf16.mxu0 0
          %4739 = vmatpush1.bf16.msra.mxu0 %v4721
          %4740 = vmatprep.subr.bf16.mxu0 0
          %4741 = vmatpush1.bf16.msra.mxu0 %v4722
          %4742 = vmatprep.subr.bf16.mxu0 0
          %4743 = vmatpush1.bf16.msra.mxu0 %v4723
          %4744 = vmatprep.subr.bf16.mxu0 0
          %4745 = vmatpush1.bf16.msra.mxu0 %v4724
          %4746 = vmatprep.subr.bf16.mxu0 0
          %4747 = vmatpush1.bf16.msra.mxu0 %v4725
          %4748 = vmatprep.subr.bf16.mxu0 0
          %4749 = vmatpush1.bf16.msra.mxu0 %v4726
          %4750 = vmatprep.subr.bf16.mxu0 0
          %4751 = vmatpush1.bf16.msra.mxu0 %v4727
          %4752 = vmatprep.subr.bf16.mxu0 0
          %4753 = vmatpush1.bf16.msra.mxu0 0
          %4754 = vmatprep.subr.bf16.mxu0 0
          %4755 = vmatpush1.bf16.msra.mxu0 0
          %4756 = vmatprep.subr.bf16.mxu0 0
          %4757 = vmatpush1.bf16.msra.mxu0 0
          %4758 = vmatprep.subr.bf16.mxu0 0
          %4759 = vmatpush1.bf16.msra.mxu0 0
          %4760 = vmatprep.subr.bf16.mxu0 0
          %4761 = vmatpush1.bf16.msra.mxu0 0
          %4762 = vmatprep.subr.bf16.mxu0 0
          %4763 = vmatpush1.bf16.msra.mxu0 0
          %4764 = vmatprep.subr.bf16.mxu0 0
          %4765 = vmatpush1.bf16.msra.mxu0 0
          %4766 = vmatprep.subr.bf16.mxu0 0
          %4767 = vmatpush1.bf16.msra.mxu0 0
          %4768 = vmatprep.mubr.bf16.mxu0 0
          %4769 = vmatmul.mubr.bf16.gmra.mrb[0].mxu0 %v3426
          %v4770 = vpop.f32.mrb[0].mxu0
          %v4771 = vadd.f32 0.0, %v4770
          %v4772 = vpop.f32.mrb[0].mxu0
          %v4773 = vpop.f32.mrb[0].mxu0
          %v4774 = vadd.f32 0.0, %v4773
          %v4775 = vpop.f32.mrb[0].mxu0
          %4776 = vmatprep.mubr.bf16.mxu0 0
          %4777 = vmatmul.mubr.bf16.gmra.mrb[0].mxu0 %v3438
          %v4778 = vpop.f32.mrb[0].mxu0
          %v4779 = vadd.f32 0.0, %v4778
          %v4780 = vpop.f32.mrb[0].mxu0
          %v4781 = vpop.f32.mrb[0].mxu0
          %v4782 = vadd.f32 0.0, %v4781
          %v4783 = vpop.f32.mrb[0].mxu0
          %4784 = vmatprep.mubr.bf16.mxu0 0
          %4785 = vmatmul.mubr.bf16.gmra.mrb[0].mxu0 %v3450
          %v4786 = vpop.f32.mrb[0].mxu0
          %v4787 = vadd.f32 0.0, %v4786
          %v4788 = vpop.f32.mrb[0].mxu0
          %v4789 = vpop.f32.mrb[0].mxu0
          %v4790 = vadd.f32 0.0, %v4789
          %v4791 = vpop.f32.mrb[0].mxu0
          %4792 = vmatprep.mubr.bf16.mxu0 0
          %4793 = vmatmul.mubr.bf16.gmra.mrb[0].mxu0 %v3462
          %v4794 = vpop.f32.mrb[0].mxu0
          %v4795 = vadd.f32 0.0, %v4794
          %v4796 = vpop.f32.mrb[0].mxu0
          %v4797 = vpop.f32.mrb[0].mxu0
          %v4798 = vadd.f32 0.0, %v4797
          %v4799 = vpop.f32.mrb[0].mxu0
          %4800 = vmatprep.mubr.bf16.mxu0 0
          %4801 = vmatmul.mubr.bf16.gmra.mrb[0].mxu0 %v3474
          %v4802 = vpop.f32.mrb[0].mxu0
          %v4803 = vadd.f32 0.0, %v4802
          %v4804 = vpop.f32.mrb[0].mxu0
          %v4805 = vpop.f32.mrb[0].mxu0
          %v4806 = vadd.f32 0.0, %v4805
          %v4807 = vpop.f32.mrb[0].mxu0
          %4808 = vmatprep.mubr.bf16.mxu0 0
          %4809 = vmatmul.mubr.bf16.gmra.mrb[0].mxu0 %v3486
          %v4810 = vpop.f32.mrb[0].mxu0
          %v4811 = vadd.f32 0.0, %v4810
          %v4812 = vpop.f32.mrb[0].mxu0
          %v4813 = vpop.f32.mrb[0].mxu0
          %v4814 = vadd.f32 0.0, %v4813
          %v4815 = vpop.f32.mrb[0].mxu0
          %4816 = vmatprep.mubr.bf16.mxu0 0
          %4817 = vmatmul.mubr.bf16.gmra.mrb[0].mxu0 %v3498
          %v4818 = vpop.f32.mrb[0].mxu0
          %v4819 = vadd.f32 0.0, %v4818
          %v4820 = vpop.f32.mrb[0].mxu0
          %v4821 = vpop.f32.mrb[0].mxu0
          %v4822 = vadd.f32 0.0, %v4821
          %v4823 = vpop.f32.mrb[0].mxu0
          %4824 = vmatprep.mubr.bf16.mxu0 0
          %4825 = vmatmul.mubr.bf16.gmra.mrb[0].mxu0 %v3510
          %v4826 = vpop.f32.mrb[0].mxu0
          %v4827 = vadd.f32 0.0, %v4826
          %v4828 = vpop.f32.mrb[0].mxu0
          %v4829 = vpop.f32.mrb[0].mxu0
          %v4830 = vadd.f32 0.0, %v4829
          %v4831 = vpop.f32.mrb[0].mxu0
          %4832 = vmatprep.mubr.bf16.mxu0 0
          %4833 = vmatmul.mubr.bf16.gmra.mrb[0].mxu0 %v3522
          %v4834 = vpop.f32.mrb[0].mxu0
          %v4835 = vadd.f32 0.0, %v4834
          %v4836 = vpop.f32.mrb[0].mxu0
          %v4837 = vpop.f32.mrb[0].mxu0
          %v4838 = vadd.f32 0.0, %v4837
          %v4839 = vpop.f32.mrb[0].mxu0
          %4840 = vmatprep.mubr.bf16.mxu0 0
          %4841 = vmatmul.mubr.bf16.gmra.mrb[0].mxu0 %v3534
          %v4842 = vpop.f32.mrb[0].mxu0
          %v4843 = vadd.f32 0.0, %v4842
          %v4844 = vpop.f32.mrb[0].mxu0
          %v4845 = vpop.f32.mrb[0].mxu0
          %v4846 = vadd.f32 0.0, %v4845
          %v4847 = vpop.f32.mrb[0].mxu0
          %4848 = vmatprep.mubr.bf16.mxu0 0
          %4849 = vmatmul.mubr.bf16.gmra.mrb[0].mxu0 %v3546
          %v4850 = vpop.f32.mrb[0].mxu0
          %v4851 = vadd.f32 0.0, %v4850
          %v4852 = vpop.f32.mrb[0].mxu0
          %v4853 = vpop.f32.mrb[0].mxu0
          %v4854 = vadd.f32 0.0, %v4853
          %v4855 = vpop.f32.mrb[0].mxu0
          %4856 = vmatprep.mubr.bf16.mxu0 0
          %4857 = vmatmul.mubr.bf16.gmra.mrb[0].mxu0 %v3558
          %v4858 = vpop.f32.mrb[0].mxu0
          %v4859 = vadd.f32 0.0, %v4858
          %v4860 = vpop.f32.mrb[0].mxu0
          %v4861 = vpop.f32.mrb[0].mxu0
          %v4862 = vadd.f32 0.0, %v4861
          %v4863 = vpop.f32.mrb[0].mxu0
          %4864 = vmatprep.mubr.bf16.mxu0 0
          %4865 = vmatmul.mubr.bf16.gmra.mrb[0].mxu0 %v3570
          %v4866 = vpop.f32.mrb[0].mxu0
          %v4867 = vadd.f32 0.0, %v4866
          %v4868 = vpop.f32.mrb[0].mxu0
          %v4869 = vpop.f32.mrb[0].mxu0
          %v4870 = vadd.f32 0.0, %v4869
          %v4871 = vpop.f32.mrb[0].mxu0
          %4872 = vmatprep.mubr.bf16.mxu0 0
          %4873 = vmatmul.mubr.bf16.gmra.mrb[0].mxu0 %v3582
          %v4874 = vpop.f32.mrb[0].mxu0
          %v4875 = vadd.f32 0.0, %v4874
          %v4876 = vpop.f32.mrb[0].mxu0
          %v4877 = vpop.f32.mrb[0].mxu0
          %v4878 = vadd.f32 0.0, %v4877
          %v4879 = vpop.f32.mrb[0].mxu0
          %4880 = vmatprep.mubr.bf16.mxu0 0
          %4881 = vmatmul.mubr.bf16.gmra.mrb[0].mxu0 %v3594
          %v4882 = vpop.f32.mrb[0].mxu0
          %v4883 = vadd.f32 0.0, %v4882
          %v4884 = vpop.f32.mrb[0].mxu0
          %v4885 = vpop.f32.mrb[0].mxu0
          %v4886 = vadd.f32 0.0, %v4885
          %v4887 = vpop.f32.mrb[0].mxu0
          %4888 = vmatprep.mubr.bf16.mxu0 0
          %4889 = vmatmul.mubr.bf16.gmra.mrb[0].mxu0 %v4669
          %v4890 = vpop.f32.mrb[0].mxu0
          %v4891 = vadd.f32 0.0, %v4890
          %v4892 = vpop.f32.mrb[0].mxu0
          %v4893 = vpop.f32.mrb[0].mxu0
          %v4894 = vadd.f32 0.0, %v4893
          %v4895 = vpop.f32.mrb[0].mxu0
          %4896 = vdwg.mxu0
          %v4897 = vadd.f32 %v4626, %v4771
          %v4898 = vadd.f32 %v4627, %v4774
          %v4899 = vadd.f32 %v4628, %v4779
          %v4900 = vadd.f32 %v4629, %v4782
          %v4901 = vadd.f32 %v4630, %v4787
          %v4902 = vadd.f32 %v4631, %v4790
          %v4903 = vadd.f32 %v4632, %v4795
          %v4904 = vadd.f32 %v4633, %v4798
          %v4905 = vadd.f32 %v4634, %v4803
          %v4906 = vadd.f32 %v4635, %v4806
          %v4907 = vadd.f32 %v4636, %v4811
          %v4908 = vadd.f32 %v4637, %v4814
          %v4909 = vadd.f32 %v4638, %v4819
          %v4910 = vadd.f32 %v4639, %v4822
          %v4911 = vadd.f32 %v4640, %v4827
          %v4912 = vadd.f32 %v4641, %v4830
          %v4913 = vadd.f32 %v4642, %v4835
          %v4914 = vadd.f32 %v4643, %v4838
          %v4915 = vadd.f32 %v4644, %v4843
          %v4916 = vadd.f32 %v4645, %v4846
          %v4917 = vadd.f32 %v4646, %v4851
          %v4918 = vadd.f32 %v4647, %v4854
          %v4919 = vadd.f32 %v4648, %v4859
          %v4920 = vadd.f32 %v4649, %v4862
          %v4921 = vadd.f32 %v4650, %v4867
          %v4922 = vadd.f32 %v4651, %v4870
          %v4923 = vadd.f32 %v4652, %v4875
          %v4924 = vadd.f32 %v4653, %v4878
          %v4925 = vadd.f32 %v4654, %v4883
          %v4926 = vadd.f32 %v4655, %v4886
          %v4927 = vadd.f32 %v4656, %v4891
          %v4928 = vadd.f32 %v4657, %v4894
          %v4931 = vrot.slane %v3383, 1
          %v4932 = vrot.slane %v3384, 1
          %v4933 = vsel %vm1052, %v4931, %v4932
          %s4935 = scalar_lea.vmem %s2, 320
          %v4936 = vld [vmem:[%s4935] sm:$0xf]
          %v4937 = vld [vmem:[%s4935 + $0x4] sm:$0xf]
          %v4938 = vld [vmem:[%s4935 + $0x8] sm:$0xf]
          %v4939 = vld [vmem:[%s4935 + $0xc] sm:$0xf]
          %v4940 = vld [vmem:[%s4935 + $0x10] sm:$0xf]
          %v4941 = vld [vmem:[%s4935 + $0x14] sm:$0xf]
          %v4942 = vld [vmem:[%s4935 + $0x18] sm:$0xf]
          %v4943 = vld [vmem:[%s4935 + $0x1c] sm:$0xf]
          %v4944 = vld [vmem:[%s4935 + $0x20] sm:$0xf]
          %v4945 = vld [vmem:[%s4935 + $0x24] sm:$0xf]
          %v4946 = vld [vmem:[%s4935 + $0x28] sm:$0xf]
          %v4947 = vld [vmem:[%s4935 + $0x2c] sm:$0xf]
          %v4948 = vld [vmem:[%s4935 + $0x30] sm:$0xf]
          %v4949 = vld [vmem:[%s4935 + $0x34] sm:$0xf]
          %v4950 = vld [vmem:[%s4935 + $0x38] sm:$0xf]
          %v4951 = vld [vmem:[%s4935 + $0x3c] sm:$0xf]
          %v4968 = vunpack.c.l.b16 %v4936
          %v4969 = vunpack.c.l.b16 %v4937
          %v4970 = vunpack.c.l.b16 %v4938
          %v4971 = vunpack.c.l.b16 %v4939
          %v4972 = vunpack.c.l.b16 %v4940
          %v4973 = vunpack.c.l.b16 %v4941
          %v4974 = vunpack.c.l.b16 %v4942
          %v4975 = vunpack.c.l.b16 %v4943
          %v4976 = vunpack.c.l.b16 %v4944
          %v4977 = vunpack.c.l.b16 %v4945
          %v4978 = vunpack.c.l.b16 %v4946
          %v4979 = vunpack.c.l.b16 %v4947
          %v4980 = vunpack.c.l.b16 %v4948
          %v4981 = vunpack.c.l.b16 %v4949
          %v4982 = vunpack.c.l.b16 %v4950
          %v4983 = vunpack.c.l.b16 %v4951
          %v4984 = vpack.c.b16 %v4969, %v4968
          %v4985 = vpack.c.b16 %v4971, %v4970
          %v4986 = vpack.c.b16 %v4973, %v4972
          %v4987 = vpack.c.b16 %v4975, %v4974
          %v4988 = vpack.c.b16 %v4977, %v4976
          %v4989 = vpack.c.b16 %v4979, %v4978
          %v4990 = vpack.c.b16 %v4981, %v4980
          %v4991 = vpack.c.b16 %v4983, %v4982
          %5000 = vmatprep.subr.bf16.mxu0 0
          %5001 = vmatpush1.bf16.msra.mxu0 %v4984
          %5002 = vmatprep.subr.bf16.mxu0 0
          %5003 = vmatpush1.bf16.msra.mxu0 %v4985
          %5004 = vmatprep.subr.bf16.mxu0 0
          %5005 = vmatpush1.bf16.msra.mxu0 %v4986
          %5006 = vmatprep.subr.bf16.mxu0 0
          %5007 = vmatpush1.bf16.msra.mxu0 %v4987
          %5008 = vmatprep.subr.bf16.mxu0 0
          %5009 = vmatpush1.bf16.msra.mxu0 %v4988
          %5010 = vmatprep.subr.bf16.mxu0 0
          %5011 = vmatpush1.bf16.msra.mxu0 %v4989
          %5012 = vmatprep.subr.bf16.mxu0 0
          %5013 = vmatpush1.bf16.msra.mxu0 %v4990
          %5014 = vmatprep.subr.bf16.mxu0 0
          %5015 = vmatpush1.bf16.msra.mxu0 %v4991
          %5016 = vmatprep.subr.bf16.mxu0 0
          %5017 = vmatpush1.bf16.msra.mxu0 0
          %5018 = vmatprep.subr.bf16.mxu0 0
          %5019 = vmatpush1.bf16.msra.mxu0 0
          %5020 = vmatprep.subr.bf16.mxu0 0
          %5021 = vmatpush1.bf16.msra.mxu0 0
          %5022 = vmatprep.subr.bf16.mxu0 0
          %5023 = vmatpush1.bf16.msra.mxu0 0
          %5024 = vmatprep.subr.bf16.mxu0 0
          %5025 = vmatpush1.bf16.msra.mxu0 0
          %5026 = vmatprep.subr.bf16.mxu0 0
          %5027 = vmatpush1.bf16.msra.mxu0 0
          %5028 = vmatprep.subr.bf16.mxu0 0
          %5029 = vmatpush1.bf16.msra.mxu0 0
          %5030 = vmatprep.subr.bf16.mxu0 0
          %5031 = vmatpush1.bf16.msra.mxu0 0
          %5032 = vmatprep.mubr.bf16.mxu0 0
          %5033 = vmatmul.mubr.bf16.gmra.mrb[0].mxu0 %v4083
          %v5034 = vpop.f32.mrb[0].mxu0
          %v5035 = vadd.f32 0.0, %v5034
          %v5036 = vpop.f32.mrb[0].mxu0
          %v5037 = vpop.f32.mrb[0].mxu0
          %v5038 = vadd.f32 0.0, %v5037
          %v5039 = vpop.f32.mrb[0].mxu0
          %5040 = vmatprep.mubr.bf16.mxu0 0
          %5041 = vmatmul.mubr.bf16.gmra.mrb[0].mxu0 %v4086
          %v5042 = vpop.f32.mrb[0].mxu0
          %v5043 = vadd.f32 0.0, %v5042
          %v5044 = vpop.f32.mrb[0].mxu0
          %v5045 = vpop.f32.mrb[0].mxu0
          %v5046 = vadd.f32 0.0, %v5045
          %v5047 = vpop.f32.mrb[0].mxu0
          %5048 = vmatprep.mubr.bf16.mxu0 0
          %5049 = vmatmul.mubr.bf16.gmra.mrb[0].mxu0 %v4089
          %v5050 = vpop.f32.mrb[0].mxu0
          %v5051 = vadd.f32 0.0, %v5050
          %v5052 = vpop.f32.mrb[0].mxu0
          %v5053 = vpop.f32.mrb[0].mxu0
          %v5054 = vadd.f32 0.0, %v5053
          %v5055 = vpop.f32.mrb[0].mxu0
          %5056 = vmatprep.mubr.bf16.mxu0 0
          %5057 = vmatmul.mubr.bf16.gmra.mrb[0].mxu0 %v4092
          %v5058 = vpop.f32.mrb[0].mxu0
          %v5059 = vadd.f32 0.0, %v5058
          %v5060 = vpop.f32.mrb[0].mxu0
          %v5061 = vpop.f32.mrb[0].mxu0
          %v5062 = vadd.f32 0.0, %v5061
          %v5063 = vpop.f32.mrb[0].mxu0
          %5064 = vmatprep.mubr.bf16.mxu0 0
          %5065 = vmatmul.mubr.bf16.gmra.mrb[0].mxu0 %v4095
          %v5066 = vpop.f32.mrb[0].mxu0
          %v5067 = vadd.f32 0.0, %v5066
          %v5068 = vpop.f32.mrb[0].mxu0
          %v5069 = vpop.f32.mrb[0].mxu0
          %v5070 = vadd.f32 0.0, %v5069
          %v5071 = vpop.f32.mrb[0].mxu0
          %5072 = vmatprep.mubr.bf16.mxu0 0
          %5073 = vmatmul.mubr.bf16.gmra.mrb[0].mxu0 %v4098
          %v5074 = vpop.f32.mrb[0].mxu0
          %v5075 = vadd.f32 0.0, %v5074
          %v5076 = vpop.f32.mrb[0].mxu0
          %v5077 = vpop.f32.mrb[0].mxu0
          %v5078 = vadd.f32 0.0, %v5077
          %v5079 = vpop.f32.mrb[0].mxu0
          %5080 = vmatprep.mubr.bf16.mxu0 0
          %5081 = vmatmul.mubr.bf16.gmra.mrb[0].mxu0 %v4101
          %v5082 = vpop.f32.mrb[0].mxu0
          %v5083 = vadd.f32 0.0, %v5082
          %v5084 = vpop.f32.mrb[0].mxu0
          %v5085 = vpop.f32.mrb[0].mxu0
          %v5086 = vadd.f32 0.0, %v5085
          %v5087 = vpop.f32.mrb[0].mxu0
          %5088 = vmatprep.mubr.bf16.mxu0 0
          %5089 = vmatmul.mubr.bf16.gmra.mrb[0].mxu0 %v4104
          %v5090 = vpop.f32.mrb[0].mxu0
          %v5091 = vadd.f32 0.0, %v5090
          %v5092 = vpop.f32.mrb[0].mxu0
          %v5093 = vpop.f32.mrb[0].mxu0
          %v5094 = vadd.f32 0.0, %v5093
          %v5095 = vpop.f32.mrb[0].mxu0
          %5096 = vmatprep.mubr.bf16.mxu0 0
          %5097 = vmatmul.mubr.bf16.gmra.mrb[0].mxu0 %v4107
          %v5098 = vpop.f32.mrb[0].mxu0
          %v5099 = vadd.f32 0.0, %v5098
          %v5100 = vpop.f32.mrb[0].mxu0
          %v5101 = vpop.f32.mrb[0].mxu0
          %v5102 = vadd.f32 0.0, %v5101
          %v5103 = vpop.f32.mrb[0].mxu0
          %5104 = vmatprep.mubr.bf16.mxu0 0
          %5105 = vmatmul.mubr.bf16.gmra.mrb[0].mxu0 %v4110
          %v5106 = vpop.f32.mrb[0].mxu0
          %v5107 = vadd.f32 0.0, %v5106
          %v5108 = vpop.f32.mrb[0].mxu0
          %v5109 = vpop.f32.mrb[0].mxu0
          %v5110 = vadd.f32 0.0, %v5109
          %v5111 = vpop.f32.mrb[0].mxu0
          %5112 = vmatprep.mubr.bf16.mxu0 0
          %5113 = vmatmul.mubr.bf16.gmra.mrb[0].mxu0 %v4113
          %v5114 = vpop.f32.mrb[0].mxu0
          %v5115 = vadd.f32 0.0, %v5114
          %v5116 = vpop.f32.mrb[0].mxu0
          %v5117 = vpop.f32.mrb[0].mxu0
          %v5118 = vadd.f32 0.0, %v5117
          %v5119 = vpop.f32.mrb[0].mxu0
          %5120 = vmatprep.mubr.bf16.mxu0 0
          %5121 = vmatmul.mubr.bf16.gmra.mrb[0].mxu0 %v4116
          %v5122 = vpop.f32.mrb[0].mxu0
          %v5123 = vadd.f32 0.0, %v5122
          %v5124 = vpop.f32.mrb[0].mxu0
          %v5125 = vpop.f32.mrb[0].mxu0
          %v5126 = vadd.f32 0.0, %v5125
          %v5127 = vpop.f32.mrb[0].mxu0
          %5128 = vmatprep.mubr.bf16.mxu0 0
          %5129 = vmatmul.mubr.bf16.gmra.mrb[0].mxu0 %v4119
          %v5130 = vpop.f32.mrb[0].mxu0
          %v5131 = vadd.f32 0.0, %v5130
          %v5132 = vpop.f32.mrb[0].mxu0
          %v5133 = vpop.f32.mrb[0].mxu0
          %v5134 = vadd.f32 0.0, %v5133
          %v5135 = vpop.f32.mrb[0].mxu0
          %5136 = vmatprep.mubr.bf16.mxu0 0
          %5137 = vmatmul.mubr.bf16.gmra.mrb[0].mxu0 %v4122
          %v5138 = vpop.f32.mrb[0].mxu0
          %v5139 = vadd.f32 0.0, %v5138
          %v5140 = vpop.f32.mrb[0].mxu0
          %v5141 = vpop.f32.mrb[0].mxu0
          %v5142 = vadd.f32 0.0, %v5141
          %v5143 = vpop.f32.mrb[0].mxu0
          %5144 = vmatprep.mubr.bf16.mxu0 0
          %5145 = vmatmul.mubr.bf16.gmra.mrb[0].mxu0 %v4125
          %v5146 = vpop.f32.mrb[0].mxu0
          %v5147 = vadd.f32 0.0, %v5146
          %v5148 = vpop.f32.mrb[0].mxu0
          %v5149 = vpop.f32.mrb[0].mxu0
          %v5150 = vadd.f32 0.0, %v5149
          %v5151 = vpop.f32.mrb[0].mxu0
          %5152 = vmatprep.mubr.bf16.mxu0 0
          %5153 = vmatmul.mubr.bf16.gmra.mrb[0].mxu0 %v4933
          %v5154 = vpop.f32.mrb[0].mxu0
          %v5155 = vadd.f32 0.0, %v5154
          %v5156 = vpop.f32.mrb[0].mxu0
          %v5157 = vpop.f32.mrb[0].mxu0
          %v5158 = vadd.f32 0.0, %v5157
          %v5159 = vpop.f32.mrb[0].mxu0
          %5160 = vdwg.mxu0
          %v5161 = vadd.f32 %v4897, %v5035
          %v5162 = vadd.f32 %v4898, %v5038
          %v5163 = vadd.f32 %v4899, %v5043
          %v5164 = vadd.f32 %v4900, %v5046
          %v5165 = vadd.f32 %v4901, %v5051
          %v5166 = vadd.f32 %v4902, %v5054
          %v5167 = vadd.f32 %v4903, %v5059
          %v5168 = vadd.f32 %v4904, %v5062
          %v5169 = vadd.f32 %v4905, %v5067
          %v5170 = vadd.f32 %v4906, %v5070
          %v5171 = vadd.f32 %v4907, %v5075
          %v5172 = vadd.f32 %v4908, %v5078
          %v5173 = vadd.f32 %v4909, %v5083
          %v5174 = vadd.f32 %v4910, %v5086
          %v5175 = vadd.f32 %v4911, %v5091
          %v5176 = vadd.f32 %v4912, %v5094
          %v5177 = vadd.f32 %v4913, %v5099
          %v5178 = vadd.f32 %v4914, %v5102
          %v5179 = vadd.f32 %v4915, %v5107
          %v5180 = vadd.f32 %v4916, %v5110
          %v5181 = vadd.f32 %v4917, %v5115
          %v5182 = vadd.f32 %v4918, %v5118
          %v5183 = vadd.f32 %v4919, %v5123
          %v5184 = vadd.f32 %v4920, %v5126
          %v5185 = vadd.f32 %v4921, %v5131
          %v5186 = vadd.f32 %v4922, %v5134
          %v5187 = vadd.f32 %v4923, %v5139
          %v5188 = vadd.f32 %v4924, %v5142
          %v5189 = vadd.f32 %v4925, %v5147
          %v5190 = vadd.f32 %v4926, %v5150
          %v5191 = vadd.f32 %v4927, %v5155
          %v5192 = vadd.f32 %v4928, %v5158
          %s5193 = scalar_lea.vmem %s2, 384
          %v5194 = vld [vmem:[%s5193] sm:$0xf]
          %v5195 = vld [vmem:[%s5193 + $0x4] sm:$0xf]
          %v5196 = vld [vmem:[%s5193 + $0x8] sm:$0xf]
          %v5197 = vld [vmem:[%s5193 + $0xc] sm:$0xf]
          %v5198 = vld [vmem:[%s5193 + $0x10] sm:$0xf]
          %v5199 = vld [vmem:[%s5193 + $0x14] sm:$0xf]
          %v5200 = vld [vmem:[%s5193 + $0x18] sm:$0xf]
          %v5201 = vld [vmem:[%s5193 + $0x1c] sm:$0xf]
          %v5202 = vld [vmem:[%s5193 + $0x20] sm:$0xf]
          %v5203 = vld [vmem:[%s5193 + $0x24] sm:$0xf]
          %v5204 = vld [vmem:[%s5193 + $0x28] sm:$0xf]
          %v5205 = vld [vmem:[%s5193 + $0x2c] sm:$0xf]
          %v5206 = vld [vmem:[%s5193 + $0x30] sm:$0xf]
          %v5207 = vld [vmem:[%s5193 + $0x34] sm:$0xf]
          %v5208 = vld [vmem:[%s5193 + $0x38] sm:$0xf]
          %v5209 = vld [vmem:[%s5193 + $0x3c] sm:$0xf]
          %v5226 = vunpack.c.l.b16 %v5194
          %v5227 = vunpack.c.l.b16 %v5195
          %v5228 = vunpack.c.l.b16 %v5196
          %v5229 = vunpack.c.l.b16 %v5197
          %v5230 = vunpack.c.l.b16 %v5198
          %v5231 = vunpack.c.l.b16 %v5199
          %v5232 = vunpack.c.l.b16 %v5200
          %v5233 = vunpack.c.l.b16 %v5201
          %v5234 = vunpack.c.l.b16 %v5202
          %v5235 = vunpack.c.l.b16 %v5203
          %v5236 = vunpack.c.l.b16 %v5204
          %v5237 = vunpack.c.l.b16 %v5205
          %v5238 = vunpack.c.l.b16 %v5206
          %v5239 = vunpack.c.l.b16 %v5207
          %v5240 = vunpack.c.l.b16 %v5208
          %v5241 = vunpack.c.l.b16 %v5209
          %v5242 = vpack.c.b16 %v5227, %v5226
          %v5243 = vpack.c.b16 %v5229, %v5228
          %v5244 = vpack.c.b16 %v5231, %v5230
          %v5245 = vpack.c.b16 %v5233, %v5232
          %v5246 = vpack.c.b16 %v5235, %v5234
          %v5247 = vpack.c.b16 %v5237, %v5236
          %v5248 = vpack.c.b16 %v5239, %v5238
          %v5249 = vpack.c.b16 %v5241, %v5240
          %5258 = vmatprep.subr.bf16.mxu0 0
          %5259 = vmatpush1.bf16.msra.mxu0 %v5242
          %5260 = vmatprep.subr.bf16.mxu0 0
          %5261 = vmatpush1.bf16.msra.mxu0 %v5243
          %5262 = vmatprep.subr.bf16.mxu0 0
          %5263 = vmatpush1.bf16.msra.mxu0 %v5244
          %5264 = vmatprep.subr.bf16.mxu0 0
          %5265 = vmatpush1.bf16.msra.mxu0 %v5245
          %5266 = vmatprep.subr.bf16.mxu0 0
          %5267 = vmatpush1.bf16.msra.mxu0 %v5246
          %5268 = vmatprep.subr.bf16.mxu0 0
          %5269 = vmatpush1.bf16.msra.mxu0 %v5247
          %5270 = vmatprep.subr.bf16.mxu0 0
          %5271 = vmatpush1.bf16.msra.mxu0 %v5248
          %5272 = vmatprep.subr.bf16.mxu0 0
          %5273 = vmatpush1.bf16.msra.mxu0 %v5249
          %5274 = vmatprep.subr.bf16.mxu0 0
          %5275 = vmatpush1.bf16.msra.mxu0 0
          %5276 = vmatprep.subr.bf16.mxu0 0
          %5277 = vmatpush1.bf16.msra.mxu0 0
          %5278 = vmatprep.subr.bf16.mxu0 0
          %5279 = vmatpush1.bf16.msra.mxu0 0
          %5280 = vmatprep.subr.bf16.mxu0 0
          %5281 = vmatpush1.bf16.msra.mxu0 0
          %5282 = vmatprep.subr.bf16.mxu0 0
          %5283 = vmatpush1.bf16.msra.mxu0 0
          %5284 = vmatprep.subr.bf16.mxu0 0
          %5285 = vmatpush1.bf16.msra.mxu0 0
          %5286 = vmatprep.subr.bf16.mxu0 0
          %5287 = vmatpush1.bf16.msra.mxu0 0
          %5288 = vmatprep.subr.bf16.mxu0 0
          %5289 = vmatpush1.bf16.msra.mxu0 0
          %5290 = vmatprep.mubr.bf16.mxu0 0
          %5291 = vmatmul.mubr.bf16.gmra.mrb[0].mxu0 %v3355
          %v5292 = vpop.f32.mrb[0].mxu0
          %v5293 = vadd.f32 0.0, %v5292
          %v5294 = vpop.f32.mrb[0].mxu0
          %v5295 = vpop.f32.mrb[0].mxu0
          %v5296 = vadd.f32 0.0, %v5295
          %v5297 = vpop.f32.mrb[0].mxu0
          %5298 = vmatprep.mubr.bf16.mxu0 0
          %5299 = vmatmul.mubr.bf16.gmra.mrb[0].mxu0 %v3357
          %v5300 = vpop.f32.mrb[0].mxu0
          %v5301 = vadd.f32 0.0, %v5300
          %v5302 = vpop.f32.mrb[0].mxu0
          %v5303 = vpop.f32.mrb[0].mxu0
          %v5304 = vadd.f32 0.0, %v5303
          %v5305 = vpop.f32.mrb[0].mxu0
          %5306 = vmatprep.mubr.bf16.mxu0 0
          %5307 = vmatmul.mubr.bf16.gmra.mrb[0].mxu0 %v3359
          %v5308 = vpop.f32.mrb[0].mxu0
          %v5309 = vadd.f32 0.0, %v5308
          %v5310 = vpop.f32.mrb[0].mxu0
          %v5311 = vpop.f32.mrb[0].mxu0
          %v5312 = vadd.f32 0.0, %v5311
          %v5313 = vpop.f32.mrb[0].mxu0
          %5314 = vmatprep.mubr.bf16.mxu0 0
          %5315 = vmatmul.mubr.bf16.gmra.mrb[0].mxu0 %v3361
          %v5316 = vpop.f32.mrb[0].mxu0
          %v5317 = vadd.f32 0.0, %v5316
          %v5318 = vpop.f32.mrb[0].mxu0
          %v5319 = vpop.f32.mrb[0].mxu0
          %v5320 = vadd.f32 0.0, %v5319
          %v5321 = vpop.f32.mrb[0].mxu0
          %5322 = vmatprep.mubr.bf16.mxu0 0
          %5323 = vmatmul.mubr.bf16.gmra.mrb[0].mxu0 %v3363
          %v5324 = vpop.f32.mrb[0].mxu0
          %v5325 = vadd.f32 0.0, %v5324
          %v5326 = vpop.f32.mrb[0].mxu0
          %v5327 = vpop.f32.mrb[0].mxu0
          %v5328 = vadd.f32 0.0, %v5327
          %v5329 = vpop.f32.mrb[0].mxu0
          %5330 = vmatprep.mubr.bf16.mxu0 0
          %5331 = vmatmul.mubr.bf16.gmra.mrb[0].mxu0 %v3365
          %v5332 = vpop.f32.mrb[0].mxu0
          %v5333 = vadd.f32 0.0, %v5332
          %v5334 = vpop.f32.mrb[0].mxu0
          %v5335 = vpop.f32.mrb[0].mxu0
          %v5336 = vadd.f32 0.0, %v5335
          %v5337 = vpop.f32.mrb[0].mxu0
          %5338 = vmatprep.mubr.bf16.mxu0 0
          %5339 = vmatmul.mubr.bf16.gmra.mrb[0].mxu0 %v3367
          %v5340 = vpop.f32.mrb[0].mxu0
          %v5341 = vadd.f32 0.0, %v5340
          %v5342 = vpop.f32.mrb[0].mxu0
          %v5343 = vpop.f32.mrb[0].mxu0
          %v5344 = vadd.f32 0.0, %v5343
          %v5345 = vpop.f32.mrb[0].mxu0
          %5346 = vmatprep.mubr.bf16.mxu0 0
          %5347 = vmatmul.mubr.bf16.gmra.mrb[0].mxu0 %v3369
          %v5348 = vpop.f32.mrb[0].mxu0
          %v5349 = vadd.f32 0.0, %v5348
          %v5350 = vpop.f32.mrb[0].mxu0
          %v5351 = vpop.f32.mrb[0].mxu0
          %v5352 = vadd.f32 0.0, %v5351
          %v5353 = vpop.f32.mrb[0].mxu0
          %5354 = vmatprep.mubr.bf16.mxu0 0
          %5355 = vmatmul.mubr.bf16.gmra.mrb[0].mxu0 %v3371
          %v5356 = vpop.f32.mrb[0].mxu0
          %v5357 = vadd.f32 0.0, %v5356
          %v5358 = vpop.f32.mrb[0].mxu0
          %v5359 = vpop.f32.mrb[0].mxu0
          %v5360 = vadd.f32 0.0, %v5359
          %v5361 = vpop.f32.mrb[0].mxu0
          %5362 = vmatprep.mubr.bf16.mxu0 0
          %5363 = vmatmul.mubr.bf16.gmra.mrb[0].mxu0 %v3373
          %v5364 = vpop.f32.mrb[0].mxu0
          %v5365 = vadd.f32 0.0, %v5364
          %v5366 = vpop.f32.mrb[0].mxu0
          %v5367 = vpop.f32.mrb[0].mxu0
          %v5368 = vadd.f32 0.0, %v5367
          %v5369 = vpop.f32.mrb[0].mxu0
          %5370 = vmatprep.mubr.bf16.mxu0 0
          %5371 = vmatmul.mubr.bf16.gmra.mrb[0].mxu0 %v3375
          %v5372 = vpop.f32.mrb[0].mxu0
          %v5373 = vadd.f32 0.0, %v5372
          %v5374 = vpop.f32.mrb[0].mxu0
          %v5375 = vpop.f32.mrb[0].mxu0
          %v5376 = vadd.f32 0.0, %v5375
          %v5377 = vpop.f32.mrb[0].mxu0
          %5378 = vmatprep.mubr.bf16.mxu0 0
          %5379 = vmatmul.mubr.bf16.gmra.mrb[0].mxu0 %v3377
          %v5380 = vpop.f32.mrb[0].mxu0
          %v5381 = vadd.f32 0.0, %v5380
          %v5382 = vpop.f32.mrb[0].mxu0
          %v5383 = vpop.f32.mrb[0].mxu0
          %v5384 = vadd.f32 0.0, %v5383
          %v5385 = vpop.f32.mrb[0].mxu0
          %5386 = vmatprep.mubr.bf16.mxu0 0
          %5387 = vmatmul.mubr.bf16.gmra.mrb[0].mxu0 %v3379
          %v5388 = vpop.f32.mrb[0].mxu0
          %v5389 = vadd.f32 0.0, %v5388
          %v5390 = vpop.f32.mrb[0].mxu0
          %v5391 = vpop.f32.mrb[0].mxu0
          %v5392 = vadd.f32 0.0, %v5391
          %v5393 = vpop.f32.mrb[0].mxu0
          %5394 = vmatprep.mubr.bf16.mxu0 0
          %5395 = vmatmul.mubr.bf16.gmra.mrb[0].mxu0 %v3381
          %v5396 = vpop.f32.mrb[0].mxu0
          %v5397 = vadd.f32 0.0, %v5396
          %v5398 = vpop.f32.mrb[0].mxu0
          %v5399 = vpop.f32.mrb[0].mxu0
          %v5400 = vadd.f32 0.0, %v5399
          %v5401 = vpop.f32.mrb[0].mxu0
          %5402 = vmatprep.mubr.bf16.mxu0 0
          %5403 = vmatmul.mubr.bf16.gmra.mrb[0].mxu0 %v3383
          %v5404 = vpop.f32.mrb[0].mxu0
          %v5405 = vadd.f32 0.0, %v5404
          %v5406 = vpop.f32.mrb[0].mxu0
          %v5407 = vpop.f32.mrb[0].mxu0
          %v5408 = vadd.f32 0.0, %v5407
          %v5409 = vpop.f32.mrb[0].mxu0
          %5410 = vmatprep.mubr.bf16.mxu0 0
          %5411 = vmatmul.mubr.bf16.gmra.mrb[0].mxu0 %v3385
          %v5412 = vpop.f32.mrb[0].mxu0
          %v5413 = vadd.f32 0.0, %v5412
          %v5414 = vpop.f32.mrb[0].mxu0
          %v5415 = vpop.f32.mrb[0].mxu0
          %v5416 = vadd.f32 0.0, %v5415
          %v5417 = vpop.f32.mrb[0].mxu0
          %5418 = vdwg.mxu0
          %v5419 = vadd.f32 %v5161, %v5293
          %v5420 = vadd.f32 %v5162, %v5296
          %v5421 = vadd.f32 %v5163, %v5301
          %v5422 = vadd.f32 %v5164, %v5304
          %v5423 = vadd.f32 %v5165, %v5309
          %v5424 = vadd.f32 %v5166, %v5312
          %v5425 = vadd.f32 %v5167, %v5317
          %v5426 = vadd.f32 %v5168, %v5320
          %v5427 = vadd.f32 %v5169, %v5325
          %v5428 = vadd.f32 %v5170, %v5328
          %v5429 = vadd.f32 %v5171, %v5333
          %v5430 = vadd.f32 %v5172, %v5336
          %v5431 = vadd.f32 %v5173, %v5341
          %v5432 = vadd.f32 %v5174, %v5344
          %v5433 = vadd.f32 %v5175, %v5349
          %v5434 = vadd.f32 %v5176, %v5352
          %v5435 = vadd.f32 %v5177, %v5357
          %v5436 = vadd.f32 %v5178, %v5360
          %v5437 = vadd.f32 %v5179, %v5365
          %v5438 = vadd.f32 %v5180, %v5368
          %v5439 = vadd.f32 %v5181, %v5373
          %v5440 = vadd.f32 %v5182, %v5376
          %v5441 = vadd.f32 %v5183, %v5381
          %v5442 = vadd.f32 %v5184, %v5384
          %v5443 = vadd.f32 %v5185, %v5389
          %v5444 = vadd.f32 %v5186, %v5392
          %v5445 = vadd.f32 %v5187, %v5397
          %v5446 = vadd.f32 %v5188, %v5400
          %v5447 = vadd.f32 %v5189, %v5405
          %v5448 = vadd.f32 %v5190, %v5408
          %v5449 = vadd.f32 %v5191, %v5413
          %v5450 = vadd.f32 %v5192, %v5416
          %v5452 = vshrl.u32 %v3385, 16
          %v5454 = vshll.u32 %v3385, 16
          %v5456 = vrot.slane %v5454, 1
          %v5457 = vor.u32 %v5452, %v5456
          %v5459 = vshll.u32 %v3386, 16
          %v5461 = vrot.slane %v5459, 1
          %v5462 = vsel %vm376, %v5457, %v5461
          %s5464 = scalar_lea.vmem %s2, 448
          %v5465 = vld [vmem:[%s5464] sm:$0xf]
          %v5466 = vld [vmem:[%s5464 + $0x4] sm:$0xf]
          %v5467 = vld [vmem:[%s5464 + $0x8] sm:$0xf]
          %v5468 = vld [vmem:[%s5464 + $0xc] sm:$0xf]
          %v5469 = vld [vmem:[%s5464 + $0x10] sm:$0xf]
          %v5470 = vld [vmem:[%s5464 + $0x14] sm:$0xf]
          %v5471 = vld [vmem:[%s5464 + $0x18] sm:$0xf]
          %v5472 = vld [vmem:[%s5464 + $0x1c] sm:$0xf]
          %v5473 = vld [vmem:[%s5464 + $0x20] sm:$0xf]
          %v5474 = vld [vmem:[%s5464 + $0x24] sm:$0xf]
          %v5475 = vld [vmem:[%s5464 + $0x28] sm:$0xf]
          %v5476 = vld [vmem:[%s5464 + $0x2c] sm:$0xf]
          %v5477 = vld [vmem:[%s5464 + $0x30] sm:$0xf]
          %v5478 = vld [vmem:[%s5464 + $0x34] sm:$0xf]
          %v5479 = vld [vmem:[%s5464 + $0x38] sm:$0xf]
          %v5480 = vld [vmem:[%s5464 + $0x3c] sm:$0xf]
          %v5497 = vunpack.c.l.b16 %v5465
          %v5498 = vunpack.c.l.b16 %v5466
          %v5499 = vunpack.c.l.b16 %v5467
          %v5500 = vunpack.c.l.b16 %v5468
          %v5501 = vunpack.c.l.b16 %v5469
          %v5502 = vunpack.c.l.b16 %v5470
          %v5503 = vunpack.c.l.b16 %v5471
          %v5504 = vunpack.c.l.b16 %v5472
          %v5505 = vunpack.c.l.b16 %v5473
          %v5506 = vunpack.c.l.b16 %v5474
          %v5507 = vunpack.c.l.b16 %v5475
          %v5508 = vunpack.c.l.b16 %v5476
          %v5509 = vunpack.c.l.b16 %v5477
          %v5510 = vunpack.c.l.b16 %v5478
          %v5511 = vunpack.c.l.b16 %v5479
          %v5512 = vunpack.c.l.b16 %v5480
          %v5513 = vpack.c.b16 %v5498, %v5497
          %v5514 = vpack.c.b16 %v5500, %v5499
          %v5515 = vpack.c.b16 %v5502, %v5501
          %v5516 = vpack.c.b16 %v5504, %v5503
          %v5517 = vpack.c.b16 %v5506, %v5505
          %v5518 = vpack.c.b16 %v5508, %v5507
          %v5519 = vpack.c.b16 %v5510, %v5509
          %v5520 = vpack.c.b16 %v5512, %v5511
          %5529 = vmatprep.subr.bf16.mxu0 0
          %5530 = vmatpush1.bf16.msra.mxu0 %v5513
          %5531 = vmatprep.subr.bf16.mxu0 0
          %5532 = vmatpush1.bf16.msra.mxu0 %v5514
          %5533 = vmatprep.subr.bf16.mxu0 0
          %5534 = vmatpush1.bf16.msra.mxu0 %v5515
          %5535 = vmatprep.subr.bf16.mxu0 0
          %5536 = vmatpush1.bf16.msra.mxu0 %v5516
          %5537 = vmatprep.subr.bf16.mxu0 0
          %5538 = vmatpush1.bf16.msra.mxu0 %v5517
          %5539 = vmatprep.subr.bf16.mxu0 0
          %5540 = vmatpush1.bf16.msra.mxu0 %v5518
          %5541 = vmatprep.subr.bf16.mxu0 0
          %5542 = vmatpush1.bf16.msra.mxu0 %v5519
          %5543 = vmatprep.subr.bf16.mxu0 0
          %5544 = vmatpush1.bf16.msra.mxu0 %v5520
          %5545 = vmatprep.subr.bf16.mxu0 0
          %5546 = vmatpush1.bf16.msra.mxu0 0
          %5547 = vmatprep.subr.bf16.mxu0 0
          %5548 = vmatpush1.bf16.msra.mxu0 0
          %5549 = vmatprep.subr.bf16.mxu0 0
          %5550 = vmatpush1.bf16.msra.mxu0 0
          %5551 = vmatprep.subr.bf16.mxu0 0
          %5552 = vmatpush1.bf16.msra.mxu0 0
          %5553 = vmatprep.subr.bf16.mxu0 0
          %5554 = vmatpush1.bf16.msra.mxu0 0
          %5555 = vmatprep.subr.bf16.mxu0 0
          %5556 = vmatpush1.bf16.msra.mxu0 0
          %5557 = vmatprep.subr.bf16.mxu0 0
          %5558 = vmatpush1.bf16.msra.mxu0 0
          %5559 = vmatprep.subr.bf16.mxu0 0
          %5560 = vmatpush1.bf16.msra.mxu0 0
          %5561 = vmatprep.mubr.bf16.mxu0 0
          %5562 = vmatmul.mubr.bf16.gmra.mrb[0].mxu0 %v3438
          %v5563 = vpop.f32.mrb[0].mxu0
          %v5564 = vadd.f32 0.0, %v5563
          %v5565 = vpop.f32.mrb[0].mxu0
          %v5566 = vpop.f32.mrb[0].mxu0
          %v5567 = vadd.f32 0.0, %v5566
          %v5568 = vpop.f32.mrb[0].mxu0
          %5569 = vmatprep.mubr.bf16.mxu0 0
          %5570 = vmatmul.mubr.bf16.gmra.mrb[0].mxu0 %v3450
          %v5571 = vpop.f32.mrb[0].mxu0
          %v5572 = vadd.f32 0.0, %v5571
          %v5573 = vpop.f32.mrb[0].mxu0
          %v5574 = vpop.f32.mrb[0].mxu0
          %v5575 = vadd.f32 0.0, %v5574
          %v5576 = vpop.f32.mrb[0].mxu0
          %5577 = vmatprep.mubr.bf16.mxu0 0
          %5578 = vmatmul.mubr.bf16.gmra.mrb[0].mxu0 %v3462
          %v5579 = vpop.f32.mrb[0].mxu0
          %v5580 = vadd.f32 0.0, %v5579
          %v5581 = vpop.f32.mrb[0].mxu0
          %v5582 = vpop.f32.mrb[0].mxu0
          %v5583 = vadd.f32 0.0, %v5582
          %v5584 = vpop.f32.mrb[0].mxu0
          %5585 = vmatprep.mubr.bf16.mxu0 0
          %5586 = vmatmul.mubr.bf16.gmra.mrb[0].mxu0 %v3474
          %v5587 = vpop.f32.mrb[0].mxu0
          %v5588 = vadd.f32 0.0, %v5587
          %v5589 = vpop.f32.mrb[0].mxu0
          %v5590 = vpop.f32.mrb[0].mxu0
          %v5591 = vadd.f32 0.0, %v5590
          %v5592 = vpop.f32.mrb[0].mxu0
          %5593 = vmatprep.mubr.bf16.mxu0 0
          %5594 = vmatmul.mubr.bf16.gmra.mrb[0].mxu0 %v3486
          %v5595 = vpop.f32.mrb[0].mxu0
          %v5596 = vadd.f32 0.0, %v5595
          %v5597 = vpop.f32.mrb[0].mxu0
          %v5598 = vpop.f32.mrb[0].mxu0
          %v5599 = vadd.f32 0.0, %v5598
          %v5600 = vpop.f32.mrb[0].mxu0
          %5601 = vmatprep.mubr.bf16.mxu0 0
          %5602 = vmatmul.mubr.bf16.gmra.mrb[0].mxu0 %v3498
          %v5603 = vpop.f32.mrb[0].mxu0
          %v5604 = vadd.f32 0.0, %v5603
          %v5605 = vpop.f32.mrb[0].mxu0
          %v5606 = vpop.f32.mrb[0].mxu0
          %v5607 = vadd.f32 0.0, %v5606
          %v5608 = vpop.f32.mrb[0].mxu0
          %5609 = vmatprep.mubr.bf16.mxu0 0
          %5610 = vmatmul.mubr.bf16.gmra.mrb[0].mxu0 %v3510
          %v5611 = vpop.f32.mrb[0].mxu0
          %v5612 = vadd.f32 0.0, %v5611
          %v5613 = vpop.f32.mrb[0].mxu0
          %v5614 = vpop.f32.mrb[0].mxu0
          %v5615 = vadd.f32 0.0, %v5614
          %v5616 = vpop.f32.mrb[0].mxu0
          %5617 = vmatprep.mubr.bf16.mxu0 0
          %5618 = vmatmul.mubr.bf16.gmra.mrb[0].mxu0 %v3522
          %v5619 = vpop.f32.mrb[0].mxu0
          %v5620 = vadd.f32 0.0, %v5619
          %v5621 = vpop.f32.mrb[0].mxu0
          %v5622 = vpop.f32.mrb[0].mxu0
          %v5623 = vadd.f32 0.0, %v5622
          %v5624 = vpop.f32.mrb[0].mxu0
          %5625 = vmatprep.mubr.bf16.mxu0 0
          %5626 = vmatmul.mubr.bf16.gmra.mrb[0].mxu0 %v3534
          %v5627 = vpop.f32.mrb[0].mxu0
          %v5628 = vadd.f32 0.0, %v5627
          %v5629 = vpop.f32.mrb[0].mxu0
          %v5630 = vpop.f32.mrb[0].mxu0
          %v5631 = vadd.f32 0.0, %v5630
          %v5632 = vpop.f32.mrb[0].mxu0
          %5633 = vmatprep.mubr.bf16.mxu0 0
          %5634 = vmatmul.mubr.bf16.gmra.mrb[0].mxu0 %v3546
          %v5635 = vpop.f32.mrb[0].mxu0
          %v5636 = vadd.f32 0.0, %v5635
          %v5637 = vpop.f32.mrb[0].mxu0
          %v5638 = vpop.f32.mrb[0].mxu0
          %v5639 = vadd.f32 0.0, %v5638
          %v5640 = vpop.f32.mrb[0].mxu0
          %5641 = vmatprep.mubr.bf16.mxu0 0
          %5642 = vmatmul.mubr.bf16.gmra.mrb[0].mxu0 %v3558
          %v5643 = vpop.f32.mrb[0].mxu0
          %v5644 = vadd.f32 0.0, %v5643
          %v5645 = vpop.f32.mrb[0].mxu0
          %v5646 = vpop.f32.mrb[0].mxu0
          %v5647 = vadd.f32 0.0, %v5646
          %v5648 = vpop.f32.mrb[0].mxu0
          %5649 = vmatprep.mubr.bf16.mxu0 0
          %5650 = vmatmul.mubr.bf16.gmra.mrb[0].mxu0 %v3570
          %v5651 = vpop.f32.mrb[0].mxu0
          %v5652 = vadd.f32 0.0, %v5651
          %v5653 = vpop.f32.mrb[0].mxu0
          %v5654 = vpop.f32.mrb[0].mxu0
          %v5655 = vadd.f32 0.0, %v5654
          %v5656 = vpop.f32.mrb[0].mxu0
          %5657 = vmatprep.mubr.bf16.mxu0 0
          %5658 = vmatmul.mubr.bf16.gmra.mrb[0].mxu0 %v3582
          %v5659 = vpop.f32.mrb[0].mxu0
          %v5660 = vadd.f32 0.0, %v5659
          %v5661 = vpop.f32.mrb[0].mxu0
          %v5662 = vpop.f32.mrb[0].mxu0
          %v5663 = vadd.f32 0.0, %v5662
          %v5664 = vpop.f32.mrb[0].mxu0
          %5665 = vmatprep.mubr.bf16.mxu0 0
          %5666 = vmatmul.mubr.bf16.gmra.mrb[0].mxu0 %v3594
          %v5667 = vpop.f32.mrb[0].mxu0
          %v5668 = vadd.f32 0.0, %v5667
          %v5669 = vpop.f32.mrb[0].mxu0
          %v5670 = vpop.f32.mrb[0].mxu0
          %v5671 = vadd.f32 0.0, %v5670
          %v5672 = vpop.f32.mrb[0].mxu0
          %5673 = vmatprep.mubr.bf16.mxu0 0
          %5674 = vmatmul.mubr.bf16.gmra.mrb[0].mxu0 %v4669
          %v5675 = vpop.f32.mrb[0].mxu0
          %v5676 = vadd.f32 0.0, %v5675
          %v5677 = vpop.f32.mrb[0].mxu0
          %v5678 = vpop.f32.mrb[0].mxu0
          %v5679 = vadd.f32 0.0, %v5678
          %v5680 = vpop.f32.mrb[0].mxu0
          %5681 = vmatprep.mubr.bf16.mxu0 0
          %5682 = vmatmul.mubr.bf16.gmra.mrb[0].mxu0 %v5462
          %v5683 = vpop.f32.mrb[0].mxu0
          %v5684 = vadd.f32 0.0, %v5683
          %v5685 = vpop.f32.mrb[0].mxu0
          %v5686 = vpop.f32.mrb[0].mxu0
          %v5687 = vadd.f32 0.0, %v5686
          %v5688 = vpop.f32.mrb[0].mxu0
          %5689 = vdwg.mxu0
          %v5690 = vadd.f32 %v5419, %v5564
          %v5691 = vadd.f32 %v5420, %v5567
          %v5692 = vadd.f32 %v5421, %v5572
          %v5693 = vadd.f32 %v5422, %v5575
          %v5694 = vadd.f32 %v5423, %v5580
          %v5695 = vadd.f32 %v5424, %v5583
          %v5696 = vadd.f32 %v5425, %v5588
          %v5697 = vadd.f32 %v5426, %v5591
          %v5698 = vadd.f32 %v5427, %v5596
          %v5699 = vadd.f32 %v5428, %v5599
          %v5700 = vadd.f32 %v5429, %v5604
          %v5701 = vadd.f32 %v5430, %v5607
          %v5702 = vadd.f32 %v5431, %v5612
          %v5703 = vadd.f32 %v5432, %v5615
          %v5704 = vadd.f32 %v5433, %v5620
          %v5705 = vadd.f32 %v5434, %v5623
          %v5706 = vadd.f32 %v5435, %v5628
          %v5707 = vadd.f32 %v5436, %v5631
          %v5708 = vadd.f32 %v5437, %v5636
          %v5709 = vadd.f32 %v5438, %v5639
          %v5710 = vadd.f32 %v5439, %v5644
          %v5711 = vadd.f32 %v5440, %v5647
          %v5712 = vadd.f32 %v5441, %v5652
          %v5713 = vadd.f32 %v5442, %v5655
          %v5714 = vadd.f32 %v5443, %v5660
          %v5715 = vadd.f32 %v5444, %v5663
          %v5716 = vadd.f32 %v5445, %v5668
          %v5717 = vadd.f32 %v5446, %v5671
          %v5718 = vadd.f32 %v5447, %v5676
          %v5719 = vadd.f32 %v5448, %v5679
          %v5720 = vadd.f32 %v5449, %v5684
          %v5721 = vadd.f32 %v5450, %v5687
          %v5724 = vrot.slane %v3385, 1
          %v5725 = vrot.slane %v3386, 1
          %v5726 = vsel %vm1052, %v5724, %v5725
          %s5728 = scalar_lea.vmem %s2, 512
          %v5729 = vld [vmem:[%s5728] sm:$0xf]
          %v5730 = vld [vmem:[%s5728 + $0x4] sm:$0xf]
          %v5731 = vld [vmem:[%s5728 + $0x8] sm:$0xf]
          %v5732 = vld [vmem:[%s5728 + $0xc] sm:$0xf]
          %v5733 = vld [vmem:[%s5728 + $0x10] sm:$0xf]
          %v5734 = vld [vmem:[%s5728 + $0x14] sm:$0xf]
          %v5735 = vld [vmem:[%s5728 + $0x18] sm:$0xf]
          %v5736 = vld [vmem:[%s5728 + $0x1c] sm:$0xf]
          %v5737 = vld [vmem:[%s5728 + $0x20] sm:$0xf]
          %v5738 = vld [vmem:[%s5728 + $0x24] sm:$0xf]
          %v5739 = vld [vmem:[%s5728 + $0x28] sm:$0xf]
          %v5740 = vld [vmem:[%s5728 + $0x2c] sm:$0xf]
          %v5741 = vld [vmem:[%s5728 + $0x30] sm:$0xf]
          %v5742 = vld [vmem:[%s5728 + $0x34] sm:$0xf]
          %v5743 = vld [vmem:[%s5728 + $0x38] sm:$0xf]
          %v5744 = vld [vmem:[%s5728 + $0x3c] sm:$0xf]
          %v5761 = vunpack.c.l.b16 %v5729
          %v5762 = vunpack.c.l.b16 %v5730
          %v5763 = vunpack.c.l.b16 %v5731
          %v5764 = vunpack.c.l.b16 %v5732
          %v5765 = vunpack.c.l.b16 %v5733
          %v5766 = vunpack.c.l.b16 %v5734
          %v5767 = vunpack.c.l.b16 %v5735
          %v5768 = vunpack.c.l.b16 %v5736
          %v5769 = vunpack.c.l.b16 %v5737
          %v5770 = vunpack.c.l.b16 %v5738
          %v5771 = vunpack.c.l.b16 %v5739
          %v5772 = vunpack.c.l.b16 %v5740
          %v5773 = vunpack.c.l.b16 %v5741
          %v5774 = vunpack.c.l.b16 %v5742
          %v5775 = vunpack.c.l.b16 %v5743
          %v5776 = vunpack.c.l.b16 %v5744
          %v5777 = vpack.c.b16 %v5762, %v5761
          %v5778 = vpack.c.b16 %v5764, %v5763
          %v5779 = vpack.c.b16 %v5766, %v5765
          %v5780 = vpack.c.b16 %v5768, %v5767
          %v5781 = vpack.c.b16 %v5770, %v5769
          %v5782 = vpack.c.b16 %v5772, %v5771
          %v5783 = vpack.c.b16 %v5774, %v5773
          %v5784 = vpack.c.b16 %v5776, %v5775
          %5793 = vmatprep.subr.bf16.mxu0 0
          %5794 = vmatpush1.bf16.msra.mxu0 %v5777
          %5795 = vmatprep.subr.bf16.mxu0 0
          %5796 = vmatpush1.bf16.msra.mxu0 %v5778
          %5797 = vmatprep.subr.bf16.mxu0 0
          %5798 = vmatpush1.bf16.msra.mxu0 %v5779
          %5799 = vmatprep.subr.bf16.mxu0 0
          %5800 = vmatpush1.bf16.msra.mxu0 %v5780
          %5801 = vmatprep.subr.bf16.mxu0 0
          %5802 = vmatpush1.bf16.msra.mxu0 %v5781
          %5803 = vmatprep.subr.bf16.mxu0 0
          %5804 = vmatpush1.bf16.msra.mxu0 %v5782
          %5805 = vmatprep.subr.bf16.mxu0 0
          %5806 = vmatpush1.bf16.msra.mxu0 %v5783
          %5807 = vmatprep.subr.bf16.mxu0 0
          %5808 = vmatpush1.bf16.msra.mxu0 %v5784
          %5809 = vmatprep.subr.bf16.mxu0 0
          %5810 = vmatpush1.bf16.msra.mxu0 0
          %5811 = vmatprep.subr.bf16.mxu0 0
          %5812 = vmatpush1.bf16.msra.mxu0 0
          %5813 = vmatprep.subr.bf16.mxu0 0
          %5814 = vmatpush1.bf16.msra.mxu0 0
          %5815 = vmatprep.subr.bf16.mxu0 0
          %5816 = vmatpush1.bf16.msra.mxu0 0
          %5817 = vmatprep.subr.bf16.mxu0 0
          %5818 = vmatpush1.bf16.msra.mxu0 0
          %5819 = vmatprep.subr.bf16.mxu0 0
          %5820 = vmatpush1.bf16.msra.mxu0 0
          %5821 = vmatprep.subr.bf16.mxu0 0
          %5822 = vmatpush1.bf16.msra.mxu0 0
          %5823 = vmatprep.subr.bf16.mxu0 0
          %5824 = vmatpush1.bf16.msra.mxu0 0
          %5825 = vmatprep.mubr.bf16.mxu0 0
          %5826 = vmatmul.mubr.bf16.gmra.mrb[0].mxu0 %v4086
          %v5827 = vpop.f32.mrb[0].mxu0
          %v5828 = vadd.f32 0.0, %v5827
          %v5829 = vpop.f32.mrb[0].mxu0
          %v5830 = vpop.f32.mrb[0].mxu0
          %v5831 = vadd.f32 0.0, %v5830
          %v5832 = vpop.f32.mrb[0].mxu0
          %5833 = vmatprep.mubr.bf16.mxu0 0
          %5834 = vmatmul.mubr.bf16.gmra.mrb[0].mxu0 %v4089
          %v5835 = vpop.f32.mrb[0].mxu0
          %v5836 = vadd.f32 0.0, %v5835
          %v5837 = vpop.f32.mrb[0].mxu0
          %v5838 = vpop.f32.mrb[0].mxu0
          %v5839 = vadd.f32 0.0, %v5838
          %v5840 = vpop.f32.mrb[0].mxu0
          %5841 = vmatprep.mubr.bf16.mxu0 0
          %5842 = vmatmul.mubr.bf16.gmra.mrb[0].mxu0 %v4092
          %v5843 = vpop.f32.mrb[0].mxu0
          %v5844 = vadd.f32 0.0, %v5843
          %v5845 = vpop.f32.mrb[0].mxu0
          %v5846 = vpop.f32.mrb[0].mxu0
          %v5847 = vadd.f32 0.0, %v5846
          %v5848 = vpop.f32.mrb[0].mxu0
          %5849 = vmatprep.mubr.bf16.mxu0 0
          %5850 = vmatmul.mubr.bf16.gmra.mrb[0].mxu0 %v4095
          %v5851 = vpop.f32.mrb[0].mxu0
          %v5852 = vadd.f32 0.0, %v5851
          %v5853 = vpop.f32.mrb[0].mxu0
          %v5854 = vpop.f32.mrb[0].mxu0
          %v5855 = vadd.f32 0.0, %v5854
          %v5856 = vpop.f32.mrb[0].mxu0
          %5857 = vmatprep.mubr.bf16.mxu0 0
          %5858 = vmatmul.mubr.bf16.gmra.mrb[0].mxu0 %v4098
          %v5859 = vpop.f32.mrb[0].mxu0
          %v5860 = vadd.f32 0.0, %v5859
          %v5861 = vpop.f32.mrb[0].mxu0
          %v5862 = vpop.f32.mrb[0].mxu0
          %v5863 = vadd.f32 0.0, %v5862
          %v5864 = vpop.f32.mrb[0].mxu0
          %5865 = vmatprep.mubr.bf16.mxu0 0
          %5866 = vmatmul.mubr.bf16.gmra.mrb[0].mxu0 %v4101
          %v5867 = vpop.f32.mrb[0].mxu0
          %v5868 = vadd.f32 0.0, %v5867
          %v5869 = vpop.f32.mrb[0].mxu0
          %v5870 = vpop.f32.mrb[0].mxu0
          %v5871 = vadd.f32 0.0, %v5870
          %v5872 = vpop.f32.mrb[0].mxu0
          %5873 = vmatprep.mubr.bf16.mxu0 0
          %5874 = vmatmul.mubr.bf16.gmra.mrb[0].mxu0 %v4104
          %v5875 = vpop.f32.mrb[0].mxu0
          %v5876 = vadd.f32 0.0, %v5875
          %v5877 = vpop.f32.mrb[0].mxu0
          %v5878 = vpop.f32.mrb[0].mxu0
          %v5879 = vadd.f32 0.0, %v5878
          %v5880 = vpop.f32.mrb[0].mxu0
          %5881 = vmatprep.mubr.bf16.mxu0 0
          %5882 = vmatmul.mubr.bf16.gmra.mrb[0].mxu0 %v4107
          %v5883 = vpop.f32.mrb[0].mxu0
          %v5884 = vadd.f32 0.0, %v5883
          %v5885 = vpop.f32.mrb[0].mxu0
          %v5886 = vpop.f32.mrb[0].mxu0
          %v5887 = vadd.f32 0.0, %v5886
          %v5888 = vpop.f32.mrb[0].mxu0
          %5889 = vmatprep.mubr.bf16.mxu0 0
          %5890 = vmatmul.mubr.bf16.gmra.mrb[0].mxu0 %v4110
          %v5891 = vpop.f32.mrb[0].mxu0
          %v5892 = vadd.f32 0.0, %v5891
          %v5893 = vpop.f32.mrb[0].mxu0
          %v5894 = vpop.f32.mrb[0].mxu0
          %v5895 = vadd.f32 0.0, %v5894
          %v5896 = vpop.f32.mrb[0].mxu0
          %5897 = vmatprep.mubr.bf16.mxu0 0
          %5898 = vmatmul.mubr.bf16.gmra.mrb[0].mxu0 %v4113
          %v5899 = vpop.f32.mrb[0].mxu0
          %v5900 = vadd.f32 0.0, %v5899
          %v5901 = vpop.f32.mrb[0].mxu0
          %v5902 = vpop.f32.mrb[0].mxu0
          %v5903 = vadd.f32 0.0, %v5902
          %v5904 = vpop.f32.mrb[0].mxu0
          %5905 = vmatprep.mubr.bf16.mxu0 0
          %5906 = vmatmul.mubr.bf16.gmra.mrb[0].mxu0 %v4116
          %v5907 = vpop.f32.mrb[0].mxu0
          %v5908 = vadd.f32 0.0, %v5907
          %v5909 = vpop.f32.mrb[0].mxu0
          %v5910 = vpop.f32.mrb[0].mxu0
          %v5911 = vadd.f32 0.0, %v5910
          %v5912 = vpop.f32.mrb[0].mxu0
          %5913 = vmatprep.mubr.bf16.mxu0 0
          %5914 = vmatmul.mubr.bf16.gmra.mrb[0].mxu0 %v4119
          %v5915 = vpop.f32.mrb[0].mxu0
          %v5916 = vadd.f32 0.0, %v5915
          %v5917 = vpop.f32.mrb[0].mxu0
          %v5918 = vpop.f32.mrb[0].mxu0
          %v5919 = vadd.f32 0.0, %v5918
          %v5920 = vpop.f32.mrb[0].mxu0
          %5921 = vmatprep.mubr.bf16.mxu0 0
          %5922 = vmatmul.mubr.bf16.gmra.mrb[0].mxu0 %v4122
          %v5923 = vpop.f32.mrb[0].mxu0
          %v5924 = vadd.f32 0.0, %v5923
          %v5925 = vpop.f32.mrb[0].mxu0
          %v5926 = vpop.f32.mrb[0].mxu0
          %v5927 = vadd.f32 0.0, %v5926
          %v5928 = vpop.f32.mrb[0].mxu0
          %5929 = vmatprep.mubr.bf16.mxu0 0
          %5930 = vmatmul.mubr.bf16.gmra.mrb[0].mxu0 %v4125
          %v5931 = vpop.f32.mrb[0].mxu0
          %v5932 = vadd.f32 0.0, %v5931
          %v5933 = vpop.f32.mrb[0].mxu0
          %v5934 = vpop.f32.mrb[0].mxu0
          %v5935 = vadd.f32 0.0, %v5934
          %v5936 = vpop.f32.mrb[0].mxu0
          %5937 = vmatprep.mubr.bf16.mxu0 0
          %5938 = vmatmul.mubr.bf16.gmra.mrb[0].mxu0 %v4933
          %v5939 = vpop.f32.mrb[0].mxu0
          %v5940 = vadd.f32 0.0, %v5939
          %v5941 = vpop.f32.mrb[0].mxu0
          %v5942 = vpop.f32.mrb[0].mxu0
          %v5943 = vadd.f32 0.0, %v5942
          %v5944 = vpop.f32.mrb[0].mxu0
          %5945 = vmatprep.mubr.bf16.mxu0 0
          %5946 = vmatmul.mubr.bf16.gmra.mrb[0].mxu0 %v5726
          %v5947 = vpop.f32.mrb[0].mxu0
          %v5948 = vadd.f32 0.0, %v5947
          %v5949 = vpop.f32.mrb[0].mxu0
          %v5950 = vpop.f32.mrb[0].mxu0
          %v5951 = vadd.f32 0.0, %v5950
          %v5952 = vpop.f32.mrb[0].mxu0
          %5953 = vdwg.mxu0
          %v5954 = vadd.f32 %v5690, %v5828
          %v5955 = vadd.f32 %v5691, %v5831
          %v5956 = vadd.f32 %v5692, %v5836
          %v5957 = vadd.f32 %v5693, %v5839
          %v5958 = vadd.f32 %v5694, %v5844
          %v5959 = vadd.f32 %v5695, %v5847
          %v5960 = vadd.f32 %v5696, %v5852
          %v5961 = vadd.f32 %v5697, %v5855
          %v5962 = vadd.f32 %v5698, %v5860
          %v5963 = vadd.f32 %v5699, %v5863
          %v5964 = vadd.f32 %v5700, %v5868
          %v5965 = vadd.f32 %v5701, %v5871
          %v5966 = vadd.f32 %v5702, %v5876
          %v5967 = vadd.f32 %v5703, %v5879
          %v5968 = vadd.f32 %v5704, %v5884
          %v5969 = vadd.f32 %v5705, %v5887
          %v5970 = vadd.f32 %v5706, %v5892
          %v5971 = vadd.f32 %v5707, %v5895
          %v5972 = vadd.f32 %v5708, %v5900
          %v5973 = vadd.f32 %v5709, %v5903
          %v5974 = vadd.f32 %v5710, %v5908
          %v5975 = vadd.f32 %v5711, %v5911
          %v5976 = vadd.f32 %v5712, %v5916
          %v5977 = vadd.f32 %v5713, %v5919
          %v5978 = vadd.f32 %v5714, %v5924
          %v5979 = vadd.f32 %v5715, %v5927
          %v5980 = vadd.f32 %v5716, %v5932
          %v5981 = vadd.f32 %v5717, %v5935
          %v5982 = vadd.f32 %v5718, %v5940
          %v5983 = vadd.f32 %v5719, %v5943
          %v5984 = vadd.f32 %v5720, %v5948
          %v5985 = vadd.f32 %v5721, %v5951
          %5986 = vmatprep.subr.mxu0 0.0
          %5987 = vmatpush1.msra.mxu0 %v5954
          %5988 = vmatprep.subr.mxu0 0.0
          %5989 = vmatpush1.msra.mxu0 %v5955
          %5990 = vmatprep.subr.mxu0 0.0
          %5991 = vmatpush1.msra.mxu0 %v5956
          %5992 = vmatprep.subr.mxu0 0.0
          %5993 = vmatpush1.msra.mxu0 %v5957
          %5994 = vmatprep.subr.mxu0 0.0
          %5995 = vmatpush1.msra.mxu0 %v5958
          %5996 = vmatprep.subr.mxu0 0.0
          %5997 = vmatpush1.msra.mxu0 %v5959
          %5998 = vmatprep.subr.mxu0 0.0
          %5999 = vmatpush1.msra.mxu0 %v5960
          %6000 = vmatprep.subr.mxu0 0.0
          %6001 = vmatpush1.msra.mxu0 %v5961
          %6002 = vmatprep.subr.mxu0 0.0
          %6003 = vmatpush1.msra.mxu0 %v5962
          %6004 = vmatprep.subr.mxu0 0.0
          %6005 = vmatpush1.msra.mxu0 %v5963
          %6006 = vmatprep.subr.mxu0 0.0
          %6007 = vmatpush1.msra.mxu0 %v5964
          %6008 = vmatprep.subr.mxu0 0.0
          %6009 = vmatpush1.msra.mxu0 %v5965
          %6010 = vmatprep.subr.mxu0 0.0
          %6011 = vmatpush1.msra.mxu0 %v5966
          %6012 = vmatprep.subr.mxu0 0.0
          %6013 = vmatpush1.msra.mxu0 %v5967
          %6014 = vmatprep.subr.mxu0 0.0
          %6015 = vmatpush1.msra.mxu0 %v5968
          %6016 = vmatprep.subr.mxu0 0.0
          %6017 = vmatpush1.msra.mxu0 %v5969
          %6018 = vmatprep.subr.mxu0 0.0
          %6019 = vmatpush1.msra.mxu0 %v5970
          %6020 = vmatprep.subr.mxu0 0.0
          %6021 = vmatpush1.msra.mxu0 %v5971
          %6022 = vmatprep.subr.mxu0 0.0
          %6023 = vmatpush1.msra.mxu0 %v5972
          %6024 = vmatprep.subr.mxu0 0.0
          %6025 = vmatpush1.msra.mxu0 %v5973
          %6026 = vmatprep.subr.mxu0 0.0
          %6027 = vmatpush1.msra.mxu0 %v5974
          %6028 = vmatprep.subr.mxu0 0.0
          %6029 = vmatpush1.msra.mxu0 %v5975
          %6030 = vmatprep.subr.mxu0 0.0
          %6031 = vmatpush1.msra.mxu0 %v5976
          %6032 = vmatprep.subr.mxu0 0.0
          %6033 = vmatpush1.msra.mxu0 %v5977
          %6034 = vmatprep.subr.mxu0 0.0
          %6035 = vmatpush1.msra.mxu0 %v5978
          %6036 = vmatprep.subr.mxu0 0.0
          %6037 = vmatpush1.msra.mxu0 %v5979
          %6038 = vmatprep.subr.mxu0 0.0
          %6039 = vmatpush1.msra.mxu0 %v5980
          %6040 = vmatprep.subr.mxu0 0.0
          %6041 = vmatpush1.msra.mxu0 %v5981
          %6042 = vmatprep.subr.mxu0 0.0
          %6043 = vmatpush1.msra.mxu0 %v5982
          %6044 = vmatprep.subr.mxu0 0.0
          %6045 = vmatpush1.msra.mxu0 %v5983
          %6046 = vmatprep.subr.mxu0 0.0
          %6047 = vmatpush1.msra.mxu0 %v5984
          %6048 = vmatprep.subr.mxu0 0.0
          %6049 = vmatpush1.msra.mxu0 %v5985
          %6050 = vmatprep.mubr.f32.mxu0 1.0
          %6051 = vmatmul.mubr.f32.gmra.mrb[0].mxu0 1.0
          %v6052 = vpop.f32.mrb[0].mxu0
          %v6053 = vadd.f32 0.0, %v6052
          %v6054 = vpop.f32.mrb[0].mxu0
          %6055 = vdwg.mxu0
          %v6056 = vmul.f32 %v5954, %v5954
          %v6057 = vmul.f32 %v5955, %v5955
          %v6058 = vmul.f32 %v5956, %v5956
          %v6059 = vmul.f32 %v5957, %v5957
          %v6060 = vmul.f32 %v5958, %v5958
          %v6061 = vmul.f32 %v5959, %v5959
          %v6062 = vmul.f32 %v5960, %v5960
          %v6063 = vmul.f32 %v5961, %v5961
          %v6064 = vmul.f32 %v5962, %v5962
          %v6065 = vmul.f32 %v5963, %v5963
          %v6066 = vmul.f32 %v5964, %v5964
          %v6067 = vmul.f32 %v5965, %v5965
          %v6068 = vmul.f32 %v5966, %v5966
          %v6069 = vmul.f32 %v5967, %v5967
          %v6070 = vmul.f32 %v5968, %v5968
          %v6071 = vmul.f32 %v5969, %v5969
          %v6072 = vmul.f32 %v5970, %v5970
          %v6073 = vmul.f32 %v5971, %v5971
          %v6074 = vmul.f32 %v5972, %v5972
          %v6075 = vmul.f32 %v5973, %v5973
          %v6076 = vmul.f32 %v5974, %v5974
          %v6077 = vmul.f32 %v5975, %v5975
          %v6078 = vmul.f32 %v5976, %v5976
          %v6079 = vmul.f32 %v5977, %v5977
          %v6080 = vmul.f32 %v5978, %v5978
          %v6081 = vmul.f32 %v5979, %v5979
          %v6082 = vmul.f32 %v5980, %v5980
          %v6083 = vmul.f32 %v5981, %v5981
          %v6084 = vmul.f32 %v5982, %v5982
          %v6085 = vmul.f32 %v5983, %v5983
          %v6086 = vmul.f32 %v5984, %v5984
          %v6087 = vmul.f32 %v5985, %v5985
          %6088 = vmatprep.subr.mxu0 0.0
          %6089 = vmatpush1.msra.mxu0 %v6056
          %6090 = vmatprep.subr.mxu0 0.0
          %6091 = vmatpush1.msra.mxu0 %v6057
          %6092 = vmatprep.subr.mxu0 0.0
          %6093 = vmatpush1.msra.mxu0 %v6058
          %6094 = vmatprep.subr.mxu0 0.0
          %6095 = vmatpush1.msra.mxu0 %v6059
          %6096 = vmatprep.subr.mxu0 0.0
          %6097 = vmatpush1.msra.mxu0 %v6060
          %6098 = vmatprep.subr.mxu0 0.0
          %6099 = vmatpush1.msra.mxu0 %v6061
          %6100 = vmatprep.subr.mxu0 0.0
          %6101 = vmatpush1.msra.mxu0 %v6062
          %6102 = vmatprep.subr.mxu0 0.0
          %6103 = vmatpush1.msra.mxu0 %v6063
          %6104 = vmatprep.subr.mxu0 0.0
          %6105 = vmatpush1.msra.mxu0 %v6064
          %6106 = vmatprep.subr.mxu0 0.0
          %6107 = vmatpush1.msra.mxu0 %v6065
          %6108 = vmatprep.subr.mxu0 0.0
          %6109 = vmatpush1.msra.mxu0 %v6066
          %6110 = vmatprep.subr.mxu0 0.0
          %6111 = vmatpush1.msra.mxu0 %v6067
          %6112 = vmatprep.subr.mxu0 0.0
          %6113 = vmatpush1.msra.mxu0 %v6068
          %6114 = vmatprep.subr.mxu0 0.0
          %6115 = vmatpush1.msra.mxu0 %v6069
          %6116 = vmatprep.subr.mxu0 0.0
          %6117 = vmatpush1.msra.mxu0 %v6070
          %6118 = vmatprep.subr.mxu0 0.0
          %6119 = vmatpush1.msra.mxu0 %v6071
          %6120 = vmatprep.subr.mxu0 0.0
          %6121 = vmatpush1.msra.mxu0 %v6072
          %6122 = vmatprep.subr.mxu0 0.0
          %6123 = vmatpush1.msra.mxu0 %v6073
          %6124 = vmatprep.subr.mxu0 0.0
          %6125 = vmatpush1.msra.mxu0 %v6074
          %6126 = vmatprep.subr.mxu0 0.0
          %6127 = vmatpush1.msra.mxu0 %v6075
          %6128 = vmatprep.subr.mxu0 0.0
          %6129 = vmatpush1.msra.mxu0 %v6076
          %6130 = vmatprep.subr.mxu0 0.0
          %6131 = vmatpush1.msra.mxu0 %v6077
          %6132 = vmatprep.subr.mxu0 0.0
          %6133 = vmatpush1.msra.mxu0 %v6078
          %6134 = vmatprep.subr.mxu0 0.0
          %6135 = vmatpush1.msra.mxu0 %v6079
          %6136 = vmatprep.subr.mxu0 0.0
          %6137 = vmatpush1.msra.mxu0 %v6080
          %6138 = vmatprep.subr.mxu0 0.0
          %6139 = vmatpush1.msra.mxu0 %v6081
          %6140 = vmatprep.subr.mxu0 0.0
          %6141 = vmatpush1.msra.mxu0 %v6082
          %6142 = vmatprep.subr.mxu0 0.0
          %6143 = vmatpush1.msra.mxu0 %v6083
          %6144 = vmatprep.subr.mxu0 0.0
          %6145 = vmatpush1.msra.mxu0 %v6084
          %6146 = vmatprep.subr.mxu0 0.0
          %6147 = vmatpush1.msra.mxu0 %v6085
          %6148 = vmatprep.subr.mxu0 0.0
          %6149 = vmatpush1.msra.mxu0 %v6086
          %6150 = vmatprep.subr.mxu0 0.0
          %6151 = vmatpush1.msra.mxu0 %v6087
          %6152 = vmatprep.mubr.f32.mxu0 1.0
          %6153 = vmatmul.mubr.f32.gmra.mrb[0].mxu0 1.0
          %v6154 = vpop.f32.mrb[0].mxu0
          %v6155 = vadd.f32 0.0, %v6154
          %v6156 = vpop.f32.mrb[0].mxu0
          %6157 = vdwg.mxu0
          %v6158 = vld [vmem:[#allocation3 + $0x2] sm:$0x1]
          %v6159 = vadd.f32 %v6158, %v6053
          %6160 = vst [vmem:[#allocation3 + $0x2] sm:$0x1] %v6159
          %v6161 = vld [vmem:[#allocation3 + $0x3] sm:$0x1]
          %v6162 = vadd.f32 %v6161, %v6155
          %6163 = vst [vmem:[#allocation3 + $0x3] sm:$0x1] %v6162
        $region48: #{tpu_custom_call.1} parent=35 // pred_fallthru
          _
        %p6164 = scmp.eq.s32.totalorder %s22, 2
        // Predicated region
        $region49: #{tpu_custom_call.1} parent=35 // pred_check
          %p6165 = pneg %p6164
        $region50: #{tpu_custom_call.1} parent=35 // pred_check_branch
          %6167 = sbr.rel (%p6165) target = $region52
        $region51: #{tpu_custom_call.1} parent=35 // pred_region
          %v6168 = vld [vmem:[#allocation3] sm:$0x1]
          %v6169 = vld [vmem:[#allocation3 + $0x1] sm:$0x1]
          %v6170 = vld [vmem:[%s3] sm:$0x1]
          %v6171 = vld [vmem:[%s3 + $0x1] sm:$0x1]
          %v6172 = vmul.f32 %v6168, 0.001953125
          %v6173 = vmul.f32 %v6169, 0.001953125
          %v6174 = vmul.f32 %v6172, %v6172
          %v6175 = vsub.f32 %v6173, %v6174
          %v6176 = vmax.f32 %v6175, 0.0
          %v6177 = vadd.f32 %v6176, 1e-05
          %v6178 = vrsqrt.pop %v6177
          %v6179 = vmul.f32 %v6170, %v6178
          %v6180 = vmul.f32 %v6172, %v6179
          %v6181 = vsub.f32 %v6171, %v6180
          %v6182 = vlaneseq
          %v6183 = vshrl.u32 %v6182, 7
          %v6184 = vsub.s32 0, %v6183
          %v6185 = vrot.slane %v6179, %v6184
          %v6186 = vmul.f32 %v2929, %v6185
          %v6187 = vmul.f32 %v2930, %v6185
          %v6188 = vmul.f32 %v2931, %v6185
          %v6189 = vmul.f32 %v2932, %v6185
          %v6190 = vmul.f32 %v2933, %v6185
          %v6191 = vmul.f32 %v2934, %v6185
          %v6192 = vmul.f32 %v2935, %v6185
          %v6193 = vmul.f32 %v2936, %v6185
          %v6194 = vmul.f32 %v2937, %v6185
          %v6195 = vmul.f32 %v2938, %v6185
          %v6196 = vmul.f32 %v2939, %v6185
          %v6197 = vmul.f32 %v2940, %v6185
          %v6198 = vmul.f32 %v2941, %v6185
          %v6199 = vmul.f32 %v2942, %v6185
          %v6200 = vmul.f32 %v2943, %v6185
          %v6201 = vmul.f32 %v2944, %v6185
          %v6202 = vmul.f32 %v2945, %v6185
          %v6203 = vmul.f32 %v2946, %v6185
          %v6204 = vmul.f32 %v2947, %v6185
          %v6205 = vmul.f32 %v2948, %v6185
          %v6206 = vmul.f32 %v2949, %v6185
          %v6207 = vmul.f32 %v2950, %v6185
          %v6208 = vmul.f32 %v2951, %v6185
          %v6209 = vmul.f32 %v2952, %v6185
          %v6210 = vmul.f32 %v2953, %v6185
          %v6211 = vmul.f32 %v2954, %v6185
          %v6212 = vmul.f32 %v2955, %v6185
          %v6213 = vmul.f32 %v2956, %v6185
          %v6214 = vmul.f32 %v2957, %v6185
          %v6215 = vmul.f32 %v2958, %v6185
          %v6216 = vmul.f32 %v2959, %v6185
          %v6217 = vmul.f32 %v2960, %v6185
          %v6218 = vlaneseq
          %v6219 = vshrl.u32 %v6218, 7
          %v6220 = vsub.s32 0, %v6219
          %v6221 = vrot.slane %v6181, %v6220
          %v6222 = vadd.f32 %v6186, %v6221
          %v6223 = vadd.f32 %v6187, %v6221
          %v6224 = vadd.f32 %v6188, %v6221
          %v6225 = vadd.f32 %v6189, %v6221
          %v6226 = vadd.f32 %v6190, %v6221
          %v6227 = vadd.f32 %v6191, %v6221
          %v6228 = vadd.f32 %v6192, %v6221
          %v6229 = vadd.f32 %v6193, %v6221
          %v6230 = vadd.f32 %v6194, %v6221
          %v6231 = vadd.f32 %v6195, %v6221
          %v6232 = vadd.f32 %v6196, %v6221
          %v6233 = vadd.f32 %v6197, %v6221
          %v6234 = vadd.f32 %v6198, %v6221
          %v6235 = vadd.f32 %v6199, %v6221
          %v6236 = vadd.f32 %v6200, %v6221
          %v6237 = vadd.f32 %v6201, %v6221
          %v6238 = vadd.f32 %v6202, %v6221
          %v6239 = vadd.f32 %v6203, %v6221
          %v6240 = vadd.f32 %v6204, %v6221
          %v6241 = vadd.f32 %v6205, %v6221
          %v6242 = vadd.f32 %v6206, %v6221
          %v6243 = vadd.f32 %v6207, %v6221
          %v6244 = vadd.f32 %v6208, %v6221
          %v6245 = vadd.f32 %v6209, %v6221
          %v6246 = vadd.f32 %v6210, %v6221
          %v6247 = vadd.f32 %v6211, %v6221
          %v6248 = vadd.f32 %v6212, %v6221
          %v6249 = vadd.f32 %v6213, %v6221
          %v6250 = vadd.f32 %v6214, %v6221
          %v6251 = vadd.f32 %v6215, %v6221
          %v6252 = vadd.f32 %v6216, %v6221
          %v6253 = vadd.f32 %v6217, %v6221
          %v6254 = vmax.f32 %v6222, 0.0
          %v6255 = vmax.f32 %v6223, 0.0
          %v6256 = vmax.f32 %v6224, 0.0
          %v6257 = vmax.f32 %v6225, 0.0
          %v6258 = vmax.f32 %v6226, 0.0
          %v6259 = vmax.f32 %v6227, 0.0
          %v6260 = vmax.f32 %v6228, 0.0
          %v6261 = vmax.f32 %v6229, 0.0
          %v6262 = vmax.f32 %v6230, 0.0
          %v6263 = vmax.f32 %v6231, 0.0
          %v6264 = vmax.f32 %v6232, 0.0
          %v6265 = vmax.f32 %v6233, 0.0
          %v6266 = vmax.f32 %v6234, 0.0
          %v6267 = vmax.f32 %v6235, 0.0
          %v6268 = vmax.f32 %v6236, 0.0
          %v6269 = vmax.f32 %v6237, 0.0
          %v6270 = vmax.f32 %v6238, 0.0
          %v6271 = vmax.f32 %v6239, 0.0
          %v6272 = vmax.f32 %v6240, 0.0
          %v6273 = vmax.f32 %v6241, 0.0
          %v6274 = vmax.f32 %v6242, 0.0
          %v6275 = vmax.f32 %v6243, 0.0
          %v6276 = vmax.f32 %v6244, 0.0
          %v6277 = vmax.f32 %v6245, 0.0
          %v6278 = vmax.f32 %v6246, 0.0
          %v6279 = vmax.f32 %v6247, 0.0
          %v6280 = vmax.f32 %v6248, 0.0
          %v6281 = vmax.f32 %v6249, 0.0
          %v6282 = vmax.f32 %v6250, 0.0
          %v6283 = vmax.f32 %v6251, 0.0
          %v6284 = vmax.f32 %v6252, 0.0
          %v6285 = vmax.f32 %v6253, 0.0
          %s6286 = scalar_lea.vmem [#allocation2], 24
          %6287 = vst [vmem:[%s6286 + $0x1] sm:$0xff] %v6254
          %6288 = vst [vmem:[%s6286 + $0x9] sm:$0xff] %v6255
          %6289 = vst [vmem:[%s6286 + $0x19] sm:$0xff] %v6256
          %6290 = vst [vmem:[%s6286 + $0x21] sm:$0xff] %v6257
          %6291 = vst [vmem:[%s6286 + $0x31] sm:$0xff] %v6258
          %6292 = vst [vmem:[%s6286 + $0x39] sm:$0xff] %v6259
          %6293 = vst [vmem:[%s6286 + $0x49] sm:$0xff] %v6260
          %6294 = vst [vmem:[%s6286 + $0x51] sm:$0xff] %v6261
          %6295 = vst [vmem:[%s6286 + $0x61] sm:$0xff] %v6262
          %6296 = vst [vmem:[%s6286 + $0x69] sm:$0xff] %v6263
          %6297 = vst [vmem:[%s6286 + $0x79] sm:$0xff] %v6264
          %6298 = vst [vmem:[%s6286 + $0x81] sm:$0xff] %v6265
          %6299 = vst [vmem:[%s6286 + $0x91] sm:$0xff] %v6266
          %6300 = vst [vmem:[%s6286 + $0x99] sm:$0xff] %v6267
          %6301 = vst [vmem:[%s6286 + $0xa9] sm:$0xff] %v6268
          %6302 = vst [vmem:[%s6286 + $0xb1] sm:$0xff] %v6269
          %6303 = vst [vmem:[%s6286 + $0xc1] sm:$0xff] %v6270
          %6304 = vst [vmem:[%s6286 + $0xc9] sm:$0xff] %v6271
          %6305 = vst [vmem:[%s6286 + $0xd9] sm:$0xff] %v6272
          %6306 = vst [vmem:[%s6286 + $0xe1] sm:$0xff] %v6273
          %6307 = vst [vmem:[%s6286 + $0xf1] sm:$0xff] %v6274
          %6308 = vst [vmem:[%s6286 + $0xf9] sm:$0xff] %v6275
          %6309 = vst [vmem:[%s6286 + $0x109] sm:$0xff] %v6276
          %6310 = vst [vmem:[%s6286 + $0x111] sm:$0xff] %v6277
          %6311 = vst [vmem:[%s6286 + $0x121] sm:$0xff] %v6278
          %6312 = vst [vmem:[%s6286 + $0x129] sm:$0xff] %v6279
          %6313 = vst [vmem:[%s6286 + $0x139] sm:$0xff] %v6280
          %6314 = vst [vmem:[%s6286 + $0x141] sm:$0xff] %v6281
          %6315 = vst [vmem:[%s6286 + $0x151] sm:$0xff] %v6282
          %6316 = vst [vmem:[%s6286 + $0x159] sm:$0xff] %v6283
          %6317 = vst [vmem:[%s6286 + $0x169] sm:$0xff] %v6284
          %6318 = vst [vmem:[%s6286 + $0x171] sm:$0xff] %v6285
          %v6319 = vld [vmem:[#allocation2] sm:$0xff]
          %v6320 = vld [vmem:[#allocation2 + $0x8] sm:$0xff]
          %v6321 = vld [vmem:[#allocation2 + $0x10] sm:$0x3]
          %v6322 = vld [vmem:[#allocation2 + $0x18] sm:$0xff]
          %v6323 = vld [vmem:[#allocation2 + $0x20] sm:$0xff]
          %v6324 = vld [vmem:[#allocation2 + $0x28] sm:$0x3]
          %v6325 = vld [vmem:[#allocation2 + $0x30] sm:$0xff]
          %v6326 = vld [vmem:[#allocation2 + $0x38] sm:$0xff]
          %v6327 = vld [vmem:[#allocation2 + $0x40] sm:$0x3]
          %v6328 = vld [vmem:[#allocation2 + $0x48] sm:$0xff]
          %v6329 = vld [vmem:[#allocation2 + $0x50] sm:$0xff]
          %v6330 = vld [vmem:[#allocation2 + $0x58] sm:$0x3]
          %v6331 = vld [vmem:[#allocation2 + $0x60] sm:$0xff]
          %v6332 = vld [vmem:[#allocation2 + $0x68] sm:$0xff]
          %v6333 = vld [vmem:[#allocation2 + $0x70] sm:$0x3]
          %v6334 = vld [vmem:[#allocation2 + $0x78] sm:$0xff]
          %v6335 = vld [vmem:[#allocation2 + $0x80] sm:$0xff]
          %v6336 = vld [vmem:[#allocation2 + $0x88] sm:$0x3]
          %v6337 = vld [vmem:[#allocation2 + $0x90] sm:$0xff]
          %v6338 = vld [vmem:[#allocation2 + $0x98] sm:$0xff]
          %v6339 = vld [vmem:[#allocation2 + $0xa0] sm:$0x3]
          %v6340 = vld [vmem:[#allocation2 + $0xa8] sm:$0xff]
          %v6341 = vld [vmem:[#allocation2 + $0xb0] sm:$0xff]
          %v6342 = vld [vmem:[#allocation2 + $0xb8] sm:$0x3]
          %v6343 = vld [vmem:[#allocation2 + $0xc0] sm:$0xff]
          %v6344 = vld [vmem:[#allocation2 + $0xc8] sm:$0xff]
          %v6345 = vld [vmem:[#allocation2 + $0xd0] sm:$0x3]
          %v6346 = vld [vmem:[#allocation2 + $0xd8] sm:$0xff]
          %v6347 = vld [vmem:[#allocation2 + $0xe0] sm:$0xff]
          %v6348 = vld [vmem:[#allocation2 + $0xe8] sm:$0x3]
          %v6349 = vld [vmem:[#allocation2 + $0xf0] sm:$0xff]
          %v6350 = vld [vmem:[#allocation2 + $0xf8] sm:$0xff]
          %v6351 = vld [vmem:[#allocation2 + $0x100] sm:$0x3]
          %v6352 = vld [vmem:[#allocation2 + $0x108] sm:$0xff]
          %v6353 = vld [vmem:[#allocation2 + $0x110] sm:$0xff]
          %v6354 = vld [vmem:[#allocation2 + $0x118] sm:$0x3]
          %v6355 = vld [vmem:[#allocation2 + $0x120] sm:$0xff]
          %v6356 = vld [vmem:[#allocation2 + $0x128] sm:$0xff]
          %v6357 = vld [vmem:[#allocation2 + $0x130] sm:$0x3]
          %v6358 = vld [vmem:[#allocation2 + $0x138] sm:$0xff]
          %v6359 = vld [vmem:[#allocation2 + $0x140] sm:$0xff]
          %v6360 = vld [vmem:[#allocation2 + $0x148] sm:$0x3]
          %v6361 = vld [vmem:[#allocation2 + $0x150] sm:$0xff]
          %v6362 = vld [vmem:[#allocation2 + $0x158] sm:$0xff]
          %v6363 = vld [vmem:[#allocation2 + $0x160] sm:$0x3]
          %v6364 = vld [vmem:[#allocation2 + $0x168] sm:$0xff]
          %v6365 = vld [vmem:[#allocation2 + $0x170] sm:$0xff]
          %v6366 = vld [vmem:[#allocation2 + $0x178] sm:$0x3]
          %v6367 = vld [vmem:[#allocation2 + $0x180] sm:$0xff]
          %v6368 = vld [vmem:[#allocation2 + $0x188] sm:$0xff]
          %v6369 = vld [vmem:[#allocation2 + $0x190] sm:$0x3]
          %v6370 = vld [vmem:[#allocation2 + $0x198] sm:$0xff]
          %v6371 = vld [vmem:[#allocation2 + $0x1a0] sm:$0xff]
          %v6372 = vld [vmem:[#allocation2 + $0x1a8] sm:$0x3]
          %v6373 = vpack.c.bf16 %v6320, %v6319
          %v6374 = vpack.c.bf16 %v6321, %v6321
          %v6375 = vpack.c.bf16 %v6323, %v6322
          %v6376 = vpack.c.bf16 %v6324, %v6324
          %v6377 = vpack.c.bf16 %v6326, %v6325
          %v6378 = vpack.c.bf16 %v6327, %v6327
          %v6379 = vpack.c.bf16 %v6329, %v6328
          %v6380 = vpack.c.bf16 %v6330, %v6330
          %v6381 = vpack.c.bf16 %v6332, %v6331
          %v6382 = vpack.c.bf16 %v6333, %v6333
          %v6383 = vpack.c.bf16 %v6335, %v6334
          %v6384 = vpack.c.bf16 %v6336, %v6336
          %v6385 = vpack.c.bf16 %v6338, %v6337
          %v6386 = vpack.c.bf16 %v6339, %v6339
          %v6387 = vpack.c.bf16 %v6341, %v6340
          %v6388 = vpack.c.bf16 %v6342, %v6342
          %v6389 = vpack.c.bf16 %v6344, %v6343
          %v6390 = vpack.c.bf16 %v6345, %v6345
          %v6391 = vpack.c.bf16 %v6347, %v6346
          %v6392 = vpack.c.bf16 %v6348, %v6348
          %v6393 = vpack.c.bf16 %v6350, %v6349
          %v6394 = vpack.c.bf16 %v6351, %v6351
          %v6395 = vpack.c.bf16 %v6353, %v6352
          %v6396 = vpack.c.bf16 %v6354, %v6354
          %v6397 = vpack.c.bf16 %v6356, %v6355
          %v6398 = vpack.c.bf16 %v6357, %v6357
          %v6399 = vpack.c.bf16 %v6359, %v6358
          %v6400 = vpack.c.bf16 %v6360, %v6360
          %v6401 = vpack.c.bf16 %v6362, %v6361
          %v6402 = vpack.c.bf16 %v6363, %v6363
          %v6403 = vpack.c.bf16 %v6365, %v6364
          %v6404 = vpack.c.bf16 %v6366, %v6366
          %v6405 = vpack.c.bf16 %v6368, %v6367
          %v6406 = vpack.c.bf16 %v6369, %v6369
          %v6407 = vpack.c.bf16 %v6371, %v6370
          %v6408 = vpack.c.bf16 %v6372, %v6372
          %v6409 = vld [vmem:[%s2] sm:$0xf]
          %v6410 = vld [vmem:[%s2 + $0x4] sm:$0xf]
          %v6411 = vld [vmem:[%s2 + $0x8] sm:$0xf]
          %v6412 = vld [vmem:[%s2 + $0xc] sm:$0xf]
          %v6413 = vld [vmem:[%s2 + $0x10] sm:$0xf]
          %v6414 = vld [vmem:[%s2 + $0x14] sm:$0xf]
          %v6415 = vld [vmem:[%s2 + $0x18] sm:$0xf]
          %v6416 = vld [vmem:[%s2 + $0x1c] sm:$0xf]
          %v6417 = vld [vmem:[%s2 + $0x20] sm:$0xf]
          %v6418 = vld [vmem:[%s2 + $0x24] sm:$0xf]
          %v6419 = vld [vmem:[%s2 + $0x28] sm:$0xf]
          %v6420 = vld [vmem:[%s2 + $0x2c] sm:$0xf]
          %v6421 = vld [vmem:[%s2 + $0x30] sm:$0xf]
          %v6422 = vld [vmem:[%s2 + $0x34] sm:$0xf]
          %v6423 = vld [vmem:[%s2 + $0x38] sm:$0xf]
          %v6424 = vld [vmem:[%s2 + $0x3c] sm:$0xf]
          %v6426 = vshrl.u32 %v6373, 16
          %v6428 = vshll.u32 %v6373, 16
          %v6430 = vrot.slane %v6428, 1
          %v6431 = vor.u32 %v6426, %v6430
          %v6433 = vshll.u32 %v6374, 16
          %v6435 = vrot.slane %v6433, 1
          %v6436 = vsel %vm376, %v6431, %v6435
          %v6438 = vshrl.u32 %v6375, 16
          %v6440 = vshll.u32 %v6375, 16
          %v6442 = vrot.slane %v6440, 1
          %v6443 = vor.u32 %v6438, %v6442
          %v6445 = vshll.u32 %v6376, 16
          %v6447 = vrot.slane %v6445, 1
          %v6448 = vsel %vm376, %v6443, %v6447
          %v6450 = vshrl.u32 %v6377, 16
          %v6452 = vshll.u32 %v6377, 16
          %v6454 = vrot.slane %v6452, 1
          %v6455 = vor.u32 %v6450, %v6454
          %v6457 = vshll.u32 %v6378, 16
          %v6459 = vrot.slane %v6457, 1
          %v6460 = vsel %vm376, %v6455, %v6459
          %v6462 = vshrl.u32 %v6379, 16
          %v6464 = vshll.u32 %v6379, 16
          %v6466 = vrot.slane %v6464, 1
          %v6467 = vor.u32 %v6462, %v6466
          %v6469 = vshll.u32 %v6380, 16
          %v6471 = vrot.slane %v6469, 1
          %v6472 = vsel %vm376, %v6467, %v6471
          %v6474 = vshrl.u32 %v6381, 16
          %v6476 = vshll.u32 %v6381, 16
          %v6478 = vrot.slane %v6476, 1
          %v6479 = vor.u32 %v6474, %v6478
          %v6481 = vshll.u32 %v6382, 16
          %v6483 = vrot.slane %v6481, 1
          %v6484 = vsel %vm376, %v6479, %v6483
          %v6486 = vshrl.u32 %v6383, 16
          %v6488 = vshll.u32 %v6383, 16
          %v6490 = vrot.slane %v6488, 1
          %v6491 = vor.u32 %v6486, %v6490
          %v6493 = vshll.u32 %v6384, 16
          %v6495 = vrot.slane %v6493, 1
          %v6496 = vsel %vm376, %v6491, %v6495
          %v6498 = vshrl.u32 %v6385, 16
          %v6500 = vshll.u32 %v6385, 16
          %v6502 = vrot.slane %v6500, 1
          %v6503 = vor.u32 %v6498, %v6502
          %v6505 = vshll.u32 %v6386, 16
          %v6507 = vrot.slane %v6505, 1
          %v6508 = vsel %vm376, %v6503, %v6507
          %v6510 = vshrl.u32 %v6387, 16
          %v6512 = vshll.u32 %v6387, 16
          %v6514 = vrot.slane %v6512, 1
          %v6515 = vor.u32 %v6510, %v6514
          %v6517 = vshll.u32 %v6388, 16
          %v6519 = vrot.slane %v6517, 1
          %v6520 = vsel %vm376, %v6515, %v6519
          %v6522 = vshrl.u32 %v6389, 16
          %v6524 = vshll.u32 %v6389, 16
          %v6526 = vrot.slane %v6524, 1
          %v6527 = vor.u32 %v6522, %v6526
          %v6529 = vshll.u32 %v6390, 16
          %v6531 = vrot.slane %v6529, 1
          %v6532 = vsel %vm376, %v6527, %v6531
          %v6534 = vshrl.u32 %v6391, 16
          %v6536 = vshll.u32 %v6391, 16
          %v6538 = vrot.slane %v6536, 1
          %v6539 = vor.u32 %v6534, %v6538
          %v6541 = vshll.u32 %v6392, 16
          %v6543 = vrot.slane %v6541, 1
          %v6544 = vsel %vm376, %v6539, %v6543
          %v6546 = vshrl.u32 %v6393, 16
          %v6548 = vshll.u32 %v6393, 16
          %v6550 = vrot.slane %v6548, 1
          %v6551 = vor.u32 %v6546, %v6550
          %v6553 = vshll.u32 %v6394, 16
          %v6555 = vrot.slane %v6553, 1
          %v6556 = vsel %vm376, %v6551, %v6555
          %v6558 = vshrl.u32 %v6395, 16
          %v6560 = vshll.u32 %v6395, 16
          %v6562 = vrot.slane %v6560, 1
          %v6563 = vor.u32 %v6558, %v6562
          %v6565 = vshll.u32 %v6396, 16
          %v6567 = vrot.slane %v6565, 1
          %v6568 = vsel %vm376, %v6563, %v6567
          %v6570 = vshrl.u32 %v6397, 16
          %v6572 = vshll.u32 %v6397, 16
          %v6574 = vrot.slane %v6572, 1
          %v6575 = vor.u32 %v6570, %v6574
          %v6577 = vshll.u32 %v6398, 16
          %v6579 = vrot.slane %v6577, 1
          %v6580 = vsel %vm376, %v6575, %v6579
          %v6582 = vshrl.u32 %v6399, 16
          %v6584 = vshll.u32 %v6399, 16
          %v6586 = vrot.slane %v6584, 1
          %v6587 = vor.u32 %v6582, %v6586
          %v6589 = vshll.u32 %v6400, 16
          %v6591 = vrot.slane %v6589, 1
          %v6592 = vsel %vm376, %v6587, %v6591
          %v6594 = vshrl.u32 %v6401, 16
          %v6596 = vshll.u32 %v6401, 16
          %v6598 = vrot.slane %v6596, 1
          %v6599 = vor.u32 %v6594, %v6598
          %v6601 = vshll.u32 %v6402, 16
          %v6603 = vrot.slane %v6601, 1
          %v6604 = vsel %vm376, %v6599, %v6603
          %v6606 = vshrl.u32 %v6403, 16
          %v6608 = vshll.u32 %v6403, 16
          %v6610 = vrot.slane %v6608, 1
          %v6611 = vor.u32 %v6606, %v6610
          %v6613 = vshll.u32 %v6404, 16
          %v6615 = vrot.slane %v6613, 1
          %v6616 = vsel %vm376, %v6611, %v6615
          %s6633 = scalar_lea.vmem %s2, 64
          %v6634 = vld [vmem:[%s6633] sm:$0xf]
          %v6635 = vld [vmem:[%s6633 + $0x4] sm:$0xf]
          %v6636 = vld [vmem:[%s6633 + $0x8] sm:$0xf]
          %v6637 = vld [vmem:[%s6633 + $0xc] sm:$0xf]
          %v6638 = vld [vmem:[%s6633 + $0x10] sm:$0xf]
          %v6639 = vld [vmem:[%s6633 + $0x14] sm:$0xf]
          %v6640 = vld [vmem:[%s6633 + $0x18] sm:$0xf]
          %v6641 = vld [vmem:[%s6633 + $0x1c] sm:$0xf]
          %v6642 = vld [vmem:[%s6633 + $0x20] sm:$0xf]
          %v6643 = vld [vmem:[%s6633 + $0x24] sm:$0xf]
          %v6644 = vld [vmem:[%s6633 + $0x28] sm:$0xf]
          %v6645 = vld [vmem:[%s6633 + $0x2c] sm:$0xf]
          %v6646 = vld [vmem:[%s6633 + $0x30] sm:$0xf]
          %v6647 = vld [vmem:[%s6633 + $0x34] sm:$0xf]
          %v6648 = vld [vmem:[%s6633 + $0x38] sm:$0xf]
          %v6649 = vld [vmem:[%s6633 + $0x3c] sm:$0xf]
          %v6666 = vunpack.c.l.b16 %v6634
          %v6667 = vunpack.c.l.b16 %v6635
          %v6668 = vunpack.c.l.b16 %v6636
          %v6669 = vunpack.c.l.b16 %v6637
          %v6670 = vunpack.c.l.b16 %v6638
          %v6671 = vunpack.c.l.b16 %v6639
          %v6672 = vunpack.c.l.b16 %v6640
          %v6673 = vunpack.c.l.b16 %v6641
          %v6674 = vunpack.c.l.b16 %v6642
          %v6675 = vunpack.c.l.b16 %v6643
          %v6676 = vunpack.c.l.b16 %v6644
          %v6677 = vunpack.c.l.b16 %v6645
          %v6678 = vunpack.c.l.b16 %v6646
          %v6679 = vunpack.c.l.b16 %v6647
          %v6680 = vunpack.c.l.b16 %v6648
          %v6681 = vunpack.c.l.b16 %v6649
          %v6682 = vpack.c.b16 %v6667, %v6666
          %v6683 = vpack.c.b16 %v6669, %v6668
          %v6684 = vpack.c.b16 %v6671, %v6670
          %v6685 = vpack.c.b16 %v6673, %v6672
          %v6686 = vpack.c.b16 %v6675, %v6674
          %v6687 = vpack.c.b16 %v6677, %v6676
          %v6688 = vpack.c.b16 %v6679, %v6678
          %v6689 = vpack.c.b16 %v6681, %v6680
          %6698 = vmatprep.subr.bf16.mxu0 0
          %6699 = vmatpush1.bf16.msra.mxu0 %v6682
          %6700 = vmatprep.subr.bf16.mxu0 0
          %6701 = vmatpush1.bf16.msra.mxu0 %v6683
          %6702 = vmatprep.subr.bf16.mxu0 0
          %6703 = vmatpush1.bf16.msra.mxu0 %v6684
          %6704 = vmatprep.subr.bf16.mxu0 0
          %6705 = vmatpush1.bf16.msra.mxu0 %v6685
          %6706 = vmatprep.subr.bf16.mxu0 0
          %6707 = vmatpush1.bf16.msra.mxu0 %v6686
          %6708 = vmatprep.subr.bf16.mxu0 0
          %6709 = vmatpush1.bf16.msra.mxu0 %v6687
          %6710 = vmatprep.subr.bf16.mxu0 0
          %6711 = vmatpush1.bf16.msra.mxu0 %v6688
          %6712 = vmatprep.subr.bf16.mxu0 0
          %6713 = vmatpush1.bf16.msra.mxu0 %v6689
          %6714 = vmatprep.subr.bf16.mxu0 0
          %6715 = vmatpush1.bf16.msra.mxu0 0
          %6716 = vmatprep.subr.bf16.mxu0 0
          %6717 = vmatpush1.bf16.msra.mxu0 0
          %6718 = vmatprep.subr.bf16.mxu0 0
          %6719 = vmatpush1.bf16.msra.mxu0 0
          %6720 = vmatprep.subr.bf16.mxu0 0
          %6721 = vmatpush1.bf16.msra.mxu0 0
          %6722 = vmatprep.subr.bf16.mxu0 0
          %6723 = vmatpush1.bf16.msra.mxu0 0
          %6724 = vmatprep.subr.bf16.mxu0 0
          %6725 = vmatpush1.bf16.msra.mxu0 0
          %6726 = vmatprep.subr.bf16.mxu0 0
          %6727 = vmatpush1.bf16.msra.mxu0 0
          %6728 = vmatprep.subr.bf16.mxu0 0
          %6729 = vmatpush1.bf16.msra.mxu0 0
          %6730 = vmatprep.mubr.bf16.mxu0 0
          %6731 = vmatmul.mubr.bf16.gmra.mrb[0].mxu0 %v6436
          %v6732 = vpop.f32.mrb[0].mxu0
          %v6733 = vadd.f32 0.0, %v6732
          %v6734 = vpop.f32.mrb[0].mxu0
          %v6735 = vpop.f32.mrb[0].mxu0
          %v6736 = vadd.f32 0.0, %v6735
          %v6737 = vpop.f32.mrb[0].mxu0
          %6738 = vmatprep.mubr.bf16.mxu0 0
          %6739 = vmatmul.mubr.bf16.gmra.mrb[0].mxu0 %v6448
          %v6740 = vpop.f32.mrb[0].mxu0
          %v6741 = vadd.f32 0.0, %v6740
          %v6742 = vpop.f32.mrb[0].mxu0
          %v6743 = vpop.f32.mrb[0].mxu0
          %v6744 = vadd.f32 0.0, %v6743
          %v6745 = vpop.f32.mrb[0].mxu0
          %6746 = vmatprep.mubr.bf16.mxu0 0
          %6747 = vmatmul.mubr.bf16.gmra.mrb[0].mxu0 %v6460
          %v6748 = vpop.f32.mrb[0].mxu0
          %v6749 = vadd.f32 0.0, %v6748
          %v6750 = vpop.f32.mrb[0].mxu0
          %v6751 = vpop.f32.mrb[0].mxu0
          %v6752 = vadd.f32 0.0, %v6751
          %v6753 = vpop.f32.mrb[0].mxu0
          %6754 = vmatprep.mubr.bf16.mxu0 0
          %6755 = vmatmul.mubr.bf16.gmra.mrb[0].mxu0 %v6472
          %v6756 = vpop.f32.mrb[0].mxu0
          %v6757 = vadd.f32 0.0, %v6756
          %v6758 = vpop.f32.mrb[0].mxu0
          %v6759 = vpop.f32.mrb[0].mxu0
          %v6760 = vadd.f32 0.0, %v6759
          %v6761 = vpop.f32.mrb[0].mxu0
          %6762 = vmatprep.mubr.bf16.mxu0 0
          %6763 = vmatmul.mubr.bf16.gmra.mrb[0].mxu0 %v6484
          %v6764 = vpop.f32.mrb[0].mxu0
          %v6765 = vadd.f32 0.0, %v6764
          %v6766 = vpop.f32.mrb[0].mxu0
          %v6767 = vpop.f32.mrb[0].mxu0
          %v6768 = vadd.f32 0.0, %v6767
          %v6769 = vpop.f32.mrb[0].mxu0
          %6770 = vmatprep.mubr.bf16.mxu0 0
          %6771 = vmatmul.mubr.bf16.gmra.mrb[0].mxu0 %v6496
          %v6772 = vpop.f32.mrb[0].mxu0
          %v6773 = vadd.f32 0.0, %v6772
          %v6774 = vpop.f32.mrb[0].mxu0
          %v6775 = vpop.f32.mrb[0].mxu0
          %v6776 = vadd.f32 0.0, %v6775
          %v6777 = vpop.f32.mrb[0].mxu0
          %6778 = vmatprep.mubr.bf16.mxu0 0
          %6779 = vmatmul.mubr.bf16.gmra.mrb[0].mxu0 %v6508
          %v6780 = vpop.f32.mrb[0].mxu0
          %v6781 = vadd.f32 0.0, %v6780
          %v6782 = vpop.f32.mrb[0].mxu0
          %v6783 = vpop.f32.mrb[0].mxu0
          %v6784 = vadd.f32 0.0, %v6783
          %v6785 = vpop.f32.mrb[0].mxu0
          %6786 = vmatprep.mubr.bf16.mxu0 0
          %6787 = vmatmul.mubr.bf16.gmra.mrb[0].mxu0 %v6520
          %v6788 = vpop.f32.mrb[0].mxu0
          %v6789 = vadd.f32 0.0, %v6788
          %v6790 = vpop.f32.mrb[0].mxu0
          %v6791 = vpop.f32.mrb[0].mxu0
          %v6792 = vadd.f32 0.0, %v6791
          %v6793 = vpop.f32.mrb[0].mxu0
          %6794 = vmatprep.mubr.bf16.mxu0 0
          %6795 = vmatmul.mubr.bf16.gmra.mrb[0].mxu0 %v6532
          %v6796 = vpop.f32.mrb[0].mxu0
          %v6797 = vadd.f32 0.0, %v6796
          %v6798 = vpop.f32.mrb[0].mxu0
          %v6799 = vpop.f32.mrb[0].mxu0
          %v6800 = vadd.f32 0.0, %v6799
          %v6801 = vpop.f32.mrb[0].mxu0
          %6802 = vmatprep.mubr.bf16.mxu0 0
          %6803 = vmatmul.mubr.bf16.gmra.mrb[0].mxu0 %v6544
          %v6804 = vpop.f32.mrb[0].mxu0
          %v6805 = vadd.f32 0.0, %v6804
          %v6806 = vpop.f32.mrb[0].mxu0
          %v6807 = vpop.f32.mrb[0].mxu0
          %v6808 = vadd.f32 0.0, %v6807
          %v6809 = vpop.f32.mrb[0].mxu0
          %6810 = vmatprep.mubr.bf16.mxu0 0
          %6811 = vmatmul.mubr.bf16.gmra.mrb[0].mxu0 %v6556
          %v6812 = vpop.f32.mrb[0].mxu0
          %v6813 = vadd.f32 0.0, %v6812
          %v6814 = vpop.f32.mrb[0].mxu0
          %v6815 = vpop.f32.mrb[0].mxu0
          %v6816 = vadd.f32 0.0, %v6815
          %v6817 = vpop.f32.mrb[0].mxu0
          %6818 = vmatprep.mubr.bf16.mxu0 0
          %6819 = vmatmul.mubr.bf16.gmra.mrb[0].mxu0 %v6568
          %v6820 = vpop.f32.mrb[0].mxu0
          %v6821 = vadd.f32 0.0, %v6820
          %v6822 = vpop.f32.mrb[0].mxu0
          %v6823 = vpop.f32.mrb[0].mxu0
          %v6824 = vadd.f32 0.0, %v6823
          %v6825 = vpop.f32.mrb[0].mxu0
          %6826 = vmatprep.mubr.bf16.mxu0 0
          %6827 = vmatmul.mubr.bf16.gmra.mrb[0].mxu0 %v6580
          %v6828 = vpop.f32.mrb[0].mxu0
          %v6829 = vadd.f32 0.0, %v6828
          %v6830 = vpop.f32.mrb[0].mxu0
          %v6831 = vpop.f32.mrb[0].mxu0
          %v6832 = vadd.f32 0.0, %v6831
          %v6833 = vpop.f32.mrb[0].mxu0
          %6834 = vmatprep.mubr.bf16.mxu0 0
          %6835 = vmatmul.mubr.bf16.gmra.mrb[0].mxu0 %v6592
          %v6836 = vpop.f32.mrb[0].mxu0
          %v6837 = vadd.f32 0.0, %v6836
          %v6838 = vpop.f32.mrb[0].mxu0
          %v6839 = vpop.f32.mrb[0].mxu0
          %v6840 = vadd.f32 0.0, %v6839
          %v6841 = vpop.f32.mrb[0].mxu0
          %6842 = vmatprep.mubr.bf16.mxu0 0
          %6843 = vmatmul.mubr.bf16.gmra.mrb[0].mxu0 %v6604
          %v6844 = vpop.f32.mrb[0].mxu0
          %v6845 = vadd.f32 0.0, %v6844
          %v6846 = vpop.f32.mrb[0].mxu0
          %v6847 = vpop.f32.mrb[0].mxu0
          %v6848 = vadd.f32 0.0, %v6847
          %v6849 = vpop.f32.mrb[0].mxu0
          %6850 = vmatprep.mubr.bf16.mxu0 0
          %6851 = vmatmul.mubr.bf16.gmra.mrb[0].mxu0 %v6616
          %v6852 = vpop.f32.mrb[0].mxu0
          %v6853 = vadd.f32 0.0, %v6852
          %v6854 = vpop.f32.mrb[0].mxu0
          %v6855 = vpop.f32.mrb[0].mxu0
          %v6856 = vadd.f32 0.0, %v6855
          %v6857 = vpop.f32.mrb[0].mxu0
          %6858 = vdwg.mxu0
          %v6875 = vunpack.c.l.b16 %v6409
          %v6876 = vunpack.c.l.b16 %v6410
          %v6877 = vunpack.c.l.b16 %v6411
          %v6878 = vunpack.c.l.b16 %v6412
          %v6879 = vunpack.c.l.b16 %v6413
          %v6880 = vunpack.c.l.b16 %v6414
          %v6881 = vunpack.c.l.b16 %v6415
          %v6882 = vunpack.c.l.b16 %v6416
          %v6883 = vunpack.c.l.b16 %v6417
          %v6884 = vunpack.c.l.b16 %v6418
          %v6885 = vunpack.c.l.b16 %v6419
          %v6886 = vunpack.c.l.b16 %v6420
          %v6887 = vunpack.c.l.b16 %v6421
          %v6888 = vunpack.c.l.b16 %v6422
          %v6889 = vunpack.c.l.b16 %v6423
          %v6890 = vunpack.c.l.b16 %v6424
          %v6891 = vpack.c.b16 %v6876, %v6875
          %v6892 = vpack.c.b16 %v6878, %v6877
          %v6893 = vpack.c.b16 %v6880, %v6879
          %v6894 = vpack.c.b16 %v6882, %v6881
          %v6895 = vpack.c.b16 %v6884, %v6883
          %v6896 = vpack.c.b16 %v6886, %v6885
          %v6897 = vpack.c.b16 %v6888, %v6887
          %v6898 = vpack.c.b16 %v6890, %v6889
          %6907 = vmatprep.subr.bf16.mxu0 0
          %6908 = vmatpush1.bf16.msra.mxu0 %v6891
          %6909 = vmatprep.subr.bf16.mxu0 0
          %6910 = vmatpush1.bf16.msra.mxu0 %v6892
          %6911 = vmatprep.subr.bf16.mxu0 0
          %6912 = vmatpush1.bf16.msra.mxu0 %v6893
          %6913 = vmatprep.subr.bf16.mxu0 0
          %6914 = vmatpush1.bf16.msra.mxu0 %v6894
          %6915 = vmatprep.subr.bf16.mxu0 0
          %6916 = vmatpush1.bf16.msra.mxu0 %v6895
          %6917 = vmatprep.subr.bf16.mxu0 0
          %6918 = vmatpush1.bf16.msra.mxu0 %v6896
          %6919 = vmatprep.subr.bf16.mxu0 0
          %6920 = vmatpush1.bf16.msra.mxu0 %v6897
          %6921 = vmatprep.subr.bf16.mxu0 0
          %6922 = vmatpush1.bf16.msra.mxu0 %v6898
          %6923 = vmatprep.subr.bf16.mxu0 0
          %6924 = vmatpush1.bf16.msra.mxu0 0
          %6925 = vmatprep.subr.bf16.mxu0 0
          %6926 = vmatpush1.bf16.msra.mxu0 0
          %6927 = vmatprep.subr.bf16.mxu0 0
          %6928 = vmatpush1.bf16.msra.mxu0 0
          %6929 = vmatprep.subr.bf16.mxu0 0
          %6930 = vmatpush1.bf16.msra.mxu0 0
          %6931 = vmatprep.subr.bf16.mxu0 0
          %6932 = vmatpush1.bf16.msra.mxu0 0
          %6933 = vmatprep.subr.bf16.mxu0 0
          %6934 = vmatpush1.bf16.msra.mxu0 0
          %6935 = vmatprep.subr.bf16.mxu0 0
          %6936 = vmatpush1.bf16.msra.mxu0 0
          %6937 = vmatprep.subr.bf16.mxu0 0
          %6938 = vmatpush1.bf16.msra.mxu0 0
          %6939 = vmatprep.mubr.bf16.mxu0 0
          %6940 = vmatmul.mubr.bf16.gmra.mrb[0].mxu0 %v6373
          %v6941 = vpop.f32.mrb[0].mxu0
          %v6942 = vadd.f32 %v6733, %v6941
          %v6943 = vpop.f32.mrb[0].mxu0
          %v6944 = vpop.f32.mrb[0].mxu0
          %v6945 = vadd.f32 %v6736, %v6944
          %v6946 = vpop.f32.mrb[0].mxu0
          %6947 = vmatprep.mubr.bf16.mxu0 0
          %6948 = vmatmul.mubr.bf16.gmra.mrb[0].mxu0 %v6375
          %v6949 = vpop.f32.mrb[0].mxu0
          %v6950 = vadd.f32 %v6741, %v6949
          %v6951 = vpop.f32.mrb[0].mxu0
          %v6952 = vpop.f32.mrb[0].mxu0
          %v6953 = vadd.f32 %v6744, %v6952
          %v6954 = vpop.f32.mrb[0].mxu0
          %6955 = vmatprep.mubr.bf16.mxu0 0
          %6956 = vmatmul.mubr.bf16.gmra.mrb[0].mxu0 %v6377
          %v6957 = vpop.f32.mrb[0].mxu0
          %v6958 = vadd.f32 %v6749, %v6957
          %v6959 = vpop.f32.mrb[0].mxu0
          %v6960 = vpop.f32.mrb[0].mxu0
          %v6961 = vadd.f32 %v6752, %v6960
          %v6962 = vpop.f32.mrb[0].mxu0
          %6963 = vmatprep.mubr.bf16.mxu0 0
          %6964 = vmatmul.mubr.bf16.gmra.mrb[0].mxu0 %v6379
          %v6965 = vpop.f32.mrb[0].mxu0
          %v6966 = vadd.f32 %v6757, %v6965
          %v6967 = vpop.f32.mrb[0].mxu0
          %v6968 = vpop.f32.mrb[0].mxu0
          %v6969 = vadd.f32 %v6760, %v6968
          %v6970 = vpop.f32.mrb[0].mxu0
          %6971 = vmatprep.mubr.bf16.mxu0 0
          %6972 = vmatmul.mubr.bf16.gmra.mrb[0].mxu0 %v6381
          %v6973 = vpop.f32.mrb[0].mxu0
          %v6974 = vadd.f32 %v6765, %v6973
          %v6975 = vpop.f32.mrb[0].mxu0
          %v6976 = vpop.f32.mrb[0].mxu0
          %v6977 = vadd.f32 %v6768, %v6976
          %v6978 = vpop.f32.mrb[0].mxu0
          %6979 = vmatprep.mubr.bf16.mxu0 0
          %6980 = vmatmul.mubr.bf16.gmra.mrb[0].mxu0 %v6383
          %v6981 = vpop.f32.mrb[0].mxu0
          %v6982 = vadd.f32 %v6773, %v6981
          %v6983 = vpop.f32.mrb[0].mxu0
          %v6984 = vpop.f32.mrb[0].mxu0
          %v6985 = vadd.f32 %v6776, %v6984
          %v6986 = vpop.f32.mrb[0].mxu0
          %6987 = vmatprep.mubr.bf16.mxu0 0
          %6988 = vmatmul.mubr.bf16.gmra.mrb[0].mxu0 %v6385
          %v6989 = vpop.f32.mrb[0].mxu0
          %v6990 = vadd.f32 %v6781, %v6989
          %v6991 = vpop.f32.mrb[0].mxu0
          %v6992 = vpop.f32.mrb[0].mxu0
          %v6993 = vadd.f32 %v6784, %v6992
          %v6994 = vpop.f32.mrb[0].mxu0
          %6995 = vmatprep.mubr.bf16.mxu0 0
          %6996 = vmatmul.mubr.bf16.gmra.mrb[0].mxu0 %v6387
          %v6997 = vpop.f32.mrb[0].mxu0
          %v6998 = vadd.f32 %v6789, %v6997
          %v6999 = vpop.f32.mrb[0].mxu0
          %v7000 = vpop.f32.mrb[0].mxu0
          %v7001 = vadd.f32 %v6792, %v7000
          %v7002 = vpop.f32.mrb[0].mxu0
          %7003 = vmatprep.mubr.bf16.mxu0 0
          %7004 = vmatmul.mubr.bf16.gmra.mrb[0].mxu0 %v6389
          %v7005 = vpop.f32.mrb[0].mxu0
          %v7006 = vadd.f32 %v6797, %v7005
          %v7007 = vpop.f32.mrb[0].mxu0
          %v7008 = vpop.f32.mrb[0].mxu0
          %v7009 = vadd.f32 %v6800, %v7008
          %v7010 = vpop.f32.mrb[0].mxu0
          %7011 = vmatprep.mubr.bf16.mxu0 0
          %7012 = vmatmul.mubr.bf16.gmra.mrb[0].mxu0 %v6391
          %v7013 = vpop.f32.mrb[0].mxu0
          %v7014 = vadd.f32 %v6805, %v7013
          %v7015 = vpop.f32.mrb[0].mxu0
          %v7016 = vpop.f32.mrb[0].mxu0
          %v7017 = vadd.f32 %v6808, %v7016
          %v7018 = vpop.f32.mrb[0].mxu0
          %7019 = vmatprep.mubr.bf16.mxu0 0
          %7020 = vmatmul.mubr.bf16.gmra.mrb[0].mxu0 %v6393
          %v7021 = vpop.f32.mrb[0].mxu0
          %v7022 = vadd.f32 %v6813, %v7021
          %v7023 = vpop.f32.mrb[0].mxu0
          %v7024 = vpop.f32.mrb[0].mxu0
          %v7025 = vadd.f32 %v6816, %v7024
          %v7026 = vpop.f32.mrb[0].mxu0
          %7027 = vmatprep.mubr.bf16.mxu0 0
          %7028 = vmatmul.mubr.bf16.gmra.mrb[0].mxu0 %v6395
          %v7029 = vpop.f32.mrb[0].mxu0
          %v7030 = vadd.f32 %v6821, %v7029
          %v7031 = vpop.f32.mrb[0].mxu0
          %v7032 = vpop.f32.mrb[0].mxu0
          %v7033 = vadd.f32 %v6824, %v7032
          %v7034 = vpop.f32.mrb[0].mxu0
          %7035 = vmatprep.mubr.bf16.mxu0 0
          %7036 = vmatmul.mubr.bf16.gmra.mrb[0].mxu0 %v6397
          %v7037 = vpop.f32.mrb[0].mxu0
          %v7038 = vadd.f32 %v6829, %v7037
          %v7039 = vpop.f32.mrb[0].mxu0
          %v7040 = vpop.f32.mrb[0].mxu0
          %v7041 = vadd.f32 %v6832, %v7040
          %v7042 = vpop.f32.mrb[0].mxu0
          %7043 = vmatprep.mubr.bf16.mxu0 0
          %7044 = vmatmul.mubr.bf16.gmra.mrb[0].mxu0 %v6399
          %v7045 = vpop.f32.mrb[0].mxu0
          %v7046 = vadd.f32 %v6837, %v7045
          %v7047 = vpop.f32.mrb[0].mxu0
          %v7048 = vpop.f32.mrb[0].mxu0
          %v7049 = vadd.f32 %v6840, %v7048
          %v7050 = vpop.f32.mrb[0].mxu0
          %7051 = vmatprep.mubr.bf16.mxu0 0
          %7052 = vmatmul.mubr.bf16.gmra.mrb[0].mxu0 %v6401
          %v7053 = vpop.f32.mrb[0].mxu0
          %v7054 = vadd.f32 %v6845, %v7053
          %v7055 = vpop.f32.mrb[0].mxu0
          %v7056 = vpop.f32.mrb[0].mxu0
          %v7057 = vadd.f32 %v6848, %v7056
          %v7058 = vpop.f32.mrb[0].mxu0
          %7059 = vmatprep.mubr.bf16.mxu0 0
          %7060 = vmatmul.mubr.bf16.gmra.mrb[0].mxu0 %v6403
          %v7061 = vpop.f32.mrb[0].mxu0
          %v7062 = vadd.f32 %v6853, %v7061
          %v7063 = vpop.f32.mrb[0].mxu0
          %v7064 = vpop.f32.mrb[0].mxu0
          %v7065 = vadd.f32 %v6856, %v7064
          %v7066 = vpop.f32.mrb[0].mxu0
          %7067 = vdwg.mxu0
          %v7100 = vrot.slane %v6373, 1
          %v7101 = vrot.slane %v6374, 1
          %v7102 = vsel %vm1052, %v7100, %v7101
          %v7103 = vrot.slane %v6375, 1
          %v7104 = vrot.slane %v6376, 1
          %v7105 = vsel %vm1052, %v7103, %v7104
          %v7106 = vrot.slane %v6377, 1
          %v7107 = vrot.slane %v6378, 1
          %v7108 = vsel %vm1052, %v7106, %v7107
          %v7109 = vrot.slane %v6379, 1
          %v7110 = vrot.slane %v6380, 1
          %v7111 = vsel %vm1052, %v7109, %v7110
          %v7112 = vrot.slane %v6381, 1
          %v7113 = vrot.slane %v6382, 1
          %v7114 = vsel %vm1052, %v7112, %v7113
          %v7115 = vrot.slane %v6383, 1
          %v7116 = vrot.slane %v6384, 1
          %v7117 = vsel %vm1052, %v7115, %v7116
          %v7118 = vrot.slane %v6385, 1
          %v7119 = vrot.slane %v6386, 1
          %v7120 = vsel %vm1052, %v7118, %v7119
          %v7121 = vrot.slane %v6387, 1
          %v7122 = vrot.slane %v6388, 1
          %v7123 = vsel %vm1052, %v7121, %v7122
          %v7124 = vrot.slane %v6389, 1
          %v7125 = vrot.slane %v6390, 1
          %v7126 = vsel %vm1052, %v7124, %v7125
          %v7127 = vrot.slane %v6391, 1
          %v7128 = vrot.slane %v6392, 1
          %v7129 = vsel %vm1052, %v7127, %v7128
          %v7130 = vrot.slane %v6393, 1
          %v7131 = vrot.slane %v6394, 1
          %v7132 = vsel %vm1052, %v7130, %v7131
          %v7133 = vrot.slane %v6395, 1
          %v7134 = vrot.slane %v6396, 1
          %v7135 = vsel %vm1052, %v7133, %v7134
          %v7136 = vrot.slane %v6397, 1
          %v7137 = vrot.slane %v6398, 1
          %v7138 = vsel %vm1052, %v7136, %v7137
          %v7139 = vrot.slane %v6399, 1
          %v7140 = vrot.slane %v6400, 1
          %v7141 = vsel %vm1052, %v7139, %v7140
          %v7142 = vrot.slane %v6401, 1
          %v7143 = vrot.slane %v6402, 1
          %v7144 = vsel %vm1052, %v7142, %v7143
          %v7145 = vrot.slane %v6403, 1
          %v7146 = vrot.slane %v6404, 1
          %v7147 = vsel %vm1052, %v7145, %v7146
          %s7164 = scalar_lea.vmem %s2, 128
          %v7165 = vld [vmem:[%s7164] sm:$0xf]
          %v7166 = vld [vmem:[%s7164 + $0x4] sm:$0xf]
          %v7167 = vld [vmem:[%s7164 + $0x8] sm:$0xf]
          %v7168 = vld [vmem:[%s7164 + $0xc] sm:$0xf]
          %v7169 = vld [vmem:[%s7164 + $0x10] sm:$0xf]
          %v7170 = vld [vmem:[%s7164 + $0x14] sm:$0xf]
          %v7171 = vld [vmem:[%s7164 + $0x18] sm:$0xf]
          %v7172 = vld [vmem:[%s7164 + $0x1c] sm:$0xf]
          %v7173 = vld [vmem:[%s7164 + $0x20] sm:$0xf]
          %v7174 = vld [vmem:[%s7164 + $0x24] sm:$0xf]
          %v7175 = vld [vmem:[%s7164 + $0x28] sm:$0xf]
          %v7176 = vld [vmem:[%s7164 + $0x2c] sm:$0xf]
          %v7177 = vld [vmem:[%s7164 + $0x30] sm:$0xf]
          %v7178 = vld [vmem:[%s7164 + $0x34] sm:$0xf]
          %v7179 = vld [vmem:[%s7164 + $0x38] sm:$0xf]
          %v7180 = vld [vmem:[%s7164 + $0x3c] sm:$0xf]
          %v7197 = vunpack.c.l.b16 %v7165
          %v7198 = vunpack.c.l.b16 %v7166
          %v7199 = vunpack.c.l.b16 %v7167
          %v7200 = vunpack.c.l.b16 %v7168
          %v7201 = vunpack.c.l.b16 %v7169
          %v7202 = vunpack.c.l.b16 %v7170
          %v7203 = vunpack.c.l.b16 %v7171
          %v7204 = vunpack.c.l.b16 %v7172
          %v7205 = vunpack.c.l.b16 %v7173
          %v7206 = vunpack.c.l.b16 %v7174
          %v7207 = vunpack.c.l.b16 %v7175
          %v7208 = vunpack.c.l.b16 %v7176
          %v7209 = vunpack.c.l.b16 %v7177
          %v7210 = vunpack.c.l.b16 %v7178
          %v7211 = vunpack.c.l.b16 %v7179
          %v7212 = vunpack.c.l.b16 %v7180
          %v7213 = vpack.c.b16 %v7198, %v7197
          %v7214 = vpack.c.b16 %v7200, %v7199
          %v7215 = vpack.c.b16 %v7202, %v7201
          %v7216 = vpack.c.b16 %v7204, %v7203
          %v7217 = vpack.c.b16 %v7206, %v7205
          %v7218 = vpack.c.b16 %v7208, %v7207
          %v7219 = vpack.c.b16 %v7210, %v7209
          %v7220 = vpack.c.b16 %v7212, %v7211
          %7229 = vmatprep.subr.bf16.mxu0 0
          %7230 = vmatpush1.bf16.msra.mxu0 %v7213
          %7231 = vmatprep.subr.bf16.mxu0 0
          %7232 = vmatpush1.bf16.msra.mxu0 %v7214
          %7233 = vmatprep.subr.bf16.mxu0 0
          %7234 = vmatpush1.bf16.msra.mxu0 %v7215
          %7235 = vmatprep.subr.bf16.mxu0 0
          %7236 = vmatpush1.bf16.msra.mxu0 %v7216
          %7237 = vmatprep.subr.bf16.mxu0 0
          %7238 = vmatpush1.bf16.msra.mxu0 %v7217
          %7239 = vmatprep.subr.bf16.mxu0 0
          %7240 = vmatpush1.bf16.msra.mxu0 %v7218
          %7241 = vmatprep.subr.bf16.mxu0 0
          %7242 = vmatpush1.bf16.msra.mxu0 %v7219
          %7243 = vmatprep.subr.bf16.mxu0 0
          %7244 = vmatpush1.bf16.msra.mxu0 %v7220
          %7245 = vmatprep.subr.bf16.mxu0 0
          %7246 = vmatpush1.bf16.msra.mxu0 0
          %7247 = vmatprep.subr.bf16.mxu0 0
          %7248 = vmatpush1.bf16.msra.mxu0 0
          %7249 = vmatprep.subr.bf16.mxu0 0
          %7250 = vmatpush1.bf16.msra.mxu0 0
          %7251 = vmatprep.subr.bf16.mxu0 0
          %7252 = vmatpush1.bf16.msra.mxu0 0
          %7253 = vmatprep.subr.bf16.mxu0 0
          %7254 = vmatpush1.bf16.msra.mxu0 0
          %7255 = vmatprep.subr.bf16.mxu0 0
          %7256 = vmatpush1.bf16.msra.mxu0 0
          %7257 = vmatprep.subr.bf16.mxu0 0
          %7258 = vmatpush1.bf16.msra.mxu0 0
          %7259 = vmatprep.subr.bf16.mxu0 0
          %7260 = vmatpush1.bf16.msra.mxu0 0
          %7261 = vmatprep.mubr.bf16.mxu0 0
          %7262 = vmatmul.mubr.bf16.gmra.mrb[0].mxu0 %v7102
          %v7263 = vpop.f32.mrb[0].mxu0
          %v7264 = vadd.f32 0.0, %v7263
          %v7265 = vpop.f32.mrb[0].mxu0
          %v7266 = vpop.f32.mrb[0].mxu0
          %v7267 = vadd.f32 0.0, %v7266
          %v7268 = vpop.f32.mrb[0].mxu0
          %7269 = vmatprep.mubr.bf16.mxu0 0
          %7270 = vmatmul.mubr.bf16.gmra.mrb[0].mxu0 %v7105
          %v7271 = vpop.f32.mrb[0].mxu0
          %v7272 = vadd.f32 0.0, %v7271
          %v7273 = vpop.f32.mrb[0].mxu0
          %v7274 = vpop.f32.mrb[0].mxu0
          %v7275 = vadd.f32 0.0, %v7274
          %v7276 = vpop.f32.mrb[0].mxu0
          %7277 = vmatprep.mubr.bf16.mxu0 0
          %7278 = vmatmul.mubr.bf16.gmra.mrb[0].mxu0 %v7108
          %v7279 = vpop.f32.mrb[0].mxu0
          %v7280 = vadd.f32 0.0, %v7279
          %v7281 = vpop.f32.mrb[0].mxu0
          %v7282 = vpop.f32.mrb[0].mxu0
          %v7283 = vadd.f32 0.0, %v7282
          %v7284 = vpop.f32.mrb[0].mxu0
          %7285 = vmatprep.mubr.bf16.mxu0 0
          %7286 = vmatmul.mubr.bf16.gmra.mrb[0].mxu0 %v7111
          %v7287 = vpop.f32.mrb[0].mxu0
          %v7288 = vadd.f32 0.0, %v7287
          %v7289 = vpop.f32.mrb[0].mxu0
          %v7290 = vpop.f32.mrb[0].mxu0
          %v7291 = vadd.f32 0.0, %v7290
          %v7292 = vpop.f32.mrb[0].mxu0
          %7293 = vmatprep.mubr.bf16.mxu0 0
          %7294 = vmatmul.mubr.bf16.gmra.mrb[0].mxu0 %v7114
          %v7295 = vpop.f32.mrb[0].mxu0
          %v7296 = vadd.f32 0.0, %v7295
          %v7297 = vpop.f32.mrb[0].mxu0
          %v7298 = vpop.f32.mrb[0].mxu0
          %v7299 = vadd.f32 0.0, %v7298
          %v7300 = vpop.f32.mrb[0].mxu0
          %7301 = vmatprep.mubr.bf16.mxu0 0
          %7302 = vmatmul.mubr.bf16.gmra.mrb[0].mxu0 %v7117
          %v7303 = vpop.f32.mrb[0].mxu0
          %v7304 = vadd.f32 0.0, %v7303
          %v7305 = vpop.f32.mrb[0].mxu0
          %v7306 = vpop.f32.mrb[0].mxu0
          %v7307 = vadd.f32 0.0, %v7306
          %v7308 = vpop.f32.mrb[0].mxu0
          %7309 = vmatprep.mubr.bf16.mxu0 0
          %7310 = vmatmul.mubr.bf16.gmra.mrb[0].mxu0 %v7120
          %v7311 = vpop.f32.mrb[0].mxu0
          %v7312 = vadd.f32 0.0, %v7311
          %v7313 = vpop.f32.mrb[0].mxu0
          %v7314 = vpop.f32.mrb[0].mxu0
          %v7315 = vadd.f32 0.0, %v7314
          %v7316 = vpop.f32.mrb[0].mxu0
          %7317 = vmatprep.mubr.bf16.mxu0 0
          %7318 = vmatmul.mubr.bf16.gmra.mrb[0].mxu0 %v7123
          %v7319 = vpop.f32.mrb[0].mxu0
          %v7320 = vadd.f32 0.0, %v7319
          %v7321 = vpop.f32.mrb[0].mxu0
          %v7322 = vpop.f32.mrb[0].mxu0
          %v7323 = vadd.f32 0.0, %v7322
          %v7324 = vpop.f32.mrb[0].mxu0
          %7325 = vmatprep.mubr.bf16.mxu0 0
          %7326 = vmatmul.mubr.bf16.gmra.mrb[0].mxu0 %v7126
          %v7327 = vpop.f32.mrb[0].mxu0
          %v7328 = vadd.f32 0.0, %v7327
          %v7329 = vpop.f32.mrb[0].mxu0
          %v7330 = vpop.f32.mrb[0].mxu0
          %v7331 = vadd.f32 0.0, %v7330
          %v7332 = vpop.f32.mrb[0].mxu0
          %7333 = vmatprep.mubr.bf16.mxu0 0
          %7334 = vmatmul.mubr.bf16.gmra.mrb[0].mxu0 %v7129
          %v7335 = vpop.f32.mrb[0].mxu0
          %v7336 = vadd.f32 0.0, %v7335
          %v7337 = vpop.f32.mrb[0].mxu0
          %v7338 = vpop.f32.mrb[0].mxu0
          %v7339 = vadd.f32 0.0, %v7338
          %v7340 = vpop.f32.mrb[0].mxu0
          %7341 = vmatprep.mubr.bf16.mxu0 0
          %7342 = vmatmul.mubr.bf16.gmra.mrb[0].mxu0 %v7132
          %v7343 = vpop.f32.mrb[0].mxu0
          %v7344 = vadd.f32 0.0, %v7343
          %v7345 = vpop.f32.mrb[0].mxu0
          %v7346 = vpop.f32.mrb[0].mxu0
          %v7347 = vadd.f32 0.0, %v7346
          %v7348 = vpop.f32.mrb[0].mxu0
          %7349 = vmatprep.mubr.bf16.mxu0 0
          %7350 = vmatmul.mubr.bf16.gmra.mrb[0].mxu0 %v7135
          %v7351 = vpop.f32.mrb[0].mxu0
          %v7352 = vadd.f32 0.0, %v7351
          %v7353 = vpop.f32.mrb[0].mxu0
          %v7354 = vpop.f32.mrb[0].mxu0
          %v7355 = vadd.f32 0.0, %v7354
          %v7356 = vpop.f32.mrb[0].mxu0
          %7357 = vmatprep.mubr.bf16.mxu0 0
          %7358 = vmatmul.mubr.bf16.gmra.mrb[0].mxu0 %v7138
          %v7359 = vpop.f32.mrb[0].mxu0
          %v7360 = vadd.f32 0.0, %v7359
          %v7361 = vpop.f32.mrb[0].mxu0
          %v7362 = vpop.f32.mrb[0].mxu0
          %v7363 = vadd.f32 0.0, %v7362
          %v7364 = vpop.f32.mrb[0].mxu0
          %7365 = vmatprep.mubr.bf16.mxu0 0
          %7366 = vmatmul.mubr.bf16.gmra.mrb[0].mxu0 %v7141
          %v7367 = vpop.f32.mrb[0].mxu0
          %v7368 = vadd.f32 0.0, %v7367
          %v7369 = vpop.f32.mrb[0].mxu0
          %v7370 = vpop.f32.mrb[0].mxu0
          %v7371 = vadd.f32 0.0, %v7370
          %v7372 = vpop.f32.mrb[0].mxu0
          %7373 = vmatprep.mubr.bf16.mxu0 0
          %7374 = vmatmul.mubr.bf16.gmra.mrb[0].mxu0 %v7144
          %v7375 = vpop.f32.mrb[0].mxu0
          %v7376 = vadd.f32 0.0, %v7375
          %v7377 = vpop.f32.mrb[0].mxu0
          %v7378 = vpop.f32.mrb[0].mxu0
          %v7379 = vadd.f32 0.0, %v7378
          %v7380 = vpop.f32.mrb[0].mxu0
          %7381 = vmatprep.mubr.bf16.mxu0 0
          %7382 = vmatmul.mubr.bf16.gmra.mrb[0].mxu0 %v7147
          %v7383 = vpop.f32.mrb[0].mxu0
          %v7384 = vadd.f32 0.0, %v7383
          %v7385 = vpop.f32.mrb[0].mxu0
          %v7386 = vpop.f32.mrb[0].mxu0
          %v7387 = vadd.f32 0.0, %v7386
          %v7388 = vpop.f32.mrb[0].mxu0
          %7389 = vdwg.mxu0
          %v7390 = vadd.f32 %v6942, %v7264
          %v7391 = vadd.f32 %v6945, %v7267
          %v7392 = vadd.f32 %v6950, %v7272
          %v7393 = vadd.f32 %v6953, %v7275
          %v7394 = vadd.f32 %v6958, %v7280
          %v7395 = vadd.f32 %v6961, %v7283
          %v7396 = vadd.f32 %v6966, %v7288
          %v7397 = vadd.f32 %v6969, %v7291
          %v7398 = vadd.f32 %v6974, %v7296
          %v7399 = vadd.f32 %v6977, %v7299
          %v7400 = vadd.f32 %v6982, %v7304
          %v7401 = vadd.f32 %v6985, %v7307
          %v7402 = vadd.f32 %v6990, %v7312
          %v7403 = vadd.f32 %v6993, %v7315
          %v7404 = vadd.f32 %v6998, %v7320
          %v7405 = vadd.f32 %v7001, %v7323
          %v7406 = vadd.f32 %v7006, %v7328
          %v7407 = vadd.f32 %v7009, %v7331
          %v7408 = vadd.f32 %v7014, %v7336
          %v7409 = vadd.f32 %v7017, %v7339
          %v7410 = vadd.f32 %v7022, %v7344
          %v7411 = vadd.f32 %v7025, %v7347
          %v7412 = vadd.f32 %v7030, %v7352
          %v7413 = vadd.f32 %v7033, %v7355
          %v7414 = vadd.f32 %v7038, %v7360
          %v7415 = vadd.f32 %v7041, %v7363
          %v7416 = vadd.f32 %v7046, %v7368
          %v7417 = vadd.f32 %v7049, %v7371
          %v7418 = vadd.f32 %v7054, %v7376
          %v7419 = vadd.f32 %v7057, %v7379
          %v7420 = vadd.f32 %v7062, %v7384
          %v7421 = vadd.f32 %v7065, %v7387
          %s7422 = scalar_lea.vmem %s2, 192
          %v7423 = vld [vmem:[%s7422] sm:$0xf]
          %v7424 = vld [vmem:[%s7422 + $0x4] sm:$0xf]
          %v7425 = vld [vmem:[%s7422 + $0x8] sm:$0xf]
          %v7426 = vld [vmem:[%s7422 + $0xc] sm:$0xf]
          %v7427 = vld [vmem:[%s7422 + $0x10] sm:$0xf]
          %v7428 = vld [vmem:[%s7422 + $0x14] sm:$0xf]
          %v7429 = vld [vmem:[%s7422 + $0x18] sm:$0xf]
          %v7430 = vld [vmem:[%s7422 + $0x1c] sm:$0xf]
          %v7431 = vld [vmem:[%s7422 + $0x20] sm:$0xf]
          %v7432 = vld [vmem:[%s7422 + $0x24] sm:$0xf]
          %v7433 = vld [vmem:[%s7422 + $0x28] sm:$0xf]
          %v7434 = vld [vmem:[%s7422 + $0x2c] sm:$0xf]
          %v7435 = vld [vmem:[%s7422 + $0x30] sm:$0xf]
          %v7436 = vld [vmem:[%s7422 + $0x34] sm:$0xf]
          %v7437 = vld [vmem:[%s7422 + $0x38] sm:$0xf]
          %v7438 = vld [vmem:[%s7422 + $0x3c] sm:$0xf]
          %v7455 = vunpack.c.l.b16 %v7423
          %v7456 = vunpack.c.l.b16 %v7424
          %v7457 = vunpack.c.l.b16 %v7425
          %v7458 = vunpack.c.l.b16 %v7426
          %v7459 = vunpack.c.l.b16 %v7427
          %v7460 = vunpack.c.l.b16 %v7428
          %v7461 = vunpack.c.l.b16 %v7429
          %v7462 = vunpack.c.l.b16 %v7430
          %v7463 = vunpack.c.l.b16 %v7431
          %v7464 = vunpack.c.l.b16 %v7432
          %v7465 = vunpack.c.l.b16 %v7433
          %v7466 = vunpack.c.l.b16 %v7434
          %v7467 = vunpack.c.l.b16 %v7435
          %v7468 = vunpack.c.l.b16 %v7436
          %v7469 = vunpack.c.l.b16 %v7437
          %v7470 = vunpack.c.l.b16 %v7438
          %v7471 = vpack.c.b16 %v7456, %v7455
          %v7472 = vpack.c.b16 %v7458, %v7457
          %v7473 = vpack.c.b16 %v7460, %v7459
          %v7474 = vpack.c.b16 %v7462, %v7461
          %v7475 = vpack.c.b16 %v7464, %v7463
          %v7476 = vpack.c.b16 %v7466, %v7465
          %v7477 = vpack.c.b16 %v7468, %v7467
          %v7478 = vpack.c.b16 %v7470, %v7469
          %7487 = vmatprep.subr.bf16.mxu0 0
          %7488 = vmatpush1.bf16.msra.mxu0 %v7471
          %7489 = vmatprep.subr.bf16.mxu0 0
          %7490 = vmatpush1.bf16.msra.mxu0 %v7472
          %7491 = vmatprep.subr.bf16.mxu0 0
          %7492 = vmatpush1.bf16.msra.mxu0 %v7473
          %7493 = vmatprep.subr.bf16.mxu0 0
          %7494 = vmatpush1.bf16.msra.mxu0 %v7474
          %7495 = vmatprep.subr.bf16.mxu0 0
          %7496 = vmatpush1.bf16.msra.mxu0 %v7475
          %7497 = vmatprep.subr.bf16.mxu0 0
          %7498 = vmatpush1.bf16.msra.mxu0 %v7476
          %7499 = vmatprep.subr.bf16.mxu0 0
          %7500 = vmatpush1.bf16.msra.mxu0 %v7477
          %7501 = vmatprep.subr.bf16.mxu0 0
          %7502 = vmatpush1.bf16.msra.mxu0 %v7478
          %7503 = vmatprep.subr.bf16.mxu0 0
          %7504 = vmatpush1.bf16.msra.mxu0 0
          %7505 = vmatprep.subr.bf16.mxu0 0
          %7506 = vmatpush1.bf16.msra.mxu0 0
          %7507 = vmatprep.subr.bf16.mxu0 0
          %7508 = vmatpush1.bf16.msra.mxu0 0
          %7509 = vmatprep.subr.bf16.mxu0 0
          %7510 = vmatpush1.bf16.msra.mxu0 0
          %7511 = vmatprep.subr.bf16.mxu0 0
          %7512 = vmatpush1.bf16.msra.mxu0 0
          %7513 = vmatprep.subr.bf16.mxu0 0
          %7514 = vmatpush1.bf16.msra.mxu0 0
          %7515 = vmatprep.subr.bf16.mxu0 0
          %7516 = vmatpush1.bf16.msra.mxu0 0
          %7517 = vmatprep.subr.bf16.mxu0 0
          %7518 = vmatpush1.bf16.msra.mxu0 0
          %7519 = vmatprep.mubr.bf16.mxu0 0
          %7520 = vmatmul.mubr.bf16.gmra.mrb[0].mxu0 %v6375
          %v7521 = vpop.f32.mrb[0].mxu0
          %v7522 = vadd.f32 0.0, %v7521
          %v7523 = vpop.f32.mrb[0].mxu0
          %v7524 = vpop.f32.mrb[0].mxu0
          %v7525 = vadd.f32 0.0, %v7524
          %v7526 = vpop.f32.mrb[0].mxu0
          %7527 = vmatprep.mubr.bf16.mxu0 0
          %7528 = vmatmul.mubr.bf16.gmra.mrb[0].mxu0 %v6377
          %v7529 = vpop.f32.mrb[0].mxu0
          %v7530 = vadd.f32 0.0, %v7529
          %v7531 = vpop.f32.mrb[0].mxu0
          %v7532 = vpop.f32.mrb[0].mxu0
          %v7533 = vadd.f32 0.0, %v7532
          %v7534 = vpop.f32.mrb[0].mxu0
          %7535 = vmatprep.mubr.bf16.mxu0 0
          %7536 = vmatmul.mubr.bf16.gmra.mrb[0].mxu0 %v6379
          %v7537 = vpop.f32.mrb[0].mxu0
          %v7538 = vadd.f32 0.0, %v7537
          %v7539 = vpop.f32.mrb[0].mxu0
          %v7540 = vpop.f32.mrb[0].mxu0
          %v7541 = vadd.f32 0.0, %v7540
          %v7542 = vpop.f32.mrb[0].mxu0
          %7543 = vmatprep.mubr.bf16.mxu0 0
          %7544 = vmatmul.mubr.bf16.gmra.mrb[0].mxu0 %v6381
          %v7545 = vpop.f32.mrb[0].mxu0
          %v7546 = vadd.f32 0.0, %v7545
          %v7547 = vpop.f32.mrb[0].mxu0
          %v7548 = vpop.f32.mrb[0].mxu0
          %v7549 = vadd.f32 0.0, %v7548
          %v7550 = vpop.f32.mrb[0].mxu0
          %7551 = vmatprep.mubr.bf16.mxu0 0
          %7552 = vmatmul.mubr.bf16.gmra.mrb[0].mxu0 %v6383
          %v7553 = vpop.f32.mrb[0].mxu0
          %v7554 = vadd.f32 0.0, %v7553
          %v7555 = vpop.f32.mrb[0].mxu0
          %v7556 = vpop.f32.mrb[0].mxu0
          %v7557 = vadd.f32 0.0, %v7556
          %v7558 = vpop.f32.mrb[0].mxu0
          %7559 = vmatprep.mubr.bf16.mxu0 0
          %7560 = vmatmul.mubr.bf16.gmra.mrb[0].mxu0 %v6385
          %v7561 = vpop.f32.mrb[0].mxu0
          %v7562 = vadd.f32 0.0, %v7561
          %v7563 = vpop.f32.mrb[0].mxu0
          %v7564 = vpop.f32.mrb[0].mxu0
          %v7565 = vadd.f32 0.0, %v7564
          %v7566 = vpop.f32.mrb[0].mxu0
          %7567 = vmatprep.mubr.bf16.mxu0 0
          %7568 = vmatmul.mubr.bf16.gmra.mrb[0].mxu0 %v6387
          %v7569 = vpop.f32.mrb[0].mxu0
          %v7570 = vadd.f32 0.0, %v7569
          %v7571 = vpop.f32.mrb[0].mxu0
          %v7572 = vpop.f32.mrb[0].mxu0
          %v7573 = vadd.f32 0.0, %v7572
          %v7574 = vpop.f32.mrb[0].mxu0
          %7575 = vmatprep.mubr.bf16.mxu0 0
          %7576 = vmatmul.mubr.bf16.gmra.mrb[0].mxu0 %v6389
          %v7577 = vpop.f32.mrb[0].mxu0
          %v7578 = vadd.f32 0.0, %v7577
          %v7579 = vpop.f32.mrb[0].mxu0
          %v7580 = vpop.f32.mrb[0].mxu0
          %v7581 = vadd.f32 0.0, %v7580
          %v7582 = vpop.f32.mrb[0].mxu0
          %7583 = vmatprep.mubr.bf16.mxu0 0
          %7584 = vmatmul.mubr.bf16.gmra.mrb[0].mxu0 %v6391
          %v7585 = vpop.f32.mrb[0].mxu0
          %v7586 = vadd.f32 0.0, %v7585
          %v7587 = vpop.f32.mrb[0].mxu0
          %v7588 = vpop.f32.mrb[0].mxu0
          %v7589 = vadd.f32 0.0, %v7588
          %v7590 = vpop.f32.mrb[0].mxu0
          %7591 = vmatprep.mubr.bf16.mxu0 0
          %7592 = vmatmul.mubr.bf16.gmra.mrb[0].mxu0 %v6393
          %v7593 = vpop.f32.mrb[0].mxu0
          %v7594 = vadd.f32 0.0, %v7593
          %v7595 = vpop.f32.mrb[0].mxu0
          %v7596 = vpop.f32.mrb[0].mxu0
          %v7597 = vadd.f32 0.0, %v7596
          %v7598 = vpop.f32.mrb[0].mxu0
          %7599 = vmatprep.mubr.bf16.mxu0 0
          %7600 = vmatmul.mubr.bf16.gmra.mrb[0].mxu0 %v6395
          %v7601 = vpop.f32.mrb[0].mxu0
          %v7602 = vadd.f32 0.0, %v7601
          %v7603 = vpop.f32.mrb[0].mxu0
          %v7604 = vpop.f32.mrb[0].mxu0
          %v7605 = vadd.f32 0.0, %v7604
          %v7606 = vpop.f32.mrb[0].mxu0
          %7607 = vmatprep.mubr.bf16.mxu0 0
          %7608 = vmatmul.mubr.bf16.gmra.mrb[0].mxu0 %v6397
          %v7609 = vpop.f32.mrb[0].mxu0
          %v7610 = vadd.f32 0.0, %v7609
          %v7611 = vpop.f32.mrb[0].mxu0
          %v7612 = vpop.f32.mrb[0].mxu0
          %v7613 = vadd.f32 0.0, %v7612
          %v7614 = vpop.f32.mrb[0].mxu0
          %7615 = vmatprep.mubr.bf16.mxu0 0
          %7616 = vmatmul.mubr.bf16.gmra.mrb[0].mxu0 %v6399
          %v7617 = vpop.f32.mrb[0].mxu0
          %v7618 = vadd.f32 0.0, %v7617
          %v7619 = vpop.f32.mrb[0].mxu0
          %v7620 = vpop.f32.mrb[0].mxu0
          %v7621 = vadd.f32 0.0, %v7620
          %v7622 = vpop.f32.mrb[0].mxu0
          %7623 = vmatprep.mubr.bf16.mxu0 0
          %7624 = vmatmul.mubr.bf16.gmra.mrb[0].mxu0 %v6401
          %v7625 = vpop.f32.mrb[0].mxu0
          %v7626 = vadd.f32 0.0, %v7625
          %v7627 = vpop.f32.mrb[0].mxu0
          %v7628 = vpop.f32.mrb[0].mxu0
          %v7629 = vadd.f32 0.0, %v7628
          %v7630 = vpop.f32.mrb[0].mxu0
          %7631 = vmatprep.mubr.bf16.mxu0 0
          %7632 = vmatmul.mubr.bf16.gmra.mrb[0].mxu0 %v6403
          %v7633 = vpop.f32.mrb[0].mxu0
          %v7634 = vadd.f32 0.0, %v7633
          %v7635 = vpop.f32.mrb[0].mxu0
          %v7636 = vpop.f32.mrb[0].mxu0
          %v7637 = vadd.f32 0.0, %v7636
          %v7638 = vpop.f32.mrb[0].mxu0
          %7639 = vmatprep.mubr.bf16.mxu0 0
          %7640 = vmatmul.mubr.bf16.gmra.mrb[0].mxu0 %v6405
          %v7641 = vpop.f32.mrb[0].mxu0
          %v7642 = vadd.f32 0.0, %v7641
          %v7643 = vpop.f32.mrb[0].mxu0
          %v7644 = vpop.f32.mrb[0].mxu0
          %v7645 = vadd.f32 0.0, %v7644
          %v7646 = vpop.f32.mrb[0].mxu0
          %7647 = vdwg.mxu0
          %v7648 = vadd.f32 %v7390, %v7522
          %v7649 = vadd.f32 %v7391, %v7525
          %v7650 = vadd.f32 %v7392, %v7530
          %v7651 = vadd.f32 %v7393, %v7533
          %v7652 = vadd.f32 %v7394, %v7538
          %v7653 = vadd.f32 %v7395, %v7541
          %v7654 = vadd.f32 %v7396, %v7546
          %v7655 = vadd.f32 %v7397, %v7549
          %v7656 = vadd.f32 %v7398, %v7554
          %v7657 = vadd.f32 %v7399, %v7557
          %v7658 = vadd.f32 %v7400, %v7562
          %v7659 = vadd.f32 %v7401, %v7565
          %v7660 = vadd.f32 %v7402, %v7570
          %v7661 = vadd.f32 %v7403, %v7573
          %v7662 = vadd.f32 %v7404, %v7578
          %v7663 = vadd.f32 %v7405, %v7581
          %v7664 = vadd.f32 %v7406, %v7586
          %v7665 = vadd.f32 %v7407, %v7589
          %v7666 = vadd.f32 %v7408, %v7594
          %v7667 = vadd.f32 %v7409, %v7597
          %v7668 = vadd.f32 %v7410, %v7602
          %v7669 = vadd.f32 %v7411, %v7605
          %v7670 = vadd.f32 %v7412, %v7610
          %v7671 = vadd.f32 %v7413, %v7613
          %v7672 = vadd.f32 %v7414, %v7618
          %v7673 = vadd.f32 %v7415, %v7621
          %v7674 = vadd.f32 %v7416, %v7626
          %v7675 = vadd.f32 %v7417, %v7629
          %v7676 = vadd.f32 %v7418, %v7634
          %v7677 = vadd.f32 %v7419, %v7637
          %v7678 = vadd.f32 %v7420, %v7642
          %v7679 = vadd.f32 %v7421, %v7645
          %v7681 = vshrl.u32 %v6405, 16
          %v7683 = vshll.u32 %v6405, 16
          %v7685 = vrot.slane %v7683, 1
          %v7686 = vor.u32 %v7681, %v7685
          %v7688 = vshll.u32 %v6406, 16
          %v7690 = vrot.slane %v7688, 1
          %v7691 = vsel %vm376, %v7686, %v7690
          %s7693 = scalar_lea.vmem %s2, 256
          %v7694 = vld [vmem:[%s7693] sm:$0xf]
          %v7695 = vld [vmem:[%s7693 + $0x4] sm:$0xf]
          %v7696 = vld [vmem:[%s7693 + $0x8] sm:$0xf]
          %v7697 = vld [vmem:[%s7693 + $0xc] sm:$0xf]
          %v7698 = vld [vmem:[%s7693 + $0x10] sm:$0xf]
          %v7699 = vld [vmem:[%s7693 + $0x14] sm:$0xf]
          %v7700 = vld [vmem:[%s7693 + $0x18] sm:$0xf]
          %v7701 = vld [vmem:[%s7693 + $0x1c] sm:$0xf]
          %v7702 = vld [vmem:[%s7693 + $0x20] sm:$0xf]
          %v7703 = vld [vmem:[%s7693 + $0x24] sm:$0xf]
          %v7704 = vld [vmem:[%s7693 + $0x28] sm:$0xf]
          %v7705 = vld [vmem:[%s7693 + $0x2c] sm:$0xf]
          %v7706 = vld [vmem:[%s7693 + $0x30] sm:$0xf]
          %v7707 = vld [vmem:[%s7693 + $0x34] sm:$0xf]
          %v7708 = vld [vmem:[%s7693 + $0x38] sm:$0xf]
          %v7709 = vld [vmem:[%s7693 + $0x3c] sm:$0xf]
          %v7726 = vunpack.c.l.b16 %v7694
          %v7727 = vunpack.c.l.b16 %v7695
          %v7728 = vunpack.c.l.b16 %v7696
          %v7729 = vunpack.c.l.b16 %v7697
          %v7730 = vunpack.c.l.b16 %v7698
          %v7731 = vunpack.c.l.b16 %v7699
          %v7732 = vunpack.c.l.b16 %v7700
          %v7733 = vunpack.c.l.b16 %v7701
          %v7734 = vunpack.c.l.b16 %v7702
          %v7735 = vunpack.c.l.b16 %v7703
          %v7736 = vunpack.c.l.b16 %v7704
          %v7737 = vunpack.c.l.b16 %v7705
          %v7738 = vunpack.c.l.b16 %v7706
          %v7739 = vunpack.c.l.b16 %v7707
          %v7740 = vunpack.c.l.b16 %v7708
          %v7741 = vunpack.c.l.b16 %v7709
          %v7742 = vpack.c.b16 %v7727, %v7726
          %v7743 = vpack.c.b16 %v7729, %v7728
          %v7744 = vpack.c.b16 %v7731, %v7730
          %v7745 = vpack.c.b16 %v7733, %v7732
          %v7746 = vpack.c.b16 %v7735, %v7734
          %v7747 = vpack.c.b16 %v7737, %v7736
          %v7748 = vpack.c.b16 %v7739, %v7738
          %v7749 = vpack.c.b16 %v7741, %v7740
          %7758 = vmatprep.subr.bf16.mxu0 0
          %7759 = vmatpush1.bf16.msra.mxu0 %v7742
          %7760 = vmatprep.subr.bf16.mxu0 0
          %7761 = vmatpush1.bf16.msra.mxu0 %v7743
          %7762 = vmatprep.subr.bf16.mxu0 0
          %7763 = vmatpush1.bf16.msra.mxu0 %v7744
          %7764 = vmatprep.subr.bf16.mxu0 0
          %7765 = vmatpush1.bf16.msra.mxu0 %v7745
          %7766 = vmatprep.subr.bf16.mxu0 0
          %7767 = vmatpush1.bf16.msra.mxu0 %v7746
          %7768 = vmatprep.subr.bf16.mxu0 0
          %7769 = vmatpush1.bf16.msra.mxu0 %v7747
          %7770 = vmatprep.subr.bf16.mxu0 0
          %7771 = vmatpush1.bf16.msra.mxu0 %v7748
          %7772 = vmatprep.subr.bf16.mxu0 0
          %7773 = vmatpush1.bf16.msra.mxu0 %v7749
          %7774 = vmatprep.subr.bf16.mxu0 0
          %7775 = vmatpush1.bf16.msra.mxu0 0
          %7776 = vmatprep.subr.bf16.mxu0 0
          %7777 = vmatpush1.bf16.msra.mxu0 0
          %7778 = vmatprep.subr.bf16.mxu0 0
          %7779 = vmatpush1.bf16.msra.mxu0 0
          %7780 = vmatprep.subr.bf16.mxu0 0
          %7781 = vmatpush1.bf16.msra.mxu0 0
          %7782 = vmatprep.subr.bf16.mxu0 0
          %7783 = vmatpush1.bf16.msra.mxu0 0
          %7784 = vmatprep.subr.bf16.mxu0 0
          %7785 = vmatpush1.bf16.msra.mxu0 0
          %7786 = vmatprep.subr.bf16.mxu0 0
          %7787 = vmatpush1.bf16.msra.mxu0 0
          %7788 = vmatprep.subr.bf16.mxu0 0
          %7789 = vmatpush1.bf16.msra.mxu0 0
          %7790 = vmatprep.mubr.bf16.mxu0 0
          %7791 = vmatmul.mubr.bf16.gmra.mrb[0].mxu0 %v6448
          %v7792 = vpop.f32.mrb[0].mxu0
          %v7793 = vadd.f32 0.0, %v7792
          %v7794 = vpop.f32.mrb[0].mxu0
          %v7795 = vpop.f32.mrb[0].mxu0
          %v7796 = vadd.f32 0.0, %v7795
          %v7797 = vpop.f32.mrb[0].mxu0
          %7798 = vmatprep.mubr.bf16.mxu0 0
          %7799 = vmatmul.mubr.bf16.gmra.mrb[0].mxu0 %v6460
          %v7800 = vpop.f32.mrb[0].mxu0
          %v7801 = vadd.f32 0.0, %v7800
          %v7802 = vpop.f32.mrb[0].mxu0
          %v7803 = vpop.f32.mrb[0].mxu0
          %v7804 = vadd.f32 0.0, %v7803
          %v7805 = vpop.f32.mrb[0].mxu0
          %7806 = vmatprep.mubr.bf16.mxu0 0
          %7807 = vmatmul.mubr.bf16.gmra.mrb[0].mxu0 %v6472
          %v7808 = vpop.f32.mrb[0].mxu0
          %v7809 = vadd.f32 0.0, %v7808
          %v7810 = vpop.f32.mrb[0].mxu0
          %v7811 = vpop.f32.mrb[0].mxu0
          %v7812 = vadd.f32 0.0, %v7811
          %v7813 = vpop.f32.mrb[0].mxu0
          %7814 = vmatprep.mubr.bf16.mxu0 0
          %7815 = vmatmul.mubr.bf16.gmra.mrb[0].mxu0 %v6484
          %v7816 = vpop.f32.mrb[0].mxu0
          %v7817 = vadd.f32 0.0, %v7816
          %v7818 = vpop.f32.mrb[0].mxu0
          %v7819 = vpop.f32.mrb[0].mxu0
          %v7820 = vadd.f32 0.0, %v7819
          %v7821 = vpop.f32.mrb[0].mxu0
          %7822 = vmatprep.mubr.bf16.mxu0 0
          %7823 = vmatmul.mubr.bf16.gmra.mrb[0].mxu0 %v6496
          %v7824 = vpop.f32.mrb[0].mxu0
          %v7825 = vadd.f32 0.0, %v7824
          %v7826 = vpop.f32.mrb[0].mxu0
          %v7827 = vpop.f32.mrb[0].mxu0
          %v7828 = vadd.f32 0.0, %v7827
          %v7829 = vpop.f32.mrb[0].mxu0
          %7830 = vmatprep.mubr.bf16.mxu0 0
          %7831 = vmatmul.mubr.bf16.gmra.mrb[0].mxu0 %v6508
          %v7832 = vpop.f32.mrb[0].mxu0
          %v7833 = vadd.f32 0.0, %v7832
          %v7834 = vpop.f32.mrb[0].mxu0
          %v7835 = vpop.f32.mrb[0].mxu0
          %v7836 = vadd.f32 0.0, %v7835
          %v7837 = vpop.f32.mrb[0].mxu0
          %7838 = vmatprep.mubr.bf16.mxu0 0
          %7839 = vmatmul.mubr.bf16.gmra.mrb[0].mxu0 %v6520
          %v7840 = vpop.f32.mrb[0].mxu0
          %v7841 = vadd.f32 0.0, %v7840
          %v7842 = vpop.f32.mrb[0].mxu0
          %v7843 = vpop.f32.mrb[0].mxu0
          %v7844 = vadd.f32 0.0, %v7843
          %v7845 = vpop.f32.mrb[0].mxu0
          %7846 = vmatprep.mubr.bf16.mxu0 0
          %7847 = vmatmul.mubr.bf16.gmra.mrb[0].mxu0 %v6532
          %v7848 = vpop.f32.mrb[0].mxu0
          %v7849 = vadd.f32 0.0, %v7848
          %v7850 = vpop.f32.mrb[0].mxu0
          %v7851 = vpop.f32.mrb[0].mxu0
          %v7852 = vadd.f32 0.0, %v7851
          %v7853 = vpop.f32.mrb[0].mxu0
          %7854 = vmatprep.mubr.bf16.mxu0 0
          %7855 = vmatmul.mubr.bf16.gmra.mrb[0].mxu0 %v6544
          %v7856 = vpop.f32.mrb[0].mxu0
          %v7857 = vadd.f32 0.0, %v7856
          %v7858 = vpop.f32.mrb[0].mxu0
          %v7859 = vpop.f32.mrb[0].mxu0
          %v7860 = vadd.f32 0.0, %v7859
          %v7861 = vpop.f32.mrb[0].mxu0
          %7862 = vmatprep.mubr.bf16.mxu0 0
          %7863 = vmatmul.mubr.bf16.gmra.mrb[0].mxu0 %v6556
          %v7864 = vpop.f32.mrb[0].mxu0
          %v7865 = vadd.f32 0.0, %v7864
          %v7866 = vpop.f32.mrb[0].mxu0
          %v7867 = vpop.f32.mrb[0].mxu0
          %v7868 = vadd.f32 0.0, %v7867
          %v7869 = vpop.f32.mrb[0].mxu0
          %7870 = vmatprep.mubr.bf16.mxu0 0
          %7871 = vmatmul.mubr.bf16.gmra.mrb[0].mxu0 %v6568
          %v7872 = vpop.f32.mrb[0].mxu0
          %v7873 = vadd.f32 0.0, %v7872
          %v7874 = vpop.f32.mrb[0].mxu0
          %v7875 = vpop.f32.mrb[0].mxu0
          %v7876 = vadd.f32 0.0, %v7875
          %v7877 = vpop.f32.mrb[0].mxu0
          %7878 = vmatprep.mubr.bf16.mxu0 0
          %7879 = vmatmul.mubr.bf16.gmra.mrb[0].mxu0 %v6580
          %v7880 = vpop.f32.mrb[0].mxu0
          %v7881 = vadd.f32 0.0, %v7880
          %v7882 = vpop.f32.mrb[0].mxu0
          %v7883 = vpop.f32.mrb[0].mxu0
          %v7884 = vadd.f32 0.0, %v7883
          %v7885 = vpop.f32.mrb[0].mxu0
          %7886 = vmatprep.mubr.bf16.mxu0 0
          %7887 = vmatmul.mubr.bf16.gmra.mrb[0].mxu0 %v6592
          %v7888 = vpop.f32.mrb[0].mxu0
          %v7889 = vadd.f32 0.0, %v7888
          %v7890 = vpop.f32.mrb[0].mxu0
          %v7891 = vpop.f32.mrb[0].mxu0
          %v7892 = vadd.f32 0.0, %v7891
          %v7893 = vpop.f32.mrb[0].mxu0
          %7894 = vmatprep.mubr.bf16.mxu0 0
          %7895 = vmatmul.mubr.bf16.gmra.mrb[0].mxu0 %v6604
          %v7896 = vpop.f32.mrb[0].mxu0
          %v7897 = vadd.f32 0.0, %v7896
          %v7898 = vpop.f32.mrb[0].mxu0
          %v7899 = vpop.f32.mrb[0].mxu0
          %v7900 = vadd.f32 0.0, %v7899
          %v7901 = vpop.f32.mrb[0].mxu0
          %7902 = vmatprep.mubr.bf16.mxu0 0
          %7903 = vmatmul.mubr.bf16.gmra.mrb[0].mxu0 %v6616
          %v7904 = vpop.f32.mrb[0].mxu0
          %v7905 = vadd.f32 0.0, %v7904
          %v7906 = vpop.f32.mrb[0].mxu0
          %v7907 = vpop.f32.mrb[0].mxu0
          %v7908 = vadd.f32 0.0, %v7907
          %v7909 = vpop.f32.mrb[0].mxu0
          %7910 = vmatprep.mubr.bf16.mxu0 0
          %7911 = vmatmul.mubr.bf16.gmra.mrb[0].mxu0 %v7691
          %v7912 = vpop.f32.mrb[0].mxu0
          %v7913 = vadd.f32 0.0, %v7912
          %v7914 = vpop.f32.mrb[0].mxu0
          %v7915 = vpop.f32.mrb[0].mxu0
          %v7916 = vadd.f32 0.0, %v7915
          %v7917 = vpop.f32.mrb[0].mxu0
          %7918 = vdwg.mxu0
          %v7919 = vadd.f32 %v7648, %v7793
          %v7920 = vadd.f32 %v7649, %v7796
          %v7921 = vadd.f32 %v7650, %v7801
          %v7922 = vadd.f32 %v7651, %v7804
          %v7923 = vadd.f32 %v7652, %v7809
          %v7924 = vadd.f32 %v7653, %v7812
          %v7925 = vadd.f32 %v7654, %v7817
          %v7926 = vadd.f32 %v7655, %v7820
          %v7927 = vadd.f32 %v7656, %v7825
          %v7928 = vadd.f32 %v7657, %v7828
          %v7929 = vadd.f32 %v7658, %v7833
          %v7930 = vadd.f32 %v7659, %v7836
          %v7931 = vadd.f32 %v7660, %v7841
          %v7932 = vadd.f32 %v7661, %v7844
          %v7933 = vadd.f32 %v7662, %v7849
          %v7934 = vadd.f32 %v7663, %v7852
          %v7935 = vadd.f32 %v7664, %v7857
          %v7936 = vadd.f32 %v7665, %v7860
          %v7937 = vadd.f32 %v7666, %v7865
          %v7938 = vadd.f32 %v7667, %v7868
          %v7939 = vadd.f32 %v7668, %v7873
          %v7940 = vadd.f32 %v7669, %v7876
          %v7941 = vadd.f32 %v7670, %v7881
          %v7942 = vadd.f32 %v7671, %v7884
          %v7943 = vadd.f32 %v7672, %v7889
          %v7944 = vadd.f32 %v7673, %v7892
          %v7945 = vadd.f32 %v7674, %v7897
          %v7946 = vadd.f32 %v7675, %v7900
          %v7947 = vadd.f32 %v7676, %v7905
          %v7948 = vadd.f32 %v7677, %v7908
          %v7949 = vadd.f32 %v7678, %v7913
          %v7950 = vadd.f32 %v7679, %v7916
          %v7953 = vrot.slane %v6405, 1
          %v7954 = vrot.slane %v6406, 1
          %v7955 = vsel %vm1052, %v7953, %v7954
          %s7957 = scalar_lea.vmem %s2, 320
          %v7958 = vld [vmem:[%s7957] sm:$0xf]
          %v7959 = vld [vmem:[%s7957 + $0x4] sm:$0xf]
          %v7960 = vld [vmem:[%s7957 + $0x8] sm:$0xf]
          %v7961 = vld [vmem:[%s7957 + $0xc] sm:$0xf]
          %v7962 = vld [vmem:[%s7957 + $0x10] sm:$0xf]
          %v7963 = vld [vmem:[%s7957 + $0x14] sm:$0xf]
          %v7964 = vld [vmem:[%s7957 + $0x18] sm:$0xf]
          %v7965 = vld [vmem:[%s7957 + $0x1c] sm:$0xf]
          %v7966 = vld [vmem:[%s7957 + $0x20] sm:$0xf]
          %v7967 = vld [vmem:[%s7957 + $0x24] sm:$0xf]
          %v7968 = vld [vmem:[%s7957 + $0x28] sm:$0xf]
          %v7969 = vld [vmem:[%s7957 + $0x2c] sm:$0xf]
          %v7970 = vld [vmem:[%s7957 + $0x30] sm:$0xf]
          %v7971 = vld [vmem:[%s7957 + $0x34] sm:$0xf]
          %v7972 = vld [vmem:[%s7957 + $0x38] sm:$0xf]
          %v7973 = vld [vmem:[%s7957 + $0x3c] sm:$0xf]
          %v7990 = vunpack.c.l.b16 %v7958
          %v7991 = vunpack.c.l.b16 %v7959
          %v7992 = vunpack.c.l.b16 %v7960
          %v7993 = vunpack.c.l.b16 %v7961
          %v7994 = vunpack.c.l.b16 %v7962
          %v7995 = vunpack.c.l.b16 %v7963
          %v7996 = vunpack.c.l.b16 %v7964
          %v7997 = vunpack.c.l.b16 %v7965
          %v7998 = vunpack.c.l.b16 %v7966
          %v7999 = vunpack.c.l.b16 %v7967
          %v8000 = vunpack.c.l.b16 %v7968
          %v8001 = vunpack.c.l.b16 %v7969
          %v8002 = vunpack.c.l.b16 %v7970
          %v8003 = vunpack.c.l.b16 %v7971
          %v8004 = vunpack.c.l.b16 %v7972
          %v8005 = vunpack.c.l.b16 %v7973
          %v8006 = vpack.c.b16 %v7991, %v7990
          %v8007 = vpack.c.b16 %v7993, %v7992
          %v8008 = vpack.c.b16 %v7995, %v7994
          %v8009 = vpack.c.b16 %v7997, %v7996
          %v8010 = vpack.c.b16 %v7999, %v7998
          %v8011 = vpack.c.b16 %v8001, %v8000
          %v8012 = vpack.c.b16 %v8003, %v8002
          %v8013 = vpack.c.b16 %v8005, %v8004
          %8022 = vmatprep.subr.bf16.mxu0 0
          %8023 = vmatpush1.bf16.msra.mxu0 %v8006
          %8024 = vmatprep.subr.bf16.mxu0 0
          %8025 = vmatpush1.bf16.msra.mxu0 %v8007
          %8026 = vmatprep.subr.bf16.mxu0 0
          %8027 = vmatpush1.bf16.msra.mxu0 %v8008
          %8028 = vmatprep.subr.bf16.mxu0 0
          %8029 = vmatpush1.bf16.msra.mxu0 %v8009
          %8030 = vmatprep.subr.bf16.mxu0 0
          %8031 = vmatpush1.bf16.msra.mxu0 %v8010
          %8032 = vmatprep.subr.bf16.mxu0 0
          %8033 = vmatpush1.bf16.msra.mxu0 %v8011
          %8034 = vmatprep.subr.bf16.mxu0 0
          %8035 = vmatpush1.bf16.msra.mxu0 %v8012
          %8036 = vmatprep.subr.bf16.mxu0 0
          %8037 = vmatpush1.bf16.msra.mxu0 %v8013
          %8038 = vmatprep.subr.bf16.mxu0 0
          %8039 = vmatpush1.bf16.msra.mxu0 0
          %8040 = vmatprep.subr.bf16.mxu0 0
          %8041 = vmatpush1.bf16.msra.mxu0 0
          %8042 = vmatprep.subr.bf16.mxu0 0
          %8043 = vmatpush1.bf16.msra.mxu0 0
          %8044 = vmatprep.subr.bf16.mxu0 0
          %8045 = vmatpush1.bf16.msra.mxu0 0
          %8046 = vmatprep.subr.bf16.mxu0 0
          %8047 = vmatpush1.bf16.msra.mxu0 0
          %8048 = vmatprep.subr.bf16.mxu0 0
          %8049 = vmatpush1.bf16.msra.mxu0 0
          %8050 = vmatprep.subr.bf16.mxu0 0
          %8051 = vmatpush1.bf16.msra.mxu0 0
          %8052 = vmatprep.subr.bf16.mxu0 0
          %8053 = vmatpush1.bf16.msra.mxu0 0
          %8054 = vmatprep.mubr.bf16.mxu0 0
          %8055 = vmatmul.mubr.bf16.gmra.mrb[0].mxu0 %v7105
          %v8056 = vpop.f32.mrb[0].mxu0
          %v8057 = vadd.f32 0.0, %v8056
          %v8058 = vpop.f32.mrb[0].mxu0
          %v8059 = vpop.f32.mrb[0].mxu0
          %v8060 = vadd.f32 0.0, %v8059
          %v8061 = vpop.f32.mrb[0].mxu0
          %8062 = vmatprep.mubr.bf16.mxu0 0
          %8063 = vmatmul.mubr.bf16.gmra.mrb[0].mxu0 %v7108
          %v8064 = vpop.f32.mrb[0].mxu0
          %v8065 = vadd.f32 0.0, %v8064
          %v8066 = vpop.f32.mrb[0].mxu0
          %v8067 = vpop.f32.mrb[0].mxu0
          %v8068 = vadd.f32 0.0, %v8067
          %v8069 = vpop.f32.mrb[0].mxu0
          %8070 = vmatprep.mubr.bf16.mxu0 0
          %8071 = vmatmul.mubr.bf16.gmra.mrb[0].mxu0 %v7111
          %v8072 = vpop.f32.mrb[0].mxu0
          %v8073 = vadd.f32 0.0, %v8072
          %v8074 = vpop.f32.mrb[0].mxu0
          %v8075 = vpop.f32.mrb[0].mxu0
          %v8076 = vadd.f32 0.0, %v8075
          %v8077 = vpop.f32.mrb[0].mxu0
          %8078 = vmatprep.mubr.bf16.mxu0 0
          %8079 = vmatmul.mubr.bf16.gmra.mrb[0].mxu0 %v7114
          %v8080 = vpop.f32.mrb[0].mxu0
          %v8081 = vadd.f32 0.0, %v8080
          %v8082 = vpop.f32.mrb[0].mxu0
          %v8083 = vpop.f32.mrb[0].mxu0
          %v8084 = vadd.f32 0.0, %v8083
          %v8085 = vpop.f32.mrb[0].mxu0
          %8086 = vmatprep.mubr.bf16.mxu0 0
          %8087 = vmatmul.mubr.bf16.gmra.mrb[0].mxu0 %v7117
          %v8088 = vpop.f32.mrb[0].mxu0
          %v8089 = vadd.f32 0.0, %v8088
          %v8090 = vpop.f32.mrb[0].mxu0
          %v8091 = vpop.f32.mrb[0].mxu0
          %v8092 = vadd.f32 0.0, %v8091
          %v8093 = vpop.f32.mrb[0].mxu0
          %8094 = vmatprep.mubr.bf16.mxu0 0
          %8095 = vmatmul.mubr.bf16.gmra.mrb[0].mxu0 %v7120
          %v8096 = vpop.f32.mrb[0].mxu0
          %v8097 = vadd.f32 0.0, %v8096
          %v8098 = vpop.f32.mrb[0].mxu0
          %v8099 = vpop.f32.mrb[0].mxu0
          %v8100 = vadd.f32 0.0, %v8099
          %v8101 = vpop.f32.mrb[0].mxu0
          %8102 = vmatprep.mubr.bf16.mxu0 0
          %8103 = vmatmul.mubr.bf16.gmra.mrb[0].mxu0 %v7123
          %v8104 = vpop.f32.mrb[0].mxu0
          %v8105 = vadd.f32 0.0, %v8104
          %v8106 = vpop.f32.mrb[0].mxu0
          %v8107 = vpop.f32.mrb[0].mxu0
          %v8108 = vadd.f32 0.0, %v8107
          %v8109 = vpop.f32.mrb[0].mxu0
          %8110 = vmatprep.mubr.bf16.mxu0 0
          %8111 = vmatmul.mubr.bf16.gmra.mrb[0].mxu0 %v7126
          %v8112 = vpop.f32.mrb[0].mxu0
          %v8113 = vadd.f32 0.0, %v8112
          %v8114 = vpop.f32.mrb[0].mxu0
          %v8115 = vpop.f32.mrb[0].mxu0
          %v8116 = vadd.f32 0.0, %v8115
          %v8117 = vpop.f32.mrb[0].mxu0
          %8118 = vmatprep.mubr.bf16.mxu0 0
          %8119 = vmatmul.mubr.bf16.gmra.mrb[0].mxu0 %v7129
          %v8120 = vpop.f32.mrb[0].mxu0
          %v8121 = vadd.f32 0.0, %v8120
          %v8122 = vpop.f32.mrb[0].mxu0
          %v8123 = vpop.f32.mrb[0].mxu0
          %v8124 = vadd.f32 0.0, %v8123
          %v8125 = vpop.f32.mrb[0].mxu0
          %8126 = vmatprep.mubr.bf16.mxu0 0
          %8127 = vmatmul.mubr.bf16.gmra.mrb[0].mxu0 %v7132
          %v8128 = vpop.f32.mrb[0].mxu0
          %v8129 = vadd.f32 0.0, %v8128
          %v8130 = vpop.f32.mrb[0].mxu0
          %v8131 = vpop.f32.mrb[0].mxu0
          %v8132 = vadd.f32 0.0, %v8131
          %v8133 = vpop.f32.mrb[0].mxu0
          %8134 = vmatprep.mubr.bf16.mxu0 0
          %8135 = vmatmul.mubr.bf16.gmra.mrb[0].mxu0 %v7135
          %v8136 = vpop.f32.mrb[0].mxu0
          %v8137 = vadd.f32 0.0, %v8136
          %v8138 = vpop.f32.mrb[0].mxu0
          %v8139 = vpop.f32.mrb[0].mxu0
          %v8140 = vadd.f32 0.0, %v8139
          %v8141 = vpop.f32.mrb[0].mxu0
          %8142 = vmatprep.mubr.bf16.mxu0 0
          %8143 = vmatmul.mubr.bf16.gmra.mrb[0].mxu0 %v7138
          %v8144 = vpop.f32.mrb[0].mxu0
          %v8145 = vadd.f32 0.0, %v8144
          %v8146 = vpop.f32.mrb[0].mxu0
          %v8147 = vpop.f32.mrb[0].mxu0
          %v8148 = vadd.f32 0.0, %v8147
          %v8149 = vpop.f32.mrb[0].mxu0
          %8150 = vmatprep.mubr.bf16.mxu0 0
          %8151 = vmatmul.mubr.bf16.gmra.mrb[0].mxu0 %v7141
          %v8152 = vpop.f32.mrb[0].mxu0
          %v8153 = vadd.f32 0.0, %v8152
          %v8154 = vpop.f32.mrb[0].mxu0
          %v8155 = vpop.f32.mrb[0].mxu0
          %v8156 = vadd.f32 0.0, %v8155
          %v8157 = vpop.f32.mrb[0].mxu0
          %8158 = vmatprep.mubr.bf16.mxu0 0
          %8159 = vmatmul.mubr.bf16.gmra.mrb[0].mxu0 %v7144
          %v8160 = vpop.f32.mrb[0].mxu0
          %v8161 = vadd.f32 0.0, %v8160
          %v8162 = vpop.f32.mrb[0].mxu0
          %v8163 = vpop.f32.mrb[0].mxu0
          %v8164 = vadd.f32 0.0, %v8163
          %v8165 = vpop.f32.mrb[0].mxu0
          %8166 = vmatprep.mubr.bf16.mxu0 0
          %8167 = vmatmul.mubr.bf16.gmra.mrb[0].mxu0 %v7147
          %v8168 = vpop.f32.mrb[0].mxu0
          %v8169 = vadd.f32 0.0, %v8168
          %v8170 = vpop.f32.mrb[0].mxu0
          %v8171 = vpop.f32.mrb[0].mxu0
          %v8172 = vadd.f32 0.0, %v8171
          %v8173 = vpop.f32.mrb[0].mxu0
          %8174 = vmatprep.mubr.bf16.mxu0 0
          %8175 = vmatmul.mubr.bf16.gmra.mrb[0].mxu0 %v7955
          %v8176 = vpop.f32.mrb[0].mxu0
          %v8177 = vadd.f32 0.0, %v8176
          %v8178 = vpop.f32.mrb[0].mxu0
          %v8179 = vpop.f32.mrb[0].mxu0
          %v8180 = vadd.f32 0.0, %v8179
          %v8181 = vpop.f32.mrb[0].mxu0
          %8182 = vdwg.mxu0
          %v8183 = vadd.f32 %v7919, %v8057
          %v8184 = vadd.f32 %v7920, %v8060
          %v8185 = vadd.f32 %v7921, %v8065
          %v8186 = vadd.f32 %v7922, %v8068
          %v8187 = vadd.f32 %v7923, %v8073
          %v8188 = vadd.f32 %v7924, %v8076
          %v8189 = vadd.f32 %v7925, %v8081
          %v8190 = vadd.f32 %v7926, %v8084
          %v8191 = vadd.f32 %v7927, %v8089
          %v8192 = vadd.f32 %v7928, %v8092
          %v8193 = vadd.f32 %v7929, %v8097
          %v8194 = vadd.f32 %v7930, %v8100
          %v8195 = vadd.f32 %v7931, %v8105
          %v8196 = vadd.f32 %v7932, %v8108
          %v8197 = vadd.f32 %v7933, %v8113
          %v8198 = vadd.f32 %v7934, %v8116
          %v8199 = vadd.f32 %v7935, %v8121
          %v8200 = vadd.f32 %v7936, %v8124
          %v8201 = vadd.f32 %v7937, %v8129
          %v8202 = vadd.f32 %v7938, %v8132
          %v8203 = vadd.f32 %v7939, %v8137
          %v8204 = vadd.f32 %v7940, %v8140
          %v8205 = vadd.f32 %v7941, %v8145
          %v8206 = vadd.f32 %v7942, %v8148
          %v8207 = vadd.f32 %v7943, %v8153
          %v8208 = vadd.f32 %v7944, %v8156
          %v8209 = vadd.f32 %v7945, %v8161
          %v8210 = vadd.f32 %v7946, %v8164
          %v8211 = vadd.f32 %v7947, %v8169
          %v8212 = vadd.f32 %v7948, %v8172
          %v8213 = vadd.f32 %v7949, %v8177
          %v8214 = vadd.f32 %v7950, %v8180
          %s8215 = scalar_lea.vmem %s2, 384
          %v8216 = vld [vmem:[%s8215] sm:$0xf]
          %v8217 = vld [vmem:[%s8215 + $0x4] sm:$0xf]
          %v8218 = vld [vmem:[%s8215 + $0x8] sm:$0xf]
          %v8219 = vld [vmem:[%s8215 + $0xc] sm:$0xf]
          %v8220 = vld [vmem:[%s8215 + $0x10] sm:$0xf]
          %v8221 = vld [vmem:[%s8215 + $0x14] sm:$0xf]
          %v8222 = vld [vmem:[%s8215 + $0x18] sm:$0xf]
          %v8223 = vld [vmem:[%s8215 + $0x1c] sm:$0xf]
          %v8224 = vld [vmem:[%s8215 + $0x20] sm:$0xf]
          %v8225 = vld [vmem:[%s8215 + $0x24] sm:$0xf]
          %v8226 = vld [vmem:[%s8215 + $0x28] sm:$0xf]
          %v8227 = vld [vmem:[%s8215 + $0x2c] sm:$0xf]
          %v8228 = vld [vmem:[%s8215 + $0x30] sm:$0xf]
          %v8229 = vld [vmem:[%s8215 + $0x34] sm:$0xf]
          %v8230 = vld [vmem:[%s8215 + $0x38] sm:$0xf]
          %v8231 = vld [vmem:[%s8215 + $0x3c] sm:$0xf]
          %v8248 = vunpack.c.l.b16 %v8216
          %v8249 = vunpack.c.l.b16 %v8217
          %v8250 = vunpack.c.l.b16 %v8218
          %v8251 = vunpack.c.l.b16 %v8219
          %v8252 = vunpack.c.l.b16 %v8220
          %v8253 = vunpack.c.l.b16 %v8221
          %v8254 = vunpack.c.l.b16 %v8222
          %v8255 = vunpack.c.l.b16 %v8223
          %v8256 = vunpack.c.l.b16 %v8224
          %v8257 = vunpack.c.l.b16 %v8225
          %v8258 = vunpack.c.l.b16 %v8226
          %v8259 = vunpack.c.l.b16 %v8227
          %v8260 = vunpack.c.l.b16 %v8228
          %v8261 = vunpack.c.l.b16 %v8229
          %v8262 = vunpack.c.l.b16 %v8230
          %v8263 = vunpack.c.l.b16 %v8231
          %v8264 = vpack.c.b16 %v8249, %v8248
          %v8265 = vpack.c.b16 %v8251, %v8250
          %v8266 = vpack.c.b16 %v8253, %v8252
          %v8267 = vpack.c.b16 %v8255, %v8254
          %v8268 = vpack.c.b16 %v8257, %v8256
          %v8269 = vpack.c.b16 %v8259, %v8258
          %v8270 = vpack.c.b16 %v8261, %v8260
          %v8271 = vpack.c.b16 %v8263, %v8262
          %8280 = vmatprep.subr.bf16.mxu0 0
          %8281 = vmatpush1.bf16.msra.mxu0 %v8264
          %8282 = vmatprep.subr.bf16.mxu0 0
          %8283 = vmatpush1.bf16.msra.mxu0 %v8265
          %8284 = vmatprep.subr.bf16.mxu0 0
          %8285 = vmatpush1.bf16.msra.mxu0 %v8266
          %8286 = vmatprep.subr.bf16.mxu0 0
          %8287 = vmatpush1.bf16.msra.mxu0 %v8267
          %8288 = vmatprep.subr.bf16.mxu0 0
          %8289 = vmatpush1.bf16.msra.mxu0 %v8268
          %8290 = vmatprep.subr.bf16.mxu0 0
          %8291 = vmatpush1.bf16.msra.mxu0 %v8269
          %8292 = vmatprep.subr.bf16.mxu0 0
          %8293 = vmatpush1.bf16.msra.mxu0 %v8270
          %8294 = vmatprep.subr.bf16.mxu0 0
          %8295 = vmatpush1.bf16.msra.mxu0 %v8271
          %8296 = vmatprep.subr.bf16.mxu0 0
          %8297 = vmatpush1.bf16.msra.mxu0 0
          %8298 = vmatprep.subr.bf16.mxu0 0
          %8299 = vmatpush1.bf16.msra.mxu0 0
          %8300 = vmatprep.subr.bf16.mxu0 0
          %8301 = vmatpush1.bf16.msra.mxu0 0
          %8302 = vmatprep.subr.bf16.mxu0 0
          %8303 = vmatpush1.bf16.msra.mxu0 0
          %8304 = vmatprep.subr.bf16.mxu0 0
          %8305 = vmatpush1.bf16.msra.mxu0 0
          %8306 = vmatprep.subr.bf16.mxu0 0
          %8307 = vmatpush1.bf16.msra.mxu0 0
          %8308 = vmatprep.subr.bf16.mxu0 0
          %8309 = vmatpush1.bf16.msra.mxu0 0
          %8310 = vmatprep.subr.bf16.mxu0 0
          %8311 = vmatpush1.bf16.msra.mxu0 0
          %8312 = vmatprep.mubr.bf16.mxu0 0
          %8313 = vmatmul.mubr.bf16.gmra.mrb[0].mxu0 %v6377
          %v8314 = vpop.f32.mrb[0].mxu0
          %v8315 = vadd.f32 0.0, %v8314
          %v8316 = vpop.f32.mrb[0].mxu0
          %v8317 = vpop.f32.mrb[0].mxu0
          %v8318 = vadd.f32 0.0, %v8317
          %v8319 = vpop.f32.mrb[0].mxu0
          %8320 = vmatprep.mubr.bf16.mxu0 0
          %8321 = vmatmul.mubr.bf16.gmra.mrb[0].mxu0 %v6379
          %v8322 = vpop.f32.mrb[0].mxu0
          %v8323 = vadd.f32 0.0, %v8322
          %v8324 = vpop.f32.mrb[0].mxu0
          %v8325 = vpop.f32.mrb[0].mxu0
          %v8326 = vadd.f32 0.0, %v8325
          %v8327 = vpop.f32.mrb[0].mxu0
          %8328 = vmatprep.mubr.bf16.mxu0 0
          %8329 = vmatmul.mubr.bf16.gmra.mrb[0].mxu0 %v6381
          %v8330 = vpop.f32.mrb[0].mxu0
          %v8331 = vadd.f32 0.0, %v8330
          %v8332 = vpop.f32.mrb[0].mxu0
          %v8333 = vpop.f32.mrb[0].mxu0
          %v8334 = vadd.f32 0.0, %v8333
          %v8335 = vpop.f32.mrb[0].mxu0
          %8336 = vmatprep.mubr.bf16.mxu0 0
          %8337 = vmatmul.mubr.bf16.gmra.mrb[0].mxu0 %v6383
          %v8338 = vpop.f32.mrb[0].mxu0
          %v8339 = vadd.f32 0.0, %v8338
          %v8340 = vpop.f32.mrb[0].mxu0
          %v8341 = vpop.f32.mrb[0].mxu0
          %v8342 = vadd.f32 0.0, %v8341
          %v8343 = vpop.f32.mrb[0].mxu0
          %8344 = vmatprep.mubr.bf16.mxu0 0
          %8345 = vmatmul.mubr.bf16.gmra.mrb[0].mxu0 %v6385
          %v8346 = vpop.f32.mrb[0].mxu0
          %v8347 = vadd.f32 0.0, %v8346
          %v8348 = vpop.f32.mrb[0].mxu0
          %v8349 = vpop.f32.mrb[0].mxu0
          %v8350 = vadd.f32 0.0, %v8349
          %v8351 = vpop.f32.mrb[0].mxu0
          %8352 = vmatprep.mubr.bf16.mxu0 0
          %8353 = vmatmul.mubr.bf16.gmra.mrb[0].mxu0 %v6387
          %v8354 = vpop.f32.mrb[0].mxu0
          %v8355 = vadd.f32 0.0, %v8354
          %v8356 = vpop.f32.mrb[0].mxu0
          %v8357 = vpop.f32.mrb[0].mxu0
          %v8358 = vadd.f32 0.0, %v8357
          %v8359 = vpop.f32.mrb[0].mxu0
          %8360 = vmatprep.mubr.bf16.mxu0 0
          %8361 = vmatmul.mubr.bf16.gmra.mrb[0].mxu0 %v6389
          %v8362 = vpop.f32.mrb[0].mxu0
          %v8363 = vadd.f32 0.0, %v8362
          %v8364 = vpop.f32.mrb[0].mxu0
          %v8365 = vpop.f32.mrb[0].mxu0
          %v8366 = vadd.f32 0.0, %v8365
          %v8367 = vpop.f32.mrb[0].mxu0
          %8368 = vmatprep.mubr.bf16.mxu0 0
          %8369 = vmatmul.mubr.bf16.gmra.mrb[0].mxu0 %v6391
          %v8370 = vpop.f32.mrb[0].mxu0
          %v8371 = vadd.f32 0.0, %v8370
          %v8372 = vpop.f32.mrb[0].mxu0
          %v8373 = vpop.f32.mrb[0].mxu0
          %v8374 = vadd.f32 0.0, %v8373
          %v8375 = vpop.f32.mrb[0].mxu0
          %8376 = vmatprep.mubr.bf16.mxu0 0
          %8377 = vmatmul.mubr.bf16.gmra.mrb[0].mxu0 %v6393
          %v8378 = vpop.f32.mrb[0].mxu0
          %v8379 = vadd.f32 0.0, %v8378
          %v8380 = vpop.f32.mrb[0].mxu0
          %v8381 = vpop.f32.mrb[0].mxu0
          %v8382 = vadd.f32 0.0, %v8381
          %v8383 = vpop.f32.mrb[0].mxu0
          %8384 = vmatprep.mubr.bf16.mxu0 0
          %8385 = vmatmul.mubr.bf16.gmra.mrb[0].mxu0 %v6395
          %v8386 = vpop.f32.mrb[0].mxu0
          %v8387 = vadd.f32 0.0, %v8386
          %v8388 = vpop.f32.mrb[0].mxu0
          %v8389 = vpop.f32.mrb[0].mxu0
          %v8390 = vadd.f32 0.0, %v8389
          %v8391 = vpop.f32.mrb[0].mxu0
          %8392 = vmatprep.mubr.bf16.mxu0 0
          %8393 = vmatmul.mubr.bf16.gmra.mrb[0].mxu0 %v6397
          %v8394 = vpop.f32.mrb[0].mxu0
          %v8395 = vadd.f32 0.0, %v8394
          %v8396 = vpop.f32.mrb[0].mxu0
          %v8397 = vpop.f32.mrb[0].mxu0
          %v8398 = vadd.f32 0.0, %v8397
          %v8399 = vpop.f32.mrb[0].mxu0
          %8400 = vmatprep.mubr.bf16.mxu0 0
          %8401 = vmatmul.mubr.bf16.gmra.mrb[0].mxu0 %v6399
          %v8402 = vpop.f32.mrb[0].mxu0
          %v8403 = vadd.f32 0.0, %v8402
          %v8404 = vpop.f32.mrb[0].mxu0
          %v8405 = vpop.f32.mrb[0].mxu0
          %v8406 = vadd.f32 0.0, %v8405
          %v8407 = vpop.f32.mrb[0].mxu0
          %8408 = vmatprep.mubr.bf16.mxu0 0
          %8409 = vmatmul.mubr.bf16.gmra.mrb[0].mxu0 %v6401
          %v8410 = vpop.f32.mrb[0].mxu0
          %v8411 = vadd.f32 0.0, %v8410
          %v8412 = vpop.f32.mrb[0].mxu0
          %v8413 = vpop.f32.mrb[0].mxu0
          %v8414 = vadd.f32 0.0, %v8413
          %v8415 = vpop.f32.mrb[0].mxu0
          %8416 = vmatprep.mubr.bf16.mxu0 0
          %8417 = vmatmul.mubr.bf16.gmra.mrb[0].mxu0 %v6403
          %v8418 = vpop.f32.mrb[0].mxu0
          %v8419 = vadd.f32 0.0, %v8418
          %v8420 = vpop.f32.mrb[0].mxu0
          %v8421 = vpop.f32.mrb[0].mxu0
          %v8422 = vadd.f32 0.0, %v8421
          %v8423 = vpop.f32.mrb[0].mxu0
          %8424 = vmatprep.mubr.bf16.mxu0 0
          %8425 = vmatmul.mubr.bf16.gmra.mrb[0].mxu0 %v6405
          %v8426 = vpop.f32.mrb[0].mxu0
          %v8427 = vadd.f32 0.0, %v8426
          %v8428 = vpop.f32.mrb[0].mxu0
          %v8429 = vpop.f32.mrb[0].mxu0
          %v8430 = vadd.f32 0.0, %v8429
          %v8431 = vpop.f32.mrb[0].mxu0
          %8432 = vmatprep.mubr.bf16.mxu0 0
          %8433 = vmatmul.mubr.bf16.gmra.mrb[0].mxu0 %v6407
          %v8434 = vpop.f32.mrb[0].mxu0
          %v8435 = vadd.f32 0.0, %v8434
          %v8436 = vpop.f32.mrb[0].mxu0
          %v8437 = vpop.f32.mrb[0].mxu0
          %v8438 = vadd.f32 0.0, %v8437
          %v8439 = vpop.f32.mrb[0].mxu0
          %8440 = vdwg.mxu0
          %v8441 = vadd.f32 %v8183, %v8315
          %v8442 = vadd.f32 %v8184, %v8318
          %v8443 = vadd.f32 %v8185, %v8323
          %v8444 = vadd.f32 %v8186, %v8326
          %v8445 = vadd.f32 %v8187, %v8331
          %v8446 = vadd.f32 %v8188, %v8334
          %v8447 = vadd.f32 %v8189, %v8339
          %v8448 = vadd.f32 %v8190, %v8342
          %v8449 = vadd.f32 %v8191, %v8347
          %v8450 = vadd.f32 %v8192, %v8350
          %v8451 = vadd.f32 %v8193, %v8355
          %v8452 = vadd.f32 %v8194, %v8358
          %v8453 = vadd.f32 %v8195, %v8363
          %v8454 = vadd.f32 %v8196, %v8366
          %v8455 = vadd.f32 %v8197, %v8371
          %v8456 = vadd.f32 %v8198, %v8374
          %v8457 = vadd.f32 %v8199, %v8379
          %v8458 = vadd.f32 %v8200, %v8382
          %v8459 = vadd.f32 %v8201, %v8387
          %v8460 = vadd.f32 %v8202, %v8390
          %v8461 = vadd.f32 %v8203, %v8395
          %v8462 = vadd.f32 %v8204, %v8398
          %v8463 = vadd.f32 %v8205, %v8403
          %v8464 = vadd.f32 %v8206, %v8406
          %v8465 = vadd.f32 %v8207, %v8411
          %v8466 = vadd.f32 %v8208, %v8414
          %v8467 = vadd.f32 %v8209, %v8419
          %v8468 = vadd.f32 %v8210, %v8422
          %v8469 = vadd.f32 %v8211, %v8427
          %v8470 = vadd.f32 %v8212, %v8430
          %v8471 = vadd.f32 %v8213, %v8435
          %v8472 = vadd.f32 %v8214, %v8438
          %v8474 = vshrl.u32 %v6407, 16
          %v8476 = vshll.u32 %v6407, 16
          %v8478 = vrot.slane %v8476, 1
          %v8479 = vor.u32 %v8474, %v8478
          %v8481 = vshll.u32 %v6408, 16
          %v8483 = vrot.slane %v8481, 1
          %v8484 = vsel %vm376, %v8479, %v8483
          %s8486 = scalar_lea.vmem %s2, 448
          %v8487 = vld [vmem:[%s8486] sm:$0xf]
          %v8488 = vld [vmem:[%s8486 + $0x4] sm:$0xf]
          %v8489 = vld [vmem:[%s8486 + $0x8] sm:$0xf]
          %v8490 = vld [vmem:[%s8486 + $0xc] sm:$0xf]
          %v8491 = vld [vmem:[%s8486 + $0x10] sm:$0xf]
          %v8492 = vld [vmem:[%s8486 + $0x14] sm:$0xf]
          %v8493 = vld [vmem:[%s8486 + $0x18] sm:$0xf]
          %v8494 = vld [vmem:[%s8486 + $0x1c] sm:$0xf]
          %v8495 = vld [vmem:[%s8486 + $0x20] sm:$0xf]
          %v8496 = vld [vmem:[%s8486 + $0x24] sm:$0xf]
          %v8497 = vld [vmem:[%s8486 + $0x28] sm:$0xf]
          %v8498 = vld [vmem:[%s8486 + $0x2c] sm:$0xf]
          %v8499 = vld [vmem:[%s8486 + $0x30] sm:$0xf]
          %v8500 = vld [vmem:[%s8486 + $0x34] sm:$0xf]
          %v8501 = vld [vmem:[%s8486 + $0x38] sm:$0xf]
          %v8502 = vld [vmem:[%s8486 + $0x3c] sm:$0xf]
          %v8519 = vunpack.c.l.b16 %v8487
          %v8520 = vunpack.c.l.b16 %v8488
          %v8521 = vunpack.c.l.b16 %v8489
          %v8522 = vunpack.c.l.b16 %v8490
          %v8523 = vunpack.c.l.b16 %v8491
          %v8524 = vunpack.c.l.b16 %v8492
          %v8525 = vunpack.c.l.b16 %v8493
          %v8526 = vunpack.c.l.b16 %v8494
          %v8527 = vunpack.c.l.b16 %v8495
          %v8528 = vunpack.c.l.b16 %v8496
          %v8529 = vunpack.c.l.b16 %v8497
          %v8530 = vunpack.c.l.b16 %v8498
          %v8531 = vunpack.c.l.b16 %v8499
          %v8532 = vunpack.c.l.b16 %v8500
          %v8533 = vunpack.c.l.b16 %v8501
          %v8534 = vunpack.c.l.b16 %v8502
          %v8535 = vpack.c.b16 %v8520, %v8519
          %v8536 = vpack.c.b16 %v8522, %v8521
          %v8537 = vpack.c.b16 %v8524, %v8523
          %v8538 = vpack.c.b16 %v8526, %v8525
          %v8539 = vpack.c.b16 %v8528, %v8527
          %v8540 = vpack.c.b16 %v8530, %v8529
          %v8541 = vpack.c.b16 %v8532, %v8531
          %v8542 = vpack.c.b16 %v8534, %v8533
          %8551 = vmatprep.subr.bf16.mxu0 0
          %8552 = vmatpush1.bf16.msra.mxu0 %v8535
          %8553 = vmatprep.subr.bf16.mxu0 0
          %8554 = vmatpush1.bf16.msra.mxu0 %v8536
          %8555 = vmatprep.subr.bf16.mxu0 0
          %8556 = vmatpush1.bf16.msra.mxu0 %v8537
          %8557 = vmatprep.subr.bf16.mxu0 0
          %8558 = vmatpush1.bf16.msra.mxu0 %v8538
          %8559 = vmatprep.subr.bf16.mxu0 0
          %8560 = vmatpush1.bf16.msra.mxu0 %v8539
          %8561 = vmatprep.subr.bf16.mxu0 0
          %8562 = vmatpush1.bf16.msra.mxu0 %v8540
          %8563 = vmatprep.subr.bf16.mxu0 0
          %8564 = vmatpush1.bf16.msra.mxu0 %v8541
          %8565 = vmatprep.subr.bf16.mxu0 0
          %8566 = vmatpush1.bf16.msra.mxu0 %v8542
          %8567 = vmatprep.subr.bf16.mxu0 0
          %8568 = vmatpush1.bf16.msra.mxu0 0
          %8569 = vmatprep.subr.bf16.mxu0 0
          %8570 = vmatpush1.bf16.msra.mxu0 0
          %8571 = vmatprep.subr.bf16.mxu0 0
          %8572 = vmatpush1.bf16.msra.mxu0 0
          %8573 = vmatprep.subr.bf16.mxu0 0
          %8574 = vmatpush1.bf16.msra.mxu0 0
          %8575 = vmatprep.subr.bf16.mxu0 0
          %8576 = vmatpush1.bf16.msra.mxu0 0
          %8577 = vmatprep.subr.bf16.mxu0 0
          %8578 = vmatpush1.bf16.msra.mxu0 0
          %8579 = vmatprep.subr.bf16.mxu0 0
          %8580 = vmatpush1.bf16.msra.mxu0 0
          %8581 = vmatprep.subr.bf16.mxu0 0
          %8582 = vmatpush1.bf16.msra.mxu0 0
          %8583 = vmatprep.mubr.bf16.mxu0 0
          %8584 = vmatmul.mubr.bf16.gmra.mrb[0].mxu0 %v6460
          %v8585 = vpop.f32.mrb[0].mxu0
          %v8586 = vadd.f32 0.0, %v8585
          %v8587 = vpop.f32.mrb[0].mxu0
          %v8588 = vpop.f32.mrb[0].mxu0
          %v8589 = vadd.f32 0.0, %v8588
          %v8590 = vpop.f32.mrb[0].mxu0
          %8591 = vmatprep.mubr.bf16.mxu0 0
          %8592 = vmatmul.mubr.bf16.gmra.mrb[0].mxu0 %v6472
          %v8593 = vpop.f32.mrb[0].mxu0
          %v8594 = vadd.f32 0.0, %v8593
          %v8595 = vpop.f32.mrb[0].mxu0
          %v8596 = vpop.f32.mrb[0].mxu0
          %v8597 = vadd.f32 0.0, %v8596
          %v8598 = vpop.f32.mrb[0].mxu0
          %8599 = vmatprep.mubr.bf16.mxu0 0
          %8600 = vmatmul.mubr.bf16.gmra.mrb[0].mxu0 %v6484
          %v8601 = vpop.f32.mrb[0].mxu0
          %v8602 = vadd.f32 0.0, %v8601
          %v8603 = vpop.f32.mrb[0].mxu0
          %v8604 = vpop.f32.mrb[0].mxu0
          %v8605 = vadd.f32 0.0, %v8604
          %v8606 = vpop.f32.mrb[0].mxu0
          %8607 = vmatprep.mubr.bf16.mxu0 0
          %8608 = vmatmul.mubr.bf16.gmra.mrb[0].mxu0 %v6496
          %v8609 = vpop.f32.mrb[0].mxu0
          %v8610 = vadd.f32 0.0, %v8609
          %v8611 = vpop.f32.mrb[0].mxu0
          %v8612 = vpop.f32.mrb[0].mxu0
          %v8613 = vadd.f32 0.0, %v8612
          %v8614 = vpop.f32.mrb[0].mxu0
          %8615 = vmatprep.mubr.bf16.mxu0 0
          %8616 = vmatmul.mubr.bf16.gmra.mrb[0].mxu0 %v6508
          %v8617 = vpop.f32.mrb[0].mxu0
          %v8618 = vadd.f32 0.0, %v8617
          %v8619 = vpop.f32.mrb[0].mxu0
          %v8620 = vpop.f32.mrb[0].mxu0
          %v8621 = vadd.f32 0.0, %v8620
          %v8622 = vpop.f32.mrb[0].mxu0
          %8623 = vmatprep.mubr.bf16.mxu0 0
          %8624 = vmatmul.mubr.bf16.gmra.mrb[0].mxu0 %v6520
          %v8625 = vpop.f32.mrb[0].mxu0
          %v8626 = vadd.f32 0.0, %v8625
          %v8627 = vpop.f32.mrb[0].mxu0
          %v8628 = vpop.f32.mrb[0].mxu0
          %v8629 = vadd.f32 0.0, %v8628
          %v8630 = vpop.f32.mrb[0].mxu0
          %8631 = vmatprep.mubr.bf16.mxu0 0
          %8632 = vmatmul.mubr.bf16.gmra.mrb[0].mxu0 %v6532
          %v8633 = vpop.f32.mrb[0].mxu0
          %v8634 = vadd.f32 0.0, %v8633
          %v8635 = vpop.f32.mrb[0].mxu0
          %v8636 = vpop.f32.mrb[0].mxu0
          %v8637 = vadd.f32 0.0, %v8636
          %v8638 = vpop.f32.mrb[0].mxu0
          %8639 = vmatprep.mubr.bf16.mxu0 0
          %8640 = vmatmul.mubr.bf16.gmra.mrb[0].mxu0 %v6544
          %v8641 = vpop.f32.mrb[0].mxu0
          %v8642 = vadd.f32 0.0, %v8641
          %v8643 = vpop.f32.mrb[0].mxu0
          %v8644 = vpop.f32.mrb[0].mxu0
          %v8645 = vadd.f32 0.0, %v8644
          %v8646 = vpop.f32.mrb[0].mxu0
          %8647 = vmatprep.mubr.bf16.mxu0 0
          %8648 = vmatmul.mubr.bf16.gmra.mrb[0].mxu0 %v6556
          %v8649 = vpop.f32.mrb[0].mxu0
          %v8650 = vadd.f32 0.0, %v8649
          %v8651 = vpop.f32.mrb[0].mxu0
          %v8652 = vpop.f32.mrb[0].mxu0
          %v8653 = vadd.f32 0.0, %v8652
          %v8654 = vpop.f32.mrb[0].mxu0
          %8655 = vmatprep.mubr.bf16.mxu0 0
          %8656 = vmatmul.mubr.bf16.gmra.mrb[0].mxu0 %v6568
          %v8657 = vpop.f32.mrb[0].mxu0
          %v8658 = vadd.f32 0.0, %v8657
          %v8659 = vpop.f32.mrb[0].mxu0
          %v8660 = vpop.f32.mrb[0].mxu0
          %v8661 = vadd.f32 0.0, %v8660
          %v8662 = vpop.f32.mrb[0].mxu0
          %8663 = vmatprep.mubr.bf16.mxu0 0
          %8664 = vmatmul.mubr.bf16.gmra.mrb[0].mxu0 %v6580
          %v8665 = vpop.f32.mrb[0].mxu0
          %v8666 = vadd.f32 0.0, %v8665
          %v8667 = vpop.f32.mrb[0].mxu0
          %v8668 = vpop.f32.mrb[0].mxu0
          %v8669 = vadd.f32 0.0, %v8668
          %v8670 = vpop.f32.mrb[0].mxu0
          %8671 = vmatprep.mubr.bf16.mxu0 0
          %8672 = vmatmul.mubr.bf16.gmra.mrb[0].mxu0 %v6592
          %v8673 = vpop.f32.mrb[0].mxu0
          %v8674 = vadd.f32 0.0, %v8673
          %v8675 = vpop.f32.mrb[0].mxu0
          %v8676 = vpop.f32.mrb[0].mxu0
          %v8677 = vadd.f32 0.0, %v8676
          %v8678 = vpop.f32.mrb[0].mxu0
          %8679 = vmatprep.mubr.bf16.mxu0 0
          %8680 = vmatmul.mubr.bf16.gmra.mrb[0].mxu0 %v6604
          %v8681 = vpop.f32.mrb[0].mxu0
          %v8682 = vadd.f32 0.0, %v8681
          %v8683 = vpop.f32.mrb[0].mxu0
          %v8684 = vpop.f32.mrb[0].mxu0
          %v8685 = vadd.f32 0.0, %v8684
          %v8686 = vpop.f32.mrb[0].mxu0
          %8687 = vmatprep.mubr.bf16.mxu0 0
          %8688 = vmatmul.mubr.bf16.gmra.mrb[0].mxu0 %v6616
          %v8689 = vpop.f32.mrb[0].mxu0
          %v8690 = vadd.f32 0.0, %v8689
          %v8691 = vpop.f32.mrb[0].mxu0
          %v8692 = vpop.f32.mrb[0].mxu0
          %v8693 = vadd.f32 0.0, %v8692
          %v8694 = vpop.f32.mrb[0].mxu0
          %8695 = vmatprep.mubr.bf16.mxu0 0
          %8696 = vmatmul.mubr.bf16.gmra.mrb[0].mxu0 %v7691
          %v8697 = vpop.f32.mrb[0].mxu0
          %v8698 = vadd.f32 0.0, %v8697
          %v8699 = vpop.f32.mrb[0].mxu0
          %v8700 = vpop.f32.mrb[0].mxu0
          %v8701 = vadd.f32 0.0, %v8700
          %v8702 = vpop.f32.mrb[0].mxu0
          %8703 = vmatprep.mubr.bf16.mxu0 0
          %8704 = vmatmul.mubr.bf16.gmra.mrb[0].mxu0 %v8484
          %v8705 = vpop.f32.mrb[0].mxu0
          %v8706 = vadd.f32 0.0, %v8705
          %v8707 = vpop.f32.mrb[0].mxu0
          %v8708 = vpop.f32.mrb[0].mxu0
          %v8709 = vadd.f32 0.0, %v8708
          %v8710 = vpop.f32.mrb[0].mxu0
          %8711 = vdwg.mxu0
          %v8712 = vadd.f32 %v8441, %v8586
          %v8713 = vadd.f32 %v8442, %v8589
          %v8714 = vadd.f32 %v8443, %v8594
          %v8715 = vadd.f32 %v8444, %v8597
          %v8716 = vadd.f32 %v8445, %v8602
          %v8717 = vadd.f32 %v8446, %v8605
          %v8718 = vadd.f32 %v8447, %v8610
          %v8719 = vadd.f32 %v8448, %v8613
          %v8720 = vadd.f32 %v8449, %v8618
          %v8721 = vadd.f32 %v8450, %v8621
          %v8722 = vadd.f32 %v8451, %v8626
          %v8723 = vadd.f32 %v8452, %v8629
          %v8724 = vadd.f32 %v8453, %v8634
          %v8725 = vadd.f32 %v8454, %v8637
          %v8726 = vadd.f32 %v8455, %v8642
          %v8727 = vadd.f32 %v8456, %v8645
          %v8728 = vadd.f32 %v8457, %v8650
          %v8729 = vadd.f32 %v8458, %v8653
          %v8730 = vadd.f32 %v8459, %v8658
          %v8731 = vadd.f32 %v8460, %v8661
          %v8732 = vadd.f32 %v8461, %v8666
          %v8733 = vadd.f32 %v8462, %v8669
          %v8734 = vadd.f32 %v8463, %v8674
          %v8735 = vadd.f32 %v8464, %v8677
          %v8736 = vadd.f32 %v8465, %v8682
          %v8737 = vadd.f32 %v8466, %v8685
          %v8738 = vadd.f32 %v8467, %v8690
          %v8739 = vadd.f32 %v8468, %v8693
          %v8740 = vadd.f32 %v8469, %v8698
          %v8741 = vadd.f32 %v8470, %v8701
          %v8742 = vadd.f32 %v8471, %v8706
          %v8743 = vadd.f32 %v8472, %v8709
          %v8746 = vrot.slane %v6407, 1
          %v8747 = vrot.slane %v6408, 1
          %v8748 = vsel %vm1052, %v8746, %v8747
          %s8750 = scalar_lea.vmem %s2, 512
          %v8751 = vld [vmem:[%s8750] sm:$0xf]
          %v8752 = vld [vmem:[%s8750 + $0x4] sm:$0xf]
          %v8753 = vld [vmem:[%s8750 + $0x8] sm:$0xf]
          %v8754 = vld [vmem:[%s8750 + $0xc] sm:$0xf]
          %v8755 = vld [vmem:[%s8750 + $0x10] sm:$0xf]
          %v8756 = vld [vmem:[%s8750 + $0x14] sm:$0xf]
          %v8757 = vld [vmem:[%s8750 + $0x18] sm:$0xf]
          %v8758 = vld [vmem:[%s8750 + $0x1c] sm:$0xf]
          %v8759 = vld [vmem:[%s8750 + $0x20] sm:$0xf]
          %v8760 = vld [vmem:[%s8750 + $0x24] sm:$0xf]
          %v8761 = vld [vmem:[%s8750 + $0x28] sm:$0xf]
          %v8762 = vld [vmem:[%s8750 + $0x2c] sm:$0xf]
          %v8763 = vld [vmem:[%s8750 + $0x30] sm:$0xf]
          %v8764 = vld [vmem:[%s8750 + $0x34] sm:$0xf]
          %v8765 = vld [vmem:[%s8750 + $0x38] sm:$0xf]
          %v8766 = vld [vmem:[%s8750 + $0x3c] sm:$0xf]
          %v8783 = vunpack.c.l.b16 %v8751
          %v8784 = vunpack.c.l.b16 %v8752
          %v8785 = vunpack.c.l.b16 %v8753
          %v8786 = vunpack.c.l.b16 %v8754
          %v8787 = vunpack.c.l.b16 %v8755
          %v8788 = vunpack.c.l.b16 %v8756
          %v8789 = vunpack.c.l.b16 %v8757
          %v8790 = vunpack.c.l.b16 %v8758
          %v8791 = vunpack.c.l.b16 %v8759
          %v8792 = vunpack.c.l.b16 %v8760
          %v8793 = vunpack.c.l.b16 %v8761
          %v8794 = vunpack.c.l.b16 %v8762
          %v8795 = vunpack.c.l.b16 %v8763
          %v8796 = vunpack.c.l.b16 %v8764
          %v8797 = vunpack.c.l.b16 %v8765
          %v8798 = vunpack.c.l.b16 %v8766
          %v8799 = vpack.c.b16 %v8784, %v8783
          %v8800 = vpack.c.b16 %v8786, %v8785
          %v8801 = vpack.c.b16 %v8788, %v8787
          %v8802 = vpack.c.b16 %v8790, %v8789
          %v8803 = vpack.c.b16 %v8792, %v8791
          %v8804 = vpack.c.b16 %v8794, %v8793
          %v8805 = vpack.c.b16 %v8796, %v8795
          %v8806 = vpack.c.b16 %v8798, %v8797
          %8815 = vmatprep.subr.bf16.mxu0 0
          %8816 = vmatpush1.bf16.msra.mxu0 %v8799
          %8817 = vmatprep.subr.bf16.mxu0 0
          %8818 = vmatpush1.bf16.msra.mxu0 %v8800
          %8819 = vmatprep.subr.bf16.mxu0 0
          %8820 = vmatpush1.bf16.msra.mxu0 %v8801
          %8821 = vmatprep.subr.bf16.mxu0 0
          %8822 = vmatpush1.bf16.msra.mxu0 %v8802
          %8823 = vmatprep.subr.bf16.mxu0 0
          %8824 = vmatpush1.bf16.msra.mxu0 %v8803
          %8825 = vmatprep.subr.bf16.mxu0 0
          %8826 = vmatpush1.bf16.msra.mxu0 %v8804
          %8827 = vmatprep.subr.bf16.mxu0 0
          %8828 = vmatpush1.bf16.msra.mxu0 %v8805
          %8829 = vmatprep.subr.bf16.mxu0 0
          %8830 = vmatpush1.bf16.msra.mxu0 %v8806
          %8831 = vmatprep.subr.bf16.mxu0 0
          %8832 = vmatpush1.bf16.msra.mxu0 0
          %8833 = vmatprep.subr.bf16.mxu0 0
          %8834 = vmatpush1.bf16.msra.mxu0 0
          %8835 = vmatprep.subr.bf16.mxu0 0
          %8836 = vmatpush1.bf16.msra.mxu0 0
          %8837 = vmatprep.subr.bf16.mxu0 0
          %8838 = vmatpush1.bf16.msra.mxu0 0
          %8839 = vmatprep.subr.bf16.mxu0 0
          %8840 = vmatpush1.bf16.msra.mxu0 0
          %8841 = vmatprep.subr.bf16.mxu0 0
          %8842 = vmatpush1.bf16.msra.mxu0 0
          %8843 = vmatprep.subr.bf16.mxu0 0
          %8844 = vmatpush1.bf16.msra.mxu0 0
          %8845 = vmatprep.subr.bf16.mxu0 0
          %8846 = vmatpush1.bf16.msra.mxu0 0
          %8847 = vmatprep.mubr.bf16.mxu0 0
          %8848 = vmatmul.mubr.bf16.gmra.mrb[0].mxu0 %v7108
          %v8849 = vpop.f32.mrb[0].mxu0
          %v8850 = vadd.f32 0.0, %v8849
          %v8851 = vpop.f32.mrb[0].mxu0
          %v8852 = vpop.f32.mrb[0].mxu0
          %v8853 = vadd.f32 0.0, %v8852
          %v8854 = vpop.f32.mrb[0].mxu0
          %8855 = vmatprep.mubr.bf16.mxu0 0
          %8856 = vmatmul.mubr.bf16.gmra.mrb[0].mxu0 %v7111
          %v8857 = vpop.f32.mrb[0].mxu0
          %v8858 = vadd.f32 0.0, %v8857
          %v8859 = vpop.f32.mrb[0].mxu0
          %v8860 = vpop.f32.mrb[0].mxu0
          %v8861 = vadd.f32 0.0, %v8860
          %v8862 = vpop.f32.mrb[0].mxu0
          %8863 = vmatprep.mubr.bf16.mxu0 0
          %8864 = vmatmul.mubr.bf16.gmra.mrb[0].mxu0 %v7114
          %v8865 = vpop.f32.mrb[0].mxu0
          %v8866 = vadd.f32 0.0, %v8865
          %v8867 = vpop.f32.mrb[0].mxu0
          %v8868 = vpop.f32.mrb[0].mxu0
          %v8869 = vadd.f32 0.0, %v8868
          %v8870 = vpop.f32.mrb[0].mxu0
          %8871 = vmatprep.mubr.bf16.mxu0 0
          %8872 = vmatmul.mubr.bf16.gmra.mrb[0].mxu0 %v7117
          %v8873 = vpop.f32.mrb[0].mxu0
          %v8874 = vadd.f32 0.0, %v8873
          %v8875 = vpop.f32.mrb[0].mxu0
          %v8876 = vpop.f32.mrb[0].mxu0
          %v8877 = vadd.f32 0.0, %v8876
          %v8878 = vpop.f32.mrb[0].mxu0
          %8879 = vmatprep.mubr.bf16.mxu0 0
          %8880 = vmatmul.mubr.bf16.gmra.mrb[0].mxu0 %v7120
          %v8881 = vpop.f32.mrb[0].mxu0
          %v8882 = vadd.f32 0.0, %v8881
          %v8883 = vpop.f32.mrb[0].mxu0
          %v8884 = vpop.f32.mrb[0].mxu0
          %v8885 = vadd.f32 0.0, %v8884
          %v8886 = vpop.f32.mrb[0].mxu0
          %8887 = vmatprep.mubr.bf16.mxu0 0
          %8888 = vmatmul.mubr.bf16.gmra.mrb[0].mxu0 %v7123
          %v8889 = vpop.f32.mrb[0].mxu0
          %v8890 = vadd.f32 0.0, %v8889
          %v8891 = vpop.f32.mrb[0].mxu0
          %v8892 = vpop.f32.mrb[0].mxu0
          %v8893 = vadd.f32 0.0, %v8892
          %v8894 = vpop.f32.mrb[0].mxu0
          %8895 = vmatprep.mubr.bf16.mxu0 0
          %8896 = vmatmul.mubr.bf16.gmra.mrb[0].mxu0 %v7126
          %v8897 = vpop.f32.mrb[0].mxu0
          %v8898 = vadd.f32 0.0, %v8897
          %v8899 = vpop.f32.mrb[0].mxu0
          %v8900 = vpop.f32.mrb[0].mxu0
          %v8901 = vadd.f32 0.0, %v8900
          %v8902 = vpop.f32.mrb[0].mxu0
          %8903 = vmatprep.mubr.bf16.mxu0 0
          %8904 = vmatmul.mubr.bf16.gmra.mrb[0].mxu0 %v7129
          %v8905 = vpop.f32.mrb[0].mxu0
          %v8906 = vadd.f32 0.0, %v8905
          %v8907 = vpop.f32.mrb[0].mxu0
          %v8908 = vpop.f32.mrb[0].mxu0
          %v8909 = vadd.f32 0.0, %v8908
          %v8910 = vpop.f32.mrb[0].mxu0
          %8911 = vmatprep.mubr.bf16.mxu0 0
          %8912 = vmatmul.mubr.bf16.gmra.mrb[0].mxu0 %v7132
          %v8913 = vpop.f32.mrb[0].mxu0
          %v8914 = vadd.f32 0.0, %v8913
          %v8915 = vpop.f32.mrb[0].mxu0
          %v8916 = vpop.f32.mrb[0].mxu0
          %v8917 = vadd.f32 0.0, %v8916
          %v8918 = vpop.f32.mrb[0].mxu0
          %8919 = vmatprep.mubr.bf16.mxu0 0
          %8920 = vmatmul.mubr.bf16.gmra.mrb[0].mxu0 %v7135
          %v8921 = vpop.f32.mrb[0].mxu0
          %v8922 = vadd.f32 0.0, %v8921
          %v8923 = vpop.f32.mrb[0].mxu0
          %v8924 = vpop.f32.mrb[0].mxu0
          %v8925 = vadd.f32 0.0, %v8924
          %v8926 = vpop.f32.mrb[0].mxu0
          %8927 = vmatprep.mubr.bf16.mxu0 0
          %8928 = vmatmul.mubr.bf16.gmra.mrb[0].mxu0 %v7138
          %v8929 = vpop.f32.mrb[0].mxu0
          %v8930 = vadd.f32 0.0, %v8929
          %v8931 = vpop.f32.mrb[0].mxu0
          %v8932 = vpop.f32.mrb[0].mxu0
          %v8933 = vadd.f32 0.0, %v8932
          %v8934 = vpop.f32.mrb[0].mxu0
          %8935 = vmatprep.mubr.bf16.mxu0 0
          %8936 = vmatmul.mubr.bf16.gmra.mrb[0].mxu0 %v7141
          %v8937 = vpop.f32.mrb[0].mxu0
          %v8938 = vadd.f32 0.0, %v8937
          %v8939 = vpop.f32.mrb[0].mxu0
          %v8940 = vpop.f32.mrb[0].mxu0
          %v8941 = vadd.f32 0.0, %v8940
          %v8942 = vpop.f32.mrb[0].mxu0
          %8943 = vmatprep.mubr.bf16.mxu0 0
          %8944 = vmatmul.mubr.bf16.gmra.mrb[0].mxu0 %v7144
          %v8945 = vpop.f32.mrb[0].mxu0
          %v8946 = vadd.f32 0.0, %v8945
          %v8947 = vpop.f32.mrb[0].mxu0
          %v8948 = vpop.f32.mrb[0].mxu0
          %v8949 = vadd.f32 0.0, %v8948
          %v8950 = vpop.f32.mrb[0].mxu0
          %8951 = vmatprep.mubr.bf16.mxu0 0
          %8952 = vmatmul.mubr.bf16.gmra.mrb[0].mxu0 %v7147
          %v8953 = vpop.f32.mrb[0].mxu0
          %v8954 = vadd.f32 0.0, %v8953
          %v8955 = vpop.f32.mrb[0].mxu0
          %v8956 = vpop.f32.mrb[0].mxu0
          %v8957 = vadd.f32 0.0, %v8956
          %v8958 = vpop.f32.mrb[0].mxu0
          %8959 = vmatprep.mubr.bf16.mxu0 0
          %8960 = vmatmul.mubr.bf16.gmra.mrb[0].mxu0 %v7955
          %v8961 = vpop.f32.mrb[0].mxu0
          %v8962 = vadd.f32 0.0, %v8961
          %v8963 = vpop.f32.mrb[0].mxu0
          %v8964 = vpop.f32.mrb[0].mxu0
          %v8965 = vadd.f32 0.0, %v8964
          %v8966 = vpop.f32.mrb[0].mxu0
          %8967 = vmatprep.mubr.bf16.mxu0 0
          %8968 = vmatmul.mubr.bf16.gmra.mrb[0].mxu0 %v8748
          %v8969 = vpop.f32.mrb[0].mxu0
          %v8970 = vadd.f32 0.0, %v8969
          %v8971 = vpop.f32.mrb[0].mxu0
          %v8972 = vpop.f32.mrb[0].mxu0
          %v8973 = vadd.f32 0.0, %v8972
          %v8974 = vpop.f32.mrb[0].mxu0
          %8975 = vdwg.mxu0
          %v8976 = vadd.f32 %v8712, %v8850
          %v8977 = vadd.f32 %v8713, %v8853
          %v8978 = vadd.f32 %v8714, %v8858
          %v8979 = vadd.f32 %v8715, %v8861
          %v8980 = vadd.f32 %v8716, %v8866
          %v8981 = vadd.f32 %v8717, %v8869
          %v8982 = vadd.f32 %v8718, %v8874
          %v8983 = vadd.f32 %v8719, %v8877
          %v8984 = vadd.f32 %v8720, %v8882
          %v8985 = vadd.f32 %v8721, %v8885
          %v8986 = vadd.f32 %v8722, %v8890
          %v8987 = vadd.f32 %v8723, %v8893
          %v8988 = vadd.f32 %v8724, %v8898
          %v8989 = vadd.f32 %v8725, %v8901
          %v8990 = vadd.f32 %v8726, %v8906
          %v8991 = vadd.f32 %v8727, %v8909
          %v8992 = vadd.f32 %v8728, %v8914
          %v8993 = vadd.f32 %v8729, %v8917
          %v8994 = vadd.f32 %v8730, %v8922
          %v8995 = vadd.f32 %v8731, %v8925
          %v8996 = vadd.f32 %v8732, %v8930
          %v8997 = vadd.f32 %v8733, %v8933
          %v8998 = vadd.f32 %v8734, %v8938
          %v8999 = vadd.f32 %v8735, %v8941
          %v9000 = vadd.f32 %v8736, %v8946
          %v9001 = vadd.f32 %v8737, %v8949
          %v9002 = vadd.f32 %v8738, %v8954
          %v9003 = vadd.f32 %v8739, %v8957
          %v9004 = vadd.f32 %v8740, %v8962
          %v9005 = vadd.f32 %v8741, %v8965
          %v9006 = vadd.f32 %v8742, %v8970
          %v9007 = vadd.f32 %v8743, %v8973
          %v9008 = vld [vmem:[#allocation3 + $0x2] sm:$0x1]
          %v9009 = vld [vmem:[#allocation3 + $0x3] sm:$0x1]
          %v9010 = vld [vmem:[%s3 + $0x2] sm:$0x1]
          %v9011 = vld [vmem:[%s3 + $0x3] sm:$0x1]
          %v9012 = vmul.f32 %v9008, 0.001953125
          %v9013 = vmul.f32 %v9009, 0.001953125
          %v9014 = vmul.f32 %v9012, %v9012
          %v9015 = vsub.f32 %v9013, %v9014
          %v9016 = vmax.f32 %v9015, 0.0
          %v9017 = vadd.f32 %v9016, 1e-05
          %v9018 = vrsqrt.pop %v9017
          %v9019 = vmul.f32 %v9010, %v9018
          %v9020 = vmul.f32 %v9012, %v9019
          %v9021 = vsub.f32 %v9011, %v9020
          %vm9070 = vcmask 1046528
          %v9071 = vrot.slane %v273, 1
          %v9072 = vrot.slane %v274, 1
          %v9073 = vsel %vm9070, %v9071, %v9072
          %v9074 = vrot.slane %v275, 1
          %v9075 = vsel %vm9070, %v9072, %v9074
          %v9076 = vrot.slane %v276, 1
          %v9077 = vrot.slane %v277, 1
          %v9078 = vsel %vm9070, %v9076, %v9077
          %v9079 = vrot.slane %v278, 1
          %v9080 = vsel %vm9070, %v9077, %v9079
          %v9081 = vrot.slane %v279, 1
          %v9082 = vrot.slane %v280, 1
          %v9083 = vsel %vm9070, %v9081, %v9082
          %v9084 = vrot.slane %v281, 1
          %v9085 = vsel %vm9070, %v9082, %v9084
          %v9086 = vrot.slane %v282, 1
          %v9087 = vrot.slane %v283, 1
          %v9088 = vsel %vm9070, %v9086, %v9087
          %v9089 = vrot.slane %v284, 1
          %v9090 = vsel %vm9070, %v9087, %v9089
          %v9091 = vrot.slane %v285, 1
          %v9092 = vrot.slane %v286, 1
          %v9093 = vsel %vm9070, %v9091, %v9092
          %v9094 = vrot.slane %v287, 1
          %v9095 = vsel %vm9070, %v9092, %v9094
          %v9096 = vrot.slane %v288, 1
          %v9097 = vrot.slane %v289, 1
          %v9098 = vsel %vm9070, %v9096, %v9097
          %v9099 = vrot.slane %v290, 1
          %v9100 = vsel %vm9070, %v9097, %v9099
          %v9101 = vrot.slane %v291, 1
          %v9102 = vrot.slane %v292, 1
          %v9103 = vsel %vm9070, %v9101, %v9102
          %v9104 = vrot.slane %v293, 1
          %v9105 = vsel %vm9070, %v9102, %v9104
          %v9106 = vrot.slane %v294, 1
          %v9107 = vrot.slane %v295, 1
          %v9108 = vsel %vm9070, %v9106, %v9107
          %v9109 = vrot.slane %v296, 1
          %v9110 = vsel %vm9070, %v9107, %v9109
          %v9111 = vrot.slane %v297, 1
          %v9112 = vrot.slane %v298, 1
          %v9113 = vsel %vm9070, %v9111, %v9112
          %v9114 = vrot.slane %v299, 1
          %v9115 = vsel %vm9070, %v9112, %v9114
          %v9116 = vrot.slane %v300, 1
          %v9117 = vrot.slane %v301, 1
          %v9118 = vsel %vm9070, %v9116, %v9117
          %v9119 = vrot.slane %v302, 1
          %v9120 = vsel %vm9070, %v9117, %v9119
          %v9121 = vrot.slane %v303, 1
          %v9122 = vrot.slane %v304, 1
          %v9123 = vsel %vm9070, %v9121, %v9122
          %v9124 = vrot.slane %v305, 1
          %v9125 = vsel %vm9070, %v9122, %v9124
          %v9126 = vrot.slane %v306, 1
          %v9127 = vrot.slane %v307, 1
          %v9128 = vsel %vm9070, %v9126, %v9127
          %v9129 = vrot.slane %v308, 1
          %v9130 = vsel %vm9070, %v9127, %v9129
          %v9131 = vrot.slane %v309, 1
          %v9132 = vrot.slane %v310, 1
          %v9133 = vsel %vm9070, %v9131, %v9132
          %v9134 = vrot.slane %v311, 1
          %v9135 = vsel %vm9070, %v9132, %v9134
          %v9136 = vrot.slane %v312, 1
          %v9137 = vrot.slane %v313, 1
          %v9138 = vsel %vm9070, %v9136, %v9137
          %v9139 = vrot.slane %v314, 1
          %v9140 = vsel %vm9070, %v9137, %v9139
          %v9141 = vrot.slane %v315, 1
          %v9142 = vrot.slane %v316, 1
          %v9143 = vsel %vm9070, %v9141, %v9142
          %v9144 = vrot.slane %v317, 1
          %v9145 = vsel %vm9070, %v9142, %v9144
          %v9146 = vrot.slane %v318, 1
          %v9147 = vrot.slane %v319, 1
          %v9148 = vsel %vm9070, %v9146, %v9147
          %v9149 = vrot.slane %v320, 1
          %v9150 = vsel %vm9070, %v9147, %v9149
          %v9183 = vlaneseq
          %v9184 = vshrl.u32 %v9183, 7
          %v9185 = vsub.s32 0, %v9184
          %v9186 = vrot.slane %v9019, %v9185
          %v9187 = vmul.f32 %v8976, %v9186
          %v9188 = vmul.f32 %v8977, %v9186
          %v9189 = vmul.f32 %v8978, %v9186
          %v9190 = vmul.f32 %v8979, %v9186
          %v9191 = vmul.f32 %v8980, %v9186
          %v9192 = vmul.f32 %v8981, %v9186
          %v9193 = vmul.f32 %v8982, %v9186
          %v9194 = vmul.f32 %v8983, %v9186
          %v9195 = vmul.f32 %v8984, %v9186
          %v9196 = vmul.f32 %v8985, %v9186
          %v9197 = vmul.f32 %v8986, %v9186
          %v9198 = vmul.f32 %v8987, %v9186
          %v9199 = vmul.f32 %v8988, %v9186
          %v9200 = vmul.f32 %v8989, %v9186
          %v9201 = vmul.f32 %v8990, %v9186
          %v9202 = vmul.f32 %v8991, %v9186
          %v9203 = vmul.f32 %v8992, %v9186
          %v9204 = vmul.f32 %v8993, %v9186
          %v9205 = vmul.f32 %v8994, %v9186
          %v9206 = vmul.f32 %v8995, %v9186
          %v9207 = vmul.f32 %v8996, %v9186
          %v9208 = vmul.f32 %v8997, %v9186
          %v9209 = vmul.f32 %v8998, %v9186
          %v9210 = vmul.f32 %v8999, %v9186
          %v9211 = vmul.f32 %v9000, %v9186
          %v9212 = vmul.f32 %v9001, %v9186
          %v9213 = vmul.f32 %v9002, %v9186
          %v9214 = vmul.f32 %v9003, %v9186
          %v9215 = vmul.f32 %v9004, %v9186
          %v9216 = vmul.f32 %v9005, %v9186
          %v9217 = vmul.f32 %v9006, %v9186
          %v9218 = vmul.f32 %v9007, %v9186
          %v9219 = vlaneseq
          %v9220 = vshrl.u32 %v9219, 7
          %v9221 = vsub.s32 0, %v9220
          %v9222 = vrot.slane %v9021, %v9221
          %v9223 = vadd.f32 %v9187, %v9222
          %v9224 = vadd.f32 %v9188, %v9222
          %v9225 = vadd.f32 %v9189, %v9222
          %v9226 = vadd.f32 %v9190, %v9222
          %v9227 = vadd.f32 %v9191, %v9222
          %v9228 = vadd.f32 %v9192, %v9222
          %v9229 = vadd.f32 %v9193, %v9222
          %v9230 = vadd.f32 %v9194, %v9222
          %v9231 = vadd.f32 %v9195, %v9222
          %v9232 = vadd.f32 %v9196, %v9222
          %v9233 = vadd.f32 %v9197, %v9222
          %v9234 = vadd.f32 %v9198, %v9222
          %v9235 = vadd.f32 %v9199, %v9222
          %v9236 = vadd.f32 %v9200, %v9222
          %v9237 = vadd.f32 %v9201, %v9222
          %v9238 = vadd.f32 %v9202, %v9222
          %v9239 = vadd.f32 %v9203, %v9222
          %v9240 = vadd.f32 %v9204, %v9222
          %v9241 = vadd.f32 %v9205, %v9222
          %v9242 = vadd.f32 %v9206, %v9222
          %v9243 = vadd.f32 %v9207, %v9222
          %v9244 = vadd.f32 %v9208, %v9222
          %v9245 = vadd.f32 %v9209, %v9222
          %v9246 = vadd.f32 %v9210, %v9222
          %v9247 = vadd.f32 %v9211, %v9222
          %v9248 = vadd.f32 %v9212, %v9222
          %v9249 = vadd.f32 %v9213, %v9222
          %v9250 = vadd.f32 %v9214, %v9222
          %v9251 = vadd.f32 %v9215, %v9222
          %v9252 = vadd.f32 %v9216, %v9222
          %v9253 = vadd.f32 %v9217, %v9222
          %v9254 = vadd.f32 %v9218, %v9222
          %v9255 = vadd.f32 %v9223, %v9073
          %v9256 = vadd.f32 %v9224, %v9075
          %v9257 = vadd.f32 %v9225, %v9078
          %v9258 = vadd.f32 %v9226, %v9080
          %v9259 = vadd.f32 %v9227, %v9083
          %v9260 = vadd.f32 %v9228, %v9085
          %v9261 = vadd.f32 %v9229, %v9088
          %v9262 = vadd.f32 %v9230, %v9090
          %v9263 = vadd.f32 %v9231, %v9093
          %v9264 = vadd.f32 %v9232, %v9095
          %v9265 = vadd.f32 %v9233, %v9098
          %v9266 = vadd.f32 %v9234, %v9100
          %v9267 = vadd.f32 %v9235, %v9103
          %v9268 = vadd.f32 %v9236, %v9105
          %v9269 = vadd.f32 %v9237, %v9108
          %v9270 = vadd.f32 %v9238, %v9110
          %v9271 = vadd.f32 %v9239, %v9113
          %v9272 = vadd.f32 %v9240, %v9115
          %v9273 = vadd.f32 %v9241, %v9118
          %v9274 = vadd.f32 %v9242, %v9120
          %v9275 = vadd.f32 %v9243, %v9123
          %v9276 = vadd.f32 %v9244, %v9125
          %v9277 = vadd.f32 %v9245, %v9128
          %v9278 = vadd.f32 %v9246, %v9130
          %v9279 = vadd.f32 %v9247, %v9133
          %v9280 = vadd.f32 %v9248, %v9135
          %v9281 = vadd.f32 %v9249, %v9138
          %v9282 = vadd.f32 %v9250, %v9140
          %v9283 = vadd.f32 %v9251, %v9143
          %v9284 = vadd.f32 %v9252, %v9145
          %v9285 = vadd.f32 %v9253, %v9148
          %v9286 = vadd.f32 %v9254, %v9150
          %v9287 = vmax.f32 %v9255, 0.0
          %v9288 = vmax.f32 %v9256, 0.0
          %v9289 = vmax.f32 %v9257, 0.0
          %v9290 = vmax.f32 %v9258, 0.0
          %v9291 = vmax.f32 %v9259, 0.0
          %v9292 = vmax.f32 %v9260, 0.0
          %v9293 = vmax.f32 %v9261, 0.0
          %v9294 = vmax.f32 %v9262, 0.0
          %v9295 = vmax.f32 %v9263, 0.0
          %v9296 = vmax.f32 %v9264, 0.0
          %v9297 = vmax.f32 %v9265, 0.0
          %v9298 = vmax.f32 %v9266, 0.0
          %v9299 = vmax.f32 %v9267, 0.0
          %v9300 = vmax.f32 %v9268, 0.0
          %v9301 = vmax.f32 %v9269, 0.0
          %v9302 = vmax.f32 %v9270, 0.0
          %v9303 = vmax.f32 %v9271, 0.0
          %v9304 = vmax.f32 %v9272, 0.0
          %v9305 = vmax.f32 %v9273, 0.0
          %v9306 = vmax.f32 %v9274, 0.0
          %v9307 = vmax.f32 %v9275, 0.0
          %v9308 = vmax.f32 %v9276, 0.0
          %v9309 = vmax.f32 %v9277, 0.0
          %v9310 = vmax.f32 %v9278, 0.0
          %v9311 = vmax.f32 %v9279, 0.0
          %v9312 = vmax.f32 %v9280, 0.0
          %v9313 = vmax.f32 %v9281, 0.0
          %v9314 = vmax.f32 %v9282, 0.0
          %v9315 = vmax.f32 %v9283, 0.0
          %v9316 = vmax.f32 %v9284, 0.0
          %v9317 = vmax.f32 %v9285, 0.0
          %v9318 = vmax.f32 %v9286, 0.0
          %9319 = vst [vmem:[%s202] sm:$0xff] %v9287
          %9320 = vst [vmem:[%s202 + $0x8] sm:$0xff] %v9288
          %9321 = vst [vmem:[%s202 + $0x10] sm:$0xff] %v9289
          %9322 = vst [vmem:[%s202 + $0x18] sm:$0xff] %v9290
          %9323 = vst [vmem:[%s202 + $0x20] sm:$0xff] %v9291
          %9324 = vst [vmem:[%s202 + $0x28] sm:$0xff] %v9292
          %9325 = vst [vmem:[%s202 + $0x30] sm:$0xff] %v9293
          %9326 = vst [vmem:[%s202 + $0x38] sm:$0xff] %v9294
          %9327 = vst [vmem:[%s202 + $0x40] sm:$0xff] %v9295
          %9328 = vst [vmem:[%s202 + $0x48] sm:$0xff] %v9296
          %9329 = vst [vmem:[%s202 + $0x50] sm:$0xff] %v9297
          %9330 = vst [vmem:[%s202 + $0x58] sm:$0xff] %v9298
          %9331 = vst [vmem:[%s202 + $0x60] sm:$0xff] %v9299
          %9332 = vst [vmem:[%s202 + $0x68] sm:$0xff] %v9300
          %9333 = vst [vmem:[%s202 + $0x70] sm:$0xff] %v9301
          %9334 = vst [vmem:[%s202 + $0x78] sm:$0xff] %v9302
          %9335 = vst [vmem:[%s202 + $0x80] sm:$0xff] %v9303
          %9336 = vst [vmem:[%s202 + $0x88] sm:$0xff] %v9304
          %9337 = vst [vmem:[%s202 + $0x90] sm:$0xff] %v9305
          %9338 = vst [vmem:[%s202 + $0x98] sm:$0xff] %v9306
          %9339 = vst [vmem:[%s202 + $0xa0] sm:$0xff] %v9307
          %9340 = vst [vmem:[%s202 + $0xa8] sm:$0xff] %v9308
          %9341 = vst [vmem:[%s202 + $0xb0] sm:$0xff] %v9309
          %9342 = vst [vmem:[%s202 + $0xb8] sm:$0xff] %v9310
          %9343 = vst [vmem:[%s202 + $0xc0] sm:$0xff] %v9311
          %9344 = vst [vmem:[%s202 + $0xc8] sm:$0xff] %v9312
          %9345 = vst [vmem:[%s202 + $0xd0] sm:$0xff] %v9313
          %9346 = vst [vmem:[%s202 + $0xd8] sm:$0xff] %v9314
          %9347 = vst [vmem:[%s202 + $0xe0] sm:$0xff] %v9315
          %9348 = vst [vmem:[%s202 + $0xe8] sm:$0xff] %v9316
          %9349 = vst [vmem:[%s202 + $0xf0] sm:$0xff] %v9317
          %9350 = vst [vmem:[%s202 + $0xf8] sm:$0xff] %v9318
        $region52: #{tpu_custom_call.1} parent=35 // pred_fallthru
          _
        %s9351 = sand.u32 %s127, 1
        %s9352 = scalar_lea.sflag [#allocation5], %s9351
        %s9353 = sand.u32 %s127, 1
        %s9354 = smul.addr %s9353, 256
        %s9355 = scalar_lea.vmem [#allocation4], %s9354
        // Predicated region
        $region53: #{tpu_custom_call.1} parent=35 // pred_check
          %p9356 = pneg %p137
        $region54: #{tpu_custom_call.1} parent=35 // pred_check_branch
          %9358 = sbr.rel (%p9356) target = $region56
        $region55: #{tpu_custom_call.1} parent=35 // pred_region
          %s9360 = ssub.s32 4096, 4096
          %9361 = vsyncadd %s9352, %s9360
          %s9362 = smul.addr %s23, 32
          %s9363 = smul.addr %s9362, 128
          %s9364 = scalar_lea.hbm %s4, %s9363
          %s9365 = sshll.u32 %s9355, 4
          %s9366 = int_to_ptr.vmem [resolvable:$true] %s9365
          %9371 = dma.vmem_to_hbm [thread:$0]  %s9366, 4096, %s9364, %s9352, 128, 128, 8
        $region56: #{tpu_custom_call.1} parent=35 // pred_fallthru
          _
      $region36: #{tpu_custom_call.1} parent=5 // pred_fallthru
        _
      %p9372 = scmp.le.s32.totalorder 2, %s13
      // Predicated region
      $region57: #{tpu_custom_call.1} parent=5 // pred_check
        %p9373 = pneg %p9372
      $region58: #{tpu_custom_call.1} parent=5 // pred_check_branch
        %9375 = sbr.rel (%p9373) target = $region60
      $region59: #{tpu_custom_call.1} parent=5 // pred_region
        %s9376 = ssub.s32 %s13, 2
        // Predicated region
        $region61: #{tpu_custom_call.1} parent=59 // pred_check
          %p9377 = pneg %p143
        $region62: #{tpu_custom_call.1} parent=59 // pred_check_branch
          %9379 = sbr.rel (%p9377) target = $region64
        $region63: #{tpu_custom_call.1} parent=59 // pred_region
          %s9380 = sand.u32 %s128, 1
          %s9381 = scalar_lea.sflag [#allocation5], %s9380
          %s9382 = sand.u32 %s128, 1
          %s9383 = smul.addr %s9382, 256
          %s9384 = scalar_lea.vmem [#allocation4], %s9383
          %9385 = dma.done %s9381, 4096
        $region64: #{tpu_custom_call.1} parent=59 // pred_fallthru
          _
      $region60: #{tpu_custom_call.1} parent=5 // pred_fallthru
        _
    $region6: #{tpu_custom_call.1} parent=1 // loop_footer
      %s17 = sadd.s32 1, %s13
    $region7: #{tpu_custom_call.1} parent=1 // loop_footer_branch
      %12 = sbr.rel target = $region3
    $region8: #{tpu_custom_call.1} parent=1 // loop_exit
      _
    %9386 = vsyncpa [#allocation5], 1
    %s9387 = scalar_lea.sflag [#allocation5], 1
    %9388 = vsyncpa %s9387, 1

</llo_original>
